<compile_context>
chip_gen: v6e
topology: v6e:2x2x1
jax: 0.10.0
libtpu: 0.0.40
codegen_flags: <defaults>
</compile_context>

<pallas_src>
import jax
import jax.numpy as jnp
from jax.experimental import pallas as pl
from jax.experimental.pallas import tpu as pltpu

EPS = 1e-5  # nn.BatchNorm2d default eps


# ------------------------------ Pallas kernels ------------------------------ #

def _store_stats(stat_ref, h):
    """Write per-tile partial [sum, sum-of-squares] (rows 0/1) for global BN."""
    stat_ref[0:1, 0:1, :] = jnp.sum(h, axis=0, keepdims=True)[None]
    stat_ref[0:1, 1:2, :] = jnp.sum(h * h, axis=0, keepdims=True)[None]


def stage1_kernel(x_ref, w1_ref, h1_ref, stat_ref):
    # conv1 (1x1) as a matmul on a (TM, Cin) pixel tile + partial BN1 statistics.
    h = jnp.dot(x_ref[...], w1_ref[...], preferred_element_type=jnp.float32)
    h1_ref[...] = h
    _store_stats(stat_ref, h)


def stage2_kernel(h1_ref, s1_ref, b1_ref, w2_ref, h2_ref, stat_ref):
    # Per image: BN1 (folded scale/bias) + ReLU, then 3x3 grouped conv computed
    # in-kernel (no HBM im2col), plus partial BN2 statistics.
    _, H, W, C = h1_ref.shape
    G, _, cg = w2_ref.shape

    act = jnp.maximum(h1_ref[0] * s1_ref[...] + b1_ref[...], 0.0)       # (H, W, C)

    # Zero-pad the H axis (leading / untiled dim -> cheap concat).
    zrow = jnp.zeros((1, W, C), jnp.float32)
    act_p = jnp.concatenate([zrow, act, zrow], axis=0)                  # (H+2, W, C)

    # W-direction +-1 shifts via circular roll (XLU) + boundary mask.
    col = jax.lax.broadcasted_iota(jnp.int32, (1, W, 1), 1)
    shift_w = [
        jnp.where(col >= 1, pltpu.roll(act_p, shift=1, axis=1), 0.0),        # x-1
        act_p,                                                               # x
        jnp.where(col <= W - 2, pltpu.roll(act_p, shift=W - 1, axis=1), 0.0),  # x+1
    ]
    # Tap (ky, kx) of the 3x3 stencil reads source pixel (y+ky-1, x+kx-1).
    taps = [shift_w[kx][ky:ky + H] for ky in range(3) for kx in range(3)]

    # Grouped conv: one (H*W, 9*cg) x (9*cg, cg) matmul per group.
    group_outs = []
    for g in range(G):
        lo = g * cg
        pg = jnp.concatenate([t[:, :, lo:lo + cg] for t in taps], axis=-1)
        pg = pg.reshape(H * W, 9 * cg)
        group_outs.append(
            jnp.dot(pg, w2_ref[g], preferred_element_type=jnp.float32))
    h2 = jnp.concatenate(group_outs, axis=-1)                            # (H*W, C)

    h2_ref[0] = h2
    _store_stats(stat_ref, h2)


def stage3_kernel(h2_ref, s2_ref, b2_ref, w3_ref, stat_ref):
    # Stats-only pass: BN2+ReLU -> conv3 (1x1); only partial BN3 stats hit HBM
    # (conv3 values are recomputed in stage 4 - cheaper than storing them).
    h2 = jnp.maximum(h2_ref[...] * s2_ref[...] + b2_ref[...], 0.0)
    h3 = jnp.dot(h2, w3_ref[...], preferred_element_type=jnp.float32)
    _store_stats(stat_ref, h3)


def stage4_proj_kernel(h2_ref, x_ref, s2_ref, b2_ref, w3_ref, s3_ref, b3_ref,
                       wsk_ref, o_ref):
    # BN2+ReLU -> conv3 -> BN3 -> + (x @ Wskip) -> ReLU on a (TM, .) pixel tile.
    h2 = jnp.maximum(h2_ref[...] * s2_ref[...] + b2_ref[...], 0.0)
    h3 = jnp.dot(h2, w3_ref[...], preferred_element_type=jnp.float32)
    ident = jnp.dot(x_ref[...], wsk_ref[...], preferred_element_type=jnp.float32)
    o_ref[...] = jnp.maximum(h3 * s3_ref[...] + b3_ref[...] + ident, 0.0)


def stage4_ident_kernel(h2_ref, x_ref, s2_ref, b2_ref, w3_ref, s3_ref, b3_ref,
                        o_ref):
    # Same, but the skip path is a plain residual add (no eye-matrix matmul).
    h2 = jnp.maximum(h2_ref[...] * s2_ref[...] + b2_ref[...], 0.0)
    h3 = jnp.dot(h2, w3_ref[...], preferred_element_type=jnp.float32)
    o_ref[...] = jnp.maximum(h3 * s3_ref[...] + b3_ref[...] + x_ref[...], 0.0)


# ------------------------------ call wrappers ------------------------------- #

_PARALLEL_1D = pltpu.CompilerParams(dimension_semantics=("parallel",))


def _pick_tile(m, target=512):
    """Largest multiple-of-8 divisor of m that is <= target (else m itself)."""
    if m <= target:
        return m
    for tm in range((target // 8) * 8, 7, -8):
        if m % tm == 0:
            return tm
    return m  # fallback: single tile (still correct)


def _resident(shape):
    # Weights / per-channel scale-bias: the same (only) block for every grid step.
    return pl.BlockSpec(shape, lambda i, _s=shape: tuple(0 for _ in _s))


def stage1_call(x2d, w1, tm):
    M, cin = x2d.shape
    ch = w1.shape[1]
    nt = M // tm
    return pl.pallas_call(
        stage1_kernel,
        grid=(nt,),
        in_specs=[pl.BlockSpec((tm, cin), lambda i: (i, 0)),
                  _resident((cin, ch))],
        out_specs=(pl.BlockSpec((tm, ch), lambda i: (i, 0)),
                   pl.BlockSpec((1, 2, ch), lambda i: (i, 0, 0))),
        out_shape=(jax.ShapeDtypeStruct((M, ch), jnp.float32),
                   jax.ShapeDtypeStruct((nt, 2, ch), jnp.float32)),
        compiler_params=_PARALLEL_1D,
    )(x2d, w1)


def stage2_call(h1_img, s1, b1, w2g):
    N, H, W, ch = h1_img.shape
    G, k2, cg = w2g.shape
    return pl.pallas_call(
        stage2_kernel,
        grid=(N,),
        in_specs=[pl.BlockSpec((1, H, W, ch), lambda n: (n, 0, 0, 0)),
                  _resident((1, ch)), _resident((1, ch)),
                  _resident((G, k2, cg))],
        out_specs=(pl.BlockSpec((1, H * W, ch), lambda n: (n, 0, 0)),
                   pl.BlockSpec((1, 2, ch), lambda n: (n, 0, 0))),
        out_shape=(jax.ShapeDtypeStruct((N, H * W, ch), jnp.float32),
                   jax.ShapeDtypeStruct((N, 2, ch), jnp.float32)),
        compiler_params=_PARALLEL_1D,
    )(h1_img, s1, b1, w2g)


def stage3_call(h2_2d, s2, b2, w3, tm):
    M, ch = h2_2d.shape
    cout = w3.shape[1]
    nt = M // tm
    return pl.pallas_call(
        stage3_kernel,
        grid=(nt,),
        in_specs=[pl.BlockSpec((tm, ch), lambda i: (i, 0)),
                  _resident((1, ch)), _resident((1, ch)),
                  _resident((ch, cout))],
        out_specs=pl.BlockSpec((1, 2, cout), lambda i: (i, 0, 0)),
        out_shape=jax.ShapeDtypeStruct((nt, 2, cout), jnp.float32),
        compiler_params=_PARALLEL_1D,
    )(h2_2d, s2, b2, w3)


def stage4_call(h2_2d, x2d, s2, b2, w3, s3, b3, wskip, tm):
    M, ch = h2_2d.shape
    cin = x2d.shape[1]
    cout = w3.shape[1]
    nt = M // tm
    common_in = [pl.BlockSpec((tm, ch), lambda i: (i, 0)),
                 pl.BlockSpec((tm, cin), lambda i: (i, 0)),
                 _resident((1, ch)), _resident((1, ch)),
                 _resident((ch, cout)),
                 _resident((1, cout)), _resident((1, cout))]
    out_spec = pl.BlockSpec((tm, cout), lambda i: (i, 0))
    out_shape = jax.ShapeDtypeStruct((M, cout), jnp.float32)
    if wskip is not None:
        return pl.pallas_call(
            stage4_proj_kernel, grid=(nt,),
            in_specs=common_in + [_resident((cin, cout))],
            out_specs=out_spec, out_shape=out_shape,
            compiler_params=_PARALLEL_1D,
        )(h2_2d, x2d, s2, b2, w3, s3, b3, wskip)
    return pl.pallas_call(
        stage4_ident_kernel, grid=(nt,),
        in_specs=common_in,
        out_specs=out_spec, out_shape=out_shape,
        compiler_params=_PARALLEL_1D,
    )(h2_2d, x2d, s2, b2, w3, s3, b3)


def _fold_bn(partial_stats, count, gamma, beta):
    """Fold global training-mode BN (biased var, like PyTorch) into scale/bias.

    partial_stats: (num_tiles, 2, C) per-tile [sum, sum-of-squares] in f32.
    Note: var = E[x^2] - mean^2; fine at these magnitudes with f32 accumulators.
    """
    s = jnp.sum(partial_stats, axis=0)                      # (2, C)
    mean = s[0] / count
    var = jnp.maximum(s[1] / count - mean * mean, 0.0)
    scale = gamma * jax.lax.rsqrt(var + EPS)
    bias = beta - mean * scale
    return scale.reshape(1, -1), bias.reshape(1, -1)


# ------------------------------ Module wrapper ------------------------------- #

class BottleneckResidualBlockPallas:
    def __init__(self, key, in_channels, hidden_channels, out_channels,
                 groups=4, tile_m=512):
        assert hidden_channels % groups == 0
        self.cin, self.ch, self.cout, self.groups = (
            in_channels, hidden_channels, out_channels, groups)
        self.tile_m = tile_m
        cg = hidden_channels // groups
        self.cg = cg
        ks = jax.random.split(key, 10)

        # PyTorch-shaped conv weights (OIHW), deterministic init.
        self.w1_t = 0.2 * jax.random.normal(ks[0], (hidden_channels, in_channels, 1, 1), jnp.float32)
        self.w2_t = 0.2 * jax.random.normal(ks[1], (hidden_channels, cg, 3, 3), jnp.float32)
        self.w3_t = 0.2 * jax.random.normal(ks[2], (out_channels, hidden_channels, 1, 1), jnp.float32)
        self.proj = in_channels != out_channels
        self.wskip_t = (0.2 * jax.random.normal(ks[3], (out_channels, in_channels, 1, 1), jnp.float32)
                        if self.proj else None)

        # BatchNorm affine params (deterministic, non-trivial).
        self.g1 = 1.0 + 0.1 * jax.random.normal(ks[4], (hidden_channels,), jnp.float32)
        self.b1 = 0.1 * jax.random.normal(ks[5], (hidden_channels,), jnp.float32)
        self.g2 = 1.0 + 0.1 * jax.random.normal(ks[6], (hidden_channels,), jnp.float32)
        self.b2 = 0.1 * jax.random.normal(ks[7], (hidden_channels,), jnp.float32)
        self.g3 = 1.0 + 0.1 * jax.random.normal(ks[8], (out_channels,), jnp.float32)
        self.b3 = 0.1 * jax.random.normal(ks[9], (out_channels,), jnp.float32)

        # Matmul-form weights for the kernels.
        self.w1_mat = jnp.transpose(self.w1_t[:, :, 0, 0])              # (cin, ch)
        self.w3_mat = jnp.transpose(self.w3_t[:, :, 0, 0])              # (ch, cout)
        self.wskip_mat = (jnp.transpose(self.wskip_t[:, :, 0, 0])       # (cin, cout)
                          if self.proj else None)                       # identity: plain add

        # Grouped 3x3 weight as (groups, 9*cg, cg):
        #   w2g[g, (ky*3+kx)*cg + i, j] = w2_t[g*cg + j, i, ky, kx]
        w2 = self.w2_t.reshape(groups, cg, cg, 3, 3)       # (g, o_local, i_local, ky, kx)
        self.w2g = jnp.transpose(w2, (0, 3, 4, 2, 1)).reshape(groups, 9 * cg, cg)

        self._forward = jax.jit(self._forward_impl)

    def _forward_impl(self, x_nchw):
        N, Cin, H, W = x_nchw.shape
        M = N * H * W
        tm = _pick_tile(M, self.tile_m)
        x2d = jnp.transpose(x_nchw, (0, 2, 3, 1)).reshape(M, Cin)       # NCHW->NHWC glue

        # Stage 1: conv1 (1x1) + global BN1 statistics.
        h1_flat, st1 = stage1_call(x2d, self.w1_mat, tm)
        s1, b1 = _fold_bn(st1, M, self.g1, self.b1)

        # Stage 2: BN1+ReLU + in-kernel grouped 3x3 conv + global BN2 statistics.
        h1_img = h1_flat.reshape(N, H, W, self.ch)
        h2_img, st2 = stage2_call(h1_img, s1, b1, self.w2g)
        s2, b2 = _fold_bn(st2, M, self.g2, self.b2)
        h2_flat = h2_img.reshape(M, self.ch)

        # Stage 3: global BN3 statistics of the conv3 output (values recomputed).
        st3 = stage3_call(h2_flat, s2, b2, self.w3_mat, tm)
        s3, b3 = _fold_bn(st3, M, self.g3, self.b3)

        # Stage 4: BN2+ReLU -> conv3 -> BN3 -> +skip -> ReLU.
        out_flat = stage4_call(h2_flat, x2d, s2, b2, self.w3_mat, s3, b3,
                               self.wskip_mat, tm)
        out = out_flat.reshape(N, H, W, self.cout)
        return jnp.transpose(out, (0, 3, 1, 2))                          # NHWC->NCHW

    def __call__(self, x_nchw):
        return self._forward(x_nchw)


# ------------------------------ Pure-JAX reference --------------------------- #

def _bn_train_nchw(x, gamma, beta):
    mean = jnp.mean(x, axis=(0, 2, 3), keepdims=True)
    var = jnp.mean((x - mean) ** 2, axis=(0, 2, 3), keepdims=True)
    return ((x - mean) * jax.lax.rsqrt(var + EPS)
            * gamma.reshape(1, -1, 1, 1) + beta.reshape(1, -1, 1, 1))


def reference_forward(m, x):
    dn = ('NCHW', 'OIHW', 'NCHW')
    hp = jax.lax.Precision.HIGHEST
    conv = lambda a, w, pad, fg: jax.lax.conv_general_dilated(
        a, w, (1, 1), pad, dimension_numbers=dn, feature_group_count=fg, precision=hp)
    identity = x if m.wskip_t is None else conv(x, m.wskip_t, ((0, 0), (0, 0)), 1)
    out = conv(x, m.w1_t, ((0, 0), (0, 0)), 1)
    out = jnp.maximum(_bn_train_nchw(out, m.g1, m.b1), 0.0)
    out = conv(out, m.w2_t, ((1, 1), (1, 1)), m.groups)
    out = jnp.maximum(_bn_train_nchw(out, m.g2, m.b2), 0.0)
    out = conv(out, m.w3_t, ((0, 0), (0, 0)), 1)
    out = _bn_train_nchw(out, m.g3, m.b3)
    return jnp.maximum(out + identity, 0.0)


# ----------------------------------- main ------------------------------------ #

if __name__ == "__main__":
    key = jax.random.PRNGKey(0)
    kx, kp, kx2, kp2 = jax.random.split(key, 4)

    # Config A: projection skip (cin != cout); M = 1024 -> 2 x 512-row tiles.
    N, Cin, H, W = 4, 8, 16, 16
    hidden, Cout, groups = 8, 16, 4
    x = jax.random.normal(kx, (N, Cin, H, W), jnp.float32)
    block = BottleneckResidualBlockPallas(kp, Cin, hidden, Cout, groups=groups)
    out = jax.block_until_ready(block(x))
    assert out.shape == (N, Cout, H, W), out.shape
    ref = jax.block_until_ready(reference_forward(block, x))
    err = float(jnp.max(jnp.abs(out - ref)))
    assert err < 1e-3, f"projection-skip mismatch vs reference: {err}"

    # Config B: identity skip (cin == cout) - exercises the no-matmul skip path.
    x2 = jax.random.normal(kx2, (2, 8, 16, 16), jnp.float32)
    block2 = BottleneckResidualBlockPallas(kp2, 8, 8, 8, groups=4)
    out2 = jax.block_until_ready(block2(x2))
    assert out2.shape == (2, 8, 16, 16), out2.shape
    ref2 = jax.block_until_ready(reference_forward(block2, x2))
    err2 = float(jnp.max(jnp.abs(out2 - ref2)))
    assert err2 < 1e-3, f"identity-skip mismatch vs reference: {err2}"

    print("KERNEL_OK")
</pallas_src>

<mosaic_0001>
module attributes {stable_mosaic.version = 11 : i64} {
  func.func @stage1_kernel(%arg0: i32, %arg1: memref<512x8xf32, #tpu.memory_space<vmem>>, %arg2: memref<8x8xf32, #tpu.memory_space<vmem>>, %arg3: memref<512x8xf32, #tpu.memory_space<vmem>>, %arg4: memref<1x2x8xf32, #tpu.memory_space<vmem>>) attributes {dimension_semantics = [#tpu.dimension_semantics<parallel>], iteration_bounds = array<i64: 2>, scalar_prefetch = 0 : i64, scratch_operands = 0 : i64, tpu.core_type = #tpu.core_type<tc>, window_params = [{transform_indices = @transform_0, window_bounds = array<i64: 512, 8>}, {pipeline_mode = #tpu.pipeline_mode<synchronous>, transform_indices = @transform_1, window_bounds = array<i64: 8, 8>}, {transform_indices = @transform_2, window_bounds = array<i64: 512, 8>}, {transform_indices = @transform_3, window_bounds = array<i64: 1, 2, 8>}]} {
    %c0 = arith.constant 0 : index
    %c0_0 = arith.constant 0 : index
    %0 = vector.load %arg1[%c0, %c0_0] : memref<512x8xf32, #tpu.memory_space<vmem>>, vector<512x8xf32>
    %c0_1 = arith.constant 0 : index
    %c0_2 = arith.constant 0 : index
    %1 = vector.load %arg2[%c0_1, %c0_2] : memref<8x8xf32, #tpu.memory_space<vmem>>, vector<8x8xf32>
    %cst = arith.constant dense<0.000000e+00> : vector<512x8xf32>
    %2 = tpu.matmul %0, %1, %cst {dimension_numbers = #tpu.dot_dimension_numbers<[1], [0], [0], [1], [0, 0, 1, 1], [], []>} : vector<512x8xf32>, vector<8x8xf32>, vector<512x8xf32> -> vector<512x8xf32>
    %c0_3 = arith.constant 0 : index
    %c0_4 = arith.constant 0 : index
    %3 = vector.load %arg3[%c0_3, %c0_4] : memref<512x8xf32, #tpu.memory_space<vmem>>, vector<512x8xf32>
    tpu.vector_store %arg3[%c0_3, %c0_4], %2 {strides = array<i32>} : memref<512x8xf32, #tpu.memory_space<vmem>>, vector<512x8xf32>,
    %cst_5 = arith.constant dense<0.000000e+00> : vector<8xf32>
    %4 = vector.multi_reduction <add>, %2, %cst_5 [0] : vector<512x8xf32> to vector<8xf32>
    %5 = vector.shape_cast %4 : vector<8xf32> to vector<1x8xf32>
    %6 = vector.shape_cast %5 : vector<1x8xf32> to vector<1x1x8xf32>
    %c0_6 = arith.constant 0 : index
    %c0_7 = arith.constant 0 : index
    %c0_8 = arith.constant 0 : index
    %7 = vector.load %arg4[%c0_6, %c0_7, %c0_8] : memref<1x2x8xf32, #tpu.memory_space<vmem>>, vector<1x1x8xf32>
    tpu.vector_store %arg4[%c0_6, %c0_7, %c0_8], %6 {strides = array<i32>} : memref<1x2x8xf32, #tpu.memory_space<vmem>>, vector<1x1x8xf32>,
    %8 = arith.mulf %2, %2 : vector<512x8xf32>
    %cst_9 = arith.constant dense<0.000000e+00> : vector<8xf32>
    %9 = vector.multi_reduction <add>, %8, %cst_9 [0] : vector<512x8xf32> to vector<8xf32>
    %10 = vector.shape_cast %9 : vector<8xf32> to vector<1x8xf32>
    %11 = vector.shape_cast %10 : vector<1x8xf32> to vector<1x1x8xf32>
    %c0_10 = arith.constant 0 : index
    %c1 = arith.constant 1 : index
    %c0_11 = arith.constant 0 : index
    %12 = vector.load %arg4[%c0_10, %c1, %c0_11] : memref<1x2x8xf32, #tpu.memory_space<vmem>>, vector<1x1x8xf32>
    tpu.vector_store %arg4[%c0_10, %c1, %c0_11], %11 {strides = array<i32>} : memref<1x2x8xf32, #tpu.memory_space<vmem>>, vector<1x1x8xf32>,
    return
  }
  func.func @transform_0(%arg0: i32) -> (i32, i32) {
    %c0_i32 = arith.constant 0 : i32
    %c0_i32_0 = arith.constant 0 : i32
    return %arg0, %c0_i32 : i32, i32
  }
  func.func @transform_1(%arg0: i32) -> (i32, i32) {
    %c0_i32 = arith.constant 0 : i32
    %c0_i32_0 = arith.constant 0 : i32
    %c0_i32_1 = arith.constant 0 : i32
    return %c0_i32, %c0_i32_0 : i32, i32
  }
  func.func @transform_2(%arg0: i32) -> (i32, i32) {
    %c0_i32 = arith.constant 0 : i32
    %c0_i32_0 = arith.constant 0 : i32
    return %arg0, %c0_i32 : i32, i32
  }
  func.func @transform_3(%arg0: i32) -> (i32, i32, i32) {
    %c0_i32 = arith.constant 0 : i32
    %c0_i32_0 = arith.constant 0 : i32
    %c0_i32_1 = arith.constant 0 : i32
    return %arg0, %c0_i32, %c0_i32_0 : i32, i32, i32
  }
}

module attributes {stable_mosaic.version = 11 : i64} {
  func.func @stage2_kernel(%arg0: i32, %arg1: memref<1x16x16x8xf32, #tpu.memory_space<vmem>>, %arg2: memref<1x8xf32, #tpu.memory_space<vmem>>, %arg3: memref<1x8xf32, #tpu.memory_space<vmem>>, %arg4: memref<4x18x2xf32, #tpu.memory_space<vmem>>, %arg5: memref<1x256x8xf32, #tpu.memory_space<vmem>>, %arg6: memref<1x2x8xf32, #tpu.memory_space<vmem>>) attributes {dimension_semantics = [#tpu.dimension_semantics<parallel>], iteration_bounds = array<i64: 4>, scalar_prefetch = 0 : i64, scratch_operands = 0 : i64, tpu.core_type = #tpu.core_type<tc>, window_params = [{transform_indices = @transform_0, window_bounds = array<i64: 1, 16, 16, 8>}, {pipeline_mode = #tpu.pipeline_mode<synchronous>, transform_indices = @transform_1, window_bounds = array<i64: 1, 8>}, {pipeline_mode = #tpu.pipeline_mode<synchronous>, transform_indices = @transform_2, window_bounds = array<i64: 1, 8>}, {pipeline_mode = #tpu.pipeline_mode<synchronous>, transform_indices = @transform_3, window_bounds = array<i64: 4, 18, 2>}, {transform_indices = @transform_4, window_bounds = array<i64: 1, 256, 8>}, {transform_indices = @transform_5, window_bounds = array<i64: 1, 2, 8>}]} {
    %c0 = arith.constant 0 : index
    %c0_0 = arith.constant 0 : index
    %c0_1 = arith.constant 0 : index
    %c0_2 = arith.constant 0 : index
    %0 = vector.load %arg1[%c0, %c0_0, %c0_1, %c0_2] : memref<1x16x16x8xf32, #tpu.memory_space<vmem>>, vector<1x16x16x8xf32>
    %1 = vector.shape_cast %0 : vector<1x16x16x8xf32> to vector<16x16x8xf32>
    %c0_3 = arith.constant 0 : index
    %c0_4 = arith.constant 0 : index
    %2 = vector.load %arg2[%c0_3, %c0_4] : memref<1x8xf32, #tpu.memory_space<vmem>>, vector<1x8xf32>
    %3 = vector.shape_cast %2 : vector<1x8xf32> to vector<1x1x8xf32>
    %4 = vector.broadcast %3 : vector<1x1x8xf32> to vector<16x16x8xf32>
    %5 = arith.mulf %1, %4 : vector<16x16x8xf32>
    %c0_5 = arith.constant 0 : index
    %c0_6 = arith.constant 0 : index
    %6 = vector.load %arg3[%c0_5, %c0_6] : memref<1x8xf32, #tpu.memory_space<vmem>>, vector<1x8xf32>
    %7 = vector.shape_cast %6 : vector<1x8xf32> to vector<1x1x8xf32>
    %8 = vector.broadcast %7 : vector<1x1x8xf32> to vector<16x16x8xf32>
    %9 = arith.addf %5, %8 : vector<16x16x8xf32>
    %cst = arith.constant 0.000000e+00 : f32
    %10 = vector.broadcast %cst : f32 to vector<16x16x8xf32>
    %11 = arith.maximumf %9, %10 : vector<16x16x8xf32>
    %cst_7 = arith.constant 0.000000e+00 : f32
    %12 = vector.broadcast %cst_7 : f32 to vector<1x16x8xf32>
    %13 = tpu.concatenate %12, %11, %12 in 0 : vector<1x16x8xf32>, vector<16x16x8xf32>, vector<1x16x8xf32> -> vector<18x16x8xf32>
    %14 = tpu.iota {dimensions = array<i32: 1>} : vector<1x16x1xi32>
    %c1_i32 = arith.constant 1 : i32
    %15 = vector.broadcast %c1_i32 : i32 to vector<1x16x1xi32>
    %16 = arith.cmpi sge, %14, %15 : vector<1x16x1xi32>
    %c1_i32_8 = arith.constant 1 : i32
    %17 = tpu.dynamic_rotate %13 by %c1_i32_8 dim 1 : vector<18x16x8xf32>, i32 -> vector<18x16x8xf32>
    %cst_9 = arith.constant 0.000000e+00 : f32
    %18 = vector.shape_cast %16 : vector<1x16x1xi1> to vector<1x16x1xi1>
    %19 = vector.broadcast %18 : vector<1x16x1xi1> to vector<18x16x8xi1>
    %20 = vector.broadcast %cst_9 : f32 to vector<18x16x8xf32>
    %21 = arith.select %19, %17, %20 : vector<18x16x8xi1>, vector<18x16x8xf32>
    %c14_i32 = arith.constant 14 : i32
    %22 = vector.broadcast %c14_i32 : i32 to vector<1x16x1xi32>
    %23 = arith.cmpi sle, %14, %22 : vector<1x16x1xi32>
    %c15_i32 = arith.constant 15 : i32
    %24 = tpu.dynamic_rotate %13 by %c15_i32 dim 1 : vector<18x16x8xf32>, i32 -> vector<18x16x8xf32>
    %cst_10 = arith.constant 0.000000e+00 : f32
    %25 = vector.shape_cast %23 : vector<1x16x1xi1> to vector<1x16x1xi1>
    %26 = vector.broadcast %25 : vector<1x16x1xi1> to vector<18x16x8xi1>
    %27 = vector.broadcast %cst_10 : f32 to vector<18x16x8xf32>
    %28 = arith.select %26, %24, %27 : vector<18x16x8xi1>, vector<18x16x8xf32>
    %29 = vector.extract_strided_slice %21 {offsets = [0, 0, 0], sizes = [16, 16, 8], strides = [1, 1, 1]} : vector<18x16x8xf32> to vector<16x16x8xf32>
    %30 = vector.extract_strided_slice %13 {offsets = [0, 0, 0], sizes = [16, 16, 8], strides = [1, 1, 1]} : vector<18x16x8xf32> to vector<16x16x8xf32>
    %31 = vector.extract_strided_slice %28 {offsets = [0, 0, 0], sizes = [16, 16, 8], strides = [1, 1, 1]} : vector<18x16x8xf32> to vector<16x16x8xf32>
    %32 = vector.extract_strided_slice %21 {offsets = [1, 0, 0], sizes = [16, 16, 8], strides = [1, 1, 1]} : vector<18x16x8xf32> to vector<16x16x8xf32>
    %33 = vector.extract_strided_slice %13 {offsets = [1, 0, 0], sizes = [16, 16, 8], strides = [1, 1, 1]} : vector<18x16x8xf32> to vector<16x16x8xf32>
    %34 = vector.extract_strided_slice %28 {offsets = [1, 0, 0], sizes = [16, 16, 8], strides = [1, 1, 1]} : vector<18x16x8xf32> to vector<16x16x8xf32>
    %35 = vector.extract_strided_slice %21 {offsets = [2, 0, 0], sizes = [16, 16, 8], strides = [1, 1, 1]} : vector<18x16x8xf32> to vector<16x16x8xf32>
    %36 = vector.extract_strided_slice %13 {offsets = [2, 0, 0], sizes = [16, 16, 8], strides = [1, 1, 1]} : vector<18x16x8xf32> to vector<16x16x8xf32>
    %37 = vector.extract_strided_slice %28 {offsets = [2, 0, 0], sizes = [16, 16, 8], strides = [1, 1, 1]} : vector<18x16x8xf32> to vector<16x16x8xf32>
    %38 = vector.extract_strided_slice %29 {offsets = [0, 0, 0], sizes = [16, 16, 2], strides = [1, 1, 1]} : vector<16x16x8xf32> to vector<16x16x2xf32>
    %39 = vector.extract_strided_slice %30 {offsets = [0, 0, 0], sizes = [16, 16, 2], strides = [1, 1, 1]} : vector<16x16x8xf32> to vector<16x16x2xf32>
    %40 = vector.extract_strided_slice %31 {offsets = [0, 0, 0], sizes = [16, 16, 2], strides = [1, 1, 1]} : vector<16x16x8xf32> to vector<16x16x2xf32>
    %41 = vector.extract_strided_slice %32 {offsets = [0, 0, 0], sizes = [16, 16, 2], strides = [1, 1, 1]} : vector<16x16x8xf32> to vector<16x16x2xf32>
    %42 = vector.extract_strided_slice %33 {offsets = [0, 0, 0], sizes = [16, 16, 2], strides = [1, 1, 1]} : vector<16x16x8xf32> to vector<16x16x2xf32>
    %43 = vector.extract_strided_slice %34 {offsets = [0, 0, 0], sizes = [16, 16, 2], strides = [1, 1, 1]} : vector<16x16x8xf32> to vector<16x16x2xf32>
    %44 = vector.extract_strided_slice %35 {offsets = [0, 0, 0], sizes = [16, 16, 2], strides = [1, 1, 1]} : vector<16x16x8xf32> to vector<16x16x2xf32>
    %45 = vector.extract_strided_slice %36 {offsets = [0, 0, 0], sizes = [16, 16, 2], strides = [1, 1, 1]} : vector<16x16x8xf32> to vector<16x16x2xf32>
    %46 = vector.extract_strided_slice %37 {offsets = [0, 0, 0], sizes = [16, 16, 2], strides = [1, 1, 1]} : vector<16x16x8xf32> to vector<16x16x2xf32>
    %47 = tpu.concatenate %38, %39, %40, %41, %42, %43, %44, %45, %46 in 2 : vector<16x16x2xf32>, vector<16x16x2xf32>, vector<16x16x2xf32>, vector<16x16x2xf32>, vector<16x16x2xf32>, vector<16x16x2xf32>, vector<16x16x2xf32>, vector<16x16x2xf32>, vector<16x16x2xf32> -> vector<16x16x18xf32>
    %48 = vector.shape_cast %47 : vector<16x16x18xf32> to vector<256x18xf32>
    %c0_11 = arith.constant 0 : index
    %c0_12 = arith.constant 0 : index
    %c0_13 = arith.constant 0 : index
    %49 = vector.load %arg4[%c0_11, %c0_12, %c0_13] : memref<4x18x2xf32, #tpu.memory_space<vmem>>, vector<1x18x2xf32>
    %50 = vector.shape_cast %49 : vector<1x18x2xf32> to vector<18x2xf32>
    %cst_14 = arith.constant dense<0.000000e+00> : vector<256x2xf32>
    %51 = tpu.matmul %48, %50, %cst_14 {dimension_numbers = #tpu.dot_dimension_numbers<[1], [0], [0], [1], [0, 0, 1, 1], [], []>} : vector<256x18xf32>, vector<18x2xf32>, vector<256x2xf32> -> vector<256x2xf32>
    %52 = vector.extract_strided_slice %29 {offsets = [0, 0, 2], sizes = [16, 16, 2], strides = [1, 1, 1]} : vector<16x16x8xf32> to vector<16x16x2xf32>
    %53 = vector.extract_strided_slice %30 {offsets = [0, 0, 2], sizes = [16, 16, 2], strides = [1, 1, 1]} : vector<16x16x8xf32> to vector<16x16x2xf32>
    %54 = vector.extract_strided_slice %31 {offsets = [0, 0, 2], sizes = [16, 16, 2], strides = [1, 1, 1]} : vector<16x16x8xf32> to vector<16x16x2xf32>
    %55 = vector.extract_strided_slice %32 {offsets = [0, 0, 2], sizes = [16, 16, 2], strides = [1, 1, 1]} : vector<16x16x8xf32> to vector<16x16x2xf32>
    %56 = vector.extract_strided_slice %33 {offsets = [0, 0, 2], sizes = [16, 16, 2], strides = [1, 1, 1]} : vector<16x16x8xf32> to vector<16x16x2xf32>
    %57 = vector.extract_strided_slice %34 {offsets = [0, 0, 2], sizes = [16, 16, 2], strides = [1, 1, 1]} : vector<16x16x8xf32> to vector<16x16x2xf32>
    %58 = vector.extract_strided_slice %35 {offsets = [0, 0, 2], sizes = [16, 16, 2], strides = [1, 1, 1]} : vector<16x16x8xf32> to vector<16x16x2xf32>
    %59 = vector.extract_strided_slice %36 {offsets = [0, 0, 2], sizes = [16, 16, 2], strides = [1, 1, 1]} : vector<16x16x8xf32> to vector<16x16x2xf32>
    %60 = vector.extract_strided_slice %37 {offsets = [0, 0, 2], sizes = [16, 16, 2], strides = [1, 1, 1]} : vector<16x16x8xf32> to vector<16x16x2xf32>
    %61 = tpu.concatenate %52, %53, %54, %55, %56, %57, %58, %59, %60 in 2 : vector<16x16x2xf32>, vector<16x16x2xf32>, vector<16x16x2xf32>, vector<16x16x2xf32>, vector<16x16x2xf32>, vector<16x16x2xf32>, vector<16x16x2xf32>, vector<16x16x2xf32>, vector<16x16x2xf32> -> vector<16x16x18xf32>
    %62 = vector.shape_cast %61 : vector<16x16x18xf32> to vector<256x18xf32>
    %c1 = arith.constant 1 : index
    %c0_15 = arith.constant 0 : index
    %c0_16 = arith.constant 0 : index
    %63 = vector.load %arg4[%c1, %c0_15, %c0_16] : memref<4x18x2xf32, #tpu.memory_space<vmem>>, vector<1x18x2xf32>
    %64 = vector.shape_cast %63 : vector<1x18x2xf32> to vector<18x2xf32>
    %cst_17 = arith.constant dense<0.000000e+00> : vector<256x2xf32>
    %65 = tpu.matmul %62, %64, %cst_17 {dimension_numbers = #tpu.dot_dimension_numbers<[1], [0], [0], [1], [0, 0, 1, 1], [], []>} : vector<256x18xf32>, vector<18x2xf32>, vector<256x2xf32> -> vector<256x2xf32>
    %66 = vector.extract_strided_slice %29 {offsets = [0, 0, 4], sizes = [16, 16, 2], strides = [1, 1, 1]} : vector<16x16x8xf32> to vector<16x16x2xf32>
    %67 = vector.extract_strided_slice %30 {offsets = [0, 0, 4], sizes = [16, 16, 2], strides = [1, 1, 1]} : vector<16x16x8xf32> to vector<16x16x2xf32>
    %68 = vector.extract_strided_slice %31 {offsets = [0, 0, 4], sizes = [16, 16, 2], strides = [1, 1, 1]} : vector<16x16x8xf32> to vector<16x16x2xf32>
    %69 = vector.extract_strided_slice %32 {offsets = [0, 0, 4], sizes = [16, 16, 2], strides = [1, 1, 1]} : vector<16x16x8xf32> to vector<16x16x2xf32>
    %70 = vector.extract_strided_slice %33 {offsets = [0, 0, 4], sizes = [16, 16, 2], strides = [1, 1, 1]} : vector<16x16x8xf32> to vector<16x16x2xf32>
    %71 = vector.extract_strided_slice %34 {offsets = [0, 0, 4], sizes = [16, 16, 2], strides = [1, 1, 1]} : vector<16x16x8xf32> to vector<16x16x2xf32>
    %72 = vector.extract_strided_slice %35 {offsets = [0, 0, 4], sizes = [16, 16, 2], strides = [1, 1, 1]} : vector<16x16x8xf32> to vector<16x16x2xf32>
    %73 = vector.extract_strided_slice %36 {offsets = [0, 0, 4], sizes = [16, 16, 2], strides = [1, 1, 1]} : vector<16x16x8xf32> to vector<16x16x2xf32>
    %74 = vector.extract_strided_slice %37 {offsets = [0, 0, 4], sizes = [16, 16, 2], strides = [1, 1, 1]} : vector<16x16x8xf32> to vector<16x16x2xf32>
    %75 = tpu.concatenate %66, %67, %68, %69, %70, %71, %72, %73, %74 in 2 : vector<16x16x2xf32>, vector<16x16x2xf32>, vector<16x16x2xf32>, vector<16x16x2xf32>, vector<16x16x2xf32>, vector<16x16x2xf32>, vector<16x16x2xf32>, vector<16x16x2xf32>, vector<16x16x2xf32> -> vector<16x16x18xf32>
    %76 = vector.shape_cast %75 : vector<16x16x18xf32> to vector<256x18xf32>
    %c2 = arith.constant 2 : index
    %c0_18 = arith.constant 0 : index
    %c0_19 = arith.constant 0 : index
    %77 = vector.load %arg4[%c2, %c0_18, %c0_19] : memref<4x18x2xf32, #tpu.memory_space<vmem>>, vector<1x18x2xf32>
    %78 = vector.shape_cast %77 : vector<1x18x2xf32> to vector<18x2xf32>
    %cst_20 = arith.constant dense<0.000000e+00> : vector<256x2xf32>
    %79 = tpu.matmul %76, %78, %cst_20 {dimension_numbers = #tpu.dot_dimension_numbers<[1], [0], [0], [1], [0, 0, 1, 1], [], []>} : vector<256x18xf32>, vector<18x2xf32>, vector<256x2xf32> -> vector<256x2xf32>
    %80 = vector.extract_strided_slice %29 {offsets = [0, 0, 6], sizes = [16, 16, 2], strides = [1, 1, 1]} : vector<16x16x8xf32> to vector<16x16x2xf32>
    %81 = vector.extract_strided_slice %30 {offsets = [0, 0, 6], sizes = [16, 16, 2], strides = [1, 1, 1]} : vector<16x16x8xf32> to vector<16x16x2xf32>
    %82 = vector.extract_strided_slice %31 {offsets = [0, 0, 6], sizes = [16, 16, 2], strides = [1, 1, 1]} : vector<16x16x8xf32> to vector<16x16x2xf32>
    %83 = vector.extract_strided_slice %32 {offsets = [0, 0, 6], sizes = [16, 16, 2], strides = [1, 1, 1]} : vector<16x16x8xf32> to vector<16x16x2xf32>
    %84 = vector.extract_strided_slice %33 {offsets = [0, 0, 6], sizes = [16, 16, 2], strides = [1, 1, 1]} : vector<16x16x8xf32> to vector<16x16x2xf32>
    %85 = vector.extract_strided_slice %34 {offsets = [0, 0, 6], sizes = [16, 16, 2], strides = [1, 1, 1]} : vector<16x16x8xf32> to vector<16x16x2xf32>
    %86 = vector.extract_strided_slice %35 {offsets = [0, 0, 6], sizes = [16, 16, 2], strides = [1, 1, 1]} : vector<16x16x8xf32> to vector<16x16x2xf32>
    %87 = vector.extract_strided_slice %36 {offsets = [0, 0, 6], sizes = [16, 16, 2], strides = [1, 1, 1]} : vector<16x16x8xf32> to vector<16x16x2xf32>
    %88 = vector.extract_strided_slice %37 {offsets = [0, 0, 6], sizes = [16, 16, 2], strides = [1, 1, 1]} : vector<16x16x8xf32> to vector<16x16x2xf32>
    %89 = tpu.concatenate %80, %81, %82, %83, %84, %85, %86, %87, %88 in 2 : vector<16x16x2xf32>, vector<16x16x2xf32>, vector<16x16x2xf32>, vector<16x16x2xf32>, vector<16x16x2xf32>, vector<16x16x2xf32>, vector<16x16x2xf32>, vector<16x16x2xf32>, vector<16x16x2xf32> -> vector<16x16x18xf32>
    %90 = vector.shape_cast %89 : vector<16x16x18xf32> to vector<256x18xf32>
    %c3 = arith.constant 3 : index
    %c0_21 = arith.constant 0 : index
    %c0_22 = arith.constant 0 : index
    %91 = vector.load %arg4[%c3, %c0_21, %c0_22] : memref<4x18x2xf32, #tpu.memory_space<vmem>>, vector<1x18x2xf32>
    %92 = vector.shape_cast %91 : vector<1x18x2xf32> to vector<18x2xf32>
    %cst_23 = arith.constant dense<0.000000e+00> : vector<256x2xf32>
    %93 = tpu.matmul %90, %92, %cst_23 {dimension_numbers = #tpu.dot_dimension_numbers<[1], [0], [0], [1], [0, 0, 1, 1], [], []>} : vector<256x18xf32>, vector<18x2xf32>, vector<256x2xf32> -> vector<256x2xf32>
    %94 = tpu.concatenate %51, %65, %79, %93 in 1 : vector<256x2xf32>, vector<256x2xf32>, vector<256x2xf32>, vector<256x2xf32> -> vector<256x8xf32>
    %c0_24 = arith.constant 0 : index
    %c0_25 = arith.constant 0 : index
    %c0_26 = arith.constant 0 : index
    %95 = vector.load %arg5[%c0_24, %c0_25, %c0_26] : memref<1x256x8xf32, #tpu.memory_space<vmem>>, vector<1x256x8xf32>
    %96 = vector.shape_cast %95 : vector<1x256x8xf32> to vector<256x8xf32>
    %97 = vector.shape_cast %94 : vector<256x8xf32> to vector<1x256x8xf32>
    tpu.vector_store %arg5[%c0_24, %c0_25, %c0_26], %97 {strides = array<i32>} : memref<1x256x8xf32, #tpu.memory_space<vmem>>, vector<1x256x8xf32>,
    %cst_27 = arith.constant dense<0.000000e+00> : vector<8xf32>
    %98 = vector.multi_reduction <add>, %94, %cst_27 [0] : vector<256x8xf32> to vector<8xf32>
    %99 = vector.shape_cast %98 : vector<8xf32> to vector<1x8xf32>
    %100 = vector.shape_cast %99 : vector<1x8xf32> to vector<1x1x8xf32>
    %c0_28 = arith.constant 0 : index
    %c0_29 = arith.constant 0 : index
    %c0_30 = arith.constant 0 : index
    %101 = vector.load %arg6[%c0_28, %c0_29, %c0_30] : memref<1x2x8xf32, #tpu.memory_space<vmem>>, vector<1x1x8xf32>
    tpu.vector_store %arg6[%c0_28, %c0_29, %c0_30], %100 {strides = array<i32>} : memref<1x2x8xf32, #tpu.memory_space<vmem>>, vector<1x1x8xf32>,
    %102 = arith.mulf %94, %94 : vector<256x8xf32>
    %cst_31 = arith.constant dense<0.000000e+00> : vector<8xf32>
    %103 = vector.multi_reduction <add>, %102, %cst_31 [0] : vector<256x8xf32> to vector<8xf32>
    %104 = vector.shape_cast %103 : vector<8xf32> to vector<1x8xf32>
    %105 = vector.shape_cast %104 : vector<1x8xf32> to vector<1x1x8xf32>
    %c0_32 = arith.constant 0 : index
    %c1_33 = arith.constant 1 : index
    %c0_34 = arith.constant 0 : index
    %106 = vector.load %arg6[%c0_32, %c1_33, %c0_34] : memref<1x2x8xf32, #tpu.memory_space<vmem>>, vector<1x1x8xf32>
    tpu.vector_store %arg6[%c0_32, %c1_33, %c0_34], %105 {strides = array<i32>} : memref<1x2x8xf32, #tpu.memory_space<vmem>>, vector<1x1x8xf32>,
    return
  }
  func.func @transform_0(%arg0: i32) -> (i32, i32, i32, i32) {
    %c0_i32 = arith.constant 0 : i32
    %c0_i32_0 = arith.constant 0 : i32
    %c0_i32_1 = arith.constant 0 : i32
    %c0_i32_2 = arith.constant 0 : i32
    return %arg0, %c0_i32, %c0_i32_0, %c0_i32_1 : i32, i32, i32, i32
  }
  func.func @transform_1(%arg0: i32) -> (i32, i32) {
    %c0_i32 = arith.constant 0 : i32
    %c0_i32_0 = arith.constant 0 : i32
    %c0_i32_1 = arith.constant 0 : i32
    return %c0_i32, %c0_i32_0 : i32, i32
  }
  func.func @transform_2(%arg0: i32) -> (i32, i32) {
    %c0_i32 = arith.constant 0 : i32
    %c0_i32_0 = arith.constant 0 : i32
    %c0_i32_1 = arith.constant 0 : i32
    return %c0_i32, %c0_i32_0 : i32, i32
  }
  func.func @transform_3(%arg0: i32) -> (i32, i32, i32) {
    %c0_i32 = arith.constant 0 : i32
    %c0_i32_0 = arith.constant 0 : i32
    %c0_i32_1 = arith.constant 0 : i32
    %c0_i32_2 = arith.constant 0 : i32
    return %c0_i32, %c0_i32_0, %c0_i32_1 : i32, i32, i32
  }
  func.func @transform_4(%arg0: i32) -> (i32, i32, i32) {
    %c0_i32 = arith.constant 0 : i32
    %c0_i32_0 = arith.constant 0 : i32
    %c0_i32_1 = arith.constant 0 : i32
    return %arg0, %c0_i32, %c0_i32_0 : i32, i32, i32
  }
  func.func @transform_5(%arg0: i32) -> (i32, i32, i32) {
    %c0_i32 = arith.constant 0 : i32
    %c0_i32_0 = arith.constant 0 : i32
    %c0_i32_1 = arith.constant 0 : i32
    return %arg0, %c0_i32, %c0_i32_0 : i32, i32, i32
  }
}

module attributes {stable_mosaic.version = 11 : i64} {
  func.func @stage3_kernel(%arg0: i32, %arg1: memref<512x8xf32, #tpu.memory_space<vmem>>, %arg2: memref<1x8xf32, #tpu.memory_space<vmem>>, %arg3: memref<1x8xf32, #tpu.memory_space<vmem>>, %arg4: memref<8x16xf32, #tpu.memory_space<vmem>>, %arg5: memref<1x2x16xf32, #tpu.memory_space<vmem>>) attributes {dimension_semantics = [#tpu.dimension_semantics<parallel>], iteration_bounds = array<i64: 2>, scalar_prefetch = 0 : i64, scratch_operands = 0 : i64, tpu.core_type = #tpu.core_type<tc>, window_params = [{transform_indices = @transform_0, window_bounds = array<i64: 512, 8>}, {pipeline_mode = #tpu.pipeline_mode<synchronous>, transform_indices = @transform_1, window_bounds = array<i64: 1, 8>}, {pipeline_mode = #tpu.pipeline_mode<synchronous>, transform_indices = @transform_2, window_bounds = array<i64: 1, 8>}, {pipeline_mode = #tpu.pipeline_mode<synchronous>, transform_indices = @transform_3, window_bounds = array<i64: 8, 16>}, {transform_indices = @transform_4, window_bounds = array<i64: 1, 2, 16>}]} {
    %c0 = arith.constant 0 : index
    %c0_0 = arith.constant 0 : index
    %0 = vector.load %arg1[%c0, %c0_0] : memref<512x8xf32, #tpu.memory_space<vmem>>, vector<512x8xf32>
    %c0_1 = arith.constant 0 : index
    %c0_2 = arith.constant 0 : index
    %1 = vector.load %arg2[%c0_1, %c0_2] : memref<1x8xf32, #tpu.memory_space<vmem>>, vector<1x8xf32>
    %2 = vector.broadcast %1 : vector<1x8xf32> to vector<512x8xf32>
    %3 = arith.mulf %0, %2 : vector<512x8xf32>
    %c0_3 = arith.constant 0 : index
    %c0_4 = arith.constant 0 : index
    %4 = vector.load %arg3[%c0_3, %c0_4] : memref<1x8xf32, #tpu.memory_space<vmem>>, vector<1x8xf32>
    %5 = vector.broadcast %4 : vector<1x8xf32> to vector<512x8xf32>
    %6 = arith.addf %3, %5 : vector<512x8xf32>
    %cst = arith.constant 0.000000e+00 : f32
    %7 = vector.broadcast %cst : f32 to vector<512x8xf32>
    %8 = arith.maximumf %6, %7 : vector<512x8xf32>
    %c0_5 = arith.constant 0 : index
    %c0_6 = arith.constant 0 : index
    %9 = vector.load %arg4[%c0_5, %c0_6] : memref<8x16xf32, #tpu.memory_space<vmem>>, vector<8x16xf32>
    %cst_7 = arith.constant dense<0.000000e+00> : vector<512x16xf32>
    %10 = tpu.matmul %8, %9, %cst_7 {dimension_numbers = #tpu.dot_dimension_numbers<[1], [0], [0], [1], [0, 0, 1, 1], [], []>} : vector<512x8xf32>, vector<8x16xf32>, vector<512x16xf32> -> vector<512x16xf32>
    %cst_8 = arith.constant dense<0.000000e+00> : vector<16xf32>
    %11 = vector.multi_reduction <add>, %10, %cst_8 [0] : vector<512x16xf32> to vector<16xf32>
    %12 = vector.shape_cast %11 : vector<16xf32> to vector<1x16xf32>
    %13 = vector.shape_cast %12 : vector<1x16xf32> to vector<1x1x16xf32>
    %c0_9 = arith.constant 0 : index
    %c0_10 = arith.constant 0 : index
    %c0_11 = arith.constant 0 : index
    %14 = vector.load %arg5[%c0_9, %c0_10, %c0_11] : memref<1x2x16xf32, #tpu.memory_space<vmem>>, vector<1x1x16xf32>
    tpu.vector_store %arg5[%c0_9, %c0_10, %c0_11], %13 {strides = array<i32>} : memref<1x2x16xf32, #tpu.memory_space<vmem>>, vector<1x1x16xf32>,
    %15 = arith.mulf %10, %10 : vector<512x16xf32>
    %cst_12 = arith.constant dense<0.000000e+00> : vector<16xf32>
    %16 = vector.multi_reduction <add>, %15, %cst_12 [0] : vector<512x16xf32> to vector<16xf32>
    %17 = vector.shape_cast %16 : vector<16xf32> to vector<1x16xf32>
    %18 = vector.shape_cast %17 : vector<1x16xf32> to vector<1x1x16xf32>
    %c0_13 = arith.constant 0 : index
    %c1 = arith.constant 1 : index
    %c0_14 = arith.constant 0 : index
    %19 = vector.load %arg5[%c0_13, %c1, %c0_14] : memref<1x2x16xf32, #tpu.memory_space<vmem>>, vector<1x1x16xf32>
    tpu.vector_store %arg5[%c0_13, %c1, %c0_14], %18 {strides = array<i32>} : memref<1x2x16xf32, #tpu.memory_space<vmem>>, vector<1x1x16xf32>,
    return
  }
  func.func @transform_0(%arg0: i32) -> (i32, i32) {
    %c0_i32 = arith.constant 0 : i32
    %c0_i32_0 = arith.constant 0 : i32
    return %arg0, %c0_i32 : i32, i32
  }
  func.func @transform_1(%arg0: i32) -> (i32, i32) {
    %c0_i32 = arith.constant 0 : i32
    %c0_i32_0 = arith.constant 0 : i32
    %c0_i32_1 = arith.constant 0 : i32
    return %c0_i32, %c0_i32_0 : i32, i32
  }
  func.func @transform_2(%arg0: i32) -> (i32, i32) {
    %c0_i32 = arith.constant 0 : i32
    %c0_i32_0 = arith.constant 0 : i32
    %c0_i32_1 = arith.constant 0 : i32
    return %c0_i32, %c0_i32_0 : i32, i32
  }
  func.func @transform_3(%arg0: i32) -> (i32, i32) {
    %c0_i32 = arith.constant 0 : i32
    %c0_i32_0 = arith.constant 0 : i32
    %c0_i32_1 = arith.constant 0 : i32
    return %c0_i32, %c0_i32_0 : i32, i32
  }
  func.func @transform_4(%arg0: i32) -> (i32, i32, i32) {
    %c0_i32 = arith.constant 0 : i32
    %c0_i32_0 = arith.constant 0 : i32
    %c0_i32_1 = arith.constant 0 : i32
    return %arg0, %c0_i32, %c0_i32_0 : i32, i32, i32
  }
}

module attributes {stable_mosaic.version = 11 : i64} {
  func.func @stage4_proj_kernel(%arg0: i32, %arg1: memref<512x8xf32, #tpu.memory_space<vmem>>, %arg2: memref<512x8xf32, #tpu.memory_space<vmem>>, %arg3: memref<1x8xf32, #tpu.memory_space<vmem>>, %arg4: memref<1x8xf32, #tpu.memory_space<vmem>>, %arg5: memref<8x16xf32, #tpu.memory_space<vmem>>, %arg6: memref<1x16xf32, #tpu.memory_space<vmem>>, %arg7: memref<1x16xf32, #tpu.memory_space<vmem>>, %arg8: memref<8x16xf32, #tpu.memory_space<vmem>>, %arg9: memref<512x16xf32, #tpu.memory_space<vmem>>) attributes {dimension_semantics = [#tpu.dimension_semantics<parallel>], iteration_bounds = array<i64: 2>, scalar_prefetch = 0 : i64, scratch_operands = 0 : i64, tpu.core_type = #tpu.core_type<tc>, window_params = [{transform_indices = @transform_0, window_bounds = array<i64: 512, 8>}, {transform_indices = @transform_1, window_bounds = array<i64: 512, 8>}, {pipeline_mode = #tpu.pipeline_mode<synchronous>, transform_indices = @transform_2, window_bounds = array<i64: 1, 8>}, {pipeline_mode = #tpu.pipeline_mode<synchronous>, transform_indices = @transform_3, window_bounds = array<i64: 1, 8>}, {pipeline_mode = #tpu.pipeline_mode<synchronous>, transform_indices = @transform_4, window_bounds = array<i64: 8, 16>}, {pipeline_mode = #tpu.pipeline_mode<synchronous>, transform_indices = @transform_5, window_bounds = array<i64: 1, 16>}, {pipeline_mode = #tpu.pipeline_mode<synchronous>, transform_indices = @transform_6, window_bounds = array<i64: 1, 16>}, {pipeline_mode = #tpu.pipeline_mode<synchronous>, transform_indices = @transform_7, window_bounds = array<i64: 8, 16>}, {transform_indices = @transform_8, window_bounds = array<i64: 512, 16>}]} {
    %c0 = arith.constant 0 : index
    %c0_0 = arith.constant 0 : index
    %0 = vector.load %arg1[%c0, %c0_0] : memref<512x8xf32, #tpu.memory_space<vmem>>, vector<512x8xf32>
    %c0_1 = arith.constant 0 : index
    %c0_2 = arith.constant 0 : index
    %1 = vector.load %arg3[%c0_1, %c0_2] : memref<1x8xf32, #tpu.memory_space<vmem>>, vector<1x8xf32>
    %2 = vector.broadcast %1 : vector<1x8xf32> to vector<512x8xf32>
    %3 = arith.mulf %0, %2 : vector<512x8xf32>
    %c0_3 = arith.constant 0 : index
    %c0_4 = arith.constant 0 : index
    %4 = vector.load %arg4[%c0_3, %c0_4] : memref<1x8xf32, #tpu.memory_space<vmem>>, vector<1x8xf32>
    %5 = vector.broadcast %4 : vector<1x8xf32> to vector<512x8xf32>
    %6 = arith.addf %3, %5 : vector<512x8xf32>
    %cst = arith.constant 0.000000e+00 : f32
    %7 = vector.broadcast %cst : f32 to vector<512x8xf32>
    %8 = arith.maximumf %6, %7 : vector<512x8xf32>
    %c0_5 = arith.constant 0 : index
    %c0_6 = arith.constant 0 : index
    %9 = vector.load %arg5[%c0_5, %c0_6] : memref<8x16xf32, #tpu.memory_space<vmem>>, vector<8x16xf32>
    %cst_7 = arith.constant dense<0.000000e+00> : vector<512x16xf32>
    %10 = tpu.matmul %8, %9, %cst_7 {dimension_numbers = #tpu.dot_dimension_numbers<[1], [0], [0], [1], [0, 0, 1, 1], [], []>} : vector<512x8xf32>, vector<8x16xf32>, vector<512x16xf32> -> vector<512x16xf32>
    %c0_8 = arith.constant 0 : index
    %c0_9 = arith.constant 0 : index
    %11 = vector.load %arg2[%c0_8, %c0_9] : memref<512x8xf32, #tpu.memory_space<vmem>>, vector<512x8xf32>
    %c0_10 = arith.constant 0 : index
    %c0_11 = arith.constant 0 : index
    %12 = vector.load %arg8[%c0_10, %c0_11] : memref<8x16xf32, #tpu.memory_space<vmem>>, vector<8x16xf32>
    %cst_12 = arith.constant dense<0.000000e+00> : vector<512x16xf32>
    %13 = tpu.matmul %11, %12, %cst_12 {dimension_numbers = #tpu.dot_dimension_numbers<[1], [0], [0], [1], [0, 0, 1, 1], [], []>} : vector<512x8xf32>, vector<8x16xf32>, vector<512x16xf32> -> vector<512x16xf32>
    %c0_13 = arith.constant 0 : index
    %c0_14 = arith.constant 0 : index
    %14 = vector.load %arg6[%c0_13, %c0_14] : memref<1x16xf32, #tpu.memory_space<vmem>>, vector<1x16xf32>
    %15 = vector.broadcast %14 : vector<1x16xf32> to vector<512x16xf32>
    %16 = arith.mulf %10, %15 : vector<512x16xf32>
    %c0_15 = arith.constant 0 : index
    %c0_16 = arith.constant 0 : index
    %17 = vector.load %arg7[%c0_15, %c0_16] : memref<1x16xf32, #tpu.memory_space<vmem>>, vector<1x16xf32>
    %18 = vector.broadcast %17 : vector<1x16xf32> to vector<512x16xf32>
    %19 = arith.addf %16, %18 : vector<512x16xf32>
    %20 = arith.addf %19, %13 : vector<512x16xf32>
    %cst_17 = arith.constant 0.000000e+00 : f32
    %21 = vector.broadcast %cst_17 : f32 to vector<512x16xf32>
    %22 = arith.maximumf %20, %21 : vector<512x16xf32>
    %c0_18 = arith.constant 0 : index
    %c0_19 = arith.constant 0 : index
    %23 = vector.load %arg9[%c0_18, %c0_19] : memref<512x16xf32, #tpu.memory_space<vmem>>, vector<512x16xf32>
    tpu.vector_store %arg9[%c0_18, %c0_19], %22 {strides = array<i32>} : memref<512x16xf32, #tpu.memory_space<vmem>>, vector<512x16xf32>,
    return
  }
  func.func @transform_0(%arg0: i32) -> (i32, i32) {
    %c0_i32 = arith.constant 0 : i32
    %c0_i32_0 = arith.constant 0 : i32
    return %arg0, %c0_i32 : i32, i32
  }
  func.func @transform_1(%arg0: i32) -> (i32, i32) {
    %c0_i32 = arith.constant 0 : i32
    %c0_i32_0 = arith.constant 0 : i32
    return %arg0, %c0_i32 : i32, i32
  }
  func.func @transform_2(%arg0: i32) -> (i32, i32) {
    %c0_i32 = arith.constant 0 : i32
    %c0_i32_0 = arith.constant 0 : i32
    %c0_i32_1 = arith.constant 0 : i32
    return %c0_i32, %c0_i32_0 : i32, i32
  }
  func.func @transform_3(%arg0: i32) -> (i32, i32) {
    %c0_i32 = arith.constant 0 : i32
    %c0_i32_0 = arith.constant 0 : i32
    %c0_i32_1 = arith.constant 0 : i32
    return %c0_i32, %c0_i32_0 : i32, i32
  }
  func.func @transform_4(%arg0: i32) -> (i32, i32) {
    %c0_i32 = arith.constant 0 : i32
    %c0_i32_0 = arith.constant 0 : i32
    %c0_i32_1 = arith.constant 0 : i32
    return %c0_i32, %c0_i32_0 : i32, i32
  }
  func.func @transform_5(%arg0: i32) -> (i32, i32) {
    %c0_i32 = arith.constant 0 : i32
    %c0_i32_0 = arith.constant 0 : i32
    %c0_i32_1 = arith.constant 0 : i32
    return %c0_i32, %c0_i32_0 : i32, i32
  }
  func.func @transform_6(%arg0: i32) -> (i32, i32) {
    %c0_i32 = arith.constant 0 : i32
    %c0_i32_0 = arith.constant 0 : i32
    %c0_i32_1 = arith.constant 0 : i32
    return %c0_i32, %c0_i32_0 : i32, i32
  }
  func.func @transform_7(%arg0: i32) -> (i32, i32) {
    %c0_i32 = arith.constant 0 : i32
    %c0_i32_0 = arith.constant 0 : i32
    %c0_i32_1 = arith.constant 0 : i32
    return %c0_i32, %c0_i32_0 : i32, i32
  }
  func.func @transform_8(%arg0: i32) -> (i32, i32) {
    %c0_i32 = arith.constant 0 : i32
    %c0_i32_0 = arith.constant 0 : i32
    return %arg0, %c0_i32 : i32, i32
  }
}

</mosaic_0001>

<llo_original>
// kernel: _forward_impl.4
$region0: #{_forward_impl.4}
  #allocation0 [shape = 'u32[]', space=smem, size = 0x4, offset = 0x4, fixed_abs, tag = 'smem constant byte address 0x4 - core index']
  #allocation1 [shape = 'u32[144,128]{1,0:T(1,128)}', space=vmem, size = 0x12000, scoped, tag = 'internal scratch']
  %s0 = inlined_call_operand.vmem [shape: f32[1024,8], index: 0, kind: input, shape index: {}]
  %s1 = inlined_call_operand.vmem [shape: f32[8,8], index: 1, kind: input, shape index: {}]
  %s2 = inlined_call_operand.vmem [shape: f32[1024,8], index: 2, kind: output, shape index: {0}]
  %s3 = inlined_call_operand.vmem [shape: f32[2,2,8], index: 3, kind: output, shape index: {1}]
  %4 = xla_tuple %s2, %s3
  %s5 = sld [smem:[#allocation0]]
  $region49: #{_forward_impl.4} parent=0
    _
  %s7 = ssub.s32 1, %s5
  %s8 = scalar_select 0, %s7, %s5
  loop: start=0, step=1, limit=4
  $region2: #{_forward_impl.4} parent=0 // loop_pre_header
    _
  $region3: #{_forward_impl.4} parent=0 // loop_header
    %s10 = sphi 0, %s14
    %p11 = scmp.ge.s32.totalorder %s10, 4
    %s20 = sphi 0, %s22
    %s23 = sphi 0, %s20
    %s24 = sphi 0, %s23
    %s40 = sphi 0, %s24
    %s44 = sphi 0, %s44
    %s46 = sphi 0, %s44
    %s47 = sphi 0, %s46
    %s61 = sphi 0, %s47
    %s67 = sphi 0, %s69
    %s70 = sphi 0, %s67
    %s71 = sphi 0, %s70
    %s87 = sphi 0, %s71
    %s93 = sphi 0, %s95
    %s96 = sphi 0, %s93
    %s97 = sphi 0, %s96
    %s113 = sphi 0, %s97
  $region4: #{_forward_impl.4} parent=0 // loop_header_branch
    %13 = sbr.rel (%p11) target = $region8
  $region5: #{_forward_impl.4} parent=0 // loop_body
    %s15 = ssub.s32 %s10, 1
    %s16 = ssub.s32 %s10, 2
    %s17 = sadd.s32 %s10, 1
    %s18 = ssub.s32 %s10, %s17
    %p19 = scmp.eq.s32.totalorder %s18, 0
    %s21 = sadd.s32 %s20, 1
    %s22 = scalar_select %p19, %s20, %s21
    %p25 = pneg %p19
    %p26 = scmp.eq.s32.totalorder %s10, 1
    %p27 = por %p25, %p26
    %p28 = scmp.ne.s32.totalorder %s20, %s23
    %p29 = scmp.eq.s32.totalorder %s10, 0
    %p30 = por %p28, %p29
    %p31 = scmp.ne.s32.totalorder %s20, %s23
    %p32 = scmp.eq.s32.totalorder %s15, 1
    %p33 = por %p31, %p32
    %p34 = scmp.ne.s32.totalorder %s23, %s24
    %p35 = scmp.eq.s32.totalorder %s15, 0
    %p36 = por %p34, %p35
    %p37 = scmp.ne.s32.totalorder %s23, %s24
    %p38 = scmp.eq.s32.totalorder %s16, 1
    %p39 = por %p37, %p38
    %p41 = scmp.ne.s32.totalorder %s24, %s40
    %p42 = scmp.eq.s32.totalorder %s16, 0
    %p43 = por %p41, %p42
    %s45 = sadd.s32 %s44, 1
    %p48 = scmp.eq.s32.totalorder %s10, 1
    %p49 = scmp.ne.s32.totalorder %s44, %s46
    %p50 = scmp.eq.s32.totalorder %s10, 0
    %p51 = por %p49, %p50
    %p52 = scmp.ne.s32.totalorder %s44, %s46
    %p53 = scmp.eq.s32.totalorder %s15, 1
    %p54 = por %p52, %p53
    %p55 = scmp.ne.s32.totalorder %s46, %s47
    %p56 = scmp.eq.s32.totalorder %s15, 0
    %p57 = por %p55, %p56
    %p58 = scmp.ne.s32.totalorder %s46, %s47
    %p59 = scmp.eq.s32.totalorder %s16, 1
    %p60 = por %p58, %p59
    %p62 = scmp.ne.s32.totalorder %s47, %s61
    %p63 = scmp.eq.s32.totalorder %s16, 0
    %p64 = por %p62, %p63
    %s65 = ssub.s32 %s10, %s17
    %p66 = scmp.eq.s32.totalorder %s65, 0
    %s68 = sadd.s32 %s67, 1
    %s69 = scalar_select %p66, %s67, %s68
    %p72 = pneg %p66
    %p73 = scmp.eq.s32.totalorder %s10, 1
    %p74 = por %p72, %p73
    %p75 = scmp.ne.s32.totalorder %s67, %s70
    %p76 = scmp.eq.s32.totalorder %s10, 0
    %p77 = por %p75, %p76
    %p78 = scmp.ne.s32.totalorder %s67, %s70
    %p79 = scmp.eq.s32.totalorder %s15, 1
    %p80 = por %p78, %p79
    %p81 = scmp.ne.s32.totalorder %s70, %s71
    %p82 = scmp.eq.s32.totalorder %s15, 0
    %p83 = por %p81, %p82
    %p84 = scmp.ne.s32.totalorder %s70, %s71
    %p85 = scmp.eq.s32.totalorder %s16, 1
    %p86 = por %p84, %p85
    %p88 = scmp.ne.s32.totalorder %s71, %s87
    %p89 = scmp.eq.s32.totalorder %s16, 0
    %p90 = por %p88, %p89
    %s91 = ssub.s32 %s10, %s17
    %p92 = scmp.eq.s32.totalorder %s91, 0
    %s94 = sadd.s32 %s93, 1
    %s95 = scalar_select %p92, %s93, %s94
    %p98 = pneg %p92
    %p99 = scmp.eq.s32.totalorder %s10, 1
    %p100 = por %p98, %p99
    %p101 = scmp.ne.s32.totalorder %s93, %s96
    %p102 = scmp.eq.s32.totalorder %s10, 0
    %p103 = por %p101, %p102
    %p104 = scmp.ne.s32.totalorder %s93, %s96
    %p105 = scmp.eq.s32.totalorder %s15, 1
    %p106 = por %p104, %p105
    %p107 = scmp.ne.s32.totalorder %s96, %s97
    %p108 = scmp.eq.s32.totalorder %s15, 0
    %p109 = por %p107, %p108
    %p110 = scmp.ne.s32.totalorder %s96, %s97
    %p111 = scmp.eq.s32.totalorder %s16, 1
    %p112 = por %p110, %p111
    %p114 = scmp.ne.s32.totalorder %s97, %s113
    %p115 = scmp.eq.s32.totalorder %s16, 0
    %p116 = por %p114, %p115
    %p117 = scmp.le.s32.totalorder 1, %s10
    %p118 = scmp.lt.s32.totalorder %s10, 3
    %p119 = pnand %p117, %p118
    %p120 = pneg %p119
    // Predicated region
    $region9: #{_forward_impl.4} parent=5 // pred_check
      _
    $region10: #{_forward_impl.4} parent=5 // pred_check_branch
      %122 = sbr.rel (%p119) target = $region12
    $region11: #{_forward_impl.4} parent=5 // pred_region
      %s123 = ssub.s32 %s10, 1
      // Predicated region
      $region13: #{_forward_impl.4} parent=11 // pred_check
        %p124 = pneg %p57
      $region14: #{_forward_impl.4} parent=11 // pred_check_branch
        %126 = sbr.rel (%p124) target = $region16
      $region15: #{_forward_impl.4} parent=11 // pred_region
        _
      $region16: #{_forward_impl.4} parent=11 // pred_fallthru
        _
    $region12: #{_forward_impl.4} parent=5 // pred_fallthru
      _
    %p127 = scmp.lt.s32.totalorder %s10, 2
    // Predicated region
    $region17: #{_forward_impl.4} parent=5 // pred_check
      %p128 = pneg %p127
    $region18: #{_forward_impl.4} parent=5 // pred_check_branch
      %130 = sbr.rel (%p128) target = $region20
    $region19: #{_forward_impl.4} parent=5 // pred_region
      // Predicated region
      $region21: #{_forward_impl.4} parent=19 // pred_check
        %p131 = pneg %p30
      $region22: #{_forward_impl.4} parent=19 // pred_check_branch
        %133 = sbr.rel (%p131) target = $region24
      $region23: #{_forward_impl.4} parent=19 // pred_region
        %s134 = smul.u32 64, %s10
        %p135 = scmp.lt.s32.totalorder %s134, 127
        %s136 = scalar_select %p135, %s134, 127
        %s137 = smul.addr %s136, 8
        %s138 = scalar_lea.vmem %s0, %s137
        %s139 = smul.u32 64, %s10
      $region24: #{_forward_impl.4} parent=19 // pred_fallthru
        _
    $region20: #{_forward_impl.4} parent=5 // pred_fallthru
      _
    %p140 = scmp.le.s32.totalorder 1, %s10
    %p141 = scmp.lt.s32.totalorder %s10, 3
    %p142 = pnand %p140, %p141
    %p143 = pneg %p142
    // Predicated region
    $region25: #{_forward_impl.4} parent=5 // pred_check
      _
    $region26: #{_forward_impl.4} parent=5 // pred_check_branch
      %145 = sbr.rel (%p142) target = $region28
    $region27: #{_forward_impl.4} parent=5 // pred_region
      %s146 = ssub.s32 %s10, 1
      %s147 = smul.u32 64, %s15
      %p148 = scmp.lt.s32.totalorder %s147, 127
      %s149 = scalar_select %p148, %s147, 127
      %s150 = smul.addr %s149, 8
      %s151 = scalar_lea.vmem %s0, %s150
      %p152 = pneg %p36
      %p153 = pneg %p33
      %p154 = pneg %p57
      %p155 = pneg %p54
      %p156 = pneg %p83
      %p157 = pneg %p80
      %s158 = smul.u32 64, %s15
      %p159 = scmp.lt.s32.totalorder %s158, 127
      %s160 = scalar_select %p159, %s158, 127
      %s161 = smul.addr %s160, 8
      %s162 = scalar_lea.vmem %s2, %s161
      %p163 = pneg %p109
      %p164 = pneg %p106
      %p165 = scmp.lt.s32.totalorder %s15, 1
      %s166 = scalar_select %p165, %s15, 1
      %s167 = smul.addr %s166, 2
      %s168 = scalar_lea.vmem %s3, %s167
      %s169 = smul.u32 64, %s15
      %p170 = scmp.lt.s32.totalorder %s169, 127
      %s171 = scalar_select %p170, %s169, 127
      %s172 = smul.addr %s171, 8
      %s173 = scalar_lea.vmem %s0, %s172
      %s174 = smul.u32 64, %s15
      %s175 = smul.u32 64, %s15
      %p176 = scmp.lt.s32.totalorder %s175, 127
      %s177 = scalar_select %p176, %s175, 127
      %s178 = smul.addr %s177, 8
      %s179 = scalar_lea.vmem %s2, %s178
      %s180 = smul.u32 64, %s15
      %p181 = scmp.lt.s32.totalorder %s15, 1
      %s182 = scalar_select %p181, %s15, 1
      %s183 = smul.addr %s182, 2
      %s184 = scalar_lea.vmem %s3, %s183
      %v185 = vld [vmem:[%s173] sm:$0xff]
      %v186 = vld [vmem:[%s173 + $0x8] sm:$0xff]
      %v187 = vld [vmem:[%s173 + $0x10] sm:$0xff]
      %v188 = vld [vmem:[%s173 + $0x18] sm:$0xff]
      %v189 = vld [vmem:[%s173 + $0x20] sm:$0xff]
      %v190 = vld [vmem:[%s173 + $0x28] sm:$0xff]
      %v191 = vld [vmem:[%s173 + $0x30] sm:$0xff]
      %v192 = vld [vmem:[%s173 + $0x38] sm:$0xff]
      %v193 = vld [vmem:[%s173 + $0x40] sm:$0xff]
      %v194 = vld [vmem:[%s173 + $0x48] sm:$0xff]
      %v195 = vld [vmem:[%s173 + $0x50] sm:$0xff]
      %v196 = vld [vmem:[%s173 + $0x58] sm:$0xff]
      %v197 = vld [vmem:[%s173 + $0x60] sm:$0xff]
      %v198 = vld [vmem:[%s173 + $0x68] sm:$0xff]
      %v199 = vld [vmem:[%s173 + $0x70] sm:$0xff]
      %v200 = vld [vmem:[%s173 + $0x78] sm:$0xff]
      %v201 = vld [vmem:[%s173 + $0x80] sm:$0xff]
      %v202 = vld [vmem:[%s173 + $0x88] sm:$0xff]
      %v203 = vld [vmem:[%s173 + $0x90] sm:$0xff]
      %v204 = vld [vmem:[%s173 + $0x98] sm:$0xff]
      %v205 = vld [vmem:[%s173 + $0xa0] sm:$0xff]
      %v206 = vld [vmem:[%s173 + $0xa8] sm:$0xff]
      %v207 = vld [vmem:[%s173 + $0xb0] sm:$0xff]
      %v208 = vld [vmem:[%s173 + $0xb8] sm:$0xff]
      %v209 = vld [vmem:[%s173 + $0xc0] sm:$0xff]
      %v210 = vld [vmem:[%s173 + $0xc8] sm:$0xff]
      %v211 = vld [vmem:[%s173 + $0xd0] sm:$0xff]
      %v212 = vld [vmem:[%s173 + $0xd8] sm:$0xff]
      %v213 = vld [vmem:[%s173 + $0xe0] sm:$0xff]
      %v214 = vld [vmem:[%s173 + $0xe8] sm:$0xff]
      %v215 = vld [vmem:[%s173 + $0xf0] sm:$0xff]
      %v216 = vld [vmem:[%s173 + $0xf8] sm:$0xff]
      %v217 = vld [vmem:[%s173 + $0x100] sm:$0xff]
      %v218 = vld [vmem:[%s173 + $0x108] sm:$0xff]
      %v219 = vld [vmem:[%s173 + $0x110] sm:$0xff]
      %v220 = vld [vmem:[%s173 + $0x118] sm:$0xff]
      %v221 = vld [vmem:[%s173 + $0x120] sm:$0xff]
      %v222 = vld [vmem:[%s173 + $0x128] sm:$0xff]
      %v223 = vld [vmem:[%s173 + $0x130] sm:$0xff]
      %v224 = vld [vmem:[%s173 + $0x138] sm:$0xff]
      %v225 = vld [vmem:[%s173 + $0x140] sm:$0xff]
      %v226 = vld [vmem:[%s173 + $0x148] sm:$0xff]
      %v227 = vld [vmem:[%s173 + $0x150] sm:$0xff]
      %v228 = vld [vmem:[%s173 + $0x158] sm:$0xff]
      %v229 = vld [vmem:[%s173 + $0x160] sm:$0xff]
      %v230 = vld [vmem:[%s173 + $0x168] sm:$0xff]
      %v231 = vld [vmem:[%s173 + $0x170] sm:$0xff]
      %v232 = vld [vmem:[%s173 + $0x178] sm:$0xff]
      %v233 = vld [vmem:[%s173 + $0x180] sm:$0xff]
      %v234 = vld [vmem:[%s173 + $0x188] sm:$0xff]
      %v235 = vld [vmem:[%s173 + $0x190] sm:$0xff]
      %v236 = vld [vmem:[%s173 + $0x198] sm:$0xff]
      %v237 = vld [vmem:[%s173 + $0x1a0] sm:$0xff]
      %v238 = vld [vmem:[%s173 + $0x1a8] sm:$0xff]
      %v239 = vld [vmem:[%s173 + $0x1b0] sm:$0xff]
      %v240 = vld [vmem:[%s173 + $0x1b8] sm:$0xff]
      %v241 = vld [vmem:[%s173 + $0x1c0] sm:$0xff]
      %v242 = vld [vmem:[%s173 + $0x1c8] sm:$0xff]
      %v243 = vld [vmem:[%s173 + $0x1d0] sm:$0xff]
      %v244 = vld [vmem:[%s173 + $0x1d8] sm:$0xff]
      %v245 = vld [vmem:[%s173 + $0x1e0] sm:$0xff]
      %v246 = vld [vmem:[%s173 + $0x1e8] sm:$0xff]
      %v247 = vld [vmem:[%s173 + $0x1f0] sm:$0xff]
      %v248 = vld [vmem:[%s173 + $0x1f8] sm:$0xff]
      %v249 = vld [vmem:[%s1] sm:$0xff]
      %vm250 = vcmask 64512
      %v252 = vsel %vm250, %v185, 0
      %v255 = vsel %vm250, %v186, 0
      %v258 = vsel %vm250, %v187, 0
      %v261 = vsel %vm250, %v188, 0
      %v264 = vsel %vm250, %v189, 0
      %v267 = vsel %vm250, %v190, 0
      %v270 = vsel %vm250, %v191, 0
      %v273 = vsel %vm250, %v192, 0
      %v276 = vsel %vm250, %v193, 0
      %v279 = vsel %vm250, %v194, 0
      %v282 = vsel %vm250, %v195, 0
      %v285 = vsel %vm250, %v196, 0
      %v288 = vsel %vm250, %v197, 0
      %v291 = vsel %vm250, %v198, 0
      %v294 = vsel %vm250, %v199, 0
      %v297 = vsel %vm250, %v200, 0
      %v300 = vsel %vm250, %v201, 0
      %v303 = vsel %vm250, %v202, 0
      %v306 = vsel %vm250, %v203, 0
      %v309 = vsel %vm250, %v204, 0
      %v312 = vsel %vm250, %v205, 0
      %v315 = vsel %vm250, %v206, 0
      %v318 = vsel %vm250, %v207, 0
      %v321 = vsel %vm250, %v208, 0
      %v324 = vsel %vm250, %v209, 0
      %v327 = vsel %vm250, %v210, 0
      %v330 = vsel %vm250, %v211, 0
      %v333 = vsel %vm250, %v212, 0
      %v336 = vsel %vm250, %v213, 0
      %v339 = vsel %vm250, %v214, 0
      %v342 = vsel %vm250, %v215, 0
      %v345 = vsel %vm250, %v216, 0
      %v348 = vsel %vm250, %v217, 0
      %v351 = vsel %vm250, %v218, 0
      %v354 = vsel %vm250, %v219, 0
      %v357 = vsel %vm250, %v220, 0
      %v360 = vsel %vm250, %v221, 0
      %v363 = vsel %vm250, %v222, 0
      %v366 = vsel %vm250, %v223, 0
      %v369 = vsel %vm250, %v224, 0
      %v372 = vsel %vm250, %v225, 0
      %v375 = vsel %vm250, %v226, 0
      %v378 = vsel %vm250, %v227, 0
      %v381 = vsel %vm250, %v228, 0
      %v384 = vsel %vm250, %v229, 0
      %v387 = vsel %vm250, %v230, 0
      %v390 = vsel %vm250, %v231, 0
      %v393 = vsel %vm250, %v232, 0
      %v396 = vsel %vm250, %v233, 0
      %v399 = vsel %vm250, %v234, 0
      %v402 = vsel %vm250, %v235, 0
      %v405 = vsel %vm250, %v236, 0
      %v408 = vsel %vm250, %v237, 0
      %v411 = vsel %vm250, %v238, 0
      %v414 = vsel %vm250, %v239, 0
      %v417 = vsel %vm250, %v240, 0
      %v420 = vsel %vm250, %v241, 0
      %v423 = vsel %vm250, %v242, 0
      %v426 = vsel %vm250, %v243, 0
      %v429 = vsel %vm250, %v244, 0
      %v432 = vsel %vm250, %v245, 0
      %v435 = vsel %vm250, %v246, 0
      %v438 = vsel %vm250, %v247, 0
      %v441 = vsel %vm250, %v248, 0
      %443 = vmatprep.subr.mxu0 0.0
      %444 = vmatpush1.msra.mxu0 0.0
      %445 = vmatprep.subr.mxu0 0.0
      %446 = vmatpush1.msra.mxu0 0.0
      %447 = vmatprep.subr.mxu0 0.0
      %448 = vmatpush1.msra.mxu0 0.0
      %449 = vmatprep.subr.mxu0 0.0
      %450 = vmatpush1.msra.mxu0 0.0
      %451 = vmatprep.subr.mxu0 0.0
      %452 = vmatpush1.msra.mxu0 0.0
      %453 = vmatprep.subr.mxu0 0.0
      %454 = vmatpush1.msra.mxu0 0.0
      %455 = vmatprep.subr.mxu0 0.0
      %456 = vmatpush1.msra.mxu0 0.0
      %457 = vmatprep.subr.mxu0 0.0
      %458 = vmatpush1.msra.mxu0 0.0
      %459 = vmatprep.subr.mxu0 0.0
      %460 = vmatpush1.msra.mxu0 0.0
      %461 = vmatprep.subr.mxu0 0.0
      %462 = vmatpush1.msra.mxu0 0.0
      %463 = vmatprep.subr.mxu0 0.0
      %464 = vmatpush1.msra.mxu0 0.0
      %465 = vmatprep.subr.mxu0 0.0
      %466 = vmatpush1.msra.mxu0 0.0
      %467 = vmatprep.subr.mxu0 0.0
      %468 = vmatpush1.msra.mxu0 0.0
      %469 = vmatprep.subr.mxu0 0.0
      %470 = vmatpush1.msra.mxu0 0.0
      %471 = vmatprep.subr.mxu0 0.0
      %472 = vmatpush1.msra.mxu0 0.0
      %473 = vmatprep.subr.mxu0 0.0
      %474 = vmatpush1.msra.mxu0 %v249
      %475 = vmatprep.subr.mxu0 0.0
      %476 = vmatpush2.msra.mxu0 0.0
      %477 = vmatprep.subr.mxu0 0.0
      %478 = vmatpush2.msra.mxu0 0.0
      %479 = vmatprep.subr.mxu0 0.0
      %480 = vmatpush2.msra.mxu0 0.0
      %481 = vmatprep.subr.mxu0 0.0
      %482 = vmatpush2.msra.mxu0 0.0
      %483 = vmatprep.subr.mxu0 0.0
      %484 = vmatpush2.msra.mxu0 0.0
      %485 = vmatprep.subr.mxu0 0.0
      %486 = vmatpush2.msra.mxu0 0.0
      %487 = vmatprep.subr.mxu0 0.0
      %488 = vmatpush2.msra.mxu0 0.0
      %489 = vmatprep.subr.mxu0 0.0
      %490 = vmatpush2.msra.mxu0 0.0
      %491 = vmatprep.subr.mxu0 0.0
      %492 = vmatpush2.msra.mxu0 0.0
      %493 = vmatprep.subr.mxu0 0.0
      %494 = vmatpush2.msra.mxu0 0.0
      %495 = vmatprep.subr.mxu0 0.0
      %496 = vmatpush2.msra.mxu0 0.0
      %497 = vmatprep.subr.mxu0 0.0
      %498 = vmatpush2.msra.mxu0 0.0
      %499 = vmatprep.subr.mxu0 0.0
      %500 = vmatpush2.msra.mxu0 0.0
      %501 = vmatprep.subr.mxu0 0.0
      %502 = vmatpush2.msra.mxu0 0.0
      %503 = vmatprep.subr.mxu0 0.0
      %504 = vmatpush2.msra.mxu0 0.0
      %505 = vmatprep.subr.mxu0 0.0
      %506 = vmatpush2.msra.mxu0 0.0
      %507 = vmatprep.mubr.f32.mxu0 0.0
      %508 = vmatmul.mubr.f32.gmra.mxu0 %v252
      %v509 = vpop.f32.mrf.mxu0
      %v510 = vadd.f32 0.0, %v509
      %v511 = vpop.f32.mrf.mxu0
      %512 = vmatprep.mubr.f32.mxu0 0.0
      %513 = vmatmul.mubr.f32.gmra.mxu0 %v255
      %v514 = vpop.f32.mrf.mxu0
      %v515 = vadd.f32 0.0, %v514
      %v516 = vpop.f32.mrf.mxu0
      %517 = vmatprep.mubr.f32.mxu0 0.0
      %518 = vmatmul.mubr.f32.gmra.mxu0 %v258
      %v519 = vpop.f32.mrf.mxu0
      %v520 = vadd.f32 0.0, %v519
      %v521 = vpop.f32.mrf.mxu0
      %522 = vmatprep.mubr.f32.mxu0 0.0
      %523 = vmatmul.mubr.f32.gmra.mxu0 %v261
      %v524 = vpop.f32.mrf.mxu0
      %v525 = vadd.f32 0.0, %v524
      %v526 = vpop.f32.mrf.mxu0
      %527 = vmatprep.mubr.f32.mxu0 0.0
      %528 = vmatmul.mubr.f32.gmra.mxu0 %v264
      %v529 = vpop.f32.mrf.mxu0
      %v530 = vadd.f32 0.0, %v529
      %v531 = vpop.f32.mrf.mxu0
      %532 = vmatprep.mubr.f32.mxu0 0.0
      %533 = vmatmul.mubr.f32.gmra.mxu0 %v267
      %v534 = vpop.f32.mrf.mxu0
      %v535 = vadd.f32 0.0, %v534
      %v536 = vpop.f32.mrf.mxu0
      %537 = vmatprep.mubr.f32.mxu0 0.0
      %538 = vmatmul.mubr.f32.gmra.mxu0 %v270
      %v539 = vpop.f32.mrf.mxu0
      %v540 = vadd.f32 0.0, %v539
      %v541 = vpop.f32.mrf.mxu0
      %542 = vmatprep.mubr.f32.mxu0 0.0
      %543 = vmatmul.mubr.f32.gmra.mxu0 %v273
      %v544 = vpop.f32.mrf.mxu0
      %v545 = vadd.f32 0.0, %v544
      %v546 = vpop.f32.mrf.mxu0
      %547 = vmatprep.mubr.f32.mxu0 0.0
      %548 = vmatmul.mubr.f32.gmra.mxu0 %v276
      %v549 = vpop.f32.mrf.mxu0
      %v550 = vadd.f32 0.0, %v549
      %v551 = vpop.f32.mrf.mxu0
      %552 = vmatprep.mubr.f32.mxu0 0.0
      %553 = vmatmul.mubr.f32.gmra.mxu0 %v279
      %v554 = vpop.f32.mrf.mxu0
      %v555 = vadd.f32 0.0, %v554
      %v556 = vpop.f32.mrf.mxu0
      %557 = vmatprep.mubr.f32.mxu0 0.0
      %558 = vmatmul.mubr.f32.gmra.mxu0 %v282
      %v559 = vpop.f32.mrf.mxu0
      %v560 = vadd.f32 0.0, %v559
      %v561 = vpop.f32.mrf.mxu0
      %562 = vmatprep.mubr.f32.mxu0 0.0
      %563 = vmatmul.mubr.f32.gmra.mxu0 %v285
      %v564 = vpop.f32.mrf.mxu0
      %v565 = vadd.f32 0.0, %v564
      %v566 = vpop.f32.mrf.mxu0
      %567 = vmatprep.mubr.f32.mxu0 0.0
      %568 = vmatmul.mubr.f32.gmra.mxu0 %v288
      %v569 = vpop.f32.mrf.mxu0
      %v570 = vadd.f32 0.0, %v569
      %v571 = vpop.f32.mrf.mxu0
      %572 = vmatprep.mubr.f32.mxu0 0.0
      %573 = vmatmul.mubr.f32.gmra.mxu0 %v291
      %v574 = vpop.f32.mrf.mxu0
      %v575 = vadd.f32 0.0, %v574
      %v576 = vpop.f32.mrf.mxu0
      %577 = vmatprep.mubr.f32.mxu0 0.0
      %578 = vmatmul.mubr.f32.gmra.mxu0 %v294
      %v579 = vpop.f32.mrf.mxu0
      %v580 = vadd.f32 0.0, %v579
      %v581 = vpop.f32.mrf.mxu0
      %582 = vmatprep.mubr.f32.mxu0 0.0
      %583 = vmatmul.mubr.f32.gmra.mxu0 %v297
      %v584 = vpop.f32.mrf.mxu0
      %v585 = vadd.f32 0.0, %v584
      %v586 = vpop.f32.mrf.mxu0
      %587 = vmatprep.mubr.f32.mxu0 0.0
      %588 = vmatmul.mubr.f32.gmra.mxu0 %v300
      %v589 = vpop.f32.mrf.mxu0
      %v590 = vadd.f32 0.0, %v589
      %v591 = vpop.f32.mrf.mxu0
      %592 = vmatprep.mubr.f32.mxu0 0.0
      %593 = vmatmul.mubr.f32.gmra.mxu0 %v303
      %v594 = vpop.f32.mrf.mxu0
      %v595 = vadd.f32 0.0, %v594
      %v596 = vpop.f32.mrf.mxu0
      %597 = vmatprep.mubr.f32.mxu0 0.0
      %598 = vmatmul.mubr.f32.gmra.mxu0 %v306
      %v599 = vpop.f32.mrf.mxu0
      %v600 = vadd.f32 0.0, %v599
      %v601 = vpop.f32.mrf.mxu0
      %602 = vmatprep.mubr.f32.mxu0 0.0
      %603 = vmatmul.mubr.f32.gmra.mxu0 %v309
      %v604 = vpop.f32.mrf.mxu0
      %v605 = vadd.f32 0.0, %v604
      %v606 = vpop.f32.mrf.mxu0
      %607 = vmatprep.mubr.f32.mxu0 0.0
      %608 = vmatmul.mubr.f32.gmra.mxu0 %v312
      %v609 = vpop.f32.mrf.mxu0
      %v610 = vadd.f32 0.0, %v609
      %v611 = vpop.f32.mrf.mxu0
      %612 = vmatprep.mubr.f32.mxu0 0.0
      %613 = vmatmul.mubr.f32.gmra.mxu0 %v315
      %v614 = vpop.f32.mrf.mxu0
      %v615 = vadd.f32 0.0, %v614
      %v616 = vpop.f32.mrf.mxu0
      %617 = vmatprep.mubr.f32.mxu0 0.0
      %618 = vmatmul.mubr.f32.gmra.mxu0 %v318
      %v619 = vpop.f32.mrf.mxu0
      %v620 = vadd.f32 0.0, %v619
      %v621 = vpop.f32.mrf.mxu0
      %622 = vmatprep.mubr.f32.mxu0 0.0
      %623 = vmatmul.mubr.f32.gmra.mxu0 %v321
      %v624 = vpop.f32.mrf.mxu0
      %v625 = vadd.f32 0.0, %v624
      %v626 = vpop.f32.mrf.mxu0
      %627 = vmatprep.mubr.f32.mxu0 0.0
      %628 = vmatmul.mubr.f32.gmra.mxu0 %v324
      %v629 = vpop.f32.mrf.mxu0
      %v630 = vadd.f32 0.0, %v629
      %v631 = vpop.f32.mrf.mxu0
      %632 = vmatprep.mubr.f32.mxu0 0.0
      %633 = vmatmul.mubr.f32.gmra.mxu0 %v327
      %v634 = vpop.f32.mrf.mxu0
      %v635 = vadd.f32 0.0, %v634
      %v636 = vpop.f32.mrf.mxu0
      %637 = vmatprep.mubr.f32.mxu0 0.0
      %638 = vmatmul.mubr.f32.gmra.mxu0 %v330
      %v639 = vpop.f32.mrf.mxu0
      %v640 = vadd.f32 0.0, %v639
      %v641 = vpop.f32.mrf.mxu0
      %642 = vmatprep.mubr.f32.mxu0 0.0
      %643 = vmatmul.mubr.f32.gmra.mxu0 %v333
      %v644 = vpop.f32.mrf.mxu0
      %v645 = vadd.f32 0.0, %v644
      %v646 = vpop.f32.mrf.mxu0
      %647 = vmatprep.mubr.f32.mxu0 0.0
      %648 = vmatmul.mubr.f32.gmra.mxu0 %v336
      %v649 = vpop.f32.mrf.mxu0
      %v650 = vadd.f32 0.0, %v649
      %v651 = vpop.f32.mrf.mxu0
      %652 = vmatprep.mubr.f32.mxu0 0.0
      %653 = vmatmul.mubr.f32.gmra.mxu0 %v339
      %v654 = vpop.f32.mrf.mxu0
      %v655 = vadd.f32 0.0, %v654
      %v656 = vpop.f32.mrf.mxu0
      %657 = vmatprep.mubr.f32.mxu0 0.0
      %658 = vmatmul.mubr.f32.gmra.mxu0 %v342
      %v659 = vpop.f32.mrf.mxu0
      %v660 = vadd.f32 0.0, %v659
      %v661 = vpop.f32.mrf.mxu0
      %662 = vmatprep.mubr.f32.mxu0 0.0
      %663 = vmatmul.mubr.f32.gmra.mxu0 %v345
      %v664 = vpop.f32.mrf.mxu0
      %v665 = vadd.f32 0.0, %v664
      %v666 = vpop.f32.mrf.mxu0
      %667 = vmatprep.mubr.f32.mxu0 0.0
      %668 = vmatmul.mubr.f32.gmra.mxu0 %v348
      %v669 = vpop.f32.mrf.mxu0
      %v670 = vadd.f32 0.0, %v669
      %v671 = vpop.f32.mrf.mxu0
      %672 = vmatprep.mubr.f32.mxu0 0.0
      %673 = vmatmul.mubr.f32.gmra.mxu0 %v351
      %v674 = vpop.f32.mrf.mxu0
      %v675 = vadd.f32 0.0, %v674
      %v676 = vpop.f32.mrf.mxu0
      %677 = vmatprep.mubr.f32.mxu0 0.0
      %678 = vmatmul.mubr.f32.gmra.mxu0 %v354
      %v679 = vpop.f32.mrf.mxu0
      %v680 = vadd.f32 0.0, %v679
      %v681 = vpop.f32.mrf.mxu0
      %682 = vmatprep.mubr.f32.mxu0 0.0
      %683 = vmatmul.mubr.f32.gmra.mxu0 %v357
      %v684 = vpop.f32.mrf.mxu0
      %v685 = vadd.f32 0.0, %v684
      %v686 = vpop.f32.mrf.mxu0
      %687 = vmatprep.mubr.f32.mxu0 0.0
      %688 = vmatmul.mubr.f32.gmra.mxu0 %v360
      %v689 = vpop.f32.mrf.mxu0
      %v690 = vadd.f32 0.0, %v689
      %v691 = vpop.f32.mrf.mxu0
      %692 = vmatprep.mubr.f32.mxu0 0.0
      %693 = vmatmul.mubr.f32.gmra.mxu0 %v363
      %v694 = vpop.f32.mrf.mxu0
      %v695 = vadd.f32 0.0, %v694
      %v696 = vpop.f32.mrf.mxu0
      %697 = vmatprep.mubr.f32.mxu0 0.0
      %698 = vmatmul.mubr.f32.gmra.mxu0 %v366
      %v699 = vpop.f32.mrf.mxu0
      %v700 = vadd.f32 0.0, %v699
      %v701 = vpop.f32.mrf.mxu0
      %702 = vmatprep.mubr.f32.mxu0 0.0
      %703 = vmatmul.mubr.f32.gmra.mxu0 %v369
      %v704 = vpop.f32.mrf.mxu0
      %v705 = vadd.f32 0.0, %v704
      %v706 = vpop.f32.mrf.mxu0
      %707 = vmatprep.mubr.f32.mxu0 0.0
      %708 = vmatmul.mubr.f32.gmra.mxu0 %v372
      %v709 = vpop.f32.mrf.mxu0
      %v710 = vadd.f32 0.0, %v709
      %v711 = vpop.f32.mrf.mxu0
      %712 = vmatprep.mubr.f32.mxu0 0.0
      %713 = vmatmul.mubr.f32.gmra.mxu0 %v375
      %v714 = vpop.f32.mrf.mxu0
      %v715 = vadd.f32 0.0, %v714
      %v716 = vpop.f32.mrf.mxu0
      %717 = vmatprep.mubr.f32.mxu0 0.0
      %718 = vmatmul.mubr.f32.gmra.mxu0 %v378
      %v719 = vpop.f32.mrf.mxu0
      %v720 = vadd.f32 0.0, %v719
      %v721 = vpop.f32.mrf.mxu0
      %722 = vmatprep.mubr.f32.mxu0 0.0
      %723 = vmatmul.mubr.f32.gmra.mxu0 %v381
      %v724 = vpop.f32.mrf.mxu0
      %v725 = vadd.f32 0.0, %v724
      %v726 = vpop.f32.mrf.mxu0
      %727 = vmatprep.mubr.f32.mxu0 0.0
      %728 = vmatmul.mubr.f32.gmra.mxu0 %v384
      %v729 = vpop.f32.mrf.mxu0
      %v730 = vadd.f32 0.0, %v729
      %v731 = vpop.f32.mrf.mxu0
      %732 = vmatprep.mubr.f32.mxu0 0.0
      %733 = vmatmul.mubr.f32.gmra.mxu0 %v387
      %v734 = vpop.f32.mrf.mxu0
      %v735 = vadd.f32 0.0, %v734
      %v736 = vpop.f32.mrf.mxu0
      %737 = vmatprep.mubr.f32.mxu0 0.0
      %738 = vmatmul.mubr.f32.gmra.mxu0 %v390
      %v739 = vpop.f32.mrf.mxu0
      %v740 = vadd.f32 0.0, %v739
      %v741 = vpop.f32.mrf.mxu0
      %742 = vmatprep.mubr.f32.mxu0 0.0
      %743 = vmatmul.mubr.f32.gmra.mxu0 %v393
      %v744 = vpop.f32.mrf.mxu0
      %v745 = vadd.f32 0.0, %v744
      %v746 = vpop.f32.mrf.mxu0
      %747 = vmatprep.mubr.f32.mxu0 0.0
      %748 = vmatmul.mubr.f32.gmra.mxu0 %v396
      %v749 = vpop.f32.mrf.mxu0
      %v750 = vadd.f32 0.0, %v749
      %v751 = vpop.f32.mrf.mxu0
      %752 = vmatprep.mubr.f32.mxu0 0.0
      %753 = vmatmul.mubr.f32.gmra.mxu0 %v399
      %v754 = vpop.f32.mrf.mxu0
      %v755 = vadd.f32 0.0, %v754
      %v756 = vpop.f32.mrf.mxu0
      %757 = vmatprep.mubr.f32.mxu0 0.0
      %758 = vmatmul.mubr.f32.gmra.mxu0 %v402
      %v759 = vpop.f32.mrf.mxu0
      %v760 = vadd.f32 0.0, %v759
      %v761 = vpop.f32.mrf.mxu0
      %762 = vmatprep.mubr.f32.mxu0 0.0
      %763 = vmatmul.mubr.f32.gmra.mxu0 %v405
      %v764 = vpop.f32.mrf.mxu0
      %v765 = vadd.f32 0.0, %v764
      %v766 = vpop.f32.mrf.mxu0
      %767 = vmatprep.mubr.f32.mxu0 0.0
      %768 = vmatmul.mubr.f32.gmra.mxu0 %v408
      %v769 = vpop.f32.mrf.mxu0
      %v770 = vadd.f32 0.0, %v769
      %v771 = vpop.f32.mrf.mxu0
      %772 = vmatprep.mubr.f32.mxu0 0.0
      %773 = vmatmul.mubr.f32.gmra.mxu0 %v411
      %v774 = vpop.f32.mrf.mxu0
      %v775 = vadd.f32 0.0, %v774
      %v776 = vpop.f32.mrf.mxu0
      %777 = vmatprep.mubr.f32.mxu0 0.0
      %778 = vmatmul.mubr.f32.gmra.mxu0 %v414
      %v779 = vpop.f32.mrf.mxu0
      %v780 = vadd.f32 0.0, %v779
      %v781 = vpop.f32.mrf.mxu0
      %782 = vmatprep.mubr.f32.mxu0 0.0
      %783 = vmatmul.mubr.f32.gmra.mxu0 %v417
      %v784 = vpop.f32.mrf.mxu0
      %v785 = vadd.f32 0.0, %v784
      %v786 = vpop.f32.mrf.mxu0
      %787 = vmatprep.mubr.f32.mxu0 0.0
      %788 = vmatmul.mubr.f32.gmra.mxu0 %v420
      %v789 = vpop.f32.mrf.mxu0
      %v790 = vadd.f32 0.0, %v789
      %v791 = vpop.f32.mrf.mxu0
      %792 = vmatprep.mubr.f32.mxu0 0.0
      %793 = vmatmul.mubr.f32.gmra.mxu0 %v423
      %v794 = vpop.f32.mrf.mxu0
      %v795 = vadd.f32 0.0, %v794
      %v796 = vpop.f32.mrf.mxu0
      %797 = vmatprep.mubr.f32.mxu0 0.0
      %798 = vmatmul.mubr.f32.gmra.mxu0 %v426
      %v799 = vpop.f32.mrf.mxu0
      %v800 = vadd.f32 0.0, %v799
      %v801 = vpop.f32.mrf.mxu0
      %802 = vmatprep.mubr.f32.mxu0 0.0
      %803 = vmatmul.mubr.f32.gmra.mxu0 %v429
      %v804 = vpop.f32.mrf.mxu0
      %v805 = vadd.f32 0.0, %v804
      %v806 = vpop.f32.mrf.mxu0
      %807 = vmatprep.mubr.f32.mxu0 0.0
      %808 = vmatmul.mubr.f32.gmra.mxu0 %v432
      %v809 = vpop.f32.mrf.mxu0
      %v810 = vadd.f32 0.0, %v809
      %v811 = vpop.f32.mrf.mxu0
      %812 = vmatprep.mubr.f32.mxu0 0.0
      %813 = vmatmul.mubr.f32.gmra.mxu0 %v435
      %v814 = vpop.f32.mrf.mxu0
      %v815 = vadd.f32 0.0, %v814
      %v816 = vpop.f32.mrf.mxu0
      %817 = vmatprep.mubr.f32.mxu0 0.0
      %818 = vmatmul.mubr.f32.gmra.mxu0 %v438
      %v819 = vpop.f32.mrf.mxu0
      %v820 = vadd.f32 0.0, %v819
      %v821 = vpop.f32.mrf.mxu0
      %822 = vmatprep.mubr.f32.mxu0 0.0
      %823 = vmatmul.mubr.f32.gmra.mxu0 %v441
      %v824 = vpop.f32.mrf.mxu0
      %v825 = vadd.f32 0.0, %v824
      %v826 = vpop.f32.mrf.mxu0
      %827 = vdwg.mxu0
      %828 = vst.msk [vmem:[%s179] sm:$0xff] %vm250, %v510
      %829 = vst.msk [vmem:[%s179 + $0x8] sm:$0xff] %vm250, %v515
      %830 = vst.msk [vmem:[%s179 + $0x10] sm:$0xff] %vm250, %v520
      %831 = vst.msk [vmem:[%s179 + $0x18] sm:$0xff] %vm250, %v525
      %832 = vst.msk [vmem:[%s179 + $0x20] sm:$0xff] %vm250, %v530
      %833 = vst.msk [vmem:[%s179 + $0x28] sm:$0xff] %vm250, %v535
      %834 = vst.msk [vmem:[%s179 + $0x30] sm:$0xff] %vm250, %v540
      %835 = vst.msk [vmem:[%s179 + $0x38] sm:$0xff] %vm250, %v545
      %836 = vst.msk [vmem:[%s179 + $0x40] sm:$0xff] %vm250, %v550
      %837 = vst.msk [vmem:[%s179 + $0x48] sm:$0xff] %vm250, %v555
      %838 = vst.msk [vmem:[%s179 + $0x50] sm:$0xff] %vm250, %v560
      %839 = vst.msk [vmem:[%s179 + $0x58] sm:$0xff] %vm250, %v565
      %840 = vst.msk [vmem:[%s179 + $0x60] sm:$0xff] %vm250, %v570
      %841 = vst.msk [vmem:[%s179 + $0x68] sm:$0xff] %vm250, %v575
      %842 = vst.msk [vmem:[%s179 + $0x70] sm:$0xff] %vm250, %v580
      %843 = vst.msk [vmem:[%s179 + $0x78] sm:$0xff] %vm250, %v585
      %844 = vst.msk [vmem:[%s179 + $0x80] sm:$0xff] %vm250, %v590
      %845 = vst.msk [vmem:[%s179 + $0x88] sm:$0xff] %vm250, %v595
      %846 = vst.msk [vmem:[%s179 + $0x90] sm:$0xff] %vm250, %v600
      %847 = vst.msk [vmem:[%s179 + $0x98] sm:$0xff] %vm250, %v605
      %848 = vst.msk [vmem:[%s179 + $0xa0] sm:$0xff] %vm250, %v610
      %849 = vst.msk [vmem:[%s179 + $0xa8] sm:$0xff] %vm250, %v615
      %850 = vst.msk [vmem:[%s179 + $0xb0] sm:$0xff] %vm250, %v620
      %851 = vst.msk [vmem:[%s179 + $0xb8] sm:$0xff] %vm250, %v625
      %852 = vst.msk [vmem:[%s179 + $0xc0] sm:$0xff] %vm250, %v630
      %853 = vst.msk [vmem:[%s179 + $0xc8] sm:$0xff] %vm250, %v635
      %854 = vst.msk [vmem:[%s179 + $0xd0] sm:$0xff] %vm250, %v640
      %855 = vst.msk [vmem:[%s179 + $0xd8] sm:$0xff] %vm250, %v645
      %856 = vst.msk [vmem:[%s179 + $0xe0] sm:$0xff] %vm250, %v650
      %857 = vst.msk [vmem:[%s179 + $0xe8] sm:$0xff] %vm250, %v655
      %858 = vst.msk [vmem:[%s179 + $0xf0] sm:$0xff] %vm250, %v660
      %859 = vst.msk [vmem:[%s179 + $0xf8] sm:$0xff] %vm250, %v665
      %860 = vst.msk [vmem:[%s179 + $0x100] sm:$0xff] %vm250, %v670
      %861 = vst.msk [vmem:[%s179 + $0x108] sm:$0xff] %vm250, %v675
      %862 = vst.msk [vmem:[%s179 + $0x110] sm:$0xff] %vm250, %v680
      %863 = vst.msk [vmem:[%s179 + $0x118] sm:$0xff] %vm250, %v685
      %864 = vst.msk [vmem:[%s179 + $0x120] sm:$0xff] %vm250, %v690
      %865 = vst.msk [vmem:[%s179 + $0x128] sm:$0xff] %vm250, %v695
      %866 = vst.msk [vmem:[%s179 + $0x130] sm:$0xff] %vm250, %v700
      %867 = vst.msk [vmem:[%s179 + $0x138] sm:$0xff] %vm250, %v705
      %868 = vst.msk [vmem:[%s179 + $0x140] sm:$0xff] %vm250, %v710
      %869 = vst.msk [vmem:[%s179 + $0x148] sm:$0xff] %vm250, %v715
      %870 = vst.msk [vmem:[%s179 + $0x150] sm:$0xff] %vm250, %v720
      %871 = vst.msk [vmem:[%s179 + $0x158] sm:$0xff] %vm250, %v725
      %872 = vst.msk [vmem:[%s179 + $0x160] sm:$0xff] %vm250, %v730
      %873 = vst.msk [vmem:[%s179 + $0x168] sm:$0xff] %vm250, %v735
      %874 = vst.msk [vmem:[%s179 + $0x170] sm:$0xff] %vm250, %v740
      %875 = vst.msk [vmem:[%s179 + $0x178] sm:$0xff] %vm250, %v745
      %876 = vst.msk [vmem:[%s179 + $0x180] sm:$0xff] %vm250, %v750
      %877 = vst.msk [vmem:[%s179 + $0x188] sm:$0xff] %vm250, %v755
      %878 = vst.msk [vmem:[%s179 + $0x190] sm:$0xff] %vm250, %v760
      %879 = vst.msk [vmem:[%s179 + $0x198] sm:$0xff] %vm250, %v765
      %880 = vst.msk [vmem:[%s179 + $0x1a0] sm:$0xff] %vm250, %v770
      %881 = vst.msk [vmem:[%s179 + $0x1a8] sm:$0xff] %vm250, %v775
      %882 = vst.msk [vmem:[%s179 + $0x1b0] sm:$0xff] %vm250, %v780
      %883 = vst.msk [vmem:[%s179 + $0x1b8] sm:$0xff] %vm250, %v785
      %884 = vst.msk [vmem:[%s179 + $0x1c0] sm:$0xff] %vm250, %v790
      %885 = vst.msk [vmem:[%s179 + $0x1c8] sm:$0xff] %vm250, %v795
      %886 = vst.msk [vmem:[%s179 + $0x1d0] sm:$0xff] %vm250, %v800
      %887 = vst.msk [vmem:[%s179 + $0x1d8] sm:$0xff] %vm250, %v805
      %888 = vst.msk [vmem:[%s179 + $0x1e0] sm:$0xff] %vm250, %v810
      %889 = vst.msk [vmem:[%s179 + $0x1e8] sm:$0xff] %vm250, %v815
      %890 = vst.msk [vmem:[%s179 + $0x1f0] sm:$0xff] %vm250, %v820
      %891 = vst.msk [vmem:[%s179 + $0x1f8] sm:$0xff] %vm250, %v825
      %v892 = vsel %vm250, %v510, 0.0
      %v893 = vsel %vm250, %v515, 0.0
      %v894 = vadd.f32 %v892, %v893
      %v895 = vsel %vm250, %v520, 0.0
      %v896 = vadd.f32 %v894, %v895
      %v897 = vsel %vm250, %v525, 0.0
      %v898 = vadd.f32 %v896, %v897
      %v899 = vsel %vm250, %v530, 0.0
      %v900 = vadd.f32 %v898, %v899
      %v901 = vsel %vm250, %v535, 0.0
      %v902 = vadd.f32 %v900, %v901
      %v903 = vsel %vm250, %v540, 0.0
      %v904 = vadd.f32 %v902, %v903
      %v905 = vsel %vm250, %v545, 0.0
      %v906 = vadd.f32 %v904, %v905
      %v907 = vsel %vm250, %v550, 0.0
      %v908 = vadd.f32 %v906, %v907
      %v909 = vsel %vm250, %v555, 0.0
      %v910 = vadd.f32 %v908, %v909
      %v911 = vsel %vm250, %v560, 0.0
      %v912 = vadd.f32 %v910, %v911
      %v913 = vsel %vm250, %v565, 0.0
      %v914 = vadd.f32 %v912, %v913
      %v915 = vsel %vm250, %v570, 0.0
      %v916 = vadd.f32 %v914, %v915
      %v917 = vsel %vm250, %v575, 0.0
      %v918 = vadd.f32 %v916, %v917
      %v919 = vsel %vm250, %v580, 0.0
      %v920 = vadd.f32 %v918, %v919
      %v921 = vsel %vm250, %v585, 0.0
      %v922 = vadd.f32 %v920, %v921
      %v923 = vsel %vm250, %v590, 0.0
      %v924 = vadd.f32 %v922, %v923
      %v925 = vsel %vm250, %v595, 0.0
      %v926 = vadd.f32 %v924, %v925
      %v927 = vsel %vm250, %v600, 0.0
      %v928 = vadd.f32 %v926, %v927
      %v929 = vsel %vm250, %v605, 0.0
      %v930 = vadd.f32 %v928, %v929
      %v931 = vsel %vm250, %v610, 0.0
      %v932 = vadd.f32 %v930, %v931
      %v933 = vsel %vm250, %v615, 0.0
      %v934 = vadd.f32 %v932, %v933
      %v935 = vsel %vm250, %v620, 0.0
      %v936 = vadd.f32 %v934, %v935
      %v937 = vsel %vm250, %v625, 0.0
      %v938 = vadd.f32 %v936, %v937
      %v939 = vsel %vm250, %v630, 0.0
      %v940 = vadd.f32 %v938, %v939
      %v941 = vsel %vm250, %v635, 0.0
      %v942 = vadd.f32 %v940, %v941
      %v943 = vsel %vm250, %v640, 0.0
      %v944 = vadd.f32 %v942, %v943
      %v945 = vsel %vm250, %v645, 0.0
      %v946 = vadd.f32 %v944, %v945
      %v947 = vsel %vm250, %v650, 0.0
      %v948 = vadd.f32 %v946, %v947
      %v949 = vsel %vm250, %v655, 0.0
      %v950 = vadd.f32 %v948, %v949
      %v951 = vsel %vm250, %v660, 0.0
      %v952 = vadd.f32 %v950, %v951
      %v953 = vsel %vm250, %v665, 0.0
      %v954 = vadd.f32 %v952, %v953
      %v955 = vsel %vm250, %v670, 0.0
      %v956 = vadd.f32 %v954, %v955
      %v957 = vsel %vm250, %v675, 0.0
      %v958 = vadd.f32 %v956, %v957
      %v959 = vsel %vm250, %v680, 0.0
      %v960 = vadd.f32 %v958, %v959
      %v961 = vsel %vm250, %v685, 0.0
      %v962 = vadd.f32 %v960, %v961
      %v963 = vsel %vm250, %v690, 0.0
      %v964 = vadd.f32 %v962, %v963
      %v965 = vsel %vm250, %v695, 0.0
      %v966 = vadd.f32 %v964, %v965
      %v967 = vsel %vm250, %v700, 0.0
      %v968 = vadd.f32 %v966, %v967
      %v969 = vsel %vm250, %v705, 0.0
      %v970 = vadd.f32 %v968, %v969
      %v971 = vsel %vm250, %v710, 0.0
      %v972 = vadd.f32 %v970, %v971
      %v973 = vsel %vm250, %v715, 0.0
      %v974 = vadd.f32 %v972, %v973
      %v975 = vsel %vm250, %v720, 0.0
      %v976 = vadd.f32 %v974, %v975
      %v977 = vsel %vm250, %v725, 0.0
      %v978 = vadd.f32 %v976, %v977
      %v979 = vsel %vm250, %v730, 0.0
      %v980 = vadd.f32 %v978, %v979
      %v981 = vsel %vm250, %v735, 0.0
      %v982 = vadd.f32 %v980, %v981
      %v983 = vsel %vm250, %v740, 0.0
      %v984 = vadd.f32 %v982, %v983
      %v985 = vsel %vm250, %v745, 0.0
      %v986 = vadd.f32 %v984, %v985
      %v987 = vsel %vm250, %v750, 0.0
      %v988 = vadd.f32 %v986, %v987
      %v989 = vsel %vm250, %v755, 0.0
      %v990 = vadd.f32 %v988, %v989
      %v991 = vsel %vm250, %v760, 0.0
      %v992 = vadd.f32 %v990, %v991
      %v993 = vsel %vm250, %v765, 0.0
      %v994 = vadd.f32 %v992, %v993
      %v995 = vsel %vm250, %v770, 0.0
      %v996 = vadd.f32 %v994, %v995
      %v997 = vsel %vm250, %v775, 0.0
      %v998 = vadd.f32 %v996, %v997
      %v999 = vsel %vm250, %v780, 0.0
      %v1000 = vadd.f32 %v998, %v999
      %v1001 = vsel %vm250, %v785, 0.0
      %v1002 = vadd.f32 %v1000, %v1001
      %v1003 = vsel %vm250, %v790, 0.0
      %v1004 = vadd.f32 %v1002, %v1003
      %v1005 = vsel %vm250, %v795, 0.0
      %v1006 = vadd.f32 %v1004, %v1005
      %v1007 = vsel %vm250, %v800, 0.0
      %v1008 = vadd.f32 %v1006, %v1007
      %v1009 = vsel %vm250, %v805, 0.0
      %v1010 = vadd.f32 %v1008, %v1009
      %v1011 = vsel %vm250, %v810, 0.0
      %v1012 = vadd.f32 %v1010, %v1011
      %v1013 = vsel %vm250, %v815, 0.0
      %v1014 = vadd.f32 %v1012, %v1013
      %v1015 = vsel %vm250, %v820, 0.0
      %v1016 = vadd.f32 %v1014, %v1015
      %v1017 = vsel %vm250, %v825, 0.0
      %v1018 = vadd.f32 %v1016, %v1017
      %v1019 = vrot.slane %v1018, 4
      %v1020 = vadd.f32 %v1018, %v1019
      %v1021 = vrot.slane %v1020, 2
      %v1022 = vadd.f32 %v1020, %v1021
      %v1023 = vrot.slane %v1022, 1
      %v1024 = vadd.f32 %v1022, %v1023
      %vm1025 = vcmask 57344
      %1026 = vst.msk [vmem:[%s184] sm:$0x1] %vm1025, %v1024
      %v1027 = vmul.f32 %v510, %v510
      %v1028 = vmul.f32 %v515, %v515
      %v1029 = vmul.f32 %v520, %v520
      %v1030 = vmul.f32 %v525, %v525
      %v1031 = vmul.f32 %v530, %v530
      %v1032 = vmul.f32 %v535, %v535
      %v1033 = vmul.f32 %v540, %v540
      %v1034 = vmul.f32 %v545, %v545
      %v1035 = vmul.f32 %v550, %v550
      %v1036 = vmul.f32 %v555, %v555
      %v1037 = vmul.f32 %v560, %v560
      %v1038 = vmul.f32 %v565, %v565
      %v1039 = vmul.f32 %v570, %v570
      %v1040 = vmul.f32 %v575, %v575
      %v1041 = vmul.f32 %v580, %v580
      %v1042 = vmul.f32 %v585, %v585
      %v1043 = vmul.f32 %v590, %v590
      %v1044 = vmul.f32 %v595, %v595
      %v1045 = vmul.f32 %v600, %v600
      %v1046 = vmul.f32 %v605, %v605
      %v1047 = vmul.f32 %v610, %v610
      %v1048 = vmul.f32 %v615, %v615
      %v1049 = vmul.f32 %v620, %v620
      %v1050 = vmul.f32 %v625, %v625
      %v1051 = vmul.f32 %v630, %v630
      %v1052 = vmul.f32 %v635, %v635
      %v1053 = vmul.f32 %v640, %v640
      %v1054 = vmul.f32 %v645, %v645
      %v1055 = vmul.f32 %v650, %v650
      %v1056 = vmul.f32 %v655, %v655
      %v1057 = vmul.f32 %v660, %v660
      %v1058 = vmul.f32 %v665, %v665
      %v1059 = vmul.f32 %v670, %v670
      %v1060 = vmul.f32 %v675, %v675
      %v1061 = vmul.f32 %v680, %v680
      %v1062 = vmul.f32 %v685, %v685
      %v1063 = vmul.f32 %v690, %v690
      %v1064 = vmul.f32 %v695, %v695
      %v1065 = vmul.f32 %v700, %v700
      %v1066 = vmul.f32 %v705, %v705
      %v1067 = vmul.f32 %v710, %v710
      %v1068 = vmul.f32 %v715, %v715
      %v1069 = vmul.f32 %v720, %v720
      %v1070 = vmul.f32 %v725, %v725
      %v1071 = vmul.f32 %v730, %v730
      %v1072 = vmul.f32 %v735, %v735
      %v1073 = vmul.f32 %v740, %v740
      %v1074 = vmul.f32 %v745, %v745
      %v1075 = vmul.f32 %v750, %v750
      %v1076 = vmul.f32 %v755, %v755
      %v1077 = vmul.f32 %v760, %v760
      %v1078 = vmul.f32 %v765, %v765
      %v1079 = vmul.f32 %v770, %v770
      %v1080 = vmul.f32 %v775, %v775
      %v1081 = vmul.f32 %v780, %v780
      %v1082 = vmul.f32 %v785, %v785
      %v1083 = vmul.f32 %v790, %v790
      %v1084 = vmul.f32 %v795, %v795
      %v1085 = vmul.f32 %v800, %v800
      %v1086 = vmul.f32 %v805, %v805
      %v1087 = vmul.f32 %v810, %v810
      %v1088 = vmul.f32 %v815, %v815
      %v1089 = vmul.f32 %v820, %v820
      %v1090 = vmul.f32 %v825, %v825
      %v1091 = vsel %vm250, %v1027, 0.0
      %v1092 = vsel %vm250, %v1028, 0.0
      %v1093 = vadd.f32 %v1091, %v1092
      %v1094 = vsel %vm250, %v1029, 0.0
      %v1095 = vadd.f32 %v1093, %v1094
      %v1096 = vsel %vm250, %v1030, 0.0
      %v1097 = vadd.f32 %v1095, %v1096
      %v1098 = vsel %vm250, %v1031, 0.0
      %v1099 = vadd.f32 %v1097, %v1098
      %v1100 = vsel %vm250, %v1032, 0.0
      %v1101 = vadd.f32 %v1099, %v1100
      %v1102 = vsel %vm250, %v1033, 0.0
      %v1103 = vadd.f32 %v1101, %v1102
      %v1104 = vsel %vm250, %v1034, 0.0
      %v1105 = vadd.f32 %v1103, %v1104
      %v1106 = vsel %vm250, %v1035, 0.0
      %v1107 = vadd.f32 %v1105, %v1106
      %v1108 = vsel %vm250, %v1036, 0.0
      %v1109 = vadd.f32 %v1107, %v1108
      %v1110 = vsel %vm250, %v1037, 0.0
      %v1111 = vadd.f32 %v1109, %v1110
      %v1112 = vsel %vm250, %v1038, 0.0
      %v1113 = vadd.f32 %v1111, %v1112
      %v1114 = vsel %vm250, %v1039, 0.0
      %v1115 = vadd.f32 %v1113, %v1114
      %v1116 = vsel %vm250, %v1040, 0.0
      %v1117 = vadd.f32 %v1115, %v1116
      %v1118 = vsel %vm250, %v1041, 0.0
      %v1119 = vadd.f32 %v1117, %v1118
      %v1120 = vsel %vm250, %v1042, 0.0
      %v1121 = vadd.f32 %v1119, %v1120
      %v1122 = vsel %vm250, %v1043, 0.0
      %v1123 = vadd.f32 %v1121, %v1122
      %v1124 = vsel %vm250, %v1044, 0.0
      %v1125 = vadd.f32 %v1123, %v1124
      %v1126 = vsel %vm250, %v1045, 0.0
      %v1127 = vadd.f32 %v1125, %v1126
      %v1128 = vsel %vm250, %v1046, 0.0
      %v1129 = vadd.f32 %v1127, %v1128
      %v1130 = vsel %vm250, %v1047, 0.0
      %v1131 = vadd.f32 %v1129, %v1130
      %v1132 = vsel %vm250, %v1048, 0.0
      %v1133 = vadd.f32 %v1131, %v1132
      %v1134 = vsel %vm250, %v1049, 0.0
      %v1135 = vadd.f32 %v1133, %v1134
      %v1136 = vsel %vm250, %v1050, 0.0
      %v1137 = vadd.f32 %v1135, %v1136
      %v1138 = vsel %vm250, %v1051, 0.0
      %v1139 = vadd.f32 %v1137, %v1138
      %v1140 = vsel %vm250, %v1052, 0.0
      %v1141 = vadd.f32 %v1139, %v1140
      %v1142 = vsel %vm250, %v1053, 0.0
      %v1143 = vadd.f32 %v1141, %v1142
      %v1144 = vsel %vm250, %v1054, 0.0
      %v1145 = vadd.f32 %v1143, %v1144
      %v1146 = vsel %vm250, %v1055, 0.0
      %v1147 = vadd.f32 %v1145, %v1146
      %v1148 = vsel %vm250, %v1056, 0.0
      %v1149 = vadd.f32 %v1147, %v1148
      %v1150 = vsel %vm250, %v1057, 0.0
      %v1151 = vadd.f32 %v1149, %v1150
      %v1152 = vsel %vm250, %v1058, 0.0
      %v1153 = vadd.f32 %v1151, %v1152
      %v1154 = vsel %vm250, %v1059, 0.0
      %v1155 = vadd.f32 %v1153, %v1154
      %v1156 = vsel %vm250, %v1060, 0.0
      %v1157 = vadd.f32 %v1155, %v1156
      %v1158 = vsel %vm250, %v1061, 0.0
      %v1159 = vadd.f32 %v1157, %v1158
      %v1160 = vsel %vm250, %v1062, 0.0
      %v1161 = vadd.f32 %v1159, %v1160
      %v1162 = vsel %vm250, %v1063, 0.0
      %v1163 = vadd.f32 %v1161, %v1162
      %v1164 = vsel %vm250, %v1064, 0.0
      %v1165 = vadd.f32 %v1163, %v1164
      %v1166 = vsel %vm250, %v1065, 0.0
      %v1167 = vadd.f32 %v1165, %v1166
      %v1168 = vsel %vm250, %v1066, 0.0
      %v1169 = vadd.f32 %v1167, %v1168
      %v1170 = vsel %vm250, %v1067, 0.0
      %v1171 = vadd.f32 %v1169, %v1170
      %v1172 = vsel %vm250, %v1068, 0.0
      %v1173 = vadd.f32 %v1171, %v1172
      %v1174 = vsel %vm250, %v1069, 0.0
      %v1175 = vadd.f32 %v1173, %v1174
      %v1176 = vsel %vm250, %v1070, 0.0
      %v1177 = vadd.f32 %v1175, %v1176
      %v1178 = vsel %vm250, %v1071, 0.0
      %v1179 = vadd.f32 %v1177, %v1178
      %v1180 = vsel %vm250, %v1072, 0.0
      %v1181 = vadd.f32 %v1179, %v1180
      %v1182 = vsel %vm250, %v1073, 0.0
      %v1183 = vadd.f32 %v1181, %v1182
      %v1184 = vsel %vm250, %v1074, 0.0
      %v1185 = vadd.f32 %v1183, %v1184
      %v1186 = vsel %vm250, %v1075, 0.0
      %v1187 = vadd.f32 %v1185, %v1186
      %v1188 = vsel %vm250, %v1076, 0.0
      %v1189 = vadd.f32 %v1187, %v1188
      %v1190 = vsel %vm250, %v1077, 0.0
      %v1191 = vadd.f32 %v1189, %v1190
      %v1192 = vsel %vm250, %v1078, 0.0
      %v1193 = vadd.f32 %v1191, %v1192
      %v1194 = vsel %vm250, %v1079, 0.0
      %v1195 = vadd.f32 %v1193, %v1194
      %v1196 = vsel %vm250, %v1080, 0.0
      %v1197 = vadd.f32 %v1195, %v1196
      %v1198 = vsel %vm250, %v1081, 0.0
      %v1199 = vadd.f32 %v1197, %v1198
      %v1200 = vsel %vm250, %v1082, 0.0
      %v1201 = vadd.f32 %v1199, %v1200
      %v1202 = vsel %vm250, %v1083, 0.0
      %v1203 = vadd.f32 %v1201, %v1202
      %v1204 = vsel %vm250, %v1084, 0.0
      %v1205 = vadd.f32 %v1203, %v1204
      %v1206 = vsel %vm250, %v1085, 0.0
      %v1207 = vadd.f32 %v1205, %v1206
      %v1208 = vsel %vm250, %v1086, 0.0
      %v1209 = vadd.f32 %v1207, %v1208
      %v1210 = vsel %vm250, %v1087, 0.0
      %v1211 = vadd.f32 %v1209, %v1210
      %v1212 = vsel %vm250, %v1088, 0.0
      %v1213 = vadd.f32 %v1211, %v1212
      %v1214 = vsel %vm250, %v1089, 0.0
      %v1215 = vadd.f32 %v1213, %v1214
      %v1216 = vsel %vm250, %v1090, 0.0
      %v1217 = vadd.f32 %v1215, %v1216
      %v1218 = vrot.slane %v1217, 4
      %v1219 = vadd.f32 %v1217, %v1218
      %v1220 = vrot.slane %v1219, 2
      %v1221 = vadd.f32 %v1219, %v1220
      %v1222 = vrot.slane %v1221, 1
      %v1223 = vadd.f32 %v1221, %v1222
      %1224 = vst.msk [vmem:[%s184 + $0x1] sm:$0x1] %vm1025, %v1223
      %s1225 = smul.u32 64, %s15
      %p1226 = scmp.lt.s32.totalorder %s1225, 127
      %s1227 = scalar_select %p1226, %s1225, 127
      %s1228 = smul.addr %s1227, 8
      %s1229 = scalar_lea.vmem %s2, %s1228
      %p1230 = scmp.lt.s32.totalorder %s15, 1
      %s1231 = scalar_select %p1230, %s15, 1
      %s1232 = smul.addr %s1231, 2
      %s1233 = scalar_lea.vmem %s3, %s1232
      // Predicated region
      $region29: #{_forward_impl.4} parent=27 // pred_check
        %p1234 = pneg %p80
      $region30: #{_forward_impl.4} parent=27 // pred_check_branch
        %1236 = sbr.rel (%p1234) target = $region32
      $region31: #{_forward_impl.4} parent=27 // pred_region
        %s1237 = smul.u32 64, %s15
      $region32: #{_forward_impl.4} parent=27 // pred_fallthru
        _
      // Predicated region
      $region33: #{_forward_impl.4} parent=27 // pred_check
        %p1238 = pneg %p106
      $region34: #{_forward_impl.4} parent=27 // pred_check_branch
        %1240 = sbr.rel (%p1238) target = $region36
      $region35: #{_forward_impl.4} parent=27 // pred_region
        _
      $region36: #{_forward_impl.4} parent=27 // pred_fallthru
        _
    $region28: #{_forward_impl.4} parent=5 // pred_fallthru
      _
    %p1241 = scmp.le.s32.totalorder 2, %s10
    // Predicated region
    $region37: #{_forward_impl.4} parent=5 // pred_check
      %p1242 = pneg %p1241
    $region38: #{_forward_impl.4} parent=5 // pred_check_branch
      %1244 = sbr.rel (%p1242) target = $region40
    $region39: #{_forward_impl.4} parent=5 // pred_region
      %s1245 = ssub.s32 %s10, 2
      // Predicated region
      $region41: #{_forward_impl.4} parent=39 // pred_check
        %p1246 = pneg %p86
      $region42: #{_forward_impl.4} parent=39 // pred_check_branch
        %1248 = sbr.rel (%p1246) target = $region44
      $region43: #{_forward_impl.4} parent=39 // pred_region
        %s1249 = smul.u32 64, %s16
        %p1250 = scmp.lt.s32.totalorder %s1249, 127
        %s1251 = scalar_select %p1250, %s1249, 127
        %s1252 = smul.addr %s1251, 8
        %s1253 = scalar_lea.vmem %s2, %s1252
      $region44: #{_forward_impl.4} parent=39 // pred_fallthru
        _
      // Predicated region
      $region45: #{_forward_impl.4} parent=39 // pred_check
        %p1254 = pneg %p112
      $region46: #{_forward_impl.4} parent=39 // pred_check_branch
        %1256 = sbr.rel (%p1254) target = $region48
      $region47: #{_forward_impl.4} parent=39 // pred_region
        %p1257 = scmp.lt.s32.totalorder %s16, 1
        %s1258 = scalar_select %p1257, %s16, 1
        %s1259 = smul.addr %s1258, 2
        %s1260 = scalar_lea.vmem %s3, %s1259
      $region48: #{_forward_impl.4} parent=39 // pred_fallthru
        _
    $region40: #{_forward_impl.4} parent=5 // pred_fallthru
      _
  $region6: #{_forward_impl.4} parent=0 // loop_footer
    %s14 = sadd.s32 1, %s10
  $region7: #{_forward_impl.4} parent=0 // loop_footer_branch
    %9 = sbr.rel target = $region3
  $region8: #{_forward_impl.4} parent=0 // loop_exit
    _

// kernel: _forward_impl.6
$region0: #{_forward_impl.6}
  #allocation0 [shape = 'u32[]', space=smem, size = 0x4, offset = 0x4, fixed_abs, tag = 'smem constant byte address 0x4 - core index']
  #allocation1 [shape = 'u32[144,128]{1,0:T(1,128)}', space=vmem, size = 0x12000, scoped, tag = 'internal scratch']
  %s0 = inlined_call_operand.vmem [shape: f32[1024,8], index: 0, kind: input, shape index: {}]
  %s1 = inlined_call_operand.vmem [shape: f32[1,8], index: 1, kind: input, shape index: {}]
  %s2 = inlined_call_operand.vmem [shape: f32[1,8], index: 2, kind: input, shape index: {}]
  %s3 = inlined_call_operand.vmem [shape: f32[8,16], index: 3, kind: input, shape index: {}]
  %s4 = inlined_call_operand.vmem [shape: f32[2,2,16], index: 4, kind: output, shape index: {}]
  %s5 = sld [smem:[#allocation0]]
  $region49: #{_forward_impl.6} parent=0
    _
  %s7 = ssub.s32 1, %s5
  %s8 = scalar_select 0, %s7, %s5
  loop: start=0, step=1, limit=4
  $region2: #{_forward_impl.6} parent=0 // loop_pre_header
    _
  $region3: #{_forward_impl.6} parent=0 // loop_header
    %s10 = sphi 0, %s14
    %p11 = scmp.ge.s32.totalorder %s10, 4
    %s20 = sphi 0, %s22
    %s23 = sphi 0, %s20
    %s24 = sphi 0, %s23
    %s40 = sphi 0, %s24
    %s44 = sphi 0, %s44
    %s46 = sphi 0, %s44
    %s47 = sphi 0, %s46
    %s61 = sphi 0, %s47
    %s65 = sphi 0, %s65
    %s67 = sphi 0, %s65
    %s68 = sphi 0, %s67
    %s82 = sphi 0, %s68
    %s86 = sphi 0, %s86
    %s88 = sphi 0, %s86
    %s89 = sphi 0, %s88
    %s103 = sphi 0, %s89
    %s109 = sphi 0, %s111
    %s112 = sphi 0, %s109
    %s113 = sphi 0, %s112
    %s129 = sphi 0, %s113
  $region4: #{_forward_impl.6} parent=0 // loop_header_branch
    %13 = sbr.rel (%p11) target = $region8
  $region5: #{_forward_impl.6} parent=0 // loop_body
    %s15 = ssub.s32 %s10, 1
    %s16 = ssub.s32 %s10, 2
    %s17 = sadd.s32 %s10, 1
    %s18 = ssub.s32 %s10, %s17
    %p19 = scmp.eq.s32.totalorder %s18, 0
    %s21 = sadd.s32 %s20, 1
    %s22 = scalar_select %p19, %s20, %s21
    %p25 = pneg %p19
    %p26 = scmp.eq.s32.totalorder %s10, 1
    %p27 = por %p25, %p26
    %p28 = scmp.ne.s32.totalorder %s20, %s23
    %p29 = scmp.eq.s32.totalorder %s10, 0
    %p30 = por %p28, %p29
    %p31 = scmp.ne.s32.totalorder %s20, %s23
    %p32 = scmp.eq.s32.totalorder %s15, 1
    %p33 = por %p31, %p32
    %p34 = scmp.ne.s32.totalorder %s23, %s24
    %p35 = scmp.eq.s32.totalorder %s15, 0
    %p36 = por %p34, %p35
    %p37 = scmp.ne.s32.totalorder %s23, %s24
    %p38 = scmp.eq.s32.totalorder %s16, 1
    %p39 = por %p37, %p38
    %p41 = scmp.ne.s32.totalorder %s24, %s40
    %p42 = scmp.eq.s32.totalorder %s16, 0
    %p43 = por %p41, %p42
    %s45 = sadd.s32 %s44, 1
    %p48 = scmp.eq.s32.totalorder %s10, 1
    %p49 = scmp.ne.s32.totalorder %s44, %s46
    %p50 = scmp.eq.s32.totalorder %s10, 0
    %p51 = por %p49, %p50
    %p52 = scmp.ne.s32.totalorder %s44, %s46
    %p53 = scmp.eq.s32.totalorder %s15, 1
    %p54 = por %p52, %p53
    %p55 = scmp.ne.s32.totalorder %s46, %s47
    %p56 = scmp.eq.s32.totalorder %s15, 0
    %p57 = por %p55, %p56
    %p58 = scmp.ne.s32.totalorder %s46, %s47
    %p59 = scmp.eq.s32.totalorder %s16, 1
    %p60 = por %p58, %p59
    %p62 = scmp.ne.s32.totalorder %s47, %s61
    %p63 = scmp.eq.s32.totalorder %s16, 0
    %p64 = por %p62, %p63
    %s66 = sadd.s32 %s65, 1
    %p69 = scmp.eq.s32.totalorder %s10, 1
    %p70 = scmp.ne.s32.totalorder %s65, %s67
    %p71 = scmp.eq.s32.totalorder %s10, 0
    %p72 = por %p70, %p71
    %p73 = scmp.ne.s32.totalorder %s65, %s67
    %p74 = scmp.eq.s32.totalorder %s15, 1
    %p75 = por %p73, %p74
    %p76 = scmp.ne.s32.totalorder %s67, %s68
    %p77 = scmp.eq.s32.totalorder %s15, 0
    %p78 = por %p76, %p77
    %p79 = scmp.ne.s32.totalorder %s67, %s68
    %p80 = scmp.eq.s32.totalorder %s16, 1
    %p81 = por %p79, %p80
    %p83 = scmp.ne.s32.totalorder %s68, %s82
    %p84 = scmp.eq.s32.totalorder %s16, 0
    %p85 = por %p83, %p84
    %s87 = sadd.s32 %s86, 1
    %p90 = scmp.eq.s32.totalorder %s10, 1
    %p91 = scmp.ne.s32.totalorder %s86, %s88
    %p92 = scmp.eq.s32.totalorder %s10, 0
    %p93 = por %p91, %p92
    %p94 = scmp.ne.s32.totalorder %s86, %s88
    %p95 = scmp.eq.s32.totalorder %s15, 1
    %p96 = por %p94, %p95
    %p97 = scmp.ne.s32.totalorder %s88, %s89
    %p98 = scmp.eq.s32.totalorder %s15, 0
    %p99 = por %p97, %p98
    %p100 = scmp.ne.s32.totalorder %s88, %s89
    %p101 = scmp.eq.s32.totalorder %s16, 1
    %p102 = por %p100, %p101
    %p104 = scmp.ne.s32.totalorder %s89, %s103
    %p105 = scmp.eq.s32.totalorder %s16, 0
    %p106 = por %p104, %p105
    %s107 = ssub.s32 %s10, %s17
    %p108 = scmp.eq.s32.totalorder %s107, 0
    %s110 = sadd.s32 %s109, 1
    %s111 = scalar_select %p108, %s109, %s110
    %p114 = pneg %p108
    %p115 = scmp.eq.s32.totalorder %s10, 1
    %p116 = por %p114, %p115
    %p117 = scmp.ne.s32.totalorder %s109, %s112
    %p118 = scmp.eq.s32.totalorder %s10, 0
    %p119 = por %p117, %p118
    %p120 = scmp.ne.s32.totalorder %s109, %s112
    %p121 = scmp.eq.s32.totalorder %s15, 1
    %p122 = por %p120, %p121
    %p123 = scmp.ne.s32.totalorder %s112, %s113
    %p124 = scmp.eq.s32.totalorder %s15, 0
    %p125 = por %p123, %p124
    %p126 = scmp.ne.s32.totalorder %s112, %s113
    %p127 = scmp.eq.s32.totalorder %s16, 1
    %p128 = por %p126, %p127
    %p130 = scmp.ne.s32.totalorder %s113, %s129
    %p131 = scmp.eq.s32.totalorder %s16, 0
    %p132 = por %p130, %p131
    %p133 = scmp.le.s32.totalorder 1, %s10
    %p134 = scmp.lt.s32.totalorder %s10, 3
    %p135 = pnand %p133, %p134
    %p136 = pneg %p135
    // Predicated region
    $region9: #{_forward_impl.6} parent=5 // pred_check
      _
    $region10: #{_forward_impl.6} parent=5 // pred_check_branch
      %138 = sbr.rel (%p135) target = $region12
    $region11: #{_forward_impl.6} parent=5 // pred_region
      %s139 = ssub.s32 %s10, 1
      // Predicated region
      $region13: #{_forward_impl.6} parent=11 // pred_check
        %p140 = pneg %p57
      $region14: #{_forward_impl.6} parent=11 // pred_check_branch
        %142 = sbr.rel (%p140) target = $region16
      $region15: #{_forward_impl.6} parent=11 // pred_region
        _
      $region16: #{_forward_impl.6} parent=11 // pred_fallthru
        _
      // Predicated region
      $region17: #{_forward_impl.6} parent=11 // pred_check
        %p143 = pneg %p78
      $region18: #{_forward_impl.6} parent=11 // pred_check_branch
        %145 = sbr.rel (%p143) target = $region20
      $region19: #{_forward_impl.6} parent=11 // pred_region
        _
      $region20: #{_forward_impl.6} parent=11 // pred_fallthru
        _
      // Predicated region
      $region21: #{_forward_impl.6} parent=11 // pred_check
        %p146 = pneg %p99
      $region22: #{_forward_impl.6} parent=11 // pred_check_branch
        %148 = sbr.rel (%p146) target = $region24
      $region23: #{_forward_impl.6} parent=11 // pred_region
        _
      $region24: #{_forward_impl.6} parent=11 // pred_fallthru
        _
    $region12: #{_forward_impl.6} parent=5 // pred_fallthru
      _
    %p149 = scmp.lt.s32.totalorder %s10, 2
    // Predicated region
    $region25: #{_forward_impl.6} parent=5 // pred_check
      %p150 = pneg %p149
    $region26: #{_forward_impl.6} parent=5 // pred_check_branch
      %152 = sbr.rel (%p150) target = $region28
    $region27: #{_forward_impl.6} parent=5 // pred_region
      // Predicated region
      $region29: #{_forward_impl.6} parent=27 // pred_check
        %p153 = pneg %p30
      $region30: #{_forward_impl.6} parent=27 // pred_check_branch
        %155 = sbr.rel (%p153) target = $region32
      $region31: #{_forward_impl.6} parent=27 // pred_region
        %s156 = smul.u32 64, %s10
        %p157 = scmp.lt.s32.totalorder %s156, 127
        %s158 = scalar_select %p157, %s156, 127
        %s159 = smul.addr %s158, 8
        %s160 = scalar_lea.vmem %s0, %s159
        %s161 = smul.u32 64, %s10
      $region32: #{_forward_impl.6} parent=27 // pred_fallthru
        _
    $region28: #{_forward_impl.6} parent=5 // pred_fallthru
      _
    %p162 = scmp.le.s32.totalorder 1, %s10
    %p163 = scmp.lt.s32.totalorder %s10, 3
    %p164 = pnand %p162, %p163
    %p165 = pneg %p164
    // Predicated region
    $region33: #{_forward_impl.6} parent=5 // pred_check
      _
    $region34: #{_forward_impl.6} parent=5 // pred_check_branch
      %167 = sbr.rel (%p164) target = $region36
    $region35: #{_forward_impl.6} parent=5 // pred_region
      %s168 = ssub.s32 %s10, 1
      %s169 = smul.u32 64, %s15
      %p170 = scmp.lt.s32.totalorder %s169, 127
      %s171 = scalar_select %p170, %s169, 127
      %s172 = smul.addr %s171, 8
      %s173 = scalar_lea.vmem %s0, %s172
      %p174 = pneg %p36
      %p175 = pneg %p33
      %p176 = pneg %p57
      %p177 = pneg %p54
      %p178 = pneg %p78
      %p179 = pneg %p75
      %p180 = pneg %p99
      %p181 = pneg %p96
      %p182 = pneg %p125
      %p183 = pneg %p122
      %p184 = scmp.lt.s32.totalorder %s15, 1
      %s185 = scalar_select %p184, %s15, 1
      %s186 = smul.addr %s185, 2
      %s187 = scalar_lea.vmem %s4, %s186
      %s188 = smul.u32 64, %s15
      %p189 = scmp.lt.s32.totalorder %s188, 127
      %s190 = scalar_select %p189, %s188, 127
      %s191 = smul.addr %s190, 8
      %s192 = scalar_lea.vmem %s0, %s191
      %s193 = smul.u32 64, %s15
      %p194 = scmp.lt.s32.totalorder %s15, 1
      %s195 = scalar_select %p194, %s15, 1
      %s196 = smul.addr %s195, 2
      %s197 = scalar_lea.vmem %s4, %s196
      %v198 = vld [vmem:[%s192] sm:$0xff]
      %v199 = vld [vmem:[%s192 + $0x8] sm:$0xff]
      %v200 = vld [vmem:[%s192 + $0x10] sm:$0xff]
      %v201 = vld [vmem:[%s192 + $0x18] sm:$0xff]
      %v202 = vld [vmem:[%s192 + $0x20] sm:$0xff]
      %v203 = vld [vmem:[%s192 + $0x28] sm:$0xff]
      %v204 = vld [vmem:[%s192 + $0x30] sm:$0xff]
      %v205 = vld [vmem:[%s192 + $0x38] sm:$0xff]
      %v206 = vld [vmem:[%s192 + $0x40] sm:$0xff]
      %v207 = vld [vmem:[%s192 + $0x48] sm:$0xff]
      %v208 = vld [vmem:[%s192 + $0x50] sm:$0xff]
      %v209 = vld [vmem:[%s192 + $0x58] sm:$0xff]
      %v210 = vld [vmem:[%s192 + $0x60] sm:$0xff]
      %v211 = vld [vmem:[%s192 + $0x68] sm:$0xff]
      %v212 = vld [vmem:[%s192 + $0x70] sm:$0xff]
      %v213 = vld [vmem:[%s192 + $0x78] sm:$0xff]
      %v214 = vld [vmem:[%s192 + $0x80] sm:$0xff]
      %v215 = vld [vmem:[%s192 + $0x88] sm:$0xff]
      %v216 = vld [vmem:[%s192 + $0x90] sm:$0xff]
      %v217 = vld [vmem:[%s192 + $0x98] sm:$0xff]
      %v218 = vld [vmem:[%s192 + $0xa0] sm:$0xff]
      %v219 = vld [vmem:[%s192 + $0xa8] sm:$0xff]
      %v220 = vld [vmem:[%s192 + $0xb0] sm:$0xff]
      %v221 = vld [vmem:[%s192 + $0xb8] sm:$0xff]
      %v222 = vld [vmem:[%s192 + $0xc0] sm:$0xff]
      %v223 = vld [vmem:[%s192 + $0xc8] sm:$0xff]
      %v224 = vld [vmem:[%s192 + $0xd0] sm:$0xff]
      %v225 = vld [vmem:[%s192 + $0xd8] sm:$0xff]
      %v226 = vld [vmem:[%s192 + $0xe0] sm:$0xff]
      %v227 = vld [vmem:[%s192 + $0xe8] sm:$0xff]
      %v228 = vld [vmem:[%s192 + $0xf0] sm:$0xff]
      %v229 = vld [vmem:[%s192 + $0xf8] sm:$0xff]
      %v230 = vld [vmem:[%s192 + $0x100] sm:$0xff]
      %v231 = vld [vmem:[%s192 + $0x108] sm:$0xff]
      %v232 = vld [vmem:[%s192 + $0x110] sm:$0xff]
      %v233 = vld [vmem:[%s192 + $0x118] sm:$0xff]
      %v234 = vld [vmem:[%s192 + $0x120] sm:$0xff]
      %v235 = vld [vmem:[%s192 + $0x128] sm:$0xff]
      %v236 = vld [vmem:[%s192 + $0x130] sm:$0xff]
      %v237 = vld [vmem:[%s192 + $0x138] sm:$0xff]
      %v238 = vld [vmem:[%s192 + $0x140] sm:$0xff]
      %v239 = vld [vmem:[%s192 + $0x148] sm:$0xff]
      %v240 = vld [vmem:[%s192 + $0x150] sm:$0xff]
      %v241 = vld [vmem:[%s192 + $0x158] sm:$0xff]
      %v242 = vld [vmem:[%s192 + $0x160] sm:$0xff]
      %v243 = vld [vmem:[%s192 + $0x168] sm:$0xff]
      %v244 = vld [vmem:[%s192 + $0x170] sm:$0xff]
      %v245 = vld [vmem:[%s192 + $0x178] sm:$0xff]
      %v246 = vld [vmem:[%s192 + $0x180] sm:$0xff]
      %v247 = vld [vmem:[%s192 + $0x188] sm:$0xff]
      %v248 = vld [vmem:[%s192 + $0x190] sm:$0xff]
      %v249 = vld [vmem:[%s192 + $0x198] sm:$0xff]
      %v250 = vld [vmem:[%s192 + $0x1a0] sm:$0xff]
      %v251 = vld [vmem:[%s192 + $0x1a8] sm:$0xff]
      %v252 = vld [vmem:[%s192 + $0x1b0] sm:$0xff]
      %v253 = vld [vmem:[%s192 + $0x1b8] sm:$0xff]
      %v254 = vld [vmem:[%s192 + $0x1c0] sm:$0xff]
      %v255 = vld [vmem:[%s192 + $0x1c8] sm:$0xff]
      %v256 = vld [vmem:[%s192 + $0x1d0] sm:$0xff]
      %v257 = vld [vmem:[%s192 + $0x1d8] sm:$0xff]
      %v258 = vld [vmem:[%s192 + $0x1e0] sm:$0xff]
      %v259 = vld [vmem:[%s192 + $0x1e8] sm:$0xff]
      %v260 = vld [vmem:[%s192 + $0x1f0] sm:$0xff]
      %v261 = vld [vmem:[%s192 + $0x1f8] sm:$0xff]
      %v262 = vld [vmem:[%s1] sm:$0x1]
      %v264 = vlaneseq
      %v265 = vshrl.u32 %v264, 7
      %v266 = vsub.s32 0, %v265
      %v267 = vrot.slane %v262, %v266
      %v269 = vmul.f32 %v198, %v267
      %v270 = vmul.f32 %v199, %v267
      %v271 = vmul.f32 %v200, %v267
      %v272 = vmul.f32 %v201, %v267
      %v273 = vmul.f32 %v202, %v267
      %v274 = vmul.f32 %v203, %v267
      %v275 = vmul.f32 %v204, %v267
      %v276 = vmul.f32 %v205, %v267
      %v277 = vmul.f32 %v206, %v267
      %v278 = vmul.f32 %v207, %v267
      %v279 = vmul.f32 %v208, %v267
      %v280 = vmul.f32 %v209, %v267
      %v281 = vmul.f32 %v210, %v267
      %v282 = vmul.f32 %v211, %v267
      %v283 = vmul.f32 %v212, %v267
      %v284 = vmul.f32 %v213, %v267
      %v285 = vmul.f32 %v214, %v267
      %v286 = vmul.f32 %v215, %v267
      %v287 = vmul.f32 %v216, %v267
      %v288 = vmul.f32 %v217, %v267
      %v289 = vmul.f32 %v218, %v267
      %v290 = vmul.f32 %v219, %v267
      %v291 = vmul.f32 %v220, %v267
      %v292 = vmul.f32 %v221, %v267
      %v293 = vmul.f32 %v222, %v267
      %v294 = vmul.f32 %v223, %v267
      %v295 = vmul.f32 %v224, %v267
      %v296 = vmul.f32 %v225, %v267
      %v297 = vmul.f32 %v226, %v267
      %v298 = vmul.f32 %v227, %v267
      %v299 = vmul.f32 %v228, %v267
      %v300 = vmul.f32 %v229, %v267
      %v301 = vmul.f32 %v230, %v267
      %v302 = vmul.f32 %v231, %v267
      %v303 = vmul.f32 %v232, %v267
      %v304 = vmul.f32 %v233, %v267
      %v305 = vmul.f32 %v234, %v267
      %v306 = vmul.f32 %v235, %v267
      %v307 = vmul.f32 %v236, %v267
      %v308 = vmul.f32 %v237, %v267
      %v309 = vmul.f32 %v238, %v267
      %v310 = vmul.f32 %v239, %v267
      %v311 = vmul.f32 %v240, %v267
      %v312 = vmul.f32 %v241, %v267
      %v313 = vmul.f32 %v242, %v267
      %v314 = vmul.f32 %v243, %v267
      %v315 = vmul.f32 %v244, %v267
      %v316 = vmul.f32 %v245, %v267
      %v317 = vmul.f32 %v246, %v267
      %v318 = vmul.f32 %v247, %v267
      %v319 = vmul.f32 %v248, %v267
      %v320 = vmul.f32 %v249, %v267
      %v321 = vmul.f32 %v250, %v267
      %v322 = vmul.f32 %v251, %v267
      %v323 = vmul.f32 %v252, %v267
      %v324 = vmul.f32 %v253, %v267
      %v325 = vmul.f32 %v254, %v267
      %v326 = vmul.f32 %v255, %v267
      %v327 = vmul.f32 %v256, %v267
      %v328 = vmul.f32 %v257, %v267
      %v329 = vmul.f32 %v258, %v267
      %v330 = vmul.f32 %v259, %v267
      %v331 = vmul.f32 %v260, %v267
      %v332 = vmul.f32 %v261, %v267
      %v333 = vld [vmem:[%s2] sm:$0x1]
      %v335 = vlaneseq
      %v336 = vshrl.u32 %v335, 7
      %v337 = vsub.s32 0, %v336
      %v338 = vrot.slane %v333, %v337
      %v340 = vadd.f32 %v269, %v338
      %v341 = vadd.f32 %v270, %v338
      %v342 = vadd.f32 %v271, %v338
      %v343 = vadd.f32 %v272, %v338
      %v344 = vadd.f32 %v273, %v338
      %v345 = vadd.f32 %v274, %v338
      %v346 = vadd.f32 %v275, %v338
      %v347 = vadd.f32 %v276, %v338
      %v348 = vadd.f32 %v277, %v338
      %v349 = vadd.f32 %v278, %v338
      %v350 = vadd.f32 %v279, %v338
      %v351 = vadd.f32 %v280, %v338
      %v352 = vadd.f32 %v281, %v338
      %v353 = vadd.f32 %v282, %v338
      %v354 = vadd.f32 %v283, %v338
      %v355 = vadd.f32 %v284, %v338
      %v356 = vadd.f32 %v285, %v338
      %v357 = vadd.f32 %v286, %v338
      %v358 = vadd.f32 %v287, %v338
      %v359 = vadd.f32 %v288, %v338
      %v360 = vadd.f32 %v289, %v338
      %v361 = vadd.f32 %v290, %v338
      %v362 = vadd.f32 %v291, %v338
      %v363 = vadd.f32 %v292, %v338
      %v364 = vadd.f32 %v293, %v338
      %v365 = vadd.f32 %v294, %v338
      %v366 = vadd.f32 %v295, %v338
      %v367 = vadd.f32 %v296, %v338
      %v368 = vadd.f32 %v297, %v338
      %v369 = vadd.f32 %v298, %v338
      %v370 = vadd.f32 %v299, %v338
      %v371 = vadd.f32 %v300, %v338
      %v372 = vadd.f32 %v301, %v338
      %v373 = vadd.f32 %v302, %v338
      %v374 = vadd.f32 %v303, %v338
      %v375 = vadd.f32 %v304, %v338
      %v376 = vadd.f32 %v305, %v338
      %v377 = vadd.f32 %v306, %v338
      %v378 = vadd.f32 %v307, %v338
      %v379 = vadd.f32 %v308, %v338
      %v380 = vadd.f32 %v309, %v338
      %v381 = vadd.f32 %v310, %v338
      %v382 = vadd.f32 %v311, %v338
      %v383 = vadd.f32 %v312, %v338
      %v384 = vadd.f32 %v313, %v338
      %v385 = vadd.f32 %v314, %v338
      %v386 = vadd.f32 %v315, %v338
      %v387 = vadd.f32 %v316, %v338
      %v388 = vadd.f32 %v317, %v338
      %v389 = vadd.f32 %v318, %v338
      %v390 = vadd.f32 %v319, %v338
      %v391 = vadd.f32 %v320, %v338
      %v392 = vadd.f32 %v321, %v338
      %v393 = vadd.f32 %v322, %v338
      %v394 = vadd.f32 %v323, %v338
      %v395 = vadd.f32 %v324, %v338
      %v396 = vadd.f32 %v325, %v338
      %v397 = vadd.f32 %v326, %v338
      %v398 = vadd.f32 %v327, %v338
      %v399 = vadd.f32 %v328, %v338
      %v400 = vadd.f32 %v329, %v338
      %v401 = vadd.f32 %v330, %v338
      %v402 = vadd.f32 %v331, %v338
      %v403 = vadd.f32 %v332, %v338
      %v404 = vmax.f32 %v340, 0.0
      %v405 = vmax.f32 %v341, 0.0
      %v406 = vmax.f32 %v342, 0.0
      %v407 = vmax.f32 %v343, 0.0
      %v408 = vmax.f32 %v344, 0.0
      %v409 = vmax.f32 %v345, 0.0
      %v410 = vmax.f32 %v346, 0.0
      %v411 = vmax.f32 %v347, 0.0
      %v412 = vmax.f32 %v348, 0.0
      %v413 = vmax.f32 %v349, 0.0
      %v414 = vmax.f32 %v350, 0.0
      %v415 = vmax.f32 %v351, 0.0
      %v416 = vmax.f32 %v352, 0.0
      %v417 = vmax.f32 %v353, 0.0
      %v418 = vmax.f32 %v354, 0.0
      %v419 = vmax.f32 %v355, 0.0
      %v420 = vmax.f32 %v356, 0.0
      %v421 = vmax.f32 %v357, 0.0
      %v422 = vmax.f32 %v358, 0.0
      %v423 = vmax.f32 %v359, 0.0
      %v424 = vmax.f32 %v360, 0.0
      %v425 = vmax.f32 %v361, 0.0
      %v426 = vmax.f32 %v362, 0.0
      %v427 = vmax.f32 %v363, 0.0
      %v428 = vmax.f32 %v364, 0.0
      %v429 = vmax.f32 %v365, 0.0
      %v430 = vmax.f32 %v366, 0.0
      %v431 = vmax.f32 %v367, 0.0
      %v432 = vmax.f32 %v368, 0.0
      %v433 = vmax.f32 %v369, 0.0
      %v434 = vmax.f32 %v370, 0.0
      %v435 = vmax.f32 %v371, 0.0
      %v436 = vmax.f32 %v372, 0.0
      %v437 = vmax.f32 %v373, 0.0
      %v438 = vmax.f32 %v374, 0.0
      %v439 = vmax.f32 %v375, 0.0
      %v440 = vmax.f32 %v376, 0.0
      %v441 = vmax.f32 %v377, 0.0
      %v442 = vmax.f32 %v378, 0.0
      %v443 = vmax.f32 %v379, 0.0
      %v444 = vmax.f32 %v380, 0.0
      %v445 = vmax.f32 %v381, 0.0
      %v446 = vmax.f32 %v382, 0.0
      %v447 = vmax.f32 %v383, 0.0
      %v448 = vmax.f32 %v384, 0.0
      %v449 = vmax.f32 %v385, 0.0
      %v450 = vmax.f32 %v386, 0.0
      %v451 = vmax.f32 %v387, 0.0
      %v452 = vmax.f32 %v388, 0.0
      %v453 = vmax.f32 %v389, 0.0
      %v454 = vmax.f32 %v390, 0.0
      %v455 = vmax.f32 %v391, 0.0
      %v456 = vmax.f32 %v392, 0.0
      %v457 = vmax.f32 %v393, 0.0
      %v458 = vmax.f32 %v394, 0.0
      %v459 = vmax.f32 %v395, 0.0
      %v460 = vmax.f32 %v396, 0.0
      %v461 = vmax.f32 %v397, 0.0
      %v462 = vmax.f32 %v398, 0.0
      %v463 = vmax.f32 %v399, 0.0
      %v464 = vmax.f32 %v400, 0.0
      %v465 = vmax.f32 %v401, 0.0
      %v466 = vmax.f32 %v402, 0.0
      %v467 = vmax.f32 %v403, 0.0
      %v468 = vld [vmem:[%s3] sm:$0xff]
      %vm469 = vcmask 64512
      %v471 = vsel %vm469, %v404, 0
      %v474 = vsel %vm469, %v405, 0
      %v477 = vsel %vm469, %v406, 0
      %v480 = vsel %vm469, %v407, 0
      %v483 = vsel %vm469, %v408, 0
      %v486 = vsel %vm469, %v409, 0
      %v489 = vsel %vm469, %v410, 0
      %v492 = vsel %vm469, %v411, 0
      %v495 = vsel %vm469, %v412, 0
      %v498 = vsel %vm469, %v413, 0
      %v501 = vsel %vm469, %v414, 0
      %v504 = vsel %vm469, %v415, 0
      %v507 = vsel %vm469, %v416, 0
      %v510 = vsel %vm469, %v417, 0
      %v513 = vsel %vm469, %v418, 0
      %v516 = vsel %vm469, %v419, 0
      %v519 = vsel %vm469, %v420, 0
      %v522 = vsel %vm469, %v421, 0
      %v525 = vsel %vm469, %v422, 0
      %v528 = vsel %vm469, %v423, 0
      %v531 = vsel %vm469, %v424, 0
      %v534 = vsel %vm469, %v425, 0
      %v537 = vsel %vm469, %v426, 0
      %v540 = vsel %vm469, %v427, 0
      %v543 = vsel %vm469, %v428, 0
      %v546 = vsel %vm469, %v429, 0
      %v549 = vsel %vm469, %v430, 0
      %v552 = vsel %vm469, %v431, 0
      %v555 = vsel %vm469, %v432, 0
      %v558 = vsel %vm469, %v433, 0
      %v561 = vsel %vm469, %v434, 0
      %v564 = vsel %vm469, %v435, 0
      %v567 = vsel %vm469, %v436, 0
      %v570 = vsel %vm469, %v437, 0
      %v573 = vsel %vm469, %v438, 0
      %v576 = vsel %vm469, %v439, 0
      %v579 = vsel %vm469, %v440, 0
      %v582 = vsel %vm469, %v441, 0
      %v585 = vsel %vm469, %v442, 0
      %v588 = vsel %vm469, %v443, 0
      %v591 = vsel %vm469, %v444, 0
      %v594 = vsel %vm469, %v445, 0
      %v597 = vsel %vm469, %v446, 0
      %v600 = vsel %vm469, %v447, 0
      %v603 = vsel %vm469, %v448, 0
      %v606 = vsel %vm469, %v449, 0
      %v609 = vsel %vm469, %v450, 0
      %v612 = vsel %vm469, %v451, 0
      %v615 = vsel %vm469, %v452, 0
      %v618 = vsel %vm469, %v453, 0
      %v621 = vsel %vm469, %v454, 0
      %v624 = vsel %vm469, %v455, 0
      %v627 = vsel %vm469, %v456, 0
      %v630 = vsel %vm469, %v457, 0
      %v633 = vsel %vm469, %v458, 0
      %v636 = vsel %vm469, %v459, 0
      %v639 = vsel %vm469, %v460, 0
      %v642 = vsel %vm469, %v461, 0
      %v645 = vsel %vm469, %v462, 0
      %v648 = vsel %vm469, %v463, 0
      %v651 = vsel %vm469, %v464, 0
      %v654 = vsel %vm469, %v465, 0
      %v657 = vsel %vm469, %v466, 0
      %v660 = vsel %vm469, %v467, 0
      %662 = vmatprep.subr.mxu0 0.0
      %663 = vmatpush1.msra.mxu0 0.0
      %664 = vmatprep.subr.mxu0 0.0
      %665 = vmatpush1.msra.mxu0 0.0
      %666 = vmatprep.subr.mxu0 0.0
      %667 = vmatpush1.msra.mxu0 0.0
      %668 = vmatprep.subr.mxu0 0.0
      %669 = vmatpush1.msra.mxu0 0.0
      %670 = vmatprep.subr.mxu0 0.0
      %671 = vmatpush1.msra.mxu0 0.0
      %672 = vmatprep.subr.mxu0 0.0
      %673 = vmatpush1.msra.mxu0 0.0
      %674 = vmatprep.subr.mxu0 0.0
      %675 = vmatpush1.msra.mxu0 0.0
      %676 = vmatprep.subr.mxu0 0.0
      %677 = vmatpush1.msra.mxu0 0.0
      %678 = vmatprep.subr.mxu0 0.0
      %679 = vmatpush1.msra.mxu0 0.0
      %680 = vmatprep.subr.mxu0 0.0
      %681 = vmatpush1.msra.mxu0 0.0
      %682 = vmatprep.subr.mxu0 0.0
      %683 = vmatpush1.msra.mxu0 0.0
      %684 = vmatprep.subr.mxu0 0.0
      %685 = vmatpush1.msra.mxu0 0.0
      %686 = vmatprep.subr.mxu0 0.0
      %687 = vmatpush1.msra.mxu0 0.0
      %688 = vmatprep.subr.mxu0 0.0
      %689 = vmatpush1.msra.mxu0 0.0
      %690 = vmatprep.subr.mxu0 0.0
      %691 = vmatpush1.msra.mxu0 0.0
      %692 = vmatprep.subr.mxu0 0.0
      %693 = vmatpush1.msra.mxu0 %v468
      %694 = vmatprep.subr.mxu0 0.0
      %695 = vmatpush2.msra.mxu0 0.0
      %696 = vmatprep.subr.mxu0 0.0
      %697 = vmatpush2.msra.mxu0 0.0
      %698 = vmatprep.subr.mxu0 0.0
      %699 = vmatpush2.msra.mxu0 0.0
      %700 = vmatprep.subr.mxu0 0.0
      %701 = vmatpush2.msra.mxu0 0.0
      %702 = vmatprep.subr.mxu0 0.0
      %703 = vmatpush2.msra.mxu0 0.0
      %704 = vmatprep.subr.mxu0 0.0
      %705 = vmatpush2.msra.mxu0 0.0
      %706 = vmatprep.subr.mxu0 0.0
      %707 = vmatpush2.msra.mxu0 0.0
      %708 = vmatprep.subr.mxu0 0.0
      %709 = vmatpush2.msra.mxu0 0.0
      %710 = vmatprep.subr.mxu0 0.0
      %711 = vmatpush2.msra.mxu0 0.0
      %712 = vmatprep.subr.mxu0 0.0
      %713 = vmatpush2.msra.mxu0 0.0
      %714 = vmatprep.subr.mxu0 0.0
      %715 = vmatpush2.msra.mxu0 0.0
      %716 = vmatprep.subr.mxu0 0.0
      %717 = vmatpush2.msra.mxu0 0.0
      %718 = vmatprep.subr.mxu0 0.0
      %719 = vmatpush2.msra.mxu0 0.0
      %720 = vmatprep.subr.mxu0 0.0
      %721 = vmatpush2.msra.mxu0 0.0
      %722 = vmatprep.subr.mxu0 0.0
      %723 = vmatpush2.msra.mxu0 0.0
      %724 = vmatprep.subr.mxu0 0.0
      %725 = vmatpush2.msra.mxu0 0.0
      %726 = vmatprep.mubr.f32.mxu0 0.0
      %727 = vmatmul.mubr.f32.gmra.mxu0 %v471
      %v728 = vpop.f32.mrf.mxu0
      %v729 = vadd.f32 0.0, %v728
      %v730 = vpop.f32.mrf.mxu0
      %731 = vmatprep.mubr.f32.mxu0 0.0
      %732 = vmatmul.mubr.f32.gmra.mxu0 %v474
      %v733 = vpop.f32.mrf.mxu0
      %v734 = vadd.f32 0.0, %v733
      %v735 = vpop.f32.mrf.mxu0
      %736 = vmatprep.mubr.f32.mxu0 0.0
      %737 = vmatmul.mubr.f32.gmra.mxu0 %v477
      %v738 = vpop.f32.mrf.mxu0
      %v739 = vadd.f32 0.0, %v738
      %v740 = vpop.f32.mrf.mxu0
      %741 = vmatprep.mubr.f32.mxu0 0.0
      %742 = vmatmul.mubr.f32.gmra.mxu0 %v480
      %v743 = vpop.f32.mrf.mxu0
      %v744 = vadd.f32 0.0, %v743
      %v745 = vpop.f32.mrf.mxu0
      %746 = vmatprep.mubr.f32.mxu0 0.0
      %747 = vmatmul.mubr.f32.gmra.mxu0 %v483
      %v748 = vpop.f32.mrf.mxu0
      %v749 = vadd.f32 0.0, %v748
      %v750 = vpop.f32.mrf.mxu0
      %751 = vmatprep.mubr.f32.mxu0 0.0
      %752 = vmatmul.mubr.f32.gmra.mxu0 %v486
      %v753 = vpop.f32.mrf.mxu0
      %v754 = vadd.f32 0.0, %v753
      %v755 = vpop.f32.mrf.mxu0
      %756 = vmatprep.mubr.f32.mxu0 0.0
      %757 = vmatmul.mubr.f32.gmra.mxu0 %v489
      %v758 = vpop.f32.mrf.mxu0
      %v759 = vadd.f32 0.0, %v758
      %v760 = vpop.f32.mrf.mxu0
      %761 = vmatprep.mubr.f32.mxu0 0.0
      %762 = vmatmul.mubr.f32.gmra.mxu0 %v492
      %v763 = vpop.f32.mrf.mxu0
      %v764 = vadd.f32 0.0, %v763
      %v765 = vpop.f32.mrf.mxu0
      %766 = vmatprep.mubr.f32.mxu0 0.0
      %767 = vmatmul.mubr.f32.gmra.mxu0 %v495
      %v768 = vpop.f32.mrf.mxu0
      %v769 = vadd.f32 0.0, %v768
      %v770 = vpop.f32.mrf.mxu0
      %771 = vmatprep.mubr.f32.mxu0 0.0
      %772 = vmatmul.mubr.f32.gmra.mxu0 %v498
      %v773 = vpop.f32.mrf.mxu0
      %v774 = vadd.f32 0.0, %v773
      %v775 = vpop.f32.mrf.mxu0
      %776 = vmatprep.mubr.f32.mxu0 0.0
      %777 = vmatmul.mubr.f32.gmra.mxu0 %v501
      %v778 = vpop.f32.mrf.mxu0
      %v779 = vadd.f32 0.0, %v778
      %v780 = vpop.f32.mrf.mxu0
      %781 = vmatprep.mubr.f32.mxu0 0.0
      %782 = vmatmul.mubr.f32.gmra.mxu0 %v504
      %v783 = vpop.f32.mrf.mxu0
      %v784 = vadd.f32 0.0, %v783
      %v785 = vpop.f32.mrf.mxu0
      %786 = vmatprep.mubr.f32.mxu0 0.0
      %787 = vmatmul.mubr.f32.gmra.mxu0 %v507
      %v788 = vpop.f32.mrf.mxu0
      %v789 = vadd.f32 0.0, %v788
      %v790 = vpop.f32.mrf.mxu0
      %791 = vmatprep.mubr.f32.mxu0 0.0
      %792 = vmatmul.mubr.f32.gmra.mxu0 %v510
      %v793 = vpop.f32.mrf.mxu0
      %v794 = vadd.f32 0.0, %v793
      %v795 = vpop.f32.mrf.mxu0
      %796 = vmatprep.mubr.f32.mxu0 0.0
      %797 = vmatmul.mubr.f32.gmra.mxu0 %v513
      %v798 = vpop.f32.mrf.mxu0
      %v799 = vadd.f32 0.0, %v798
      %v800 = vpop.f32.mrf.mxu0
      %801 = vmatprep.mubr.f32.mxu0 0.0
      %802 = vmatmul.mubr.f32.gmra.mxu0 %v516
      %v803 = vpop.f32.mrf.mxu0
      %v804 = vadd.f32 0.0, %v803
      %v805 = vpop.f32.mrf.mxu0
      %806 = vmatprep.mubr.f32.mxu0 0.0
      %807 = vmatmul.mubr.f32.gmra.mxu0 %v519
      %v808 = vpop.f32.mrf.mxu0
      %v809 = vadd.f32 0.0, %v808
      %v810 = vpop.f32.mrf.mxu0
      %811 = vmatprep.mubr.f32.mxu0 0.0
      %812 = vmatmul.mubr.f32.gmra.mxu0 %v522
      %v813 = vpop.f32.mrf.mxu0
      %v814 = vadd.f32 0.0, %v813
      %v815 = vpop.f32.mrf.mxu0
      %816 = vmatprep.mubr.f32.mxu0 0.0
      %817 = vmatmul.mubr.f32.gmra.mxu0 %v525
      %v818 = vpop.f32.mrf.mxu0
      %v819 = vadd.f32 0.0, %v818
      %v820 = vpop.f32.mrf.mxu0
      %821 = vmatprep.mubr.f32.mxu0 0.0
      %822 = vmatmul.mubr.f32.gmra.mxu0 %v528
      %v823 = vpop.f32.mrf.mxu0
      %v824 = vadd.f32 0.0, %v823
      %v825 = vpop.f32.mrf.mxu0
      %826 = vmatprep.mubr.f32.mxu0 0.0
      %827 = vmatmul.mubr.f32.gmra.mxu0 %v531
      %v828 = vpop.f32.mrf.mxu0
      %v829 = vadd.f32 0.0, %v828
      %v830 = vpop.f32.mrf.mxu0
      %831 = vmatprep.mubr.f32.mxu0 0.0
      %832 = vmatmul.mubr.f32.gmra.mxu0 %v534
      %v833 = vpop.f32.mrf.mxu0
      %v834 = vadd.f32 0.0, %v833
      %v835 = vpop.f32.mrf.mxu0
      %836 = vmatprep.mubr.f32.mxu0 0.0
      %837 = vmatmul.mubr.f32.gmra.mxu0 %v537
      %v838 = vpop.f32.mrf.mxu0
      %v839 = vadd.f32 0.0, %v838
      %v840 = vpop.f32.mrf.mxu0
      %841 = vmatprep.mubr.f32.mxu0 0.0
      %842 = vmatmul.mubr.f32.gmra.mxu0 %v540
      %v843 = vpop.f32.mrf.mxu0
      %v844 = vadd.f32 0.0, %v843
      %v845 = vpop.f32.mrf.mxu0
      %846 = vmatprep.mubr.f32.mxu0 0.0
      %847 = vmatmul.mubr.f32.gmra.mxu0 %v543
      %v848 = vpop.f32.mrf.mxu0
      %v849 = vadd.f32 0.0, %v848
      %v850 = vpop.f32.mrf.mxu0
      %851 = vmatprep.mubr.f32.mxu0 0.0
      %852 = vmatmul.mubr.f32.gmra.mxu0 %v546
      %v853 = vpop.f32.mrf.mxu0
      %v854 = vadd.f32 0.0, %v853
      %v855 = vpop.f32.mrf.mxu0
      %856 = vmatprep.mubr.f32.mxu0 0.0
      %857 = vmatmul.mubr.f32.gmra.mxu0 %v549
      %v858 = vpop.f32.mrf.mxu0
      %v859 = vadd.f32 0.0, %v858
      %v860 = vpop.f32.mrf.mxu0
      %861 = vmatprep.mubr.f32.mxu0 0.0
      %862 = vmatmul.mubr.f32.gmra.mxu0 %v552
      %v863 = vpop.f32.mrf.mxu0
      %v864 = vadd.f32 0.0, %v863
      %v865 = vpop.f32.mrf.mxu0
      %866 = vmatprep.mubr.f32.mxu0 0.0
      %867 = vmatmul.mubr.f32.gmra.mxu0 %v555
      %v868 = vpop.f32.mrf.mxu0
      %v869 = vadd.f32 0.0, %v868
      %v870 = vpop.f32.mrf.mxu0
      %871 = vmatprep.mubr.f32.mxu0 0.0
      %872 = vmatmul.mubr.f32.gmra.mxu0 %v558
      %v873 = vpop.f32.mrf.mxu0
      %v874 = vadd.f32 0.0, %v873
      %v875 = vpop.f32.mrf.mxu0
      %876 = vmatprep.mubr.f32.mxu0 0.0
      %877 = vmatmul.mubr.f32.gmra.mxu0 %v561
      %v878 = vpop.f32.mrf.mxu0
      %v879 = vadd.f32 0.0, %v878
      %v880 = vpop.f32.mrf.mxu0
      %881 = vmatprep.mubr.f32.mxu0 0.0
      %882 = vmatmul.mubr.f32.gmra.mxu0 %v564
      %v883 = vpop.f32.mrf.mxu0
      %v884 = vadd.f32 0.0, %v883
      %v885 = vpop.f32.mrf.mxu0
      %886 = vmatprep.mubr.f32.mxu0 0.0
      %887 = vmatmul.mubr.f32.gmra.mxu0 %v567
      %v888 = vpop.f32.mrf.mxu0
      %v889 = vadd.f32 0.0, %v888
      %v890 = vpop.f32.mrf.mxu0
      %891 = vmatprep.mubr.f32.mxu0 0.0
      %892 = vmatmul.mubr.f32.gmra.mxu0 %v570
      %v893 = vpop.f32.mrf.mxu0
      %v894 = vadd.f32 0.0, %v893
      %v895 = vpop.f32.mrf.mxu0
      %896 = vmatprep.mubr.f32.mxu0 0.0
      %897 = vmatmul.mubr.f32.gmra.mxu0 %v573
      %v898 = vpop.f32.mrf.mxu0
      %v899 = vadd.f32 0.0, %v898
      %v900 = vpop.f32.mrf.mxu0
      %901 = vmatprep.mubr.f32.mxu0 0.0
      %902 = vmatmul.mubr.f32.gmra.mxu0 %v576
      %v903 = vpop.f32.mrf.mxu0
      %v904 = vadd.f32 0.0, %v903
      %v905 = vpop.f32.mrf.mxu0
      %906 = vmatprep.mubr.f32.mxu0 0.0
      %907 = vmatmul.mubr.f32.gmra.mxu0 %v579
      %v908 = vpop.f32.mrf.mxu0
      %v909 = vadd.f32 0.0, %v908
      %v910 = vpop.f32.mrf.mxu0
      %911 = vmatprep.mubr.f32.mxu0 0.0
      %912 = vmatmul.mubr.f32.gmra.mxu0 %v582
      %v913 = vpop.f32.mrf.mxu0
      %v914 = vadd.f32 0.0, %v913
      %v915 = vpop.f32.mrf.mxu0
      %916 = vmatprep.mubr.f32.mxu0 0.0
      %917 = vmatmul.mubr.f32.gmra.mxu0 %v585
      %v918 = vpop.f32.mrf.mxu0
      %v919 = vadd.f32 0.0, %v918
      %v920 = vpop.f32.mrf.mxu0
      %921 = vmatprep.mubr.f32.mxu0 0.0
      %922 = vmatmul.mubr.f32.gmra.mxu0 %v588
      %v923 = vpop.f32.mrf.mxu0
      %v924 = vadd.f32 0.0, %v923
      %v925 = vpop.f32.mrf.mxu0
      %926 = vmatprep.mubr.f32.mxu0 0.0
      %927 = vmatmul.mubr.f32.gmra.mxu0 %v591
      %v928 = vpop.f32.mrf.mxu0
      %v929 = vadd.f32 0.0, %v928
      %v930 = vpop.f32.mrf.mxu0
      %931 = vmatprep.mubr.f32.mxu0 0.0
      %932 = vmatmul.mubr.f32.gmra.mxu0 %v594
      %v933 = vpop.f32.mrf.mxu0
      %v934 = vadd.f32 0.0, %v933
      %v935 = vpop.f32.mrf.mxu0
      %936 = vmatprep.mubr.f32.mxu0 0.0
      %937 = vmatmul.mubr.f32.gmra.mxu0 %v597
      %v938 = vpop.f32.mrf.mxu0
      %v939 = vadd.f32 0.0, %v938
      %v940 = vpop.f32.mrf.mxu0
      %941 = vmatprep.mubr.f32.mxu0 0.0
      %942 = vmatmul.mubr.f32.gmra.mxu0 %v600
      %v943 = vpop.f32.mrf.mxu0
      %v944 = vadd.f32 0.0, %v943
      %v945 = vpop.f32.mrf.mxu0
      %946 = vmatprep.mubr.f32.mxu0 0.0
      %947 = vmatmul.mubr.f32.gmra.mxu0 %v603
      %v948 = vpop.f32.mrf.mxu0
      %v949 = vadd.f32 0.0, %v948
      %v950 = vpop.f32.mrf.mxu0
      %951 = vmatprep.mubr.f32.mxu0 0.0
      %952 = vmatmul.mubr.f32.gmra.mxu0 %v606
      %v953 = vpop.f32.mrf.mxu0
      %v954 = vadd.f32 0.0, %v953
      %v955 = vpop.f32.mrf.mxu0
      %956 = vmatprep.mubr.f32.mxu0 0.0
      %957 = vmatmul.mubr.f32.gmra.mxu0 %v609
      %v958 = vpop.f32.mrf.mxu0
      %v959 = vadd.f32 0.0, %v958
      %v960 = vpop.f32.mrf.mxu0
      %961 = vmatprep.mubr.f32.mxu0 0.0
      %962 = vmatmul.mubr.f32.gmra.mxu0 %v612
      %v963 = vpop.f32.mrf.mxu0
      %v964 = vadd.f32 0.0, %v963
      %v965 = vpop.f32.mrf.mxu0
      %966 = vmatprep.mubr.f32.mxu0 0.0
      %967 = vmatmul.mubr.f32.gmra.mxu0 %v615
      %v968 = vpop.f32.mrf.mxu0
      %v969 = vadd.f32 0.0, %v968
      %v970 = vpop.f32.mrf.mxu0
      %971 = vmatprep.mubr.f32.mxu0 0.0
      %972 = vmatmul.mubr.f32.gmra.mxu0 %v618
      %v973 = vpop.f32.mrf.mxu0
      %v974 = vadd.f32 0.0, %v973
      %v975 = vpop.f32.mrf.mxu0
      %976 = vmatprep.mubr.f32.mxu0 0.0
      %977 = vmatmul.mubr.f32.gmra.mxu0 %v621
      %v978 = vpop.f32.mrf.mxu0
      %v979 = vadd.f32 0.0, %v978
      %v980 = vpop.f32.mrf.mxu0
      %981 = vmatprep.mubr.f32.mxu0 0.0
      %982 = vmatmul.mubr.f32.gmra.mxu0 %v624
      %v983 = vpop.f32.mrf.mxu0
      %v984 = vadd.f32 0.0, %v983
      %v985 = vpop.f32.mrf.mxu0
      %986 = vmatprep.mubr.f32.mxu0 0.0
      %987 = vmatmul.mubr.f32.gmra.mxu0 %v627
      %v988 = vpop.f32.mrf.mxu0
      %v989 = vadd.f32 0.0, %v988
      %v990 = vpop.f32.mrf.mxu0
      %991 = vmatprep.mubr.f32.mxu0 0.0
      %992 = vmatmul.mubr.f32.gmra.mxu0 %v630
      %v993 = vpop.f32.mrf.mxu0
      %v994 = vadd.f32 0.0, %v993
      %v995 = vpop.f32.mrf.mxu0
      %996 = vmatprep.mubr.f32.mxu0 0.0
      %997 = vmatmul.mubr.f32.gmra.mxu0 %v633
      %v998 = vpop.f32.mrf.mxu0
      %v999 = vadd.f32 0.0, %v998
      %v1000 = vpop.f32.mrf.mxu0
      %1001 = vmatprep.mubr.f32.mxu0 0.0
      %1002 = vmatmul.mubr.f32.gmra.mxu0 %v636
      %v1003 = vpop.f32.mrf.mxu0
      %v1004 = vadd.f32 0.0, %v1003
      %v1005 = vpop.f32.mrf.mxu0
      %1006 = vmatprep.mubr.f32.mxu0 0.0
      %1007 = vmatmul.mubr.f32.gmra.mxu0 %v639
      %v1008 = vpop.f32.mrf.mxu0
      %v1009 = vadd.f32 0.0, %v1008
      %v1010 = vpop.f32.mrf.mxu0
      %1011 = vmatprep.mubr.f32.mxu0 0.0
      %1012 = vmatmul.mubr.f32.gmra.mxu0 %v642
      %v1013 = vpop.f32.mrf.mxu0
      %v1014 = vadd.f32 0.0, %v1013
      %v1015 = vpop.f32.mrf.mxu0
      %1016 = vmatprep.mubr.f32.mxu0 0.0
      %1017 = vmatmul.mubr.f32.gmra.mxu0 %v645
      %v1018 = vpop.f32.mrf.mxu0
      %v1019 = vadd.f32 0.0, %v1018
      %v1020 = vpop.f32.mrf.mxu0
      %1021 = vmatprep.mubr.f32.mxu0 0.0
      %1022 = vmatmul.mubr.f32.gmra.mxu0 %v648
      %v1023 = vpop.f32.mrf.mxu0
      %v1024 = vadd.f32 0.0, %v1023
      %v1025 = vpop.f32.mrf.mxu0
      %1026 = vmatprep.mubr.f32.mxu0 0.0
      %1027 = vmatmul.mubr.f32.gmra.mxu0 %v651
      %v1028 = vpop.f32.mrf.mxu0
      %v1029 = vadd.f32 0.0, %v1028
      %v1030 = vpop.f32.mrf.mxu0
      %1031 = vmatprep.mubr.f32.mxu0 0.0
      %1032 = vmatmul.mubr.f32.gmra.mxu0 %v654
      %v1033 = vpop.f32.mrf.mxu0
      %v1034 = vadd.f32 0.0, %v1033
      %v1035 = vpop.f32.mrf.mxu0
      %1036 = vmatprep.mubr.f32.mxu0 0.0
      %1037 = vmatmul.mubr.f32.gmra.mxu0 %v657
      %v1038 = vpop.f32.mrf.mxu0
      %v1039 = vadd.f32 0.0, %v1038
      %v1040 = vpop.f32.mrf.mxu0
      %1041 = vmatprep.mubr.f32.mxu0 0.0
      %1042 = vmatmul.mubr.f32.gmra.mxu0 %v660
      %v1043 = vpop.f32.mrf.mxu0
      %v1044 = vadd.f32 0.0, %v1043
      %v1045 = vpop.f32.mrf.mxu0
      %1046 = vdwg.mxu0
      %vm1047 = vcmask 130048
      %v1048 = vsel %vm1047, %v729, 0.0
      %v1049 = vsel %vm1047, %v734, 0.0
      %v1050 = vadd.f32 %v1048, %v1049
      %v1051 = vsel %vm1047, %v739, 0.0
      %v1052 = vadd.f32 %v1050, %v1051
      %v1053 = vsel %vm1047, %v744, 0.0
      %v1054 = vadd.f32 %v1052, %v1053
      %v1055 = vsel %vm1047, %v749, 0.0
      %v1056 = vadd.f32 %v1054, %v1055
      %v1057 = vsel %vm1047, %v754, 0.0
      %v1058 = vadd.f32 %v1056, %v1057
      %v1059 = vsel %vm1047, %v759, 0.0
      %v1060 = vadd.f32 %v1058, %v1059
      %v1061 = vsel %vm1047, %v764, 0.0
      %v1062 = vadd.f32 %v1060, %v1061
      %v1063 = vsel %vm1047, %v769, 0.0
      %v1064 = vadd.f32 %v1062, %v1063
      %v1065 = vsel %vm1047, %v774, 0.0
      %v1066 = vadd.f32 %v1064, %v1065
      %v1067 = vsel %vm1047, %v779, 0.0
      %v1068 = vadd.f32 %v1066, %v1067
      %v1069 = vsel %vm1047, %v784, 0.0
      %v1070 = vadd.f32 %v1068, %v1069
      %v1071 = vsel %vm1047, %v789, 0.0
      %v1072 = vadd.f32 %v1070, %v1071
      %v1073 = vsel %vm1047, %v794, 0.0
      %v1074 = vadd.f32 %v1072, %v1073
      %v1075 = vsel %vm1047, %v799, 0.0
      %v1076 = vadd.f32 %v1074, %v1075
      %v1077 = vsel %vm1047, %v804, 0.0
      %v1078 = vadd.f32 %v1076, %v1077
      %v1079 = vsel %vm1047, %v809, 0.0
      %v1080 = vadd.f32 %v1078, %v1079
      %v1081 = vsel %vm1047, %v814, 0.0
      %v1082 = vadd.f32 %v1080, %v1081
      %v1083 = vsel %vm1047, %v819, 0.0
      %v1084 = vadd.f32 %v1082, %v1083
      %v1085 = vsel %vm1047, %v824, 0.0
      %v1086 = vadd.f32 %v1084, %v1085
      %v1087 = vsel %vm1047, %v829, 0.0
      %v1088 = vadd.f32 %v1086, %v1087
      %v1089 = vsel %vm1047, %v834, 0.0
      %v1090 = vadd.f32 %v1088, %v1089
      %v1091 = vsel %vm1047, %v839, 0.0
      %v1092 = vadd.f32 %v1090, %v1091
      %v1093 = vsel %vm1047, %v844, 0.0
      %v1094 = vadd.f32 %v1092, %v1093
      %v1095 = vsel %vm1047, %v849, 0.0
      %v1096 = vadd.f32 %v1094, %v1095
      %v1097 = vsel %vm1047, %v854, 0.0
      %v1098 = vadd.f32 %v1096, %v1097
      %v1099 = vsel %vm1047, %v859, 0.0
      %v1100 = vadd.f32 %v1098, %v1099
      %v1101 = vsel %vm1047, %v864, 0.0
      %v1102 = vadd.f32 %v1100, %v1101
      %v1103 = vsel %vm1047, %v869, 0.0
      %v1104 = vadd.f32 %v1102, %v1103
      %v1105 = vsel %vm1047, %v874, 0.0
      %v1106 = vadd.f32 %v1104, %v1105
      %v1107 = vsel %vm1047, %v879, 0.0
      %v1108 = vadd.f32 %v1106, %v1107
      %v1109 = vsel %vm1047, %v884, 0.0
      %v1110 = vadd.f32 %v1108, %v1109
      %v1111 = vsel %vm1047, %v889, 0.0
      %v1112 = vadd.f32 %v1110, %v1111
      %v1113 = vsel %vm1047, %v894, 0.0
      %v1114 = vadd.f32 %v1112, %v1113
      %v1115 = vsel %vm1047, %v899, 0.0
      %v1116 = vadd.f32 %v1114, %v1115
      %v1117 = vsel %vm1047, %v904, 0.0
      %v1118 = vadd.f32 %v1116, %v1117
      %v1119 = vsel %vm1047, %v909, 0.0
      %v1120 = vadd.f32 %v1118, %v1119
      %v1121 = vsel %vm1047, %v914, 0.0
      %v1122 = vadd.f32 %v1120, %v1121
      %v1123 = vsel %vm1047, %v919, 0.0
      %v1124 = vadd.f32 %v1122, %v1123
      %v1125 = vsel %vm1047, %v924, 0.0
      %v1126 = vadd.f32 %v1124, %v1125
      %v1127 = vsel %vm1047, %v929, 0.0
      %v1128 = vadd.f32 %v1126, %v1127
      %v1129 = vsel %vm1047, %v934, 0.0
      %v1130 = vadd.f32 %v1128, %v1129
      %v1131 = vsel %vm1047, %v939, 0.0
      %v1132 = vadd.f32 %v1130, %v1131
      %v1133 = vsel %vm1047, %v944, 0.0
      %v1134 = vadd.f32 %v1132, %v1133
      %v1135 = vsel %vm1047, %v949, 0.0
      %v1136 = vadd.f32 %v1134, %v1135
      %v1137 = vsel %vm1047, %v954, 0.0
      %v1138 = vadd.f32 %v1136, %v1137
      %v1139 = vsel %vm1047, %v959, 0.0
      %v1140 = vadd.f32 %v1138, %v1139
      %v1141 = vsel %vm1047, %v964, 0.0
      %v1142 = vadd.f32 %v1140, %v1141
      %v1143 = vsel %vm1047, %v969, 0.0
      %v1144 = vadd.f32 %v1142, %v1143
      %v1145 = vsel %vm1047, %v974, 0.0
      %v1146 = vadd.f32 %v1144, %v1145
      %v1147 = vsel %vm1047, %v979, 0.0
      %v1148 = vadd.f32 %v1146, %v1147
      %v1149 = vsel %vm1047, %v984, 0.0
      %v1150 = vadd.f32 %v1148, %v1149
      %v1151 = vsel %vm1047, %v989, 0.0
      %v1152 = vadd.f32 %v1150, %v1151
      %v1153 = vsel %vm1047, %v994, 0.0
      %v1154 = vadd.f32 %v1152, %v1153
      %v1155 = vsel %vm1047, %v999, 0.0
      %v1156 = vadd.f32 %v1154, %v1155
      %v1157 = vsel %vm1047, %v1004, 0.0
      %v1158 = vadd.f32 %v1156, %v1157
      %v1159 = vsel %vm1047, %v1009, 0.0
      %v1160 = vadd.f32 %v1158, %v1159
      %v1161 = vsel %vm1047, %v1014, 0.0
      %v1162 = vadd.f32 %v1160, %v1161
      %v1163 = vsel %vm1047, %v1019, 0.0
      %v1164 = vadd.f32 %v1162, %v1163
      %v1165 = vsel %vm1047, %v1024, 0.0
      %v1166 = vadd.f32 %v1164, %v1165
      %v1167 = vsel %vm1047, %v1029, 0.0
      %v1168 = vadd.f32 %v1166, %v1167
      %v1169 = vsel %vm1047, %v1034, 0.0
      %v1170 = vadd.f32 %v1168, %v1169
      %v1171 = vsel %vm1047, %v1039, 0.0
      %v1172 = vadd.f32 %v1170, %v1171
      %v1173 = vsel %vm1047, %v1044, 0.0
      %v1174 = vadd.f32 %v1172, %v1173
      %v1175 = vrot.slane %v1174, 4
      %v1176 = vadd.f32 %v1174, %v1175
      %v1177 = vrot.slane %v1176, 2
      %v1178 = vadd.f32 %v1176, %v1177
      %v1179 = vrot.slane %v1178, 1
      %v1180 = vadd.f32 %v1178, %v1179
      %vm1181 = vcmask 122880
      %1182 = vst.msk [vmem:[%s197] sm:$0x1] %vm1181, %v1180
      %v1183 = vmul.f32 %v729, %v729
      %v1184 = vmul.f32 %v734, %v734
      %v1185 = vmul.f32 %v739, %v739
      %v1186 = vmul.f32 %v744, %v744
      %v1187 = vmul.f32 %v749, %v749
      %v1188 = vmul.f32 %v754, %v754
      %v1189 = vmul.f32 %v759, %v759
      %v1190 = vmul.f32 %v764, %v764
      %v1191 = vmul.f32 %v769, %v769
      %v1192 = vmul.f32 %v774, %v774
      %v1193 = vmul.f32 %v779, %v779
      %v1194 = vmul.f32 %v784, %v784
      %v1195 = vmul.f32 %v789, %v789
      %v1196 = vmul.f32 %v794, %v794
      %v1197 = vmul.f32 %v799, %v799
      %v1198 = vmul.f32 %v804, %v804
      %v1199 = vmul.f32 %v809, %v809
      %v1200 = vmul.f32 %v814, %v814
      %v1201 = vmul.f32 %v819, %v819
      %v1202 = vmul.f32 %v824, %v824
      %v1203 = vmul.f32 %v829, %v829
      %v1204 = vmul.f32 %v834, %v834
      %v1205 = vmul.f32 %v839, %v839
      %v1206 = vmul.f32 %v844, %v844
      %v1207 = vmul.f32 %v849, %v849
      %v1208 = vmul.f32 %v854, %v854
      %v1209 = vmul.f32 %v859, %v859
      %v1210 = vmul.f32 %v864, %v864
      %v1211 = vmul.f32 %v869, %v869
      %v1212 = vmul.f32 %v874, %v874
      %v1213 = vmul.f32 %v879, %v879
      %v1214 = vmul.f32 %v884, %v884
      %v1215 = vmul.f32 %v889, %v889
      %v1216 = vmul.f32 %v894, %v894
      %v1217 = vmul.f32 %v899, %v899
      %v1218 = vmul.f32 %v904, %v904
      %v1219 = vmul.f32 %v909, %v909
      %v1220 = vmul.f32 %v914, %v914
      %v1221 = vmul.f32 %v919, %v919
      %v1222 = vmul.f32 %v924, %v924
      %v1223 = vmul.f32 %v929, %v929
      %v1224 = vmul.f32 %v934, %v934
      %v1225 = vmul.f32 %v939, %v939
      %v1226 = vmul.f32 %v944, %v944
      %v1227 = vmul.f32 %v949, %v949
      %v1228 = vmul.f32 %v954, %v954
      %v1229 = vmul.f32 %v959, %v959
      %v1230 = vmul.f32 %v964, %v964
      %v1231 = vmul.f32 %v969, %v969
      %v1232 = vmul.f32 %v974, %v974
      %v1233 = vmul.f32 %v979, %v979
      %v1234 = vmul.f32 %v984, %v984
      %v1235 = vmul.f32 %v989, %v989
      %v1236 = vmul.f32 %v994, %v994
      %v1237 = vmul.f32 %v999, %v999
      %v1238 = vmul.f32 %v1004, %v1004
      %v1239 = vmul.f32 %v1009, %v1009
      %v1240 = vmul.f32 %v1014, %v1014
      %v1241 = vmul.f32 %v1019, %v1019
      %v1242 = vmul.f32 %v1024, %v1024
      %v1243 = vmul.f32 %v1029, %v1029
      %v1244 = vmul.f32 %v1034, %v1034
      %v1245 = vmul.f32 %v1039, %v1039
      %v1246 = vmul.f32 %v1044, %v1044
      %v1247 = vsel %vm1047, %v1183, 0.0
      %v1248 = vsel %vm1047, %v1184, 0.0
      %v1249 = vadd.f32 %v1247, %v1248
      %v1250 = vsel %vm1047, %v1185, 0.0
      %v1251 = vadd.f32 %v1249, %v1250
      %v1252 = vsel %vm1047, %v1186, 0.0
      %v1253 = vadd.f32 %v1251, %v1252
      %v1254 = vsel %vm1047, %v1187, 0.0
      %v1255 = vadd.f32 %v1253, %v1254
      %v1256 = vsel %vm1047, %v1188, 0.0
      %v1257 = vadd.f32 %v1255, %v1256
      %v1258 = vsel %vm1047, %v1189, 0.0
      %v1259 = vadd.f32 %v1257, %v1258
      %v1260 = vsel %vm1047, %v1190, 0.0
      %v1261 = vadd.f32 %v1259, %v1260
      %v1262 = vsel %vm1047, %v1191, 0.0
      %v1263 = vadd.f32 %v1261, %v1262
      %v1264 = vsel %vm1047, %v1192, 0.0
      %v1265 = vadd.f32 %v1263, %v1264
      %v1266 = vsel %vm1047, %v1193, 0.0
      %v1267 = vadd.f32 %v1265, %v1266
      %v1268 = vsel %vm1047, %v1194, 0.0
      %v1269 = vadd.f32 %v1267, %v1268
      %v1270 = vsel %vm1047, %v1195, 0.0
      %v1271 = vadd.f32 %v1269, %v1270
      %v1272 = vsel %vm1047, %v1196, 0.0
      %v1273 = vadd.f32 %v1271, %v1272
      %v1274 = vsel %vm1047, %v1197, 0.0
      %v1275 = vadd.f32 %v1273, %v1274
      %v1276 = vsel %vm1047, %v1198, 0.0
      %v1277 = vadd.f32 %v1275, %v1276
      %v1278 = vsel %vm1047, %v1199, 0.0
      %v1279 = vadd.f32 %v1277, %v1278
      %v1280 = vsel %vm1047, %v1200, 0.0
      %v1281 = vadd.f32 %v1279, %v1280
      %v1282 = vsel %vm1047, %v1201, 0.0
      %v1283 = vadd.f32 %v1281, %v1282
      %v1284 = vsel %vm1047, %v1202, 0.0
      %v1285 = vadd.f32 %v1283, %v1284
      %v1286 = vsel %vm1047, %v1203, 0.0
      %v1287 = vadd.f32 %v1285, %v1286
      %v1288 = vsel %vm1047, %v1204, 0.0
      %v1289 = vadd.f32 %v1287, %v1288
      %v1290 = vsel %vm1047, %v1205, 0.0
      %v1291 = vadd.f32 %v1289, %v1290
      %v1292 = vsel %vm1047, %v1206, 0.0
      %v1293 = vadd.f32 %v1291, %v1292
      %v1294 = vsel %vm1047, %v1207, 0.0
      %v1295 = vadd.f32 %v1293, %v1294
      %v1296 = vsel %vm1047, %v1208, 0.0
      %v1297 = vadd.f32 %v1295, %v1296
      %v1298 = vsel %vm1047, %v1209, 0.0
      %v1299 = vadd.f32 %v1297, %v1298
      %v1300 = vsel %vm1047, %v1210, 0.0
      %v1301 = vadd.f32 %v1299, %v1300
      %v1302 = vsel %vm1047, %v1211, 0.0
      %v1303 = vadd.f32 %v1301, %v1302
      %v1304 = vsel %vm1047, %v1212, 0.0
      %v1305 = vadd.f32 %v1303, %v1304
      %v1306 = vsel %vm1047, %v1213, 0.0
      %v1307 = vadd.f32 %v1305, %v1306
      %v1308 = vsel %vm1047, %v1214, 0.0
      %v1309 = vadd.f32 %v1307, %v1308
      %v1310 = vsel %vm1047, %v1215, 0.0
      %v1311 = vadd.f32 %v1309, %v1310
      %v1312 = vsel %vm1047, %v1216, 0.0
      %v1313 = vadd.f32 %v1311, %v1312
      %v1314 = vsel %vm1047, %v1217, 0.0
      %v1315 = vadd.f32 %v1313, %v1314
      %v1316 = vsel %vm1047, %v1218, 0.0
      %v1317 = vadd.f32 %v1315, %v1316
      %v1318 = vsel %vm1047, %v1219, 0.0
      %v1319 = vadd.f32 %v1317, %v1318
      %v1320 = vsel %vm1047, %v1220, 0.0
      %v1321 = vadd.f32 %v1319, %v1320
      %v1322 = vsel %vm1047, %v1221, 0.0
      %v1323 = vadd.f32 %v1321, %v1322
      %v1324 = vsel %vm1047, %v1222, 0.0
      %v1325 = vadd.f32 %v1323, %v1324
      %v1326 = vsel %vm1047, %v1223, 0.0
      %v1327 = vadd.f32 %v1325, %v1326
      %v1328 = vsel %vm1047, %v1224, 0.0
      %v1329 = vadd.f32 %v1327, %v1328
      %v1330 = vsel %vm1047, %v1225, 0.0
      %v1331 = vadd.f32 %v1329, %v1330
      %v1332 = vsel %vm1047, %v1226, 0.0
      %v1333 = vadd.f32 %v1331, %v1332
      %v1334 = vsel %vm1047, %v1227, 0.0
      %v1335 = vadd.f32 %v1333, %v1334
      %v1336 = vsel %vm1047, %v1228, 0.0
      %v1337 = vadd.f32 %v1335, %v1336
      %v1338 = vsel %vm1047, %v1229, 0.0
      %v1339 = vadd.f32 %v1337, %v1338
      %v1340 = vsel %vm1047, %v1230, 0.0
      %v1341 = vadd.f32 %v1339, %v1340
      %v1342 = vsel %vm1047, %v1231, 0.0
      %v1343 = vadd.f32 %v1341, %v1342
      %v1344 = vsel %vm1047, %v1232, 0.0
      %v1345 = vadd.f32 %v1343, %v1344
      %v1346 = vsel %vm1047, %v1233, 0.0
      %v1347 = vadd.f32 %v1345, %v1346
      %v1348 = vsel %vm1047, %v1234, 0.0
      %v1349 = vadd.f32 %v1347, %v1348
      %v1350 = vsel %vm1047, %v1235, 0.0
      %v1351 = vadd.f32 %v1349, %v1350
      %v1352 = vsel %vm1047, %v1236, 0.0
      %v1353 = vadd.f32 %v1351, %v1352
      %v1354 = vsel %vm1047, %v1237, 0.0
      %v1355 = vadd.f32 %v1353, %v1354
      %v1356 = vsel %vm1047, %v1238, 0.0
      %v1357 = vadd.f32 %v1355, %v1356
      %v1358 = vsel %vm1047, %v1239, 0.0
      %v1359 = vadd.f32 %v1357, %v1358
      %v1360 = vsel %vm1047, %v1240, 0.0
      %v1361 = vadd.f32 %v1359, %v1360
      %v1362 = vsel %vm1047, %v1241, 0.0
      %v1363 = vadd.f32 %v1361, %v1362
      %v1364 = vsel %vm1047, %v1242, 0.0
      %v1365 = vadd.f32 %v1363, %v1364
      %v1366 = vsel %vm1047, %v1243, 0.0
      %v1367 = vadd.f32 %v1365, %v1366
      %v1368 = vsel %vm1047, %v1244, 0.0
      %v1369 = vadd.f32 %v1367, %v1368
      %v1370 = vsel %vm1047, %v1245, 0.0
      %v1371 = vadd.f32 %v1369, %v1370
      %v1372 = vsel %vm1047, %v1246, 0.0
      %v1373 = vadd.f32 %v1371, %v1372
      %v1374 = vrot.slane %v1373, 4
      %v1375 = vadd.f32 %v1373, %v1374
      %v1376 = vrot.slane %v1375, 2
      %v1377 = vadd.f32 %v1375, %v1376
      %v1378 = vrot.slane %v1377, 1
      %v1379 = vadd.f32 %v1377, %v1378
      %1380 = vst.msk [vmem:[%s197 + $0x1] sm:$0x1] %vm1181, %v1379
      %p1381 = scmp.lt.s32.totalorder %s15, 1
      %s1382 = scalar_select %p1381, %s15, 1
      %s1383 = smul.addr %s1382, 2
      %s1384 = scalar_lea.vmem %s4, %s1383
      // Predicated region
      $region37: #{_forward_impl.6} parent=35 // pred_check
        %p1385 = pneg %p122
      $region38: #{_forward_impl.6} parent=35 // pred_check_branch
        %1387 = sbr.rel (%p1385) target = $region40
      $region39: #{_forward_impl.6} parent=35 // pred_region
        _
      $region40: #{_forward_impl.6} parent=35 // pred_fallthru
        _
    $region36: #{_forward_impl.6} parent=5 // pred_fallthru
      _
    %p1388 = scmp.le.s32.totalorder 2, %s10
    // Predicated region
    $region41: #{_forward_impl.6} parent=5 // pred_check
      %p1389 = pneg %p1388
    $region42: #{_forward_impl.6} parent=5 // pred_check_branch
      %1391 = sbr.rel (%p1389) target = $region44
    $region43: #{_forward_impl.6} parent=5 // pred_region
      %s1392 = ssub.s32 %s10, 2
      // Predicated region
      $region45: #{_forward_impl.6} parent=43 // pred_check
        %p1393 = pneg %p128
      $region46: #{_forward_impl.6} parent=43 // pred_check_branch
        %1395 = sbr.rel (%p1393) target = $region48
      $region47: #{_forward_impl.6} parent=43 // pred_region
        %p1396 = scmp.lt.s32.totalorder %s16, 1
        %s1397 = scalar_select %p1396, %s16, 1
        %s1398 = smul.addr %s1397, 2
        %s1399 = scalar_lea.vmem %s4, %s1398
      $region48: #{_forward_impl.6} parent=43 // pred_fallthru
        _
    $region44: #{_forward_impl.6} parent=5 // pred_fallthru
      _
  $region6: #{_forward_impl.6} parent=0 // loop_footer
    %s14 = sadd.s32 1, %s10
  $region7: #{_forward_impl.6} parent=0 // loop_footer_branch
    %9 = sbr.rel target = $region3
  $region8: #{_forward_impl.6} parent=0 // loop_exit
    _

// kernel: _forward_impl.7
$region0: #{_forward_impl.7}
  #allocation0 [shape = 'u32[]', space=smem, size = 0x4, offset = 0x4, fixed_abs, tag = 'smem constant byte address 0x4 - core index']
  #allocation1 [shape = 'u32[144,128]{1,0:T(1,128)}', space=vmem, size = 0x12000, scoped, tag = 'internal scratch']
  %s0 = inlined_call_operand.vmem [shape: f32[1024,8], index: 0, kind: input, shape index: {}]
  %s1 = inlined_call_operand.vmem [shape: f32[1024,8], index: 1, kind: input, shape index: {}]
  %s2 = inlined_call_operand.vmem [shape: f32[1,8], index: 2, kind: input, shape index: {}]
  %s3 = inlined_call_operand.vmem [shape: f32[1,8], index: 3, kind: input, shape index: {}]
  %s4 = inlined_call_operand.vmem [shape: f32[8,16], index: 4, kind: input, shape index: {}]
  %s5 = inlined_call_operand.vmem [shape: f32[1,16], index: 5, kind: input, shape index: {}]
  %s6 = inlined_call_operand.vmem [shape: f32[1,16], index: 6, kind: input, shape index: {}]
  %s7 = inlined_call_operand.vmem [shape: f32[8,16], index: 7, kind: input, shape index: {}]
  %s8 = inlined_call_operand.vmem [shape: f32[1024,16], index: 8, kind: output, shape index: {}]
  %s9 = sld [smem:[#allocation0]]
  $region65: #{_forward_impl.7} parent=0
    _
  %s11 = ssub.s32 1, %s9
  %s12 = scalar_select 0, %s11, %s9
  loop: start=0, step=1, limit=4
  $region2: #{_forward_impl.7} parent=0 // loop_pre_header
    _
  $region3: #{_forward_impl.7} parent=0 // loop_header
    %s14 = sphi 0, %s18
    %p15 = scmp.ge.s32.totalorder %s14, 4
    %s24 = sphi 0, %s26
    %s27 = sphi 0, %s24
    %s28 = sphi 0, %s27
    %s44 = sphi 0, %s28
    %s50 = sphi 0, %s52
    %s53 = sphi 0, %s50
    %s54 = sphi 0, %s53
    %s70 = sphi 0, %s54
    %s74 = sphi 0, %s74
    %s76 = sphi 0, %s74
    %s77 = sphi 0, %s76
    %s91 = sphi 0, %s77
    %s95 = sphi 0, %s95
    %s97 = sphi 0, %s95
    %s98 = sphi 0, %s97
    %s112 = sphi 0, %s98
    %s116 = sphi 0, %s116
    %s118 = sphi 0, %s116
    %s119 = sphi 0, %s118
    %s133 = sphi 0, %s119
    %s137 = sphi 0, %s137
    %s139 = sphi 0, %s137
    %s140 = sphi 0, %s139
    %s154 = sphi 0, %s140
    %s158 = sphi 0, %s158
    %s160 = sphi 0, %s158
    %s161 = sphi 0, %s160
    %s175 = sphi 0, %s161
    %s179 = sphi 0, %s179
    %s181 = sphi 0, %s179
    %s182 = sphi 0, %s181
    %s196 = sphi 0, %s182
    %s202 = sphi 0, %s204
    %s205 = sphi 0, %s202
    %s206 = sphi 0, %s205
    %s222 = sphi 0, %s206
  $region4: #{_forward_impl.7} parent=0 // loop_header_branch
    %17 = sbr.rel (%p15) target = $region8
  $region5: #{_forward_impl.7} parent=0 // loop_body
    %s19 = ssub.s32 %s14, 1
    %s20 = ssub.s32 %s14, 2
    %s21 = sadd.s32 %s14, 1
    %s22 = ssub.s32 %s14, %s21
    %p23 = scmp.eq.s32.totalorder %s22, 0
    %s25 = sadd.s32 %s24, 1
    %s26 = scalar_select %p23, %s24, %s25
    %p29 = pneg %p23
    %p30 = scmp.eq.s32.totalorder %s14, 1
    %p31 = por %p29, %p30
    %p32 = scmp.ne.s32.totalorder %s24, %s27
    %p33 = scmp.eq.s32.totalorder %s14, 0
    %p34 = por %p32, %p33
    %p35 = scmp.ne.s32.totalorder %s24, %s27
    %p36 = scmp.eq.s32.totalorder %s19, 1
    %p37 = por %p35, %p36
    %p38 = scmp.ne.s32.totalorder %s27, %s28
    %p39 = scmp.eq.s32.totalorder %s19, 0
    %p40 = por %p38, %p39
    %p41 = scmp.ne.s32.totalorder %s27, %s28
    %p42 = scmp.eq.s32.totalorder %s20, 1
    %p43 = por %p41, %p42
    %p45 = scmp.ne.s32.totalorder %s28, %s44
    %p46 = scmp.eq.s32.totalorder %s20, 0
    %p47 = por %p45, %p46
    %s48 = ssub.s32 %s14, %s21
    %p49 = scmp.eq.s32.totalorder %s48, 0
    %s51 = sadd.s32 %s50, 1
    %s52 = scalar_select %p49, %s50, %s51
    %p55 = pneg %p49
    %p56 = scmp.eq.s32.totalorder %s14, 1
    %p57 = por %p55, %p56
    %p58 = scmp.ne.s32.totalorder %s50, %s53
    %p59 = scmp.eq.s32.totalorder %s14, 0
    %p60 = por %p58, %p59
    %p61 = scmp.ne.s32.totalorder %s50, %s53
    %p62 = scmp.eq.s32.totalorder %s19, 1
    %p63 = por %p61, %p62
    %p64 = scmp.ne.s32.totalorder %s53, %s54
    %p65 = scmp.eq.s32.totalorder %s19, 0
    %p66 = por %p64, %p65
    %p67 = scmp.ne.s32.totalorder %s53, %s54
    %p68 = scmp.eq.s32.totalorder %s20, 1
    %p69 = por %p67, %p68
    %p71 = scmp.ne.s32.totalorder %s54, %s70
    %p72 = scmp.eq.s32.totalorder %s20, 0
    %p73 = por %p71, %p72
    %s75 = sadd.s32 %s74, 1
    %p78 = scmp.eq.s32.totalorder %s14, 1
    %p79 = scmp.ne.s32.totalorder %s74, %s76
    %p80 = scmp.eq.s32.totalorder %s14, 0
    %p81 = por %p79, %p80
    %p82 = scmp.ne.s32.totalorder %s74, %s76
    %p83 = scmp.eq.s32.totalorder %s19, 1
    %p84 = por %p82, %p83
    %p85 = scmp.ne.s32.totalorder %s76, %s77
    %p86 = scmp.eq.s32.totalorder %s19, 0
    %p87 = por %p85, %p86
    %p88 = scmp.ne.s32.totalorder %s76, %s77
    %p89 = scmp.eq.s32.totalorder %s20, 1
    %p90 = por %p88, %p89
    %p92 = scmp.ne.s32.totalorder %s77, %s91
    %p93 = scmp.eq.s32.totalorder %s20, 0
    %p94 = por %p92, %p93
    %s96 = sadd.s32 %s95, 1
    %p99 = scmp.eq.s32.totalorder %s14, 1
    %p100 = scmp.ne.s32.totalorder %s95, %s97
    %p101 = scmp.eq.s32.totalorder %s14, 0
    %p102 = por %p100, %p101
    %p103 = scmp.ne.s32.totalorder %s95, %s97
    %p104 = scmp.eq.s32.totalorder %s19, 1
    %p105 = por %p103, %p104
    %p106 = scmp.ne.s32.totalorder %s97, %s98
    %p107 = scmp.eq.s32.totalorder %s19, 0
    %p108 = por %p106, %p107
    %p109 = scmp.ne.s32.totalorder %s97, %s98
    %p110 = scmp.eq.s32.totalorder %s20, 1
    %p111 = por %p109, %p110
    %p113 = scmp.ne.s32.totalorder %s98, %s112
    %p114 = scmp.eq.s32.totalorder %s20, 0
    %p115 = por %p113, %p114
    %s117 = sadd.s32 %s116, 1
    %p120 = scmp.eq.s32.totalorder %s14, 1
    %p121 = scmp.ne.s32.totalorder %s116, %s118
    %p122 = scmp.eq.s32.totalorder %s14, 0
    %p123 = por %p121, %p122
    %p124 = scmp.ne.s32.totalorder %s116, %s118
    %p125 = scmp.eq.s32.totalorder %s19, 1
    %p126 = por %p124, %p125
    %p127 = scmp.ne.s32.totalorder %s118, %s119
    %p128 = scmp.eq.s32.totalorder %s19, 0
    %p129 = por %p127, %p128
    %p130 = scmp.ne.s32.totalorder %s118, %s119
    %p131 = scmp.eq.s32.totalorder %s20, 1
    %p132 = por %p130, %p131
    %p134 = scmp.ne.s32.totalorder %s119, %s133
    %p135 = scmp.eq.s32.totalorder %s20, 0
    %p136 = por %p134, %p135
    %s138 = sadd.s32 %s137, 1
    %p141 = scmp.eq.s32.totalorder %s14, 1
    %p142 = scmp.ne.s32.totalorder %s137, %s139
    %p143 = scmp.eq.s32.totalorder %s14, 0
    %p144 = por %p142, %p143
    %p145 = scmp.ne.s32.totalorder %s137, %s139
    %p146 = scmp.eq.s32.totalorder %s19, 1
    %p147 = por %p145, %p146
    %p148 = scmp.ne.s32.totalorder %s139, %s140
    %p149 = scmp.eq.s32.totalorder %s19, 0
    %p150 = por %p148, %p149
    %p151 = scmp.ne.s32.totalorder %s139, %s140
    %p152 = scmp.eq.s32.totalorder %s20, 1
    %p153 = por %p151, %p152
    %p155 = scmp.ne.s32.totalorder %s140, %s154
    %p156 = scmp.eq.s32.totalorder %s20, 0
    %p157 = por %p155, %p156
    %s159 = sadd.s32 %s158, 1
    %p162 = scmp.eq.s32.totalorder %s14, 1
    %p163 = scmp.ne.s32.totalorder %s158, %s160
    %p164 = scmp.eq.s32.totalorder %s14, 0
    %p165 = por %p163, %p164
    %p166 = scmp.ne.s32.totalorder %s158, %s160
    %p167 = scmp.eq.s32.totalorder %s19, 1
    %p168 = por %p166, %p167
    %p169 = scmp.ne.s32.totalorder %s160, %s161
    %p170 = scmp.eq.s32.totalorder %s19, 0
    %p171 = por %p169, %p170
    %p172 = scmp.ne.s32.totalorder %s160, %s161
    %p173 = scmp.eq.s32.totalorder %s20, 1
    %p174 = por %p172, %p173
    %p176 = scmp.ne.s32.totalorder %s161, %s175
    %p177 = scmp.eq.s32.totalorder %s20, 0
    %p178 = por %p176, %p177
    %s180 = sadd.s32 %s179, 1
    %p183 = scmp.eq.s32.totalorder %s14, 1
    %p184 = scmp.ne.s32.totalorder %s179, %s181
    %p185 = scmp.eq.s32.totalorder %s14, 0
    %p186 = por %p184, %p185
    %p187 = scmp.ne.s32.totalorder %s179, %s181
    %p188 = scmp.eq.s32.totalorder %s19, 1
    %p189 = por %p187, %p188
    %p190 = scmp.ne.s32.totalorder %s181, %s182
    %p191 = scmp.eq.s32.totalorder %s19, 0
    %p192 = por %p190, %p191
    %p193 = scmp.ne.s32.totalorder %s181, %s182
    %p194 = scmp.eq.s32.totalorder %s20, 1
    %p195 = por %p193, %p194
    %p197 = scmp.ne.s32.totalorder %s182, %s196
    %p198 = scmp.eq.s32.totalorder %s20, 0
    %p199 = por %p197, %p198
    %s200 = ssub.s32 %s14, %s21
    %p201 = scmp.eq.s32.totalorder %s200, 0
    %s203 = sadd.s32 %s202, 1
    %s204 = scalar_select %p201, %s202, %s203
    %p207 = pneg %p201
    %p208 = scmp.eq.s32.totalorder %s14, 1
    %p209 = por %p207, %p208
    %p210 = scmp.ne.s32.totalorder %s202, %s205
    %p211 = scmp.eq.s32.totalorder %s14, 0
    %p212 = por %p210, %p211
    %p213 = scmp.ne.s32.totalorder %s202, %s205
    %p214 = scmp.eq.s32.totalorder %s19, 1
    %p215 = por %p213, %p214
    %p216 = scmp.ne.s32.totalorder %s205, %s206
    %p217 = scmp.eq.s32.totalorder %s19, 0
    %p218 = por %p216, %p217
    %p219 = scmp.ne.s32.totalorder %s205, %s206
    %p220 = scmp.eq.s32.totalorder %s20, 1
    %p221 = por %p219, %p220
    %p223 = scmp.ne.s32.totalorder %s206, %s222
    %p224 = scmp.eq.s32.totalorder %s20, 0
    %p225 = por %p223, %p224
    %p226 = scmp.le.s32.totalorder 1, %s14
    %p227 = scmp.lt.s32.totalorder %s14, 3
    %p228 = pnand %p226, %p227
    %p229 = pneg %p228
    // Predicated region
    $region9: #{_forward_impl.7} parent=5 // pred_check
      _
    $region10: #{_forward_impl.7} parent=5 // pred_check_branch
      %231 = sbr.rel (%p228) target = $region12
    $region11: #{_forward_impl.7} parent=5 // pred_region
      %s232 = ssub.s32 %s14, 1
      // Predicated region
      $region13: #{_forward_impl.7} parent=11 // pred_check
        %p233 = pneg %p87
      $region14: #{_forward_impl.7} parent=11 // pred_check_branch
        %235 = sbr.rel (%p233) target = $region16
      $region15: #{_forward_impl.7} parent=11 // pred_region
        _
      $region16: #{_forward_impl.7} parent=11 // pred_fallthru
        _
      // Predicated region
      $region17: #{_forward_impl.7} parent=11 // pred_check
        %p236 = pneg %p108
      $region18: #{_forward_impl.7} parent=11 // pred_check_branch
        %238 = sbr.rel (%p236) target = $region20
      $region19: #{_forward_impl.7} parent=11 // pred_region
        _
      $region20: #{_forward_impl.7} parent=11 // pred_fallthru
        _
      // Predicated region
      $region21: #{_forward_impl.7} parent=11 // pred_check
        %p239 = pneg %p129
      $region22: #{_forward_impl.7} parent=11 // pred_check_branch
        %241 = sbr.rel (%p239) target = $region24
      $region23: #{_forward_impl.7} parent=11 // pred_region
        _
      $region24: #{_forward_impl.7} parent=11 // pred_fallthru
        _
      // Predicated region
      $region25: #{_forward_impl.7} parent=11 // pred_check
        %p242 = pneg %p150
      $region26: #{_forward_impl.7} parent=11 // pred_check_branch
        %244 = sbr.rel (%p242) target = $region28
      $region27: #{_forward_impl.7} parent=11 // pred_region
        _
      $region28: #{_forward_impl.7} parent=11 // pred_fallthru
        _
      // Predicated region
      $region29: #{_forward_impl.7} parent=11 // pred_check
        %p245 = pneg %p171
      $region30: #{_forward_impl.7} parent=11 // pred_check_branch
        %247 = sbr.rel (%p245) target = $region32
      $region31: #{_forward_impl.7} parent=11 // pred_region
        _
      $region32: #{_forward_impl.7} parent=11 // pred_fallthru
        _
      // Predicated region
      $region33: #{_forward_impl.7} parent=11 // pred_check
        %p248 = pneg %p192
      $region34: #{_forward_impl.7} parent=11 // pred_check_branch
        %250 = sbr.rel (%p248) target = $region36
      $region35: #{_forward_impl.7} parent=11 // pred_region
        _
      $region36: #{_forward_impl.7} parent=11 // pred_fallthru
        _
    $region12: #{_forward_impl.7} parent=5 // pred_fallthru
      _
    %p251 = scmp.lt.s32.totalorder %s14, 2
    // Predicated region
    $region37: #{_forward_impl.7} parent=5 // pred_check
      %p252 = pneg %p251
    $region38: #{_forward_impl.7} parent=5 // pred_check_branch
      %254 = sbr.rel (%p252) target = $region40
    $region39: #{_forward_impl.7} parent=5 // pred_region
      // Predicated region
      $region41: #{_forward_impl.7} parent=39 // pred_check
        %p255 = pneg %p34
      $region42: #{_forward_impl.7} parent=39 // pred_check_branch
        %257 = sbr.rel (%p255) target = $region44
      $region43: #{_forward_impl.7} parent=39 // pred_region
        %s258 = smul.u32 64, %s14
        %p259 = scmp.lt.s32.totalorder %s258, 127
        %s260 = scalar_select %p259, %s258, 127
        %s261 = smul.addr %s260, 8
        %s262 = scalar_lea.vmem %s0, %s261
        %s263 = smul.u32 64, %s14
      $region44: #{_forward_impl.7} parent=39 // pred_fallthru
        _
      // Predicated region
      $region45: #{_forward_impl.7} parent=39 // pred_check
        %p264 = pneg %p60
      $region46: #{_forward_impl.7} parent=39 // pred_check_branch
        %266 = sbr.rel (%p264) target = $region48
      $region47: #{_forward_impl.7} parent=39 // pred_region
        %s267 = smul.u32 64, %s14
        %p268 = scmp.lt.s32.totalorder %s267, 127
        %s269 = scalar_select %p268, %s267, 127
        %s270 = smul.addr %s269, 8
        %s271 = scalar_lea.vmem %s1, %s270
        %s272 = smul.u32 64, %s14
      $region48: #{_forward_impl.7} parent=39 // pred_fallthru
        _
    $region40: #{_forward_impl.7} parent=5 // pred_fallthru
      _
    %p273 = scmp.le.s32.totalorder 1, %s14
    %p274 = scmp.lt.s32.totalorder %s14, 3
    %p275 = pnand %p273, %p274
    %p276 = pneg %p275
    // Predicated region
    $region49: #{_forward_impl.7} parent=5 // pred_check
      _
    $region50: #{_forward_impl.7} parent=5 // pred_check_branch
      %278 = sbr.rel (%p275) target = $region52
    $region51: #{_forward_impl.7} parent=5 // pred_region
      %s279 = ssub.s32 %s14, 1
      %s280 = smul.u32 64, %s19
      %p281 = scmp.lt.s32.totalorder %s280, 127
      %s282 = scalar_select %p281, %s280, 127
      %s283 = smul.addr %s282, 8
      %s284 = scalar_lea.vmem %s0, %s283
      %p285 = pneg %p40
      %p286 = pneg %p37
      %s287 = smul.u32 64, %s19
      %p288 = scmp.lt.s32.totalorder %s287, 127
      %s289 = scalar_select %p288, %s287, 127
      %s290 = smul.addr %s289, 8
      %s291 = scalar_lea.vmem %s1, %s290
      %p292 = pneg %p66
      %p293 = pneg %p63
      %p294 = pneg %p87
      %p295 = pneg %p84
      %p296 = pneg %p108
      %p297 = pneg %p105
      %p298 = pneg %p129
      %p299 = pneg %p126
      %p300 = pneg %p150
      %p301 = pneg %p147
      %p302 = pneg %p171
      %p303 = pneg %p168
      %p304 = pneg %p192
      %p305 = pneg %p189
      %p306 = pneg %p218
      %p307 = pneg %p215
      %s308 = smul.u32 64, %s19
      %p309 = scmp.lt.s32.totalorder %s308, 127
      %s310 = scalar_select %p309, %s308, 127
      %s311 = smul.addr %s310, 8
      %s312 = scalar_lea.vmem %s8, %s311
      %s313 = smul.u32 64, %s19
      %p314 = scmp.lt.s32.totalorder %s313, 127
      %s315 = scalar_select %p314, %s313, 127
      %s316 = smul.addr %s315, 8
      %s317 = scalar_lea.vmem %s0, %s316
      %s318 = smul.u32 64, %s19
      %s319 = smul.u32 64, %s19
      %p320 = scmp.lt.s32.totalorder %s319, 127
      %s321 = scalar_select %p320, %s319, 127
      %s322 = smul.addr %s321, 8
      %s323 = scalar_lea.vmem %s1, %s322
      %s324 = smul.u32 64, %s19
      %s325 = smul.u32 64, %s19
      %p326 = scmp.lt.s32.totalorder %s325, 127
      %s327 = scalar_select %p326, %s325, 127
      %s328 = smul.addr %s327, 8
      %s329 = scalar_lea.vmem %s8, %s328
      %s330 = smul.u32 64, %s19
      %v331 = vld [vmem:[%s317] sm:$0xff]
      %v332 = vld [vmem:[%s317 + $0x8] sm:$0xff]
      %v333 = vld [vmem:[%s317 + $0x10] sm:$0xff]
      %v334 = vld [vmem:[%s317 + $0x18] sm:$0xff]
      %v335 = vld [vmem:[%s317 + $0x20] sm:$0xff]
      %v336 = vld [vmem:[%s317 + $0x28] sm:$0xff]
      %v337 = vld [vmem:[%s317 + $0x30] sm:$0xff]
      %v338 = vld [vmem:[%s317 + $0x38] sm:$0xff]
      %v339 = vld [vmem:[%s317 + $0x40] sm:$0xff]
      %v340 = vld [vmem:[%s317 + $0x48] sm:$0xff]
      %v341 = vld [vmem:[%s317 + $0x50] sm:$0xff]
      %v342 = vld [vmem:[%s317 + $0x58] sm:$0xff]
      %v343 = vld [vmem:[%s317 + $0x60] sm:$0xff]
      %v344 = vld [vmem:[%s317 + $0x68] sm:$0xff]
      %v345 = vld [vmem:[%s317 + $0x70] sm:$0xff]
      %v346 = vld [vmem:[%s317 + $0x78] sm:$0xff]
      %v347 = vld [vmem:[%s317 + $0x80] sm:$0xff]
      %v348 = vld [vmem:[%s317 + $0x88] sm:$0xff]
      %v349 = vld [vmem:[%s317 + $0x90] sm:$0xff]
      %v350 = vld [vmem:[%s317 + $0x98] sm:$0xff]
      %v351 = vld [vmem:[%s317 + $0xa0] sm:$0xff]
      %v352 = vld [vmem:[%s317 + $0xa8] sm:$0xff]
      %v353 = vld [vmem:[%s317 + $0xb0] sm:$0xff]
      %v354 = vld [vmem:[%s317 + $0xb8] sm:$0xff]
      %v355 = vld [vmem:[%s317 + $0xc0] sm:$0xff]
      %v356 = vld [vmem:[%s317 + $0xc8] sm:$0xff]
      %v357 = vld [vmem:[%s317 + $0xd0] sm:$0xff]
      %v358 = vld [vmem:[%s317 + $0xd8] sm:$0xff]
      %v359 = vld [vmem:[%s317 + $0xe0] sm:$0xff]
      %v360 = vld [vmem:[%s317 + $0xe8] sm:$0xff]
      %v361 = vld [vmem:[%s317 + $0xf0] sm:$0xff]
      %v362 = vld [vmem:[%s317 + $0xf8] sm:$0xff]
      %v363 = vld [vmem:[%s317 + $0x100] sm:$0xff]
      %v364 = vld [vmem:[%s317 + $0x108] sm:$0xff]
      %v365 = vld [vmem:[%s317 + $0x110] sm:$0xff]
      %v366 = vld [vmem:[%s317 + $0x118] sm:$0xff]
      %v367 = vld [vmem:[%s317 + $0x120] sm:$0xff]
      %v368 = vld [vmem:[%s317 + $0x128] sm:$0xff]
      %v369 = vld [vmem:[%s317 + $0x130] sm:$0xff]
      %v370 = vld [vmem:[%s317 + $0x138] sm:$0xff]
      %v371 = vld [vmem:[%s317 + $0x140] sm:$0xff]
      %v372 = vld [vmem:[%s317 + $0x148] sm:$0xff]
      %v373 = vld [vmem:[%s317 + $0x150] sm:$0xff]
      %v374 = vld [vmem:[%s317 + $0x158] sm:$0xff]
      %v375 = vld [vmem:[%s317 + $0x160] sm:$0xff]
      %v376 = vld [vmem:[%s317 + $0x168] sm:$0xff]
      %v377 = vld [vmem:[%s317 + $0x170] sm:$0xff]
      %v378 = vld [vmem:[%s317 + $0x178] sm:$0xff]
      %v379 = vld [vmem:[%s317 + $0x180] sm:$0xff]
      %v380 = vld [vmem:[%s317 + $0x188] sm:$0xff]
      %v381 = vld [vmem:[%s317 + $0x190] sm:$0xff]
      %v382 = vld [vmem:[%s317 + $0x198] sm:$0xff]
      %v383 = vld [vmem:[%s317 + $0x1a0] sm:$0xff]
      %v384 = vld [vmem:[%s317 + $0x1a8] sm:$0xff]
      %v385 = vld [vmem:[%s317 + $0x1b0] sm:$0xff]
      %v386 = vld [vmem:[%s317 + $0x1b8] sm:$0xff]
      %v387 = vld [vmem:[%s317 + $0x1c0] sm:$0xff]
      %v388 = vld [vmem:[%s317 + $0x1c8] sm:$0xff]
      %v389 = vld [vmem:[%s317 + $0x1d0] sm:$0xff]
      %v390 = vld [vmem:[%s317 + $0x1d8] sm:$0xff]
      %v391 = vld [vmem:[%s317 + $0x1e0] sm:$0xff]
      %v392 = vld [vmem:[%s317 + $0x1e8] sm:$0xff]
      %v393 = vld [vmem:[%s317 + $0x1f0] sm:$0xff]
      %v394 = vld [vmem:[%s317 + $0x1f8] sm:$0xff]
      %v395 = vld [vmem:[%s2] sm:$0x1]
      %v397 = vlaneseq
      %v398 = vshrl.u32 %v397, 7
      %v399 = vsub.s32 0, %v398
      %v400 = vrot.slane %v395, %v399
      %v402 = vmul.f32 %v331, %v400
      %v403 = vmul.f32 %v332, %v400
      %v404 = vmul.f32 %v333, %v400
      %v405 = vmul.f32 %v334, %v400
      %v406 = vmul.f32 %v335, %v400
      %v407 = vmul.f32 %v336, %v400
      %v408 = vmul.f32 %v337, %v400
      %v409 = vmul.f32 %v338, %v400
      %v410 = vmul.f32 %v339, %v400
      %v411 = vmul.f32 %v340, %v400
      %v412 = vmul.f32 %v341, %v400
      %v413 = vmul.f32 %v342, %v400
      %v414 = vmul.f32 %v343, %v400
      %v415 = vmul.f32 %v344, %v400
      %v416 = vmul.f32 %v345, %v400
      %v417 = vmul.f32 %v346, %v400
      %v418 = vmul.f32 %v347, %v400
      %v419 = vmul.f32 %v348, %v400
      %v420 = vmul.f32 %v349, %v400
      %v421 = vmul.f32 %v350, %v400
      %v422 = vmul.f32 %v351, %v400
      %v423 = vmul.f32 %v352, %v400
      %v424 = vmul.f32 %v353, %v400
      %v425 = vmul.f32 %v354, %v400
      %v426 = vmul.f32 %v355, %v400
      %v427 = vmul.f32 %v356, %v400
      %v428 = vmul.f32 %v357, %v400
      %v429 = vmul.f32 %v358, %v400
      %v430 = vmul.f32 %v359, %v400
      %v431 = vmul.f32 %v360, %v400
      %v432 = vmul.f32 %v361, %v400
      %v433 = vmul.f32 %v362, %v400
      %v434 = vmul.f32 %v363, %v400
      %v435 = vmul.f32 %v364, %v400
      %v436 = vmul.f32 %v365, %v400
      %v437 = vmul.f32 %v366, %v400
      %v438 = vmul.f32 %v367, %v400
      %v439 = vmul.f32 %v368, %v400
      %v440 = vmul.f32 %v369, %v400
      %v441 = vmul.f32 %v370, %v400
      %v442 = vmul.f32 %v371, %v400
      %v443 = vmul.f32 %v372, %v400
      %v444 = vmul.f32 %v373, %v400
      %v445 = vmul.f32 %v374, %v400
      %v446 = vmul.f32 %v375, %v400
      %v447 = vmul.f32 %v376, %v400
      %v448 = vmul.f32 %v377, %v400
      %v449 = vmul.f32 %v378, %v400
      %v450 = vmul.f32 %v379, %v400
      %v451 = vmul.f32 %v380, %v400
      %v452 = vmul.f32 %v381, %v400
      %v453 = vmul.f32 %v382, %v400
      %v454 = vmul.f32 %v383, %v400
      %v455 = vmul.f32 %v384, %v400
      %v456 = vmul.f32 %v385, %v400
      %v457 = vmul.f32 %v386, %v400
      %v458 = vmul.f32 %v387, %v400
      %v459 = vmul.f32 %v388, %v400
      %v460 = vmul.f32 %v389, %v400
      %v461 = vmul.f32 %v390, %v400
      %v462 = vmul.f32 %v391, %v400
      %v463 = vmul.f32 %v392, %v400
      %v464 = vmul.f32 %v393, %v400
      %v465 = vmul.f32 %v394, %v400
      %v466 = vld [vmem:[%s3] sm:$0x1]
      %v468 = vlaneseq
      %v469 = vshrl.u32 %v468, 7
      %v470 = vsub.s32 0, %v469
      %v471 = vrot.slane %v466, %v470
      %v473 = vadd.f32 %v402, %v471
      %v474 = vadd.f32 %v403, %v471
      %v475 = vadd.f32 %v404, %v471
      %v476 = vadd.f32 %v405, %v471
      %v477 = vadd.f32 %v406, %v471
      %v478 = vadd.f32 %v407, %v471
      %v479 = vadd.f32 %v408, %v471
      %v480 = vadd.f32 %v409, %v471
      %v481 = vadd.f32 %v410, %v471
      %v482 = vadd.f32 %v411, %v471
      %v483 = vadd.f32 %v412, %v471
      %v484 = vadd.f32 %v413, %v471
      %v485 = vadd.f32 %v414, %v471
      %v486 = vadd.f32 %v415, %v471
      %v487 = vadd.f32 %v416, %v471
      %v488 = vadd.f32 %v417, %v471
      %v489 = vadd.f32 %v418, %v471
      %v490 = vadd.f32 %v419, %v471
      %v491 = vadd.f32 %v420, %v471
      %v492 = vadd.f32 %v421, %v471
      %v493 = vadd.f32 %v422, %v471
      %v494 = vadd.f32 %v423, %v471
      %v495 = vadd.f32 %v424, %v471
      %v496 = vadd.f32 %v425, %v471
      %v497 = vadd.f32 %v426, %v471
      %v498 = vadd.f32 %v427, %v471
      %v499 = vadd.f32 %v428, %v471
      %v500 = vadd.f32 %v429, %v471
      %v501 = vadd.f32 %v430, %v471
      %v502 = vadd.f32 %v431, %v471
      %v503 = vadd.f32 %v432, %v471
      %v504 = vadd.f32 %v433, %v471
      %v505 = vadd.f32 %v434, %v471
      %v506 = vadd.f32 %v435, %v471
      %v507 = vadd.f32 %v436, %v471
      %v508 = vadd.f32 %v437, %v471
      %v509 = vadd.f32 %v438, %v471
      %v510 = vadd.f32 %v439, %v471
      %v511 = vadd.f32 %v440, %v471
      %v512 = vadd.f32 %v441, %v471
      %v513 = vadd.f32 %v442, %v471
      %v514 = vadd.f32 %v443, %v471
      %v515 = vadd.f32 %v444, %v471
      %v516 = vadd.f32 %v445, %v471
      %v517 = vadd.f32 %v446, %v471
      %v518 = vadd.f32 %v447, %v471
      %v519 = vadd.f32 %v448, %v471
      %v520 = vadd.f32 %v449, %v471
      %v521 = vadd.f32 %v450, %v471
      %v522 = vadd.f32 %v451, %v471
      %v523 = vadd.f32 %v452, %v471
      %v524 = vadd.f32 %v453, %v471
      %v525 = vadd.f32 %v454, %v471
      %v526 = vadd.f32 %v455, %v471
      %v527 = vadd.f32 %v456, %v471
      %v528 = vadd.f32 %v457, %v471
      %v529 = vadd.f32 %v458, %v471
      %v530 = vadd.f32 %v459, %v471
      %v531 = vadd.f32 %v460, %v471
      %v532 = vadd.f32 %v461, %v471
      %v533 = vadd.f32 %v462, %v471
      %v534 = vadd.f32 %v463, %v471
      %v535 = vadd.f32 %v464, %v471
      %v536 = vadd.f32 %v465, %v471
      %v537 = vmax.f32 %v473, 0.0
      %v538 = vmax.f32 %v474, 0.0
      %v539 = vmax.f32 %v475, 0.0
      %v540 = vmax.f32 %v476, 0.0
      %v541 = vmax.f32 %v477, 0.0
      %v542 = vmax.f32 %v478, 0.0
      %v543 = vmax.f32 %v479, 0.0
      %v544 = vmax.f32 %v480, 0.0
      %v545 = vmax.f32 %v481, 0.0
      %v546 = vmax.f32 %v482, 0.0
      %v547 = vmax.f32 %v483, 0.0
      %v548 = vmax.f32 %v484, 0.0
      %v549 = vmax.f32 %v485, 0.0
      %v550 = vmax.f32 %v486, 0.0
      %v551 = vmax.f32 %v487, 0.0
      %v552 = vmax.f32 %v488, 0.0
      %v553 = vmax.f32 %v489, 0.0
      %v554 = vmax.f32 %v490, 0.0
      %v555 = vmax.f32 %v491, 0.0
      %v556 = vmax.f32 %v492, 0.0
      %v557 = vmax.f32 %v493, 0.0
      %v558 = vmax.f32 %v494, 0.0
      %v559 = vmax.f32 %v495, 0.0
      %v560 = vmax.f32 %v496, 0.0
      %v561 = vmax.f32 %v497, 0.0
      %v562 = vmax.f32 %v498, 0.0
      %v563 = vmax.f32 %v499, 0.0
      %v564 = vmax.f32 %v500, 0.0
      %v565 = vmax.f32 %v501, 0.0
      %v566 = vmax.f32 %v502, 0.0
      %v567 = vmax.f32 %v503, 0.0
      %v568 = vmax.f32 %v504, 0.0
      %v569 = vmax.f32 %v505, 0.0
      %v570 = vmax.f32 %v506, 0.0
      %v571 = vmax.f32 %v507, 0.0
      %v572 = vmax.f32 %v508, 0.0
      %v573 = vmax.f32 %v509, 0.0
      %v574 = vmax.f32 %v510, 0.0
      %v575 = vmax.f32 %v511, 0.0
      %v576 = vmax.f32 %v512, 0.0
      %v577 = vmax.f32 %v513, 0.0
      %v578 = vmax.f32 %v514, 0.0
      %v579 = vmax.f32 %v515, 0.0
      %v580 = vmax.f32 %v516, 0.0
      %v581 = vmax.f32 %v517, 0.0
      %v582 = vmax.f32 %v518, 0.0
      %v583 = vmax.f32 %v519, 0.0
      %v584 = vmax.f32 %v520, 0.0
      %v585 = vmax.f32 %v521, 0.0
      %v586 = vmax.f32 %v522, 0.0
      %v587 = vmax.f32 %v523, 0.0
      %v588 = vmax.f32 %v524, 0.0
      %v589 = vmax.f32 %v525, 0.0
      %v590 = vmax.f32 %v526, 0.0
      %v591 = vmax.f32 %v527, 0.0
      %v592 = vmax.f32 %v528, 0.0
      %v593 = vmax.f32 %v529, 0.0
      %v594 = vmax.f32 %v530, 0.0
      %v595 = vmax.f32 %v531, 0.0
      %v596 = vmax.f32 %v532, 0.0
      %v597 = vmax.f32 %v533, 0.0
      %v598 = vmax.f32 %v534, 0.0
      %v599 = vmax.f32 %v535, 0.0
      %v600 = vmax.f32 %v536, 0.0
      %v601 = vld [vmem:[%s4] sm:$0xff]
      %vm602 = vcmask 64512
      %v604 = vsel %vm602, %v537, 0
      %v607 = vsel %vm602, %v538, 0
      %v610 = vsel %vm602, %v539, 0
      %v613 = vsel %vm602, %v540, 0
      %v616 = vsel %vm602, %v541, 0
      %v619 = vsel %vm602, %v542, 0
      %v622 = vsel %vm602, %v543, 0
      %v625 = vsel %vm602, %v544, 0
      %v628 = vsel %vm602, %v545, 0
      %v631 = vsel %vm602, %v546, 0
      %v634 = vsel %vm602, %v547, 0
      %v637 = vsel %vm602, %v548, 0
      %v640 = vsel %vm602, %v549, 0
      %v643 = vsel %vm602, %v550, 0
      %v646 = vsel %vm602, %v551, 0
      %v649 = vsel %vm602, %v552, 0
      %v652 = vsel %vm602, %v553, 0
      %v655 = vsel %vm602, %v554, 0
      %v658 = vsel %vm602, %v555, 0
      %v661 = vsel %vm602, %v556, 0
      %v664 = vsel %vm602, %v557, 0
      %v667 = vsel %vm602, %v558, 0
      %v670 = vsel %vm602, %v559, 0
      %v673 = vsel %vm602, %v560, 0
      %v676 = vsel %vm602, %v561, 0
      %v679 = vsel %vm602, %v562, 0
      %v682 = vsel %vm602, %v563, 0
      %v685 = vsel %vm602, %v564, 0
      %v688 = vsel %vm602, %v565, 0
      %v691 = vsel %vm602, %v566, 0
      %v694 = vsel %vm602, %v567, 0
      %v697 = vsel %vm602, %v568, 0
      %v700 = vsel %vm602, %v569, 0
      %v703 = vsel %vm602, %v570, 0
      %v706 = vsel %vm602, %v571, 0
      %v709 = vsel %vm602, %v572, 0
      %v712 = vsel %vm602, %v573, 0
      %v715 = vsel %vm602, %v574, 0
      %v718 = vsel %vm602, %v575, 0
      %v721 = vsel %vm602, %v576, 0
      %v724 = vsel %vm602, %v577, 0
      %v727 = vsel %vm602, %v578, 0
      %v730 = vsel %vm602, %v579, 0
      %v733 = vsel %vm602, %v580, 0
      %v736 = vsel %vm602, %v581, 0
      %v739 = vsel %vm602, %v582, 0
      %v742 = vsel %vm602, %v583, 0
      %v745 = vsel %vm602, %v584, 0
      %v748 = vsel %vm602, %v585, 0
      %v751 = vsel %vm602, %v586, 0
      %v754 = vsel %vm602, %v587, 0
      %v757 = vsel %vm602, %v588, 0
      %v760 = vsel %vm602, %v589, 0
      %v763 = vsel %vm602, %v590, 0
      %v766 = vsel %vm602, %v591, 0
      %v769 = vsel %vm602, %v592, 0
      %v772 = vsel %vm602, %v593, 0
      %v775 = vsel %vm602, %v594, 0
      %v778 = vsel %vm602, %v595, 0
      %v781 = vsel %vm602, %v596, 0
      %v784 = vsel %vm602, %v597, 0
      %v787 = vsel %vm602, %v598, 0
      %v790 = vsel %vm602, %v599, 0
      %v793 = vsel %vm602, %v600, 0
      %795 = vmatprep.subr.mxu0 0.0
      %796 = vmatpush1.msra.mxu0 0.0
      %797 = vmatprep.subr.mxu0 0.0
      %798 = vmatpush1.msra.mxu0 0.0
      %799 = vmatprep.subr.mxu0 0.0
      %800 = vmatpush1.msra.mxu0 0.0
      %801 = vmatprep.subr.mxu0 0.0
      %802 = vmatpush1.msra.mxu0 0.0
      %803 = vmatprep.subr.mxu0 0.0
      %804 = vmatpush1.msra.mxu0 0.0
      %805 = vmatprep.subr.mxu0 0.0
      %806 = vmatpush1.msra.mxu0 0.0
      %807 = vmatprep.subr.mxu0 0.0
      %808 = vmatpush1.msra.mxu0 0.0
      %809 = vmatprep.subr.mxu0 0.0
      %810 = vmatpush1.msra.mxu0 0.0
      %811 = vmatprep.subr.mxu0 0.0
      %812 = vmatpush1.msra.mxu0 0.0
      %813 = vmatprep.subr.mxu0 0.0
      %814 = vmatpush1.msra.mxu0 0.0
      %815 = vmatprep.subr.mxu0 0.0
      %816 = vmatpush1.msra.mxu0 0.0
      %817 = vmatprep.subr.mxu0 0.0
      %818 = vmatpush1.msra.mxu0 0.0
      %819 = vmatprep.subr.mxu0 0.0
      %820 = vmatpush1.msra.mxu0 0.0
      %821 = vmatprep.subr.mxu0 0.0
      %822 = vmatpush1.msra.mxu0 0.0
      %823 = vmatprep.subr.mxu0 0.0
      %824 = vmatpush1.msra.mxu0 0.0
      %825 = vmatprep.subr.mxu0 0.0
      %826 = vmatpush1.msra.mxu0 %v601
      %827 = vmatprep.subr.mxu0 0.0
      %828 = vmatpush2.msra.mxu0 0.0
      %829 = vmatprep.subr.mxu0 0.0
      %830 = vmatpush2.msra.mxu0 0.0
      %831 = vmatprep.subr.mxu0 0.0
      %832 = vmatpush2.msra.mxu0 0.0
      %833 = vmatprep.subr.mxu0 0.0
      %834 = vmatpush2.msra.mxu0 0.0
      %835 = vmatprep.subr.mxu0 0.0
      %836 = vmatpush2.msra.mxu0 0.0
      %837 = vmatprep.subr.mxu0 0.0
      %838 = vmatpush2.msra.mxu0 0.0
      %839 = vmatprep.subr.mxu0 0.0
      %840 = vmatpush2.msra.mxu0 0.0
      %841 = vmatprep.subr.mxu0 0.0
      %842 = vmatpush2.msra.mxu0 0.0
      %843 = vmatprep.subr.mxu0 0.0
      %844 = vmatpush2.msra.mxu0 0.0
      %845 = vmatprep.subr.mxu0 0.0
      %846 = vmatpush2.msra.mxu0 0.0
      %847 = vmatprep.subr.mxu0 0.0
      %848 = vmatpush2.msra.mxu0 0.0
      %849 = vmatprep.subr.mxu0 0.0
      %850 = vmatpush2.msra.mxu0 0.0
      %851 = vmatprep.subr.mxu0 0.0
      %852 = vmatpush2.msra.mxu0 0.0
      %853 = vmatprep.subr.mxu0 0.0
      %854 = vmatpush2.msra.mxu0 0.0
      %855 = vmatprep.subr.mxu0 0.0
      %856 = vmatpush2.msra.mxu0 0.0
      %857 = vmatprep.subr.mxu0 0.0
      %858 = vmatpush2.msra.mxu0 0.0
      %859 = vmatprep.mubr.f32.mxu0 0.0
      %860 = vmatmul.mubr.f32.gmra.mxu0 %v604
      %v861 = vpop.f32.mrf.mxu0
      %v862 = vadd.f32 0.0, %v861
      %v863 = vpop.f32.mrf.mxu0
      %864 = vmatprep.mubr.f32.mxu0 0.0
      %865 = vmatmul.mubr.f32.gmra.mxu0 %v607
      %v866 = vpop.f32.mrf.mxu0
      %v867 = vadd.f32 0.0, %v866
      %v868 = vpop.f32.mrf.mxu0
      %869 = vmatprep.mubr.f32.mxu0 0.0
      %870 = vmatmul.mubr.f32.gmra.mxu0 %v610
      %v871 = vpop.f32.mrf.mxu0
      %v872 = vadd.f32 0.0, %v871
      %v873 = vpop.f32.mrf.mxu0
      %874 = vmatprep.mubr.f32.mxu0 0.0
      %875 = vmatmul.mubr.f32.gmra.mxu0 %v613
      %v876 = vpop.f32.mrf.mxu0
      %v877 = vadd.f32 0.0, %v876
      %v878 = vpop.f32.mrf.mxu0
      %879 = vmatprep.mubr.f32.mxu0 0.0
      %880 = vmatmul.mubr.f32.gmra.mxu0 %v616
      %v881 = vpop.f32.mrf.mxu0
      %v882 = vadd.f32 0.0, %v881
      %v883 = vpop.f32.mrf.mxu0
      %884 = vmatprep.mubr.f32.mxu0 0.0
      %885 = vmatmul.mubr.f32.gmra.mxu0 %v619
      %v886 = vpop.f32.mrf.mxu0
      %v887 = vadd.f32 0.0, %v886
      %v888 = vpop.f32.mrf.mxu0
      %889 = vmatprep.mubr.f32.mxu0 0.0
      %890 = vmatmul.mubr.f32.gmra.mxu0 %v622
      %v891 = vpop.f32.mrf.mxu0
      %v892 = vadd.f32 0.0, %v891
      %v893 = vpop.f32.mrf.mxu0
      %894 = vmatprep.mubr.f32.mxu0 0.0
      %895 = vmatmul.mubr.f32.gmra.mxu0 %v625
      %v896 = vpop.f32.mrf.mxu0
      %v897 = vadd.f32 0.0, %v896
      %v898 = vpop.f32.mrf.mxu0
      %899 = vmatprep.mubr.f32.mxu0 0.0
      %900 = vmatmul.mubr.f32.gmra.mxu0 %v628
      %v901 = vpop.f32.mrf.mxu0
      %v902 = vadd.f32 0.0, %v901
      %v903 = vpop.f32.mrf.mxu0
      %904 = vmatprep.mubr.f32.mxu0 0.0
      %905 = vmatmul.mubr.f32.gmra.mxu0 %v631
      %v906 = vpop.f32.mrf.mxu0
      %v907 = vadd.f32 0.0, %v906
      %v908 = vpop.f32.mrf.mxu0
      %909 = vmatprep.mubr.f32.mxu0 0.0
      %910 = vmatmul.mubr.f32.gmra.mxu0 %v634
      %v911 = vpop.f32.mrf.mxu0
      %v912 = vadd.f32 0.0, %v911
      %v913 = vpop.f32.mrf.mxu0
      %914 = vmatprep.mubr.f32.mxu0 0.0
      %915 = vmatmul.mubr.f32.gmra.mxu0 %v637
      %v916 = vpop.f32.mrf.mxu0
      %v917 = vadd.f32 0.0, %v916
      %v918 = vpop.f32.mrf.mxu0
      %919 = vmatprep.mubr.f32.mxu0 0.0
      %920 = vmatmul.mubr.f32.gmra.mxu0 %v640
      %v921 = vpop.f32.mrf.mxu0
      %v922 = vadd.f32 0.0, %v921
      %v923 = vpop.f32.mrf.mxu0
      %924 = vmatprep.mubr.f32.mxu0 0.0
      %925 = vmatmul.mubr.f32.gmra.mxu0 %v643
      %v926 = vpop.f32.mrf.mxu0
      %v927 = vadd.f32 0.0, %v926
      %v928 = vpop.f32.mrf.mxu0
      %929 = vmatprep.mubr.f32.mxu0 0.0
      %930 = vmatmul.mubr.f32.gmra.mxu0 %v646
      %v931 = vpop.f32.mrf.mxu0
      %v932 = vadd.f32 0.0, %v931
      %v933 = vpop.f32.mrf.mxu0
      %934 = vmatprep.mubr.f32.mxu0 0.0
      %935 = vmatmul.mubr.f32.gmra.mxu0 %v649
      %v936 = vpop.f32.mrf.mxu0
      %v937 = vadd.f32 0.0, %v936
      %v938 = vpop.f32.mrf.mxu0
      %939 = vmatprep.mubr.f32.mxu0 0.0
      %940 = vmatmul.mubr.f32.gmra.mxu0 %v652
      %v941 = vpop.f32.mrf.mxu0
      %v942 = vadd.f32 0.0, %v941
      %v943 = vpop.f32.mrf.mxu0
      %944 = vmatprep.mubr.f32.mxu0 0.0
      %945 = vmatmul.mubr.f32.gmra.mxu0 %v655
      %v946 = vpop.f32.mrf.mxu0
      %v947 = vadd.f32 0.0, %v946
      %v948 = vpop.f32.mrf.mxu0
      %949 = vmatprep.mubr.f32.mxu0 0.0
      %950 = vmatmul.mubr.f32.gmra.mxu0 %v658
      %v951 = vpop.f32.mrf.mxu0
      %v952 = vadd.f32 0.0, %v951
      %v953 = vpop.f32.mrf.mxu0
      %954 = vmatprep.mubr.f32.mxu0 0.0
      %955 = vmatmul.mubr.f32.gmra.mxu0 %v661
      %v956 = vpop.f32.mrf.mxu0
      %v957 = vadd.f32 0.0, %v956
      %v958 = vpop.f32.mrf.mxu0
      %959 = vmatprep.mubr.f32.mxu0 0.0
      %960 = vmatmul.mubr.f32.gmra.mxu0 %v664
      %v961 = vpop.f32.mrf.mxu0
      %v962 = vadd.f32 0.0, %v961
      %v963 = vpop.f32.mrf.mxu0
      %964 = vmatprep.mubr.f32.mxu0 0.0
      %965 = vmatmul.mubr.f32.gmra.mxu0 %v667
      %v966 = vpop.f32.mrf.mxu0
      %v967 = vadd.f32 0.0, %v966
      %v968 = vpop.f32.mrf.mxu0
      %969 = vmatprep.mubr.f32.mxu0 0.0
      %970 = vmatmul.mubr.f32.gmra.mxu0 %v670
      %v971 = vpop.f32.mrf.mxu0
      %v972 = vadd.f32 0.0, %v971
      %v973 = vpop.f32.mrf.mxu0
      %974 = vmatprep.mubr.f32.mxu0 0.0
      %975 = vmatmul.mubr.f32.gmra.mxu0 %v673
      %v976 = vpop.f32.mrf.mxu0
      %v977 = vadd.f32 0.0, %v976
      %v978 = vpop.f32.mrf.mxu0
      %979 = vmatprep.mubr.f32.mxu0 0.0
      %980 = vmatmul.mubr.f32.gmra.mxu0 %v676
      %v981 = vpop.f32.mrf.mxu0
      %v982 = vadd.f32 0.0, %v981
      %v983 = vpop.f32.mrf.mxu0
      %984 = vmatprep.mubr.f32.mxu0 0.0
      %985 = vmatmul.mubr.f32.gmra.mxu0 %v679
      %v986 = vpop.f32.mrf.mxu0
      %v987 = vadd.f32 0.0, %v986
      %v988 = vpop.f32.mrf.mxu0
      %989 = vmatprep.mubr.f32.mxu0 0.0
      %990 = vmatmul.mubr.f32.gmra.mxu0 %v682
      %v991 = vpop.f32.mrf.mxu0
      %v992 = vadd.f32 0.0, %v991
      %v993 = vpop.f32.mrf.mxu0
      %994 = vmatprep.mubr.f32.mxu0 0.0
      %995 = vmatmul.mubr.f32.gmra.mxu0 %v685
      %v996 = vpop.f32.mrf.mxu0
      %v997 = vadd.f32 0.0, %v996
      %v998 = vpop.f32.mrf.mxu0
      %999 = vmatprep.mubr.f32.mxu0 0.0
      %1000 = vmatmul.mubr.f32.gmra.mxu0 %v688
      %v1001 = vpop.f32.mrf.mxu0
      %v1002 = vadd.f32 0.0, %v1001
      %v1003 = vpop.f32.mrf.mxu0
      %1004 = vmatprep.mubr.f32.mxu0 0.0
      %1005 = vmatmul.mubr.f32.gmra.mxu0 %v691
      %v1006 = vpop.f32.mrf.mxu0
      %v1007 = vadd.f32 0.0, %v1006
      %v1008 = vpop.f32.mrf.mxu0
      %1009 = vmatprep.mubr.f32.mxu0 0.0
      %1010 = vmatmul.mubr.f32.gmra.mxu0 %v694
      %v1011 = vpop.f32.mrf.mxu0
      %v1012 = vadd.f32 0.0, %v1011
      %v1013 = vpop.f32.mrf.mxu0
      %1014 = vmatprep.mubr.f32.mxu0 0.0
      %1015 = vmatmul.mubr.f32.gmra.mxu0 %v697
      %v1016 = vpop.f32.mrf.mxu0
      %v1017 = vadd.f32 0.0, %v1016
      %v1018 = vpop.f32.mrf.mxu0
      %1019 = vmatprep.mubr.f32.mxu0 0.0
      %1020 = vmatmul.mubr.f32.gmra.mxu0 %v700
      %v1021 = vpop.f32.mrf.mxu0
      %v1022 = vadd.f32 0.0, %v1021
      %v1023 = vpop.f32.mrf.mxu0
      %1024 = vmatprep.mubr.f32.mxu0 0.0
      %1025 = vmatmul.mubr.f32.gmra.mxu0 %v703
      %v1026 = vpop.f32.mrf.mxu0
      %v1027 = vadd.f32 0.0, %v1026
      %v1028 = vpop.f32.mrf.mxu0
      %1029 = vmatprep.mubr.f32.mxu0 0.0
      %1030 = vmatmul.mubr.f32.gmra.mxu0 %v706
      %v1031 = vpop.f32.mrf.mxu0
      %v1032 = vadd.f32 0.0, %v1031
      %v1033 = vpop.f32.mrf.mxu0
      %1034 = vmatprep.mubr.f32.mxu0 0.0
      %1035 = vmatmul.mubr.f32.gmra.mxu0 %v709
      %v1036 = vpop.f32.mrf.mxu0
      %v1037 = vadd.f32 0.0, %v1036
      %v1038 = vpop.f32.mrf.mxu0
      %1039 = vmatprep.mubr.f32.mxu0 0.0
      %1040 = vmatmul.mubr.f32.gmra.mxu0 %v712
      %v1041 = vpop.f32.mrf.mxu0
      %v1042 = vadd.f32 0.0, %v1041
      %v1043 = vpop.f32.mrf.mxu0
      %1044 = vmatprep.mubr.f32.mxu0 0.0
      %1045 = vmatmul.mubr.f32.gmra.mxu0 %v715
      %v1046 = vpop.f32.mrf.mxu0
      %v1047 = vadd.f32 0.0, %v1046
      %v1048 = vpop.f32.mrf.mxu0
      %1049 = vmatprep.mubr.f32.mxu0 0.0
      %1050 = vmatmul.mubr.f32.gmra.mxu0 %v718
      %v1051 = vpop.f32.mrf.mxu0
      %v1052 = vadd.f32 0.0, %v1051
      %v1053 = vpop.f32.mrf.mxu0
      %1054 = vmatprep.mubr.f32.mxu0 0.0
      %1055 = vmatmul.mubr.f32.gmra.mxu0 %v721
      %v1056 = vpop.f32.mrf.mxu0
      %v1057 = vadd.f32 0.0, %v1056
      %v1058 = vpop.f32.mrf.mxu0
      %1059 = vmatprep.mubr.f32.mxu0 0.0
      %1060 = vmatmul.mubr.f32.gmra.mxu0 %v724
      %v1061 = vpop.f32.mrf.mxu0
      %v1062 = vadd.f32 0.0, %v1061
      %v1063 = vpop.f32.mrf.mxu0
      %1064 = vmatprep.mubr.f32.mxu0 0.0
      %1065 = vmatmul.mubr.f32.gmra.mxu0 %v727
      %v1066 = vpop.f32.mrf.mxu0
      %v1067 = vadd.f32 0.0, %v1066
      %v1068 = vpop.f32.mrf.mxu0
      %1069 = vmatprep.mubr.f32.mxu0 0.0
      %1070 = vmatmul.mubr.f32.gmra.mxu0 %v730
      %v1071 = vpop.f32.mrf.mxu0
      %v1072 = vadd.f32 0.0, %v1071
      %v1073 = vpop.f32.mrf.mxu0
      %1074 = vmatprep.mubr.f32.mxu0 0.0
      %1075 = vmatmul.mubr.f32.gmra.mxu0 %v733
      %v1076 = vpop.f32.mrf.mxu0
      %v1077 = vadd.f32 0.0, %v1076
      %v1078 = vpop.f32.mrf.mxu0
      %1079 = vmatprep.mubr.f32.mxu0 0.0
      %1080 = vmatmul.mubr.f32.gmra.mxu0 %v736
      %v1081 = vpop.f32.mrf.mxu0
      %v1082 = vadd.f32 0.0, %v1081
      %v1083 = vpop.f32.mrf.mxu0
      %1084 = vmatprep.mubr.f32.mxu0 0.0
      %1085 = vmatmul.mubr.f32.gmra.mxu0 %v739
      %v1086 = vpop.f32.mrf.mxu0
      %v1087 = vadd.f32 0.0, %v1086
      %v1088 = vpop.f32.mrf.mxu0
      %1089 = vmatprep.mubr.f32.mxu0 0.0
      %1090 = vmatmul.mubr.f32.gmra.mxu0 %v742
      %v1091 = vpop.f32.mrf.mxu0
      %v1092 = vadd.f32 0.0, %v1091
      %v1093 = vpop.f32.mrf.mxu0
      %1094 = vmatprep.mubr.f32.mxu0 0.0
      %1095 = vmatmul.mubr.f32.gmra.mxu0 %v745
      %v1096 = vpop.f32.mrf.mxu0
      %v1097 = vadd.f32 0.0, %v1096
      %v1098 = vpop.f32.mrf.mxu0
      %1099 = vmatprep.mubr.f32.mxu0 0.0
      %1100 = vmatmul.mubr.f32.gmra.mxu0 %v748
      %v1101 = vpop.f32.mrf.mxu0
      %v1102 = vadd.f32 0.0, %v1101
      %v1103 = vpop.f32.mrf.mxu0
      %1104 = vmatprep.mubr.f32.mxu0 0.0
      %1105 = vmatmul.mubr.f32.gmra.mxu0 %v751
      %v1106 = vpop.f32.mrf.mxu0
      %v1107 = vadd.f32 0.0, %v1106
      %v1108 = vpop.f32.mrf.mxu0
      %1109 = vmatprep.mubr.f32.mxu0 0.0
      %1110 = vmatmul.mubr.f32.gmra.mxu0 %v754
      %v1111 = vpop.f32.mrf.mxu0
      %v1112 = vadd.f32 0.0, %v1111
      %v1113 = vpop.f32.mrf.mxu0
      %1114 = vmatprep.mubr.f32.mxu0 0.0
      %1115 = vmatmul.mubr.f32.gmra.mxu0 %v757
      %v1116 = vpop.f32.mrf.mxu0
      %v1117 = vadd.f32 0.0, %v1116
      %v1118 = vpop.f32.mrf.mxu0
      %1119 = vmatprep.mubr.f32.mxu0 0.0
      %1120 = vmatmul.mubr.f32.gmra.mxu0 %v760
      %v1121 = vpop.f32.mrf.mxu0
      %v1122 = vadd.f32 0.0, %v1121
      %v1123 = vpop.f32.mrf.mxu0
      %1124 = vmatprep.mubr.f32.mxu0 0.0
      %1125 = vmatmul.mubr.f32.gmra.mxu0 %v763
      %v1126 = vpop.f32.mrf.mxu0
      %v1127 = vadd.f32 0.0, %v1126
      %v1128 = vpop.f32.mrf.mxu0
      %1129 = vmatprep.mubr.f32.mxu0 0.0
      %1130 = vmatmul.mubr.f32.gmra.mxu0 %v766
      %v1131 = vpop.f32.mrf.mxu0
      %v1132 = vadd.f32 0.0, %v1131
      %v1133 = vpop.f32.mrf.mxu0
      %1134 = vmatprep.mubr.f32.mxu0 0.0
      %1135 = vmatmul.mubr.f32.gmra.mxu0 %v769
      %v1136 = vpop.f32.mrf.mxu0
      %v1137 = vadd.f32 0.0, %v1136
      %v1138 = vpop.f32.mrf.mxu0
      %1139 = vmatprep.mubr.f32.mxu0 0.0
      %1140 = vmatmul.mubr.f32.gmra.mxu0 %v772
      %v1141 = vpop.f32.mrf.mxu0
      %v1142 = vadd.f32 0.0, %v1141
      %v1143 = vpop.f32.mrf.mxu0
      %1144 = vmatprep.mubr.f32.mxu0 0.0
      %1145 = vmatmul.mubr.f32.gmra.mxu0 %v775
      %v1146 = vpop.f32.mrf.mxu0
      %v1147 = vadd.f32 0.0, %v1146
      %v1148 = vpop.f32.mrf.mxu0
      %1149 = vmatprep.mubr.f32.mxu0 0.0
      %1150 = vmatmul.mubr.f32.gmra.mxu0 %v778
      %v1151 = vpop.f32.mrf.mxu0
      %v1152 = vadd.f32 0.0, %v1151
      %v1153 = vpop.f32.mrf.mxu0
      %1154 = vmatprep.mubr.f32.mxu0 0.0
      %1155 = vmatmul.mubr.f32.gmra.mxu0 %v781
      %v1156 = vpop.f32.mrf.mxu0
      %v1157 = vadd.f32 0.0, %v1156
      %v1158 = vpop.f32.mrf.mxu0
      %1159 = vmatprep.mubr.f32.mxu0 0.0
      %1160 = vmatmul.mubr.f32.gmra.mxu0 %v784
      %v1161 = vpop.f32.mrf.mxu0
      %v1162 = vadd.f32 0.0, %v1161
      %v1163 = vpop.f32.mrf.mxu0
      %1164 = vmatprep.mubr.f32.mxu0 0.0
      %1165 = vmatmul.mubr.f32.gmra.mxu0 %v787
      %v1166 = vpop.f32.mrf.mxu0
      %v1167 = vadd.f32 0.0, %v1166
      %v1168 = vpop.f32.mrf.mxu0
      %1169 = vmatprep.mubr.f32.mxu0 0.0
      %1170 = vmatmul.mubr.f32.gmra.mxu0 %v790
      %v1171 = vpop.f32.mrf.mxu0
      %v1172 = vadd.f32 0.0, %v1171
      %v1173 = vpop.f32.mrf.mxu0
      %1174 = vmatprep.mubr.f32.mxu0 0.0
      %1175 = vmatmul.mubr.f32.gmra.mxu0 %v793
      %v1176 = vpop.f32.mrf.mxu0
      %v1177 = vadd.f32 0.0, %v1176
      %v1178 = vpop.f32.mrf.mxu0
      %1179 = vdwg.mxu0
      %v1180 = vld [vmem:[%s323] sm:$0xff]
      %v1181 = vld [vmem:[%s323 + $0x8] sm:$0xff]
      %v1182 = vld [vmem:[%s323 + $0x10] sm:$0xff]
      %v1183 = vld [vmem:[%s323 + $0x18] sm:$0xff]
      %v1184 = vld [vmem:[%s323 + $0x20] sm:$0xff]
      %v1185 = vld [vmem:[%s323 + $0x28] sm:$0xff]
      %v1186 = vld [vmem:[%s323 + $0x30] sm:$0xff]
      %v1187 = vld [vmem:[%s323 + $0x38] sm:$0xff]
      %v1188 = vld [vmem:[%s323 + $0x40] sm:$0xff]
      %v1189 = vld [vmem:[%s323 + $0x48] sm:$0xff]
      %v1190 = vld [vmem:[%s323 + $0x50] sm:$0xff]
      %v1191 = vld [vmem:[%s323 + $0x58] sm:$0xff]
      %v1192 = vld [vmem:[%s323 + $0x60] sm:$0xff]
      %v1193 = vld [vmem:[%s323 + $0x68] sm:$0xff]
      %v1194 = vld [vmem:[%s323 + $0x70] sm:$0xff]
      %v1195 = vld [vmem:[%s323 + $0x78] sm:$0xff]
      %v1196 = vld [vmem:[%s323 + $0x80] sm:$0xff]
      %v1197 = vld [vmem:[%s323 + $0x88] sm:$0xff]
      %v1198 = vld [vmem:[%s323 + $0x90] sm:$0xff]
      %v1199 = vld [vmem:[%s323 + $0x98] sm:$0xff]
      %v1200 = vld [vmem:[%s323 + $0xa0] sm:$0xff]
      %v1201 = vld [vmem:[%s323 + $0xa8] sm:$0xff]
      %v1202 = vld [vmem:[%s323 + $0xb0] sm:$0xff]
      %v1203 = vld [vmem:[%s323 + $0xb8] sm:$0xff]
      %v1204 = vld [vmem:[%s323 + $0xc0] sm:$0xff]
      %v1205 = vld [vmem:[%s323 + $0xc8] sm:$0xff]
      %v1206 = vld [vmem:[%s323 + $0xd0] sm:$0xff]
      %v1207 = vld [vmem:[%s323 + $0xd8] sm:$0xff]
      %v1208 = vld [vmem:[%s323 + $0xe0] sm:$0xff]
      %v1209 = vld [vmem:[%s323 + $0xe8] sm:$0xff]
      %v1210 = vld [vmem:[%s323 + $0xf0] sm:$0xff]
      %v1211 = vld [vmem:[%s323 + $0xf8] sm:$0xff]
      %v1212 = vld [vmem:[%s323 + $0x100] sm:$0xff]
      %v1213 = vld [vmem:[%s323 + $0x108] sm:$0xff]
      %v1214 = vld [vmem:[%s323 + $0x110] sm:$0xff]
      %v1215 = vld [vmem:[%s323 + $0x118] sm:$0xff]
      %v1216 = vld [vmem:[%s323 + $0x120] sm:$0xff]
      %v1217 = vld [vmem:[%s323 + $0x128] sm:$0xff]
      %v1218 = vld [vmem:[%s323 + $0x130] sm:$0xff]
      %v1219 = vld [vmem:[%s323 + $0x138] sm:$0xff]
      %v1220 = vld [vmem:[%s323 + $0x140] sm:$0xff]
      %v1221 = vld [vmem:[%s323 + $0x148] sm:$0xff]
      %v1222 = vld [vmem:[%s323 + $0x150] sm:$0xff]
      %v1223 = vld [vmem:[%s323 + $0x158] sm:$0xff]
      %v1224 = vld [vmem:[%s323 + $0x160] sm:$0xff]
      %v1225 = vld [vmem:[%s323 + $0x168] sm:$0xff]
      %v1226 = vld [vmem:[%s323 + $0x170] sm:$0xff]
      %v1227 = vld [vmem:[%s323 + $0x178] sm:$0xff]
      %v1228 = vld [vmem:[%s323 + $0x180] sm:$0xff]
      %v1229 = vld [vmem:[%s323 + $0x188] sm:$0xff]
      %v1230 = vld [vmem:[%s323 + $0x190] sm:$0xff]
      %v1231 = vld [vmem:[%s323 + $0x198] sm:$0xff]
      %v1232 = vld [vmem:[%s323 + $0x1a0] sm:$0xff]
      %v1233 = vld [vmem:[%s323 + $0x1a8] sm:$0xff]
      %v1234 = vld [vmem:[%s323 + $0x1b0] sm:$0xff]
      %v1235 = vld [vmem:[%s323 + $0x1b8] sm:$0xff]
      %v1236 = vld [vmem:[%s323 + $0x1c0] sm:$0xff]
      %v1237 = vld [vmem:[%s323 + $0x1c8] sm:$0xff]
      %v1238 = vld [vmem:[%s323 + $0x1d0] sm:$0xff]
      %v1239 = vld [vmem:[%s323 + $0x1d8] sm:$0xff]
      %v1240 = vld [vmem:[%s323 + $0x1e0] sm:$0xff]
      %v1241 = vld [vmem:[%s323 + $0x1e8] sm:$0xff]
      %v1242 = vld [vmem:[%s323 + $0x1f0] sm:$0xff]
      %v1243 = vld [vmem:[%s323 + $0x1f8] sm:$0xff]
      %v1244 = vld [vmem:[%s7] sm:$0xff]
      %v1246 = vsel %vm602, %v1180, 0
      %v1249 = vsel %vm602, %v1181, 0
      %v1252 = vsel %vm602, %v1182, 0
      %v1255 = vsel %vm602, %v1183, 0
      %v1258 = vsel %vm602, %v1184, 0
      %v1261 = vsel %vm602, %v1185, 0
      %v1264 = vsel %vm602, %v1186, 0
      %v1267 = vsel %vm602, %v1187, 0
      %v1270 = vsel %vm602, %v1188, 0
      %v1273 = vsel %vm602, %v1189, 0
      %v1276 = vsel %vm602, %v1190, 0
      %v1279 = vsel %vm602, %v1191, 0
      %v1282 = vsel %vm602, %v1192, 0
      %v1285 = vsel %vm602, %v1193, 0
      %v1288 = vsel %vm602, %v1194, 0
      %v1291 = vsel %vm602, %v1195, 0
      %v1294 = vsel %vm602, %v1196, 0
      %v1297 = vsel %vm602, %v1197, 0
      %v1300 = vsel %vm602, %v1198, 0
      %v1303 = vsel %vm602, %v1199, 0
      %v1306 = vsel %vm602, %v1200, 0
      %v1309 = vsel %vm602, %v1201, 0
      %v1312 = vsel %vm602, %v1202, 0
      %v1315 = vsel %vm602, %v1203, 0
      %v1318 = vsel %vm602, %v1204, 0
      %v1321 = vsel %vm602, %v1205, 0
      %v1324 = vsel %vm602, %v1206, 0
      %v1327 = vsel %vm602, %v1207, 0
      %v1330 = vsel %vm602, %v1208, 0
      %v1333 = vsel %vm602, %v1209, 0
      %v1336 = vsel %vm602, %v1210, 0
      %v1339 = vsel %vm602, %v1211, 0
      %v1342 = vsel %vm602, %v1212, 0
      %v1345 = vsel %vm602, %v1213, 0
      %v1348 = vsel %vm602, %v1214, 0
      %v1351 = vsel %vm602, %v1215, 0
      %v1354 = vsel %vm602, %v1216, 0
      %v1357 = vsel %vm602, %v1217, 0
      %v1360 = vsel %vm602, %v1218, 0
      %v1363 = vsel %vm602, %v1219, 0
      %v1366 = vsel %vm602, %v1220, 0
      %v1369 = vsel %vm602, %v1221, 0
      %v1372 = vsel %vm602, %v1222, 0
      %v1375 = vsel %vm602, %v1223, 0
      %v1378 = vsel %vm602, %v1224, 0
      %v1381 = vsel %vm602, %v1225, 0
      %v1384 = vsel %vm602, %v1226, 0
      %v1387 = vsel %vm602, %v1227, 0
      %v1390 = vsel %vm602, %v1228, 0
      %v1393 = vsel %vm602, %v1229, 0
      %v1396 = vsel %vm602, %v1230, 0
      %v1399 = vsel %vm602, %v1231, 0
      %v1402 = vsel %vm602, %v1232, 0
      %v1405 = vsel %vm602, %v1233, 0
      %v1408 = vsel %vm602, %v1234, 0
      %v1411 = vsel %vm602, %v1235, 0
      %v1414 = vsel %vm602, %v1236, 0
      %v1417 = vsel %vm602, %v1237, 0
      %v1420 = vsel %vm602, %v1238, 0
      %v1423 = vsel %vm602, %v1239, 0
      %v1426 = vsel %vm602, %v1240, 0
      %v1429 = vsel %vm602, %v1241, 0
      %v1432 = vsel %vm602, %v1242, 0
      %v1435 = vsel %vm602, %v1243, 0
      %1437 = vmatprep.subr.mxu0 0.0
      %1438 = vmatpush1.msra.mxu0 0.0
      %1439 = vmatprep.subr.mxu0 0.0
      %1440 = vmatpush1.msra.mxu0 0.0
      %1441 = vmatprep.subr.mxu0 0.0
      %1442 = vmatpush1.msra.mxu0 0.0
      %1443 = vmatprep.subr.mxu0 0.0
      %1444 = vmatpush1.msra.mxu0 0.0
      %1445 = vmatprep.subr.mxu0 0.0
      %1446 = vmatpush1.msra.mxu0 0.0
      %1447 = vmatprep.subr.mxu0 0.0
      %1448 = vmatpush1.msra.mxu0 0.0
      %1449 = vmatprep.subr.mxu0 0.0
      %1450 = vmatpush1.msra.mxu0 0.0
      %1451 = vmatprep.subr.mxu0 0.0
      %1452 = vmatpush1.msra.mxu0 0.0
      %1453 = vmatprep.subr.mxu0 0.0
      %1454 = vmatpush1.msra.mxu0 0.0
      %1455 = vmatprep.subr.mxu0 0.0
      %1456 = vmatpush1.msra.mxu0 0.0
      %1457 = vmatprep.subr.mxu0 0.0
      %1458 = vmatpush1.msra.mxu0 0.0
      %1459 = vmatprep.subr.mxu0 0.0
      %1460 = vmatpush1.msra.mxu0 0.0
      %1461 = vmatprep.subr.mxu0 0.0
      %1462 = vmatpush1.msra.mxu0 0.0
      %1463 = vmatprep.subr.mxu0 0.0
      %1464 = vmatpush1.msra.mxu0 0.0
      %1465 = vmatprep.subr.mxu0 0.0
      %1466 = vmatpush1.msra.mxu0 0.0
      %1467 = vmatprep.subr.mxu0 0.0
      %1468 = vmatpush1.msra.mxu0 %v1244
      %1469 = vmatprep.subr.mxu0 0.0
      %1470 = vmatpush2.msra.mxu0 0.0
      %1471 = vmatprep.subr.mxu0 0.0
      %1472 = vmatpush2.msra.mxu0 0.0
      %1473 = vmatprep.subr.mxu0 0.0
      %1474 = vmatpush2.msra.mxu0 0.0
      %1475 = vmatprep.subr.mxu0 0.0
      %1476 = vmatpush2.msra.mxu0 0.0
      %1477 = vmatprep.subr.mxu0 0.0
      %1478 = vmatpush2.msra.mxu0 0.0
      %1479 = vmatprep.subr.mxu0 0.0
      %1480 = vmatpush2.msra.mxu0 0.0
      %1481 = vmatprep.subr.mxu0 0.0
      %1482 = vmatpush2.msra.mxu0 0.0
      %1483 = vmatprep.subr.mxu0 0.0
      %1484 = vmatpush2.msra.mxu0 0.0
      %1485 = vmatprep.subr.mxu0 0.0
      %1486 = vmatpush2.msra.mxu0 0.0
      %1487 = vmatprep.subr.mxu0 0.0
      %1488 = vmatpush2.msra.mxu0 0.0
      %1489 = vmatprep.subr.mxu0 0.0
      %1490 = vmatpush2.msra.mxu0 0.0
      %1491 = vmatprep.subr.mxu0 0.0
      %1492 = vmatpush2.msra.mxu0 0.0
      %1493 = vmatprep.subr.mxu0 0.0
      %1494 = vmatpush2.msra.mxu0 0.0
      %1495 = vmatprep.subr.mxu0 0.0
      %1496 = vmatpush2.msra.mxu0 0.0
      %1497 = vmatprep.subr.mxu0 0.0
      %1498 = vmatpush2.msra.mxu0 0.0
      %1499 = vmatprep.subr.mxu0 0.0
      %1500 = vmatpush2.msra.mxu0 0.0
      %1501 = vmatprep.mubr.f32.mxu0 0.0
      %1502 = vmatmul.mubr.f32.gmra.mxu0 %v1246
      %v1503 = vpop.f32.mrf.mxu0
      %v1504 = vadd.f32 0.0, %v1503
      %v1505 = vpop.f32.mrf.mxu0
      %1506 = vmatprep.mubr.f32.mxu0 0.0
      %1507 = vmatmul.mubr.f32.gmra.mxu0 %v1249
      %v1508 = vpop.f32.mrf.mxu0
      %v1509 = vadd.f32 0.0, %v1508
      %v1510 = vpop.f32.mrf.mxu0
      %1511 = vmatprep.mubr.f32.mxu0 0.0
      %1512 = vmatmul.mubr.f32.gmra.mxu0 %v1252
      %v1513 = vpop.f32.mrf.mxu0
      %v1514 = vadd.f32 0.0, %v1513
      %v1515 = vpop.f32.mrf.mxu0
      %1516 = vmatprep.mubr.f32.mxu0 0.0
      %1517 = vmatmul.mubr.f32.gmra.mxu0 %v1255
      %v1518 = vpop.f32.mrf.mxu0
      %v1519 = vadd.f32 0.0, %v1518
      %v1520 = vpop.f32.mrf.mxu0
      %1521 = vmatprep.mubr.f32.mxu0 0.0
      %1522 = vmatmul.mubr.f32.gmra.mxu0 %v1258
      %v1523 = vpop.f32.mrf.mxu0
      %v1524 = vadd.f32 0.0, %v1523
      %v1525 = vpop.f32.mrf.mxu0
      %1526 = vmatprep.mubr.f32.mxu0 0.0
      %1527 = vmatmul.mubr.f32.gmra.mxu0 %v1261
      %v1528 = vpop.f32.mrf.mxu0
      %v1529 = vadd.f32 0.0, %v1528
      %v1530 = vpop.f32.mrf.mxu0
      %1531 = vmatprep.mubr.f32.mxu0 0.0
      %1532 = vmatmul.mubr.f32.gmra.mxu0 %v1264
      %v1533 = vpop.f32.mrf.mxu0
      %v1534 = vadd.f32 0.0, %v1533
      %v1535 = vpop.f32.mrf.mxu0
      %1536 = vmatprep.mubr.f32.mxu0 0.0
      %1537 = vmatmul.mubr.f32.gmra.mxu0 %v1267
      %v1538 = vpop.f32.mrf.mxu0
      %v1539 = vadd.f32 0.0, %v1538
      %v1540 = vpop.f32.mrf.mxu0
      %1541 = vmatprep.mubr.f32.mxu0 0.0
      %1542 = vmatmul.mubr.f32.gmra.mxu0 %v1270
      %v1543 = vpop.f32.mrf.mxu0
      %v1544 = vadd.f32 0.0, %v1543
      %v1545 = vpop.f32.mrf.mxu0
      %1546 = vmatprep.mubr.f32.mxu0 0.0
      %1547 = vmatmul.mubr.f32.gmra.mxu0 %v1273
      %v1548 = vpop.f32.mrf.mxu0
      %v1549 = vadd.f32 0.0, %v1548
      %v1550 = vpop.f32.mrf.mxu0
      %1551 = vmatprep.mubr.f32.mxu0 0.0
      %1552 = vmatmul.mubr.f32.gmra.mxu0 %v1276
      %v1553 = vpop.f32.mrf.mxu0
      %v1554 = vadd.f32 0.0, %v1553
      %v1555 = vpop.f32.mrf.mxu0
      %1556 = vmatprep.mubr.f32.mxu0 0.0
      %1557 = vmatmul.mubr.f32.gmra.mxu0 %v1279
      %v1558 = vpop.f32.mrf.mxu0
      %v1559 = vadd.f32 0.0, %v1558
      %v1560 = vpop.f32.mrf.mxu0
      %1561 = vmatprep.mubr.f32.mxu0 0.0
      %1562 = vmatmul.mubr.f32.gmra.mxu0 %v1282
      %v1563 = vpop.f32.mrf.mxu0
      %v1564 = vadd.f32 0.0, %v1563
      %v1565 = vpop.f32.mrf.mxu0
      %1566 = vmatprep.mubr.f32.mxu0 0.0
      %1567 = vmatmul.mubr.f32.gmra.mxu0 %v1285
      %v1568 = vpop.f32.mrf.mxu0
      %v1569 = vadd.f32 0.0, %v1568
      %v1570 = vpop.f32.mrf.mxu0
      %1571 = vmatprep.mubr.f32.mxu0 0.0
      %1572 = vmatmul.mubr.f32.gmra.mxu0 %v1288
      %v1573 = vpop.f32.mrf.mxu0
      %v1574 = vadd.f32 0.0, %v1573
      %v1575 = vpop.f32.mrf.mxu0
      %1576 = vmatprep.mubr.f32.mxu0 0.0
      %1577 = vmatmul.mubr.f32.gmra.mxu0 %v1291
      %v1578 = vpop.f32.mrf.mxu0
      %v1579 = vadd.f32 0.0, %v1578
      %v1580 = vpop.f32.mrf.mxu0
      %1581 = vmatprep.mubr.f32.mxu0 0.0
      %1582 = vmatmul.mubr.f32.gmra.mxu0 %v1294
      %v1583 = vpop.f32.mrf.mxu0
      %v1584 = vadd.f32 0.0, %v1583
      %v1585 = vpop.f32.mrf.mxu0
      %1586 = vmatprep.mubr.f32.mxu0 0.0
      %1587 = vmatmul.mubr.f32.gmra.mxu0 %v1297
      %v1588 = vpop.f32.mrf.mxu0
      %v1589 = vadd.f32 0.0, %v1588
      %v1590 = vpop.f32.mrf.mxu0
      %1591 = vmatprep.mubr.f32.mxu0 0.0
      %1592 = vmatmul.mubr.f32.gmra.mxu0 %v1300
      %v1593 = vpop.f32.mrf.mxu0
      %v1594 = vadd.f32 0.0, %v1593
      %v1595 = vpop.f32.mrf.mxu0
      %1596 = vmatprep.mubr.f32.mxu0 0.0
      %1597 = vmatmul.mubr.f32.gmra.mxu0 %v1303
      %v1598 = vpop.f32.mrf.mxu0
      %v1599 = vadd.f32 0.0, %v1598
      %v1600 = vpop.f32.mrf.mxu0
      %1601 = vmatprep.mubr.f32.mxu0 0.0
      %1602 = vmatmul.mubr.f32.gmra.mxu0 %v1306
      %v1603 = vpop.f32.mrf.mxu0
      %v1604 = vadd.f32 0.0, %v1603
      %v1605 = vpop.f32.mrf.mxu0
      %1606 = vmatprep.mubr.f32.mxu0 0.0
      %1607 = vmatmul.mubr.f32.gmra.mxu0 %v1309
      %v1608 = vpop.f32.mrf.mxu0
      %v1609 = vadd.f32 0.0, %v1608
      %v1610 = vpop.f32.mrf.mxu0
      %1611 = vmatprep.mubr.f32.mxu0 0.0
      %1612 = vmatmul.mubr.f32.gmra.mxu0 %v1312
      %v1613 = vpop.f32.mrf.mxu0
      %v1614 = vadd.f32 0.0, %v1613
      %v1615 = vpop.f32.mrf.mxu0
      %1616 = vmatprep.mubr.f32.mxu0 0.0
      %1617 = vmatmul.mubr.f32.gmra.mxu0 %v1315
      %v1618 = vpop.f32.mrf.mxu0
      %v1619 = vadd.f32 0.0, %v1618
      %v1620 = vpop.f32.mrf.mxu0
      %1621 = vmatprep.mubr.f32.mxu0 0.0
      %1622 = vmatmul.mubr.f32.gmra.mxu0 %v1318
      %v1623 = vpop.f32.mrf.mxu0
      %v1624 = vadd.f32 0.0, %v1623
      %v1625 = vpop.f32.mrf.mxu0
      %1626 = vmatprep.mubr.f32.mxu0 0.0
      %1627 = vmatmul.mubr.f32.gmra.mxu0 %v1321
      %v1628 = vpop.f32.mrf.mxu0
      %v1629 = vadd.f32 0.0, %v1628
      %v1630 = vpop.f32.mrf.mxu0
      %1631 = vmatprep.mubr.f32.mxu0 0.0
      %1632 = vmatmul.mubr.f32.gmra.mxu0 %v1324
      %v1633 = vpop.f32.mrf.mxu0
      %v1634 = vadd.f32 0.0, %v1633
      %v1635 = vpop.f32.mrf.mxu0
      %1636 = vmatprep.mubr.f32.mxu0 0.0
      %1637 = vmatmul.mubr.f32.gmra.mxu0 %v1327
      %v1638 = vpop.f32.mrf.mxu0
      %v1639 = vadd.f32 0.0, %v1638
      %v1640 = vpop.f32.mrf.mxu0
      %1641 = vmatprep.mubr.f32.mxu0 0.0
      %1642 = vmatmul.mubr.f32.gmra.mxu0 %v1330
      %v1643 = vpop.f32.mrf.mxu0
      %v1644 = vadd.f32 0.0, %v1643
      %v1645 = vpop.f32.mrf.mxu0
      %1646 = vmatprep.mubr.f32.mxu0 0.0
      %1647 = vmatmul.mubr.f32.gmra.mxu0 %v1333
      %v1648 = vpop.f32.mrf.mxu0
      %v1649 = vadd.f32 0.0, %v1648
      %v1650 = vpop.f32.mrf.mxu0
      %1651 = vmatprep.mubr.f32.mxu0 0.0
      %1652 = vmatmul.mubr.f32.gmra.mxu0 %v1336
      %v1653 = vpop.f32.mrf.mxu0
      %v1654 = vadd.f32 0.0, %v1653
      %v1655 = vpop.f32.mrf.mxu0
      %1656 = vmatprep.mubr.f32.mxu0 0.0
      %1657 = vmatmul.mubr.f32.gmra.mxu0 %v1339
      %v1658 = vpop.f32.mrf.mxu0
      %v1659 = vadd.f32 0.0, %v1658
      %v1660 = vpop.f32.mrf.mxu0
      %1661 = vmatprep.mubr.f32.mxu0 0.0
      %1662 = vmatmul.mubr.f32.gmra.mxu0 %v1342
      %v1663 = vpop.f32.mrf.mxu0
      %v1664 = vadd.f32 0.0, %v1663
      %v1665 = vpop.f32.mrf.mxu0
      %1666 = vmatprep.mubr.f32.mxu0 0.0
      %1667 = vmatmul.mubr.f32.gmra.mxu0 %v1345
      %v1668 = vpop.f32.mrf.mxu0
      %v1669 = vadd.f32 0.0, %v1668
      %v1670 = vpop.f32.mrf.mxu0
      %1671 = vmatprep.mubr.f32.mxu0 0.0
      %1672 = vmatmul.mubr.f32.gmra.mxu0 %v1348
      %v1673 = vpop.f32.mrf.mxu0
      %v1674 = vadd.f32 0.0, %v1673
      %v1675 = vpop.f32.mrf.mxu0
      %1676 = vmatprep.mubr.f32.mxu0 0.0
      %1677 = vmatmul.mubr.f32.gmra.mxu0 %v1351
      %v1678 = vpop.f32.mrf.mxu0
      %v1679 = vadd.f32 0.0, %v1678
      %v1680 = vpop.f32.mrf.mxu0
      %1681 = vmatprep.mubr.f32.mxu0 0.0
      %1682 = vmatmul.mubr.f32.gmra.mxu0 %v1354
      %v1683 = vpop.f32.mrf.mxu0
      %v1684 = vadd.f32 0.0, %v1683
      %v1685 = vpop.f32.mrf.mxu0
      %1686 = vmatprep.mubr.f32.mxu0 0.0
      %1687 = vmatmul.mubr.f32.gmra.mxu0 %v1357
      %v1688 = vpop.f32.mrf.mxu0
      %v1689 = vadd.f32 0.0, %v1688
      %v1690 = vpop.f32.mrf.mxu0
      %1691 = vmatprep.mubr.f32.mxu0 0.0
      %1692 = vmatmul.mubr.f32.gmra.mxu0 %v1360
      %v1693 = vpop.f32.mrf.mxu0
      %v1694 = vadd.f32 0.0, %v1693
      %v1695 = vpop.f32.mrf.mxu0
      %1696 = vmatprep.mubr.f32.mxu0 0.0
      %1697 = vmatmul.mubr.f32.gmra.mxu0 %v1363
      %v1698 = vpop.f32.mrf.mxu0
      %v1699 = vadd.f32 0.0, %v1698
      %v1700 = vpop.f32.mrf.mxu0
      %1701 = vmatprep.mubr.f32.mxu0 0.0
      %1702 = vmatmul.mubr.f32.gmra.mxu0 %v1366
      %v1703 = vpop.f32.mrf.mxu0
      %v1704 = vadd.f32 0.0, %v1703
      %v1705 = vpop.f32.mrf.mxu0
      %1706 = vmatprep.mubr.f32.mxu0 0.0
      %1707 = vmatmul.mubr.f32.gmra.mxu0 %v1369
      %v1708 = vpop.f32.mrf.mxu0
      %v1709 = vadd.f32 0.0, %v1708
      %v1710 = vpop.f32.mrf.mxu0
      %1711 = vmatprep.mubr.f32.mxu0 0.0
      %1712 = vmatmul.mubr.f32.gmra.mxu0 %v1372
      %v1713 = vpop.f32.mrf.mxu0
      %v1714 = vadd.f32 0.0, %v1713
      %v1715 = vpop.f32.mrf.mxu0
      %1716 = vmatprep.mubr.f32.mxu0 0.0
      %1717 = vmatmul.mubr.f32.gmra.mxu0 %v1375
      %v1718 = vpop.f32.mrf.mxu0
      %v1719 = vadd.f32 0.0, %v1718
      %v1720 = vpop.f32.mrf.mxu0
      %1721 = vmatprep.mubr.f32.mxu0 0.0
      %1722 = vmatmul.mubr.f32.gmra.mxu0 %v1378
      %v1723 = vpop.f32.mrf.mxu0
      %v1724 = vadd.f32 0.0, %v1723
      %v1725 = vpop.f32.mrf.mxu0
      %1726 = vmatprep.mubr.f32.mxu0 0.0
      %1727 = vmatmul.mubr.f32.gmra.mxu0 %v1381
      %v1728 = vpop.f32.mrf.mxu0
      %v1729 = vadd.f32 0.0, %v1728
      %v1730 = vpop.f32.mrf.mxu0
      %1731 = vmatprep.mubr.f32.mxu0 0.0
      %1732 = vmatmul.mubr.f32.gmra.mxu0 %v1384
      %v1733 = vpop.f32.mrf.mxu0
      %v1734 = vadd.f32 0.0, %v1733
      %v1735 = vpop.f32.mrf.mxu0
      %1736 = vmatprep.mubr.f32.mxu0 0.0
      %1737 = vmatmul.mubr.f32.gmra.mxu0 %v1387
      %v1738 = vpop.f32.mrf.mxu0
      %v1739 = vadd.f32 0.0, %v1738
      %v1740 = vpop.f32.mrf.mxu0
      %1741 = vmatprep.mubr.f32.mxu0 0.0
      %1742 = vmatmul.mubr.f32.gmra.mxu0 %v1390
      %v1743 = vpop.f32.mrf.mxu0
      %v1744 = vadd.f32 0.0, %v1743
      %v1745 = vpop.f32.mrf.mxu0
      %1746 = vmatprep.mubr.f32.mxu0 0.0
      %1747 = vmatmul.mubr.f32.gmra.mxu0 %v1393
      %v1748 = vpop.f32.mrf.mxu0
      %v1749 = vadd.f32 0.0, %v1748
      %v1750 = vpop.f32.mrf.mxu0
      %1751 = vmatprep.mubr.f32.mxu0 0.0
      %1752 = vmatmul.mubr.f32.gmra.mxu0 %v1396
      %v1753 = vpop.f32.mrf.mxu0
      %v1754 = vadd.f32 0.0, %v1753
      %v1755 = vpop.f32.mrf.mxu0
      %1756 = vmatprep.mubr.f32.mxu0 0.0
      %1757 = vmatmul.mubr.f32.gmra.mxu0 %v1399
      %v1758 = vpop.f32.mrf.mxu0
      %v1759 = vadd.f32 0.0, %v1758
      %v1760 = vpop.f32.mrf.mxu0
      %1761 = vmatprep.mubr.f32.mxu0 0.0
      %1762 = vmatmul.mubr.f32.gmra.mxu0 %v1402
      %v1763 = vpop.f32.mrf.mxu0
      %v1764 = vadd.f32 0.0, %v1763
      %v1765 = vpop.f32.mrf.mxu0
      %1766 = vmatprep.mubr.f32.mxu0 0.0
      %1767 = vmatmul.mubr.f32.gmra.mxu0 %v1405
      %v1768 = vpop.f32.mrf.mxu0
      %v1769 = vadd.f32 0.0, %v1768
      %v1770 = vpop.f32.mrf.mxu0
      %1771 = vmatprep.mubr.f32.mxu0 0.0
      %1772 = vmatmul.mubr.f32.gmra.mxu0 %v1408
      %v1773 = vpop.f32.mrf.mxu0
      %v1774 = vadd.f32 0.0, %v1773
      %v1775 = vpop.f32.mrf.mxu0
      %1776 = vmatprep.mubr.f32.mxu0 0.0
      %1777 = vmatmul.mubr.f32.gmra.mxu0 %v1411
      %v1778 = vpop.f32.mrf.mxu0
      %v1779 = vadd.f32 0.0, %v1778
      %v1780 = vpop.f32.mrf.mxu0
      %1781 = vmatprep.mubr.f32.mxu0 0.0
      %1782 = vmatmul.mubr.f32.gmra.mxu0 %v1414
      %v1783 = vpop.f32.mrf.mxu0
      %v1784 = vadd.f32 0.0, %v1783
      %v1785 = vpop.f32.mrf.mxu0
      %1786 = vmatprep.mubr.f32.mxu0 0.0
      %1787 = vmatmul.mubr.f32.gmra.mxu0 %v1417
      %v1788 = vpop.f32.mrf.mxu0
      %v1789 = vadd.f32 0.0, %v1788
      %v1790 = vpop.f32.mrf.mxu0
      %1791 = vmatprep.mubr.f32.mxu0 0.0
      %1792 = vmatmul.mubr.f32.gmra.mxu0 %v1420
      %v1793 = vpop.f32.mrf.mxu0
      %v1794 = vadd.f32 0.0, %v1793
      %v1795 = vpop.f32.mrf.mxu0
      %1796 = vmatprep.mubr.f32.mxu0 0.0
      %1797 = vmatmul.mubr.f32.gmra.mxu0 %v1423
      %v1798 = vpop.f32.mrf.mxu0
      %v1799 = vadd.f32 0.0, %v1798
      %v1800 = vpop.f32.mrf.mxu0
      %1801 = vmatprep.mubr.f32.mxu0 0.0
      %1802 = vmatmul.mubr.f32.gmra.mxu0 %v1426
      %v1803 = vpop.f32.mrf.mxu0
      %v1804 = vadd.f32 0.0, %v1803
      %v1805 = vpop.f32.mrf.mxu0
      %1806 = vmatprep.mubr.f32.mxu0 0.0
      %1807 = vmatmul.mubr.f32.gmra.mxu0 %v1429
      %v1808 = vpop.f32.mrf.mxu0
      %v1809 = vadd.f32 0.0, %v1808
      %v1810 = vpop.f32.mrf.mxu0
      %1811 = vmatprep.mubr.f32.mxu0 0.0
      %1812 = vmatmul.mubr.f32.gmra.mxu0 %v1432
      %v1813 = vpop.f32.mrf.mxu0
      %v1814 = vadd.f32 0.0, %v1813
      %v1815 = vpop.f32.mrf.mxu0
      %1816 = vmatprep.mubr.f32.mxu0 0.0
      %1817 = vmatmul.mubr.f32.gmra.mxu0 %v1435
      %v1818 = vpop.f32.mrf.mxu0
      %v1819 = vadd.f32 0.0, %v1818
      %v1820 = vpop.f32.mrf.mxu0
      %1821 = vdwg.mxu0
      %v1822 = vld [vmem:[%s5] sm:$0x1]
      %v1824 = vlaneseq
      %v1825 = vshrl.u32 %v1824, 7
      %v1826 = vsub.s32 0, %v1825
      %v1827 = vrot.slane %v1822, %v1826
      %v1829 = vmul.f32 %v862, %v1827
      %v1830 = vmul.f32 %v867, %v1827
      %v1831 = vmul.f32 %v872, %v1827
      %v1832 = vmul.f32 %v877, %v1827
      %v1833 = vmul.f32 %v882, %v1827
      %v1834 = vmul.f32 %v887, %v1827
      %v1835 = vmul.f32 %v892, %v1827
      %v1836 = vmul.f32 %v897, %v1827
      %v1837 = vmul.f32 %v902, %v1827
      %v1838 = vmul.f32 %v907, %v1827
      %v1839 = vmul.f32 %v912, %v1827
      %v1840 = vmul.f32 %v917, %v1827
      %v1841 = vmul.f32 %v922, %v1827
      %v1842 = vmul.f32 %v927, %v1827
      %v1843 = vmul.f32 %v932, %v1827
      %v1844 = vmul.f32 %v937, %v1827
      %v1845 = vmul.f32 %v942, %v1827
      %v1846 = vmul.f32 %v947, %v1827
      %v1847 = vmul.f32 %v952, %v1827
      %v1848 = vmul.f32 %v957, %v1827
      %v1849 = vmul.f32 %v962, %v1827
      %v1850 = vmul.f32 %v967, %v1827
      %v1851 = vmul.f32 %v972, %v1827
      %v1852 = vmul.f32 %v977, %v1827
      %v1853 = vmul.f32 %v982, %v1827
      %v1854 = vmul.f32 %v987, %v1827
      %v1855 = vmul.f32 %v992, %v1827
      %v1856 = vmul.f32 %v997, %v1827
      %v1857 = vmul.f32 %v1002, %v1827
      %v1858 = vmul.f32 %v1007, %v1827
      %v1859 = vmul.f32 %v1012, %v1827
      %v1860 = vmul.f32 %v1017, %v1827
      %v1861 = vmul.f32 %v1022, %v1827
      %v1862 = vmul.f32 %v1027, %v1827
      %v1863 = vmul.f32 %v1032, %v1827
      %v1864 = vmul.f32 %v1037, %v1827
      %v1865 = vmul.f32 %v1042, %v1827
      %v1866 = vmul.f32 %v1047, %v1827
      %v1867 = vmul.f32 %v1052, %v1827
      %v1868 = vmul.f32 %v1057, %v1827
      %v1869 = vmul.f32 %v1062, %v1827
      %v1870 = vmul.f32 %v1067, %v1827
      %v1871 = vmul.f32 %v1072, %v1827
      %v1872 = vmul.f32 %v1077, %v1827
      %v1873 = vmul.f32 %v1082, %v1827
      %v1874 = vmul.f32 %v1087, %v1827
      %v1875 = vmul.f32 %v1092, %v1827
      %v1876 = vmul.f32 %v1097, %v1827
      %v1877 = vmul.f32 %v1102, %v1827
      %v1878 = vmul.f32 %v1107, %v1827
      %v1879 = vmul.f32 %v1112, %v1827
      %v1880 = vmul.f32 %v1117, %v1827
      %v1881 = vmul.f32 %v1122, %v1827
      %v1882 = vmul.f32 %v1127, %v1827
      %v1883 = vmul.f32 %v1132, %v1827
      %v1884 = vmul.f32 %v1137, %v1827
      %v1885 = vmul.f32 %v1142, %v1827
      %v1886 = vmul.f32 %v1147, %v1827
      %v1887 = vmul.f32 %v1152, %v1827
      %v1888 = vmul.f32 %v1157, %v1827
      %v1889 = vmul.f32 %v1162, %v1827
      %v1890 = vmul.f32 %v1167, %v1827
      %v1891 = vmul.f32 %v1172, %v1827
      %v1892 = vmul.f32 %v1177, %v1827
      %v1893 = vld [vmem:[%s6] sm:$0x1]
      %v1895 = vlaneseq
      %v1896 = vshrl.u32 %v1895, 7
      %v1897 = vsub.s32 0, %v1896
      %v1898 = vrot.slane %v1893, %v1897
      %v1900 = vadd.f32 %v1829, %v1898
      %v1901 = vadd.f32 %v1830, %v1898
      %v1902 = vadd.f32 %v1831, %v1898
      %v1903 = vadd.f32 %v1832, %v1898
      %v1904 = vadd.f32 %v1833, %v1898
      %v1905 = vadd.f32 %v1834, %v1898
      %v1906 = vadd.f32 %v1835, %v1898
      %v1907 = vadd.f32 %v1836, %v1898
      %v1908 = vadd.f32 %v1837, %v1898
      %v1909 = vadd.f32 %v1838, %v1898
      %v1910 = vadd.f32 %v1839, %v1898
      %v1911 = vadd.f32 %v1840, %v1898
      %v1912 = vadd.f32 %v1841, %v1898
      %v1913 = vadd.f32 %v1842, %v1898
      %v1914 = vadd.f32 %v1843, %v1898
      %v1915 = vadd.f32 %v1844, %v1898
      %v1916 = vadd.f32 %v1845, %v1898
      %v1917 = vadd.f32 %v1846, %v1898
      %v1918 = vadd.f32 %v1847, %v1898
      %v1919 = vadd.f32 %v1848, %v1898
      %v1920 = vadd.f32 %v1849, %v1898
      %v1921 = vadd.f32 %v1850, %v1898
      %v1922 = vadd.f32 %v1851, %v1898
      %v1923 = vadd.f32 %v1852, %v1898
      %v1924 = vadd.f32 %v1853, %v1898
      %v1925 = vadd.f32 %v1854, %v1898
      %v1926 = vadd.f32 %v1855, %v1898
      %v1927 = vadd.f32 %v1856, %v1898
      %v1928 = vadd.f32 %v1857, %v1898
      %v1929 = vadd.f32 %v1858, %v1898
      %v1930 = vadd.f32 %v1859, %v1898
      %v1931 = vadd.f32 %v1860, %v1898
      %v1932 = vadd.f32 %v1861, %v1898
      %v1933 = vadd.f32 %v1862, %v1898
      %v1934 = vadd.f32 %v1863, %v1898
      %v1935 = vadd.f32 %v1864, %v1898
      %v1936 = vadd.f32 %v1865, %v1898
      %v1937 = vadd.f32 %v1866, %v1898
      %v1938 = vadd.f32 %v1867, %v1898
      %v1939 = vadd.f32 %v1868, %v1898
      %v1940 = vadd.f32 %v1869, %v1898
      %v1941 = vadd.f32 %v1870, %v1898
      %v1942 = vadd.f32 %v1871, %v1898
      %v1943 = vadd.f32 %v1872, %v1898
      %v1944 = vadd.f32 %v1873, %v1898
      %v1945 = vadd.f32 %v1874, %v1898
      %v1946 = vadd.f32 %v1875, %v1898
      %v1947 = vadd.f32 %v1876, %v1898
      %v1948 = vadd.f32 %v1877, %v1898
      %v1949 = vadd.f32 %v1878, %v1898
      %v1950 = vadd.f32 %v1879, %v1898
      %v1951 = vadd.f32 %v1880, %v1898
      %v1952 = vadd.f32 %v1881, %v1898
      %v1953 = vadd.f32 %v1882, %v1898
      %v1954 = vadd.f32 %v1883, %v1898
      %v1955 = vadd.f32 %v1884, %v1898
      %v1956 = vadd.f32 %v1885, %v1898
      %v1957 = vadd.f32 %v1886, %v1898
      %v1958 = vadd.f32 %v1887, %v1898
      %v1959 = vadd.f32 %v1888, %v1898
      %v1960 = vadd.f32 %v1889, %v1898
      %v1961 = vadd.f32 %v1890, %v1898
      %v1962 = vadd.f32 %v1891, %v1898
      %v1963 = vadd.f32 %v1892, %v1898
      %v1964 = vadd.f32 %v1900, %v1504
      %v1965 = vadd.f32 %v1901, %v1509
      %v1966 = vadd.f32 %v1902, %v1514
      %v1967 = vadd.f32 %v1903, %v1519
      %v1968 = vadd.f32 %v1904, %v1524
      %v1969 = vadd.f32 %v1905, %v1529
      %v1970 = vadd.f32 %v1906, %v1534
      %v1971 = vadd.f32 %v1907, %v1539
      %v1972 = vadd.f32 %v1908, %v1544
      %v1973 = vadd.f32 %v1909, %v1549
      %v1974 = vadd.f32 %v1910, %v1554
      %v1975 = vadd.f32 %v1911, %v1559
      %v1976 = vadd.f32 %v1912, %v1564
      %v1977 = vadd.f32 %v1913, %v1569
      %v1978 = vadd.f32 %v1914, %v1574
      %v1979 = vadd.f32 %v1915, %v1579
      %v1980 = vadd.f32 %v1916, %v1584
      %v1981 = vadd.f32 %v1917, %v1589
      %v1982 = vadd.f32 %v1918, %v1594
      %v1983 = vadd.f32 %v1919, %v1599
      %v1984 = vadd.f32 %v1920, %v1604
      %v1985 = vadd.f32 %v1921, %v1609
      %v1986 = vadd.f32 %v1922, %v1614
      %v1987 = vadd.f32 %v1923, %v1619
      %v1988 = vadd.f32 %v1924, %v1624
      %v1989 = vadd.f32 %v1925, %v1629
      %v1990 = vadd.f32 %v1926, %v1634
      %v1991 = vadd.f32 %v1927, %v1639
      %v1992 = vadd.f32 %v1928, %v1644
      %v1993 = vadd.f32 %v1929, %v1649
      %v1994 = vadd.f32 %v1930, %v1654
      %v1995 = vadd.f32 %v1931, %v1659
      %v1996 = vadd.f32 %v1932, %v1664
      %v1997 = vadd.f32 %v1933, %v1669
      %v1998 = vadd.f32 %v1934, %v1674
      %v1999 = vadd.f32 %v1935, %v1679
      %v2000 = vadd.f32 %v1936, %v1684
      %v2001 = vadd.f32 %v1937, %v1689
      %v2002 = vadd.f32 %v1938, %v1694
      %v2003 = vadd.f32 %v1939, %v1699
      %v2004 = vadd.f32 %v1940, %v1704
      %v2005 = vadd.f32 %v1941, %v1709
      %v2006 = vadd.f32 %v1942, %v1714
      %v2007 = vadd.f32 %v1943, %v1719
      %v2008 = vadd.f32 %v1944, %v1724
      %v2009 = vadd.f32 %v1945, %v1729
      %v2010 = vadd.f32 %v1946, %v1734
      %v2011 = vadd.f32 %v1947, %v1739
      %v2012 = vadd.f32 %v1948, %v1744
      %v2013 = vadd.f32 %v1949, %v1749
      %v2014 = vadd.f32 %v1950, %v1754
      %v2015 = vadd.f32 %v1951, %v1759
      %v2016 = vadd.f32 %v1952, %v1764
      %v2017 = vadd.f32 %v1953, %v1769
      %v2018 = vadd.f32 %v1954, %v1774
      %v2019 = vadd.f32 %v1955, %v1779
      %v2020 = vadd.f32 %v1956, %v1784
      %v2021 = vadd.f32 %v1957, %v1789
      %v2022 = vadd.f32 %v1958, %v1794
      %v2023 = vadd.f32 %v1959, %v1799
      %v2024 = vadd.f32 %v1960, %v1804
      %v2025 = vadd.f32 %v1961, %v1809
      %v2026 = vadd.f32 %v1962, %v1814
      %v2027 = vadd.f32 %v1963, %v1819
      %v2028 = vmax.f32 %v1964, 0.0
      %v2029 = vmax.f32 %v1965, 0.0
      %v2030 = vmax.f32 %v1966, 0.0
      %v2031 = vmax.f32 %v1967, 0.0
      %v2032 = vmax.f32 %v1968, 0.0
      %v2033 = vmax.f32 %v1969, 0.0
      %v2034 = vmax.f32 %v1970, 0.0
      %v2035 = vmax.f32 %v1971, 0.0
      %v2036 = vmax.f32 %v1972, 0.0
      %v2037 = vmax.f32 %v1973, 0.0
      %v2038 = vmax.f32 %v1974, 0.0
      %v2039 = vmax.f32 %v1975, 0.0
      %v2040 = vmax.f32 %v1976, 0.0
      %v2041 = vmax.f32 %v1977, 0.0
      %v2042 = vmax.f32 %v1978, 0.0
      %v2043 = vmax.f32 %v1979, 0.0
      %v2044 = vmax.f32 %v1980, 0.0
      %v2045 = vmax.f32 %v1981, 0.0
      %v2046 = vmax.f32 %v1982, 0.0
      %v2047 = vmax.f32 %v1983, 0.0
      %v2048 = vmax.f32 %v1984, 0.0
      %v2049 = vmax.f32 %v1985, 0.0
      %v2050 = vmax.f32 %v1986, 0.0
      %v2051 = vmax.f32 %v1987, 0.0
      %v2052 = vmax.f32 %v1988, 0.0
      %v2053 = vmax.f32 %v1989, 0.0
      %v2054 = vmax.f32 %v1990, 0.0
      %v2055 = vmax.f32 %v1991, 0.0
      %v2056 = vmax.f32 %v1992, 0.0
      %v2057 = vmax.f32 %v1993, 0.0
      %v2058 = vmax.f32 %v1994, 0.0
      %v2059 = vmax.f32 %v1995, 0.0
      %v2060 = vmax.f32 %v1996, 0.0
      %v2061 = vmax.f32 %v1997, 0.0
      %v2062 = vmax.f32 %v1998, 0.0
      %v2063 = vmax.f32 %v1999, 0.0
      %v2064 = vmax.f32 %v2000, 0.0
      %v2065 = vmax.f32 %v2001, 0.0
      %v2066 = vmax.f32 %v2002, 0.0
      %v2067 = vmax.f32 %v2003, 0.0
      %v2068 = vmax.f32 %v2004, 0.0
      %v2069 = vmax.f32 %v2005, 0.0
      %v2070 = vmax.f32 %v2006, 0.0
      %v2071 = vmax.f32 %v2007, 0.0
      %v2072 = vmax.f32 %v2008, 0.0
      %v2073 = vmax.f32 %v2009, 0.0
      %v2074 = vmax.f32 %v2010, 0.0
      %v2075 = vmax.f32 %v2011, 0.0
      %v2076 = vmax.f32 %v2012, 0.0
      %v2077 = vmax.f32 %v2013, 0.0
      %v2078 = vmax.f32 %v2014, 0.0
      %v2079 = vmax.f32 %v2015, 0.0
      %v2080 = vmax.f32 %v2016, 0.0
      %v2081 = vmax.f32 %v2017, 0.0
      %v2082 = vmax.f32 %v2018, 0.0
      %v2083 = vmax.f32 %v2019, 0.0
      %v2084 = vmax.f32 %v2020, 0.0
      %v2085 = vmax.f32 %v2021, 0.0
      %v2086 = vmax.f32 %v2022, 0.0
      %v2087 = vmax.f32 %v2023, 0.0
      %v2088 = vmax.f32 %v2024, 0.0
      %v2089 = vmax.f32 %v2025, 0.0
      %v2090 = vmax.f32 %v2026, 0.0
      %v2091 = vmax.f32 %v2027, 0.0
      %vm2092 = vcmask 130048
      %2093 = vst.msk [vmem:[%s329] sm:$0xff] %vm2092, %v2028
      %2094 = vst.msk [vmem:[%s329 + $0x8] sm:$0xff] %vm2092, %v2029
      %2095 = vst.msk [vmem:[%s329 + $0x10] sm:$0xff] %vm2092, %v2030
      %2096 = vst.msk [vmem:[%s329 + $0x18] sm:$0xff] %vm2092, %v2031
      %2097 = vst.msk [vmem:[%s329 + $0x20] sm:$0xff] %vm2092, %v2032
      %2098 = vst.msk [vmem:[%s329 + $0x28] sm:$0xff] %vm2092, %v2033
      %2099 = vst.msk [vmem:[%s329 + $0x30] sm:$0xff] %vm2092, %v2034
      %2100 = vst.msk [vmem:[%s329 + $0x38] sm:$0xff] %vm2092, %v2035
      %2101 = vst.msk [vmem:[%s329 + $0x40] sm:$0xff] %vm2092, %v2036
      %2102 = vst.msk [vmem:[%s329 + $0x48] sm:$0xff] %vm2092, %v2037
      %2103 = vst.msk [vmem:[%s329 + $0x50] sm:$0xff] %vm2092, %v2038
      %2104 = vst.msk [vmem:[%s329 + $0x58] sm:$0xff] %vm2092, %v2039
      %2105 = vst.msk [vmem:[%s329 + $0x60] sm:$0xff] %vm2092, %v2040
      %2106 = vst.msk [vmem:[%s329 + $0x68] sm:$0xff] %vm2092, %v2041
      %2107 = vst.msk [vmem:[%s329 + $0x70] sm:$0xff] %vm2092, %v2042
      %2108 = vst.msk [vmem:[%s329 + $0x78] sm:$0xff] %vm2092, %v2043
      %2109 = vst.msk [vmem:[%s329 + $0x80] sm:$0xff] %vm2092, %v2044
      %2110 = vst.msk [vmem:[%s329 + $0x88] sm:$0xff] %vm2092, %v2045
      %2111 = vst.msk [vmem:[%s329 + $0x90] sm:$0xff] %vm2092, %v2046
      %2112 = vst.msk [vmem:[%s329 + $0x98] sm:$0xff] %vm2092, %v2047
      %2113 = vst.msk [vmem:[%s329 + $0xa0] sm:$0xff] %vm2092, %v2048
      %2114 = vst.msk [vmem:[%s329 + $0xa8] sm:$0xff] %vm2092, %v2049
      %2115 = vst.msk [vmem:[%s329 + $0xb0] sm:$0xff] %vm2092, %v2050
      %2116 = vst.msk [vmem:[%s329 + $0xb8] sm:$0xff] %vm2092, %v2051
      %2117 = vst.msk [vmem:[%s329 + $0xc0] sm:$0xff] %vm2092, %v2052
      %2118 = vst.msk [vmem:[%s329 + $0xc8] sm:$0xff] %vm2092, %v2053
      %2119 = vst.msk [vmem:[%s329 + $0xd0] sm:$0xff] %vm2092, %v2054
      %2120 = vst.msk [vmem:[%s329 + $0xd8] sm:$0xff] %vm2092, %v2055
      %2121 = vst.msk [vmem:[%s329 + $0xe0] sm:$0xff] %vm2092, %v2056
      %2122 = vst.msk [vmem:[%s329 + $0xe8] sm:$0xff] %vm2092, %v2057
      %2123 = vst.msk [vmem:[%s329 + $0xf0] sm:$0xff] %vm2092, %v2058
      %2124 = vst.msk [vmem:[%s329 + $0xf8] sm:$0xff] %vm2092, %v2059
      %2125 = vst.msk [vmem:[%s329 + $0x100] sm:$0xff] %vm2092, %v2060
      %2126 = vst.msk [vmem:[%s329 + $0x108] sm:$0xff] %vm2092, %v2061
      %2127 = vst.msk [vmem:[%s329 + $0x110] sm:$0xff] %vm2092, %v2062
      %2128 = vst.msk [vmem:[%s329 + $0x118] sm:$0xff] %vm2092, %v2063
      %2129 = vst.msk [vmem:[%s329 + $0x120] sm:$0xff] %vm2092, %v2064
      %2130 = vst.msk [vmem:[%s329 + $0x128] sm:$0xff] %vm2092, %v2065
      %2131 = vst.msk [vmem:[%s329 + $0x130] sm:$0xff] %vm2092, %v2066
      %2132 = vst.msk [vmem:[%s329 + $0x138] sm:$0xff] %vm2092, %v2067
      %2133 = vst.msk [vmem:[%s329 + $0x140] sm:$0xff] %vm2092, %v2068
      %2134 = vst.msk [vmem:[%s329 + $0x148] sm:$0xff] %vm2092, %v2069
      %2135 = vst.msk [vmem:[%s329 + $0x150] sm:$0xff] %vm2092, %v2070
      %2136 = vst.msk [vmem:[%s329 + $0x158] sm:$0xff] %vm2092, %v2071
      %2137 = vst.msk [vmem:[%s329 + $0x160] sm:$0xff] %vm2092, %v2072
      %2138 = vst.msk [vmem:[%s329 + $0x168] sm:$0xff] %vm2092, %v2073
      %2139 = vst.msk [vmem:[%s329 + $0x170] sm:$0xff] %vm2092, %v2074
      %2140 = vst.msk [vmem:[%s329 + $0x178] sm:$0xff] %vm2092, %v2075
      %2141 = vst.msk [vmem:[%s329 + $0x180] sm:$0xff] %vm2092, %v2076
      %2142 = vst.msk [vmem:[%s329 + $0x188] sm:$0xff] %vm2092, %v2077
      %2143 = vst.msk [vmem:[%s329 + $0x190] sm:$0xff] %vm2092, %v2078
      %2144 = vst.msk [vmem:[%s329 + $0x198] sm:$0xff] %vm2092, %v2079
      %2145 = vst.msk [vmem:[%s329 + $0x1a0] sm:$0xff] %vm2092, %v2080
      %2146 = vst.msk [vmem:[%s329 + $0x1a8] sm:$0xff] %vm2092, %v2081
      %2147 = vst.msk [vmem:[%s329 + $0x1b0] sm:$0xff] %vm2092, %v2082
      %2148 = vst.msk [vmem:[%s329 + $0x1b8] sm:$0xff] %vm2092, %v2083
      %2149 = vst.msk [vmem:[%s329 + $0x1c0] sm:$0xff] %vm2092, %v2084
      %2150 = vst.msk [vmem:[%s329 + $0x1c8] sm:$0xff] %vm2092, %v2085
      %2151 = vst.msk [vmem:[%s329 + $0x1d0] sm:$0xff] %vm2092, %v2086
      %2152 = vst.msk [vmem:[%s329 + $0x1d8] sm:$0xff] %vm2092, %v2087
      %2153 = vst.msk [vmem:[%s329 + $0x1e0] sm:$0xff] %vm2092, %v2088
      %2154 = vst.msk [vmem:[%s329 + $0x1e8] sm:$0xff] %vm2092, %v2089
      %2155 = vst.msk [vmem:[%s329 + $0x1f0] sm:$0xff] %vm2092, %v2090
      %2156 = vst.msk [vmem:[%s329 + $0x1f8] sm:$0xff] %vm2092, %v2091
      %s2157 = smul.u32 64, %s19
      %p2158 = scmp.lt.s32.totalorder %s2157, 127
      %s2159 = scalar_select %p2158, %s2157, 127
      %s2160 = smul.addr %s2159, 8
      %s2161 = scalar_lea.vmem %s8, %s2160
      // Predicated region
      $region53: #{_forward_impl.7} parent=51 // pred_check
        %p2162 = pneg %p215
      $region54: #{_forward_impl.7} parent=51 // pred_check_branch
        %2164 = sbr.rel (%p2162) target = $region56
      $region55: #{_forward_impl.7} parent=51 // pred_region
        %s2165 = smul.u32 64, %s19
      $region56: #{_forward_impl.7} parent=51 // pred_fallthru
        _
    $region52: #{_forward_impl.7} parent=5 // pred_fallthru
      _
    %p2166 = scmp.le.s32.totalorder 2, %s14
    // Predicated region
    $region57: #{_forward_impl.7} parent=5 // pred_check
      %p2167 = pneg %p2166
    $region58: #{_forward_impl.7} parent=5 // pred_check_branch
      %2169 = sbr.rel (%p2167) target = $region60
    $region59: #{_forward_impl.7} parent=5 // pred_region
      %s2170 = ssub.s32 %s14, 2
      // Predicated region
      $region61: #{_forward_impl.7} parent=59 // pred_check
        %p2171 = pneg %p221
      $region62: #{_forward_impl.7} parent=59 // pred_check_branch
        %2173 = sbr.rel (%p2171) target = $region64
      $region63: #{_forward_impl.7} parent=59 // pred_region
        %s2174 = smul.u32 64, %s20
        %p2175 = scmp.lt.s32.totalorder %s2174, 127
        %s2176 = scalar_select %p2175, %s2174, 127
        %s2177 = smul.addr %s2176, 8
        %s2178 = scalar_lea.vmem %s8, %s2177
      $region64: #{_forward_impl.7} parent=59 // pred_fallthru
        _
    $region60: #{_forward_impl.7} parent=5 // pred_fallthru
      _
  $region6: #{_forward_impl.7} parent=0 // loop_footer
    %s18 = sadd.s32 1, %s14
  $region7: #{_forward_impl.7} parent=0 // loop_footer_branch
    %13 = sbr.rel target = $region3
  $region8: #{_forward_impl.7} parent=0 // loop_exit
    _

// kernel: _forward_impl.5
$region0: #{_forward_impl.5}
  #allocation0 [shape = 'u32[]', space=smem, size = 0x4, offset = 0x4, fixed_abs, tag = 'smem constant byte address 0x4 - core index']
  #allocation1 [shape = 'u32[144,128]{1,0:T(1,128)}', space=vmem, size = 0x12000, scoped, tag = 'internal scratch']
  %s0 = inlined_call_operand.vmem [shape: f32[4,16,16,8], index: 0, kind: input, shape index: {}]
  %s1 = inlined_call_operand.vmem [shape: f32[1,8], index: 1, kind: input, shape index: {}]
  %s2 = inlined_call_operand.vmem [shape: f32[1,8], index: 2, kind: input, shape index: {}]
  %s3 = inlined_call_operand.vmem [shape: f32[4,18,2], index: 3, kind: input, shape index: {}]
  %s4 = inlined_call_operand.vmem [shape: f32[4,256,8], index: 4, kind: output, shape index: {0}]
  %s5 = inlined_call_operand.vmem [shape: f32[4,2,8], index: 5, kind: output, shape index: {1}]
  %6 = xla_tuple %s4, %s5
  %s7 = sld [smem:[#allocation0]]
  $region57: #{_forward_impl.5} parent=0
    _
  %s9 = ssub.s32 1, %s7
  %s10 = scalar_select 0, %s9, %s7
  loop: start=0, step=1, limit=6
  $region2: #{_forward_impl.5} parent=0 // loop_pre_header
    _
  $region3: #{_forward_impl.5} parent=0 // loop_header
    %s12 = sphi 0, %s16
    %p13 = scmp.ge.s32.totalorder %s12, 6
    %s22 = sphi 0, %s24
    %s25 = sphi 0, %s22
    %s26 = sphi 0, %s25
    %s42 = sphi 0, %s26
    %s46 = sphi 0, %s46
    %s48 = sphi 0, %s46
    %s49 = sphi 0, %s48
    %s63 = sphi 0, %s49
    %s67 = sphi 0, %s67
    %s69 = sphi 0, %s67
    %s70 = sphi 0, %s69
    %s84 = sphi 0, %s70
    %s88 = sphi 0, %s88
    %s90 = sphi 0, %s88
    %s91 = sphi 0, %s90
    %s105 = sphi 0, %s91
    %s111 = sphi 0, %s113
    %s114 = sphi 0, %s111
    %s115 = sphi 0, %s114
    %s131 = sphi 0, %s115
    %s137 = sphi 0, %s139
    %s140 = sphi 0, %s137
    %s141 = sphi 0, %s140
    %s157 = sphi 0, %s141
  $region4: #{_forward_impl.5} parent=0 // loop_header_branch
    %15 = sbr.rel (%p13) target = $region8
  $region5: #{_forward_impl.5} parent=0 // loop_body
    %s17 = ssub.s32 %s12, 1
    %s18 = ssub.s32 %s12, 2
    %s19 = sadd.s32 %s12, 1
    %s20 = ssub.s32 %s12, %s19
    %p21 = scmp.eq.s32.totalorder %s20, 0
    %s23 = sadd.s32 %s22, 1
    %s24 = scalar_select %p21, %s22, %s23
    %p27 = pneg %p21
    %p28 = scmp.eq.s32.totalorder %s12, 3
    %p29 = por %p27, %p28
    %p30 = scmp.ne.s32.totalorder %s22, %s25
    %p31 = scmp.eq.s32.totalorder %s12, 0
    %p32 = por %p30, %p31
    %p33 = scmp.ne.s32.totalorder %s22, %s25
    %p34 = scmp.eq.s32.totalorder %s17, 3
    %p35 = por %p33, %p34
    %p36 = scmp.ne.s32.totalorder %s25, %s26
    %p37 = scmp.eq.s32.totalorder %s17, 0
    %p38 = por %p36, %p37
    %p39 = scmp.ne.s32.totalorder %s25, %s26
    %p40 = scmp.eq.s32.totalorder %s18, 3
    %p41 = por %p39, %p40
    %p43 = scmp.ne.s32.totalorder %s26, %s42
    %p44 = scmp.eq.s32.totalorder %s18, 0
    %p45 = por %p43, %p44
    %s47 = sadd.s32 %s46, 1
    %p50 = scmp.eq.s32.totalorder %s12, 3
    %p51 = scmp.ne.s32.totalorder %s46, %s48
    %p52 = scmp.eq.s32.totalorder %s12, 0
    %p53 = por %p51, %p52
    %p54 = scmp.ne.s32.totalorder %s46, %s48
    %p55 = scmp.eq.s32.totalorder %s17, 3
    %p56 = por %p54, %p55
    %p57 = scmp.ne.s32.totalorder %s48, %s49
    %p58 = scmp.eq.s32.totalorder %s17, 0
    %p59 = por %p57, %p58
    %p60 = scmp.ne.s32.totalorder %s48, %s49
    %p61 = scmp.eq.s32.totalorder %s18, 3
    %p62 = por %p60, %p61
    %p64 = scmp.ne.s32.totalorder %s49, %s63
    %p65 = scmp.eq.s32.totalorder %s18, 0
    %p66 = por %p64, %p65
    %s68 = sadd.s32 %s67, 1
    %p71 = scmp.eq.s32.totalorder %s12, 3
    %p72 = scmp.ne.s32.totalorder %s67, %s69
    %p73 = scmp.eq.s32.totalorder %s12, 0
    %p74 = por %p72, %p73
    %p75 = scmp.ne.s32.totalorder %s67, %s69
    %p76 = scmp.eq.s32.totalorder %s17, 3
    %p77 = por %p75, %p76
    %p78 = scmp.ne.s32.totalorder %s69, %s70
    %p79 = scmp.eq.s32.totalorder %s17, 0
    %p80 = por %p78, %p79
    %p81 = scmp.ne.s32.totalorder %s69, %s70
    %p82 = scmp.eq.s32.totalorder %s18, 3
    %p83 = por %p81, %p82
    %p85 = scmp.ne.s32.totalorder %s70, %s84
    %p86 = scmp.eq.s32.totalorder %s18, 0
    %p87 = por %p85, %p86
    %s89 = sadd.s32 %s88, 1
    %p92 = scmp.eq.s32.totalorder %s12, 3
    %p93 = scmp.ne.s32.totalorder %s88, %s90
    %p94 = scmp.eq.s32.totalorder %s12, 0
    %p95 = por %p93, %p94
    %p96 = scmp.ne.s32.totalorder %s88, %s90
    %p97 = scmp.eq.s32.totalorder %s17, 3
    %p98 = por %p96, %p97
    %p99 = scmp.ne.s32.totalorder %s90, %s91
    %p100 = scmp.eq.s32.totalorder %s17, 0
    %p101 = por %p99, %p100
    %p102 = scmp.ne.s32.totalorder %s90, %s91
    %p103 = scmp.eq.s32.totalorder %s18, 3
    %p104 = por %p102, %p103
    %p106 = scmp.ne.s32.totalorder %s91, %s105
    %p107 = scmp.eq.s32.totalorder %s18, 0
    %p108 = por %p106, %p107
    %s109 = ssub.s32 %s12, %s19
    %p110 = scmp.eq.s32.totalorder %s109, 0
    %s112 = sadd.s32 %s111, 1
    %s113 = scalar_select %p110, %s111, %s112
    %p116 = pneg %p110
    %p117 = scmp.eq.s32.totalorder %s12, 3
    %p118 = por %p116, %p117
    %p119 = scmp.ne.s32.totalorder %s111, %s114
    %p120 = scmp.eq.s32.totalorder %s12, 0
    %p121 = por %p119, %p120
    %p122 = scmp.ne.s32.totalorder %s111, %s114
    %p123 = scmp.eq.s32.totalorder %s17, 3
    %p124 = por %p122, %p123
    %p125 = scmp.ne.s32.totalorder %s114, %s115
    %p126 = scmp.eq.s32.totalorder %s17, 0
    %p127 = por %p125, %p126
    %p128 = scmp.ne.s32.totalorder %s114, %s115
    %p129 = scmp.eq.s32.totalorder %s18, 3
    %p130 = por %p128, %p129
    %p132 = scmp.ne.s32.totalorder %s115, %s131
    %p133 = scmp.eq.s32.totalorder %s18, 0
    %p134 = por %p132, %p133
    %s135 = ssub.s32 %s12, %s19
    %p136 = scmp.eq.s32.totalorder %s135, 0
    %s138 = sadd.s32 %s137, 1
    %s139 = scalar_select %p136, %s137, %s138
    %p142 = pneg %p136
    %p143 = scmp.eq.s32.totalorder %s12, 3
    %p144 = por %p142, %p143
    %p145 = scmp.ne.s32.totalorder %s137, %s140
    %p146 = scmp.eq.s32.totalorder %s12, 0
    %p147 = por %p145, %p146
    %p148 = scmp.ne.s32.totalorder %s137, %s140
    %p149 = scmp.eq.s32.totalorder %s17, 3
    %p150 = por %p148, %p149
    %p151 = scmp.ne.s32.totalorder %s140, %s141
    %p152 = scmp.eq.s32.totalorder %s17, 0
    %p153 = por %p151, %p152
    %p154 = scmp.ne.s32.totalorder %s140, %s141
    %p155 = scmp.eq.s32.totalorder %s18, 3
    %p156 = por %p154, %p155
    %p158 = scmp.ne.s32.totalorder %s141, %s157
    %p159 = scmp.eq.s32.totalorder %s18, 0
    %p160 = por %p158, %p159
    %p161 = scmp.le.s32.totalorder 1, %s12
    %p162 = scmp.lt.s32.totalorder %s12, 5
    %p163 = pnand %p161, %p162
    %p164 = pneg %p163
    // Predicated region
    $region9: #{_forward_impl.5} parent=5 // pred_check
      _
    $region10: #{_forward_impl.5} parent=5 // pred_check_branch
      %166 = sbr.rel (%p163) target = $region12
    $region11: #{_forward_impl.5} parent=5 // pred_region
      %s167 = ssub.s32 %s12, 1
      // Predicated region
      $region13: #{_forward_impl.5} parent=11 // pred_check
        %p168 = pneg %p59
      $region14: #{_forward_impl.5} parent=11 // pred_check_branch
        %170 = sbr.rel (%p168) target = $region16
      $region15: #{_forward_impl.5} parent=11 // pred_region
        _
      $region16: #{_forward_impl.5} parent=11 // pred_fallthru
        _
      // Predicated region
      $region17: #{_forward_impl.5} parent=11 // pred_check
        %p171 = pneg %p80
      $region18: #{_forward_impl.5} parent=11 // pred_check_branch
        %173 = sbr.rel (%p171) target = $region20
      $region19: #{_forward_impl.5} parent=11 // pred_region
        _
      $region20: #{_forward_impl.5} parent=11 // pred_fallthru
        _
      // Predicated region
      $region21: #{_forward_impl.5} parent=11 // pred_check
        %p174 = pneg %p101
      $region22: #{_forward_impl.5} parent=11 // pred_check_branch
        %176 = sbr.rel (%p174) target = $region24
      $region23: #{_forward_impl.5} parent=11 // pred_region
        _
      $region24: #{_forward_impl.5} parent=11 // pred_fallthru
        _
    $region12: #{_forward_impl.5} parent=5 // pred_fallthru
      _
    %p177 = scmp.lt.s32.totalorder %s12, 4
    // Predicated region
    $region25: #{_forward_impl.5} parent=5 // pred_check
      %p178 = pneg %p177
    $region26: #{_forward_impl.5} parent=5 // pred_check_branch
      %180 = sbr.rel (%p178) target = $region28
    $region27: #{_forward_impl.5} parent=5 // pred_region
      // Predicated region
      $region29: #{_forward_impl.5} parent=27 // pred_check
        %p181 = pneg %p32
      $region30: #{_forward_impl.5} parent=27 // pred_check_branch
        %183 = sbr.rel (%p181) target = $region32
      $region31: #{_forward_impl.5} parent=27 // pred_region
        %p184 = scmp.lt.s32.totalorder %s12, 3
        %s185 = scalar_select %p184, %s12, 3
        %s186 = smul.addr %s185, 32
        %s187 = smul.addr %s186, 8
        %s188 = scalar_lea.vmem %s0, %s187
      $region32: #{_forward_impl.5} parent=27 // pred_fallthru
        _
    $region28: #{_forward_impl.5} parent=5 // pred_fallthru
      _
    %p189 = scmp.le.s32.totalorder 1, %s12
    %p190 = scmp.lt.s32.totalorder %s12, 5
    %p191 = pnand %p189, %p190
    %p192 = pneg %p191
    // Predicated region
    $region33: #{_forward_impl.5} parent=5 // pred_check
      _
    $region34: #{_forward_impl.5} parent=5 // pred_check_branch
      %194 = sbr.rel (%p191) target = $region36
    $region35: #{_forward_impl.5} parent=5 // pred_region
      %s195 = ssub.s32 %s12, 1
      %p196 = scmp.lt.s32.totalorder %s17, 3
      %s197 = scalar_select %p196, %s17, 3
      %s198 = smul.addr %s197, 32
      %s199 = smul.addr %s198, 8
      %s200 = scalar_lea.vmem %s0, %s199
      %p201 = pneg %p38
      %p202 = pneg %p35
      %p203 = pneg %p59
      %p204 = pneg %p56
      %p205 = pneg %p80
      %p206 = pneg %p77
      %p207 = pneg %p101
      %p208 = pneg %p98
      %p209 = pneg %p127
      %p210 = pneg %p124
      %p211 = scmp.lt.s32.totalorder %s17, 3
      %s212 = scalar_select %p211, %s17, 3
      %s213 = smul.addr %s212, 32
      %s214 = smul.addr %s213, 8
      %s215 = scalar_lea.vmem %s4, %s214
      %p216 = pneg %p153
      %p217 = pneg %p150
      %p218 = scmp.lt.s32.totalorder %s17, 3
      %s219 = scalar_select %p218, %s17, 3
      %s220 = smul.addr %s219, 2
      %s221 = scalar_lea.vmem %s5, %s220
      %p222 = scmp.lt.s32.totalorder %s17, 3
      %s223 = scalar_select %p222, %s17, 3
      %s224 = smul.addr %s223, 32
      %s225 = smul.addr %s224, 8
      %s226 = scalar_lea.vmem %s0, %s225
      %p227 = scmp.lt.s32.totalorder %s17, 3
      %s228 = scalar_select %p227, %s17, 3
      %s229 = smul.addr %s228, 32
      %s230 = smul.addr %s229, 8
      %s231 = scalar_lea.vmem %s4, %s230
      %p232 = scmp.lt.s32.totalorder %s17, 3
      %s233 = scalar_select %p232, %s17, 3
      %s234 = smul.addr %s233, 2
      %s235 = scalar_lea.vmem %s5, %s234
      %v236 = vld [vmem:[%s226] sm:$0xff]
      %v237 = vld [vmem:[%s226 + $0x8] sm:$0xff]
      %v238 = vld [vmem:[%s226 + $0x10] sm:$0xff]
      %v239 = vld [vmem:[%s226 + $0x18] sm:$0xff]
      %v240 = vld [vmem:[%s226 + $0x20] sm:$0xff]
      %v241 = vld [vmem:[%s226 + $0x28] sm:$0xff]
      %v242 = vld [vmem:[%s226 + $0x30] sm:$0xff]
      %v243 = vld [vmem:[%s226 + $0x38] sm:$0xff]
      %v244 = vld [vmem:[%s226 + $0x40] sm:$0xff]
      %v245 = vld [vmem:[%s226 + $0x48] sm:$0xff]
      %v246 = vld [vmem:[%s226 + $0x50] sm:$0xff]
      %v247 = vld [vmem:[%s226 + $0x58] sm:$0xff]
      %v248 = vld [vmem:[%s226 + $0x60] sm:$0xff]
      %v249 = vld [vmem:[%s226 + $0x68] sm:$0xff]
      %v250 = vld [vmem:[%s226 + $0x70] sm:$0xff]
      %v251 = vld [vmem:[%s226 + $0x78] sm:$0xff]
      %v252 = vld [vmem:[%s226 + $0x80] sm:$0xff]
      %v253 = vld [vmem:[%s226 + $0x88] sm:$0xff]
      %v254 = vld [vmem:[%s226 + $0x90] sm:$0xff]
      %v255 = vld [vmem:[%s226 + $0x98] sm:$0xff]
      %v256 = vld [vmem:[%s226 + $0xa0] sm:$0xff]
      %v257 = vld [vmem:[%s226 + $0xa8] sm:$0xff]
      %v258 = vld [vmem:[%s226 + $0xb0] sm:$0xff]
      %v259 = vld [vmem:[%s226 + $0xb8] sm:$0xff]
      %v260 = vld [vmem:[%s226 + $0xc0] sm:$0xff]
      %v261 = vld [vmem:[%s226 + $0xc8] sm:$0xff]
      %v262 = vld [vmem:[%s226 + $0xd0] sm:$0xff]
      %v263 = vld [vmem:[%s226 + $0xd8] sm:$0xff]
      %v264 = vld [vmem:[%s226 + $0xe0] sm:$0xff]
      %v265 = vld [vmem:[%s226 + $0xe8] sm:$0xff]
      %v266 = vld [vmem:[%s226 + $0xf0] sm:$0xff]
      %v267 = vld [vmem:[%s226 + $0xf8] sm:$0xff]
      %v268 = vld [vmem:[%s1] sm:$0x1]
      %v270 = vlaneseq
      %v271 = vshrl.u32 %v270, 7
      %v272 = vsub.s32 0, %v271
      %v273 = vrot.slane %v268, %v272
      %v275 = vmul.f32 %v236, %v273
      %v276 = vmul.f32 %v237, %v273
      %v277 = vmul.f32 %v238, %v273
      %v278 = vmul.f32 %v239, %v273
      %v279 = vmul.f32 %v240, %v273
      %v280 = vmul.f32 %v241, %v273
      %v281 = vmul.f32 %v242, %v273
      %v282 = vmul.f32 %v243, %v273
      %v283 = vmul.f32 %v244, %v273
      %v284 = vmul.f32 %v245, %v273
      %v285 = vmul.f32 %v246, %v273
      %v286 = vmul.f32 %v247, %v273
      %v287 = vmul.f32 %v248, %v273
      %v288 = vmul.f32 %v249, %v273
      %v289 = vmul.f32 %v250, %v273
      %v290 = vmul.f32 %v251, %v273
      %v291 = vmul.f32 %v252, %v273
      %v292 = vmul.f32 %v253, %v273
      %v293 = vmul.f32 %v254, %v273
      %v294 = vmul.f32 %v255, %v273
      %v295 = vmul.f32 %v256, %v273
      %v296 = vmul.f32 %v257, %v273
      %v297 = vmul.f32 %v258, %v273
      %v298 = vmul.f32 %v259, %v273
      %v299 = vmul.f32 %v260, %v273
      %v300 = vmul.f32 %v261, %v273
      %v301 = vmul.f32 %v262, %v273
      %v302 = vmul.f32 %v263, %v273
      %v303 = vmul.f32 %v264, %v273
      %v304 = vmul.f32 %v265, %v273
      %v305 = vmul.f32 %v266, %v273
      %v306 = vmul.f32 %v267, %v273
      %v307 = vld [vmem:[%s2] sm:$0x1]
      %v309 = vlaneseq
      %v310 = vshrl.u32 %v309, 7
      %v311 = vsub.s32 0, %v310
      %v312 = vrot.slane %v307, %v311
      %v314 = vadd.f32 %v275, %v312
      %v315 = vadd.f32 %v276, %v312
      %v316 = vadd.f32 %v277, %v312
      %v317 = vadd.f32 %v278, %v312
      %v318 = vadd.f32 %v279, %v312
      %v319 = vadd.f32 %v280, %v312
      %v320 = vadd.f32 %v281, %v312
      %v321 = vadd.f32 %v282, %v312
      %v322 = vadd.f32 %v283, %v312
      %v323 = vadd.f32 %v284, %v312
      %v324 = vadd.f32 %v285, %v312
      %v325 = vadd.f32 %v286, %v312
      %v326 = vadd.f32 %v287, %v312
      %v327 = vadd.f32 %v288, %v312
      %v328 = vadd.f32 %v289, %v312
      %v329 = vadd.f32 %v290, %v312
      %v330 = vadd.f32 %v291, %v312
      %v331 = vadd.f32 %v292, %v312
      %v332 = vadd.f32 %v293, %v312
      %v333 = vadd.f32 %v294, %v312
      %v334 = vadd.f32 %v295, %v312
      %v335 = vadd.f32 %v296, %v312
      %v336 = vadd.f32 %v297, %v312
      %v337 = vadd.f32 %v298, %v312
      %v338 = vadd.f32 %v299, %v312
      %v339 = vadd.f32 %v300, %v312
      %v340 = vadd.f32 %v301, %v312
      %v341 = vadd.f32 %v302, %v312
      %v342 = vadd.f32 %v303, %v312
      %v343 = vadd.f32 %v304, %v312
      %v344 = vadd.f32 %v305, %v312
      %v345 = vadd.f32 %v306, %v312
      %v346 = vmax.f32 %v314, 0.0
      %v347 = vmax.f32 %v315, 0.0
      %v348 = vmax.f32 %v316, 0.0
      %v349 = vmax.f32 %v317, 0.0
      %v350 = vmax.f32 %v318, 0.0
      %v351 = vmax.f32 %v319, 0.0
      %v352 = vmax.f32 %v320, 0.0
      %v353 = vmax.f32 %v321, 0.0
      %v354 = vmax.f32 %v322, 0.0
      %v355 = vmax.f32 %v323, 0.0
      %v356 = vmax.f32 %v324, 0.0
      %v357 = vmax.f32 %v325, 0.0
      %v358 = vmax.f32 %v326, 0.0
      %v359 = vmax.f32 %v327, 0.0
      %v360 = vmax.f32 %v328, 0.0
      %v361 = vmax.f32 %v329, 0.0
      %v362 = vmax.f32 %v330, 0.0
      %v363 = vmax.f32 %v331, 0.0
      %v364 = vmax.f32 %v332, 0.0
      %v365 = vmax.f32 %v333, 0.0
      %v366 = vmax.f32 %v334, 0.0
      %v367 = vmax.f32 %v335, 0.0
      %v368 = vmax.f32 %v336, 0.0
      %v369 = vmax.f32 %v337, 0.0
      %v370 = vmax.f32 %v338, 0.0
      %v371 = vmax.f32 %v339, 0.0
      %v372 = vmax.f32 %v340, 0.0
      %v373 = vmax.f32 %v341, 0.0
      %v374 = vmax.f32 %v342, 0.0
      %v375 = vmax.f32 %v343, 0.0
      %v376 = vmax.f32 %v344, 0.0
      %v377 = vmax.f32 %v345, 0.0
      %v378 = vlaneseq
      %v379 = vshrl.u32 %v378, 7
      %v380 = vadd.s32 %v379, 8
      %vm381 = vcmp.ge.s32.totalorder %v379, 1
      %vm382 = vcmp.ge.s32.totalorder %v380, 1
      %v383 = vrot.slane %v346, 7
      %v384 = vrot.slane %v348, 7
      %v385 = vrot.slane %v350, 7
      %v386 = vrot.slane %v352, 7
      %v387 = vrot.slane %v354, 7
      %v388 = vrot.slane %v356, 7
      %v389 = vrot.slane %v358, 7
      %v390 = vrot.slane %v360, 7
      %v391 = vrot.slane %v362, 7
      %v392 = vrot.slane %v364, 7
      %v393 = vrot.slane %v366, 7
      %v394 = vrot.slane %v368, 7
      %v395 = vrot.slane %v370, 7
      %v396 = vrot.slane %v372, 7
      %v397 = vrot.slane %v374, 7
      %v398 = vrot.slane %v376, 7
      %v399 = vrot.slane %v347, 7
      %v400 = vrot.slane %v349, 7
      %v401 = vrot.slane %v351, 7
      %v402 = vrot.slane %v353, 7
      %v403 = vrot.slane %v355, 7
      %v404 = vrot.slane %v357, 7
      %v405 = vrot.slane %v359, 7
      %v406 = vrot.slane %v361, 7
      %v407 = vrot.slane %v363, 7
      %v408 = vrot.slane %v365, 7
      %v409 = vrot.slane %v367, 7
      %v410 = vrot.slane %v369, 7
      %v411 = vrot.slane %v371, 7
      %v412 = vrot.slane %v373, 7
      %v413 = vrot.slane %v375, 7
      %v414 = vrot.slane %v377, 7
      %vm415 = vcmp.lt.s32.totalorder %v379, 1
      %v416 = vsel %vm415, %v383, %v399
      %v417 = vsel %vm415, %v384, %v400
      %v418 = vsel %vm415, %v385, %v401
      %v419 = vsel %vm415, %v386, %v402
      %v420 = vsel %vm415, %v387, %v403
      %v421 = vsel %vm415, %v388, %v404
      %v422 = vsel %vm415, %v389, %v405
      %v423 = vsel %vm415, %v390, %v406
      %v424 = vsel %vm415, %v391, %v407
      %v425 = vsel %vm415, %v392, %v408
      %v426 = vsel %vm415, %v393, %v409
      %v427 = vsel %vm415, %v394, %v410
      %v428 = vsel %vm415, %v395, %v411
      %v429 = vsel %vm415, %v396, %v412
      %v430 = vsel %vm415, %v397, %v413
      %v431 = vsel %vm415, %v398, %v414
      %v432 = vsel %vm415, %v399, %v383
      %v433 = vsel %vm415, %v400, %v384
      %v434 = vsel %vm415, %v401, %v385
      %v435 = vsel %vm415, %v402, %v386
      %v436 = vsel %vm415, %v403, %v387
      %v437 = vsel %vm415, %v404, %v388
      %v438 = vsel %vm415, %v405, %v389
      %v439 = vsel %vm415, %v406, %v390
      %v440 = vsel %vm415, %v407, %v391
      %v441 = vsel %vm415, %v408, %v392
      %v442 = vsel %vm415, %v409, %v393
      %v443 = vsel %vm415, %v410, %v394
      %v444 = vsel %vm415, %v411, %v395
      %v445 = vsel %vm415, %v412, %v396
      %v446 = vsel %vm415, %v413, %v397
      %v447 = vsel %vm415, %v414, %v398
      %v448 = vsel %vm381, 1, 0
      %v449 = vsel %vm382, 1, 0
      %vm450 = vcmp.eq.s32.totalorder %v448, 1
      %vm451 = vcmp.eq.s32.totalorder %v449, 1
      %v452 = vsel %vm450, 0.0, 0.0
      %v453 = vsel %vm451, 0.0, 0.0
      %v454 = vsel %vm450, %v432, 0.0
      %v455 = vsel %vm451, %v416, 0.0
      %v456 = vsel %vm450, %v433, 0.0
      %v457 = vsel %vm451, %v417, 0.0
      %v458 = vsel %vm450, %v434, 0.0
      %v459 = vsel %vm451, %v418, 0.0
      %v460 = vsel %vm450, %v435, 0.0
      %v461 = vsel %vm451, %v419, 0.0
      %v462 = vsel %vm450, %v436, 0.0
      %v463 = vsel %vm451, %v420, 0.0
      %v464 = vsel %vm450, %v437, 0.0
      %v465 = vsel %vm451, %v421, 0.0
      %v466 = vsel %vm450, %v438, 0.0
      %v467 = vsel %vm451, %v422, 0.0
      %v468 = vsel %vm450, %v439, 0.0
      %v469 = vsel %vm451, %v423, 0.0
      %v470 = vsel %vm450, %v440, 0.0
      %v471 = vsel %vm451, %v424, 0.0
      %v472 = vsel %vm450, %v441, 0.0
      %v473 = vsel %vm451, %v425, 0.0
      %v474 = vsel %vm450, %v442, 0.0
      %v475 = vsel %vm451, %v426, 0.0
      %v476 = vsel %vm450, %v443, 0.0
      %v477 = vsel %vm451, %v427, 0.0
      %v478 = vsel %vm450, %v444, 0.0
      %v479 = vsel %vm451, %v428, 0.0
      %v480 = vsel %vm450, %v445, 0.0
      %v481 = vsel %vm451, %v429, 0.0
      %v482 = vsel %vm450, %v446, 0.0
      %v483 = vsel %vm451, %v430, 0.0
      %v484 = vsel %vm450, %v447, 0.0
      %v485 = vsel %vm451, %v431, 0.0
      %vm486 = vcmp.le.s32.totalorder %v379, 14
      %vm487 = vcmp.le.s32.totalorder %v380, 14
      %v488 = vrot.slane %v346, 1
      %v489 = vrot.slane %v348, 1
      %v490 = vrot.slane %v350, 1
      %v491 = vrot.slane %v352, 1
      %v492 = vrot.slane %v354, 1
      %v493 = vrot.slane %v356, 1
      %v494 = vrot.slane %v358, 1
      %v495 = vrot.slane %v360, 1
      %v496 = vrot.slane %v362, 1
      %v497 = vrot.slane %v364, 1
      %v498 = vrot.slane %v366, 1
      %v499 = vrot.slane %v368, 1
      %v500 = vrot.slane %v370, 1
      %v501 = vrot.slane %v372, 1
      %v502 = vrot.slane %v374, 1
      %v503 = vrot.slane %v376, 1
      %v504 = vrot.slane %v347, 1
      %v505 = vrot.slane %v349, 1
      %v506 = vrot.slane %v351, 1
      %v507 = vrot.slane %v353, 1
      %v508 = vrot.slane %v355, 1
      %v509 = vrot.slane %v357, 1
      %v510 = vrot.slane %v359, 1
      %v511 = vrot.slane %v361, 1
      %v512 = vrot.slane %v363, 1
      %v513 = vrot.slane %v365, 1
      %v514 = vrot.slane %v367, 1
      %v515 = vrot.slane %v369, 1
      %v516 = vrot.slane %v371, 1
      %v517 = vrot.slane %v373, 1
      %v518 = vrot.slane %v375, 1
      %v519 = vrot.slane %v377, 1
      %vm520 = vcmp.lt.s32.totalorder %v379, 7
      %v521 = vsel %vm520, %v488, %v504
      %v522 = vsel %vm520, %v489, %v505
      %v523 = vsel %vm520, %v490, %v506
      %v524 = vsel %vm520, %v491, %v507
      %v525 = vsel %vm520, %v492, %v508
      %v526 = vsel %vm520, %v493, %v509
      %v527 = vsel %vm520, %v494, %v510
      %v528 = vsel %vm520, %v495, %v511
      %v529 = vsel %vm520, %v496, %v512
      %v530 = vsel %vm520, %v497, %v513
      %v531 = vsel %vm520, %v498, %v514
      %v532 = vsel %vm520, %v499, %v515
      %v533 = vsel %vm520, %v500, %v516
      %v534 = vsel %vm520, %v501, %v517
      %v535 = vsel %vm520, %v502, %v518
      %v536 = vsel %vm520, %v503, %v519
      %v537 = vsel %vm520, %v504, %v488
      %v538 = vsel %vm520, %v505, %v489
      %v539 = vsel %vm520, %v506, %v490
      %v540 = vsel %vm520, %v507, %v491
      %v541 = vsel %vm520, %v508, %v492
      %v542 = vsel %vm520, %v509, %v493
      %v543 = vsel %vm520, %v510, %v494
      %v544 = vsel %vm520, %v511, %v495
      %v545 = vsel %vm520, %v512, %v496
      %v546 = vsel %vm520, %v513, %v497
      %v547 = vsel %vm520, %v514, %v498
      %v548 = vsel %vm520, %v515, %v499
      %v549 = vsel %vm520, %v516, %v500
      %v550 = vsel %vm520, %v517, %v501
      %v551 = vsel %vm520, %v518, %v502
      %v552 = vsel %vm520, %v519, %v503
      %v553 = vsel %vm486, 1, 0
      %v554 = vsel %vm487, 1, 0
      %vm555 = vcmp.eq.s32.totalorder %v553, 1
      %vm556 = vcmp.eq.s32.totalorder %v554, 1
      %v557 = vsel %vm555, 0.0, 0.0
      %v558 = vsel %vm556, 0.0, 0.0
      %v559 = vsel %vm555, %v521, 0.0
      %v560 = vsel %vm556, %v537, 0.0
      %v561 = vsel %vm555, %v522, 0.0
      %v562 = vsel %vm556, %v538, 0.0
      %v563 = vsel %vm555, %v523, 0.0
      %v564 = vsel %vm556, %v539, 0.0
      %v565 = vsel %vm555, %v524, 0.0
      %v566 = vsel %vm556, %v540, 0.0
      %v567 = vsel %vm555, %v525, 0.0
      %v568 = vsel %vm556, %v541, 0.0
      %v569 = vsel %vm555, %v526, 0.0
      %v570 = vsel %vm556, %v542, 0.0
      %v571 = vsel %vm555, %v527, 0.0
      %v572 = vsel %vm556, %v543, 0.0
      %v573 = vsel %vm555, %v528, 0.0
      %v574 = vsel %vm556, %v544, 0.0
      %v575 = vsel %vm555, %v529, 0.0
      %v576 = vsel %vm556, %v545, 0.0
      %v577 = vsel %vm555, %v530, 0.0
      %v578 = vsel %vm556, %v546, 0.0
      %v579 = vsel %vm555, %v531, 0.0
      %v580 = vsel %vm556, %v547, 0.0
      %v581 = vsel %vm555, %v532, 0.0
      %v582 = vsel %vm556, %v548, 0.0
      %v583 = vsel %vm555, %v533, 0.0
      %v584 = vsel %vm556, %v549, 0.0
      %v585 = vsel %vm555, %v534, 0.0
      %v586 = vsel %vm556, %v550, 0.0
      %v587 = vsel %vm555, %v535, 0.0
      %v588 = vsel %vm556, %v551, 0.0
      %v589 = vsel %vm555, %v536, 0.0
      %v590 = vsel %vm556, %v552, 0.0
      %622 = vrot.lane.b32.xlu0 0.0, 2
      %v623 = vpop.permute.xlu0 %622
      %624 = vrot.lane.b32.xlu0 %v346, 2
      %v625 = vpop.permute.xlu0 %624
      %626 = vrot.lane.b32.xlu0 %v347, 2
      %v627 = vpop.permute.xlu0 %626
      %628 = vrot.lane.b32.xlu0 %v348, 2
      %v629 = vpop.permute.xlu0 %628
      %630 = vrot.lane.b32.xlu0 %v349, 2
      %v631 = vpop.permute.xlu0 %630
      %632 = vrot.lane.b32.xlu0 %v350, 2
      %v633 = vpop.permute.xlu0 %632
      %634 = vrot.lane.b32.xlu0 %v351, 2
      %v635 = vpop.permute.xlu0 %634
      %636 = vrot.lane.b32.xlu0 %v352, 2
      %v637 = vpop.permute.xlu0 %636
      %638 = vrot.lane.b32.xlu0 %v353, 2
      %v639 = vpop.permute.xlu0 %638
      %640 = vrot.lane.b32.xlu0 %v354, 2
      %v641 = vpop.permute.xlu0 %640
      %642 = vrot.lane.b32.xlu0 %v355, 2
      %v643 = vpop.permute.xlu0 %642
      %644 = vrot.lane.b32.xlu0 %v356, 2
      %v645 = vpop.permute.xlu0 %644
      %646 = vrot.lane.b32.xlu0 %v357, 2
      %v647 = vpop.permute.xlu0 %646
      %648 = vrot.lane.b32.xlu0 %v358, 2
      %v649 = vpop.permute.xlu0 %648
      %650 = vrot.lane.b32.xlu0 %v359, 2
      %v651 = vpop.permute.xlu0 %650
      %652 = vrot.lane.b32.xlu0 %v360, 2
      %v653 = vpop.permute.xlu0 %652
      %654 = vrot.lane.b32.xlu0 %v361, 2
      %v655 = vpop.permute.xlu0 %654
      %656 = vrot.lane.b32.xlu0 %v362, 2
      %v657 = vpop.permute.xlu0 %656
      %658 = vrot.lane.b32.xlu0 %v363, 2
      %v659 = vpop.permute.xlu0 %658
      %660 = vrot.lane.b32.xlu0 %v364, 2
      %v661 = vpop.permute.xlu0 %660
      %662 = vrot.lane.b32.xlu0 %v365, 2
      %v663 = vpop.permute.xlu0 %662
      %664 = vrot.lane.b32.xlu0 %v366, 2
      %v665 = vpop.permute.xlu0 %664
      %666 = vrot.lane.b32.xlu0 %v367, 2
      %v667 = vpop.permute.xlu0 %666
      %668 = vrot.lane.b32.xlu0 %v368, 2
      %v669 = vpop.permute.xlu0 %668
      %670 = vrot.lane.b32.xlu0 %v369, 2
      %v671 = vpop.permute.xlu0 %670
      %672 = vrot.lane.b32.xlu0 %v370, 2
      %v673 = vpop.permute.xlu0 %672
      %674 = vrot.lane.b32.xlu0 %v371, 2
      %v675 = vpop.permute.xlu0 %674
      %676 = vrot.lane.b32.xlu0 %v372, 2
      %v677 = vpop.permute.xlu0 %676
      %678 = vrot.lane.b32.xlu0 %v373, 2
      %v679 = vpop.permute.xlu0 %678
      %680 = vrot.lane.b32.xlu0 %v374, 2
      %v681 = vpop.permute.xlu0 %680
      %682 = vrot.lane.b32.xlu0 %v375, 2
      %v683 = vpop.permute.xlu0 %682
      %747 = vrot.lane.b32.xlu0 %v557, 4
      %v748 = vpop.permute.xlu0 %747
      %749 = vrot.lane.b32.xlu0 %v558, 4
      %v750 = vpop.permute.xlu0 %749
      %751 = vrot.lane.b32.xlu0 %v559, 4
      %v752 = vpop.permute.xlu0 %751
      %753 = vrot.lane.b32.xlu0 %v560, 4
      %v754 = vpop.permute.xlu0 %753
      %755 = vrot.lane.b32.xlu0 %v561, 4
      %v756 = vpop.permute.xlu0 %755
      %757 = vrot.lane.b32.xlu0 %v562, 4
      %v758 = vpop.permute.xlu0 %757
      %759 = vrot.lane.b32.xlu0 %v563, 4
      %v760 = vpop.permute.xlu0 %759
      %761 = vrot.lane.b32.xlu0 %v564, 4
      %v762 = vpop.permute.xlu0 %761
      %763 = vrot.lane.b32.xlu0 %v565, 4
      %v764 = vpop.permute.xlu0 %763
      %765 = vrot.lane.b32.xlu0 %v566, 4
      %v766 = vpop.permute.xlu0 %765
      %767 = vrot.lane.b32.xlu0 %v567, 4
      %v768 = vpop.permute.xlu0 %767
      %769 = vrot.lane.b32.xlu0 %v568, 4
      %v770 = vpop.permute.xlu0 %769
      %771 = vrot.lane.b32.xlu0 %v569, 4
      %v772 = vpop.permute.xlu0 %771
      %773 = vrot.lane.b32.xlu0 %v570, 4
      %v774 = vpop.permute.xlu0 %773
      %775 = vrot.lane.b32.xlu0 %v571, 4
      %v776 = vpop.permute.xlu0 %775
      %777 = vrot.lane.b32.xlu0 %v572, 4
      %v778 = vpop.permute.xlu0 %777
      %779 = vrot.lane.b32.xlu0 %v573, 4
      %v780 = vpop.permute.xlu0 %779
      %781 = vrot.lane.b32.xlu0 %v574, 4
      %v782 = vpop.permute.xlu0 %781
      %783 = vrot.lane.b32.xlu0 %v575, 4
      %v784 = vpop.permute.xlu0 %783
      %785 = vrot.lane.b32.xlu0 %v576, 4
      %v786 = vpop.permute.xlu0 %785
      %787 = vrot.lane.b32.xlu0 %v577, 4
      %v788 = vpop.permute.xlu0 %787
      %789 = vrot.lane.b32.xlu0 %v578, 4
      %v790 = vpop.permute.xlu0 %789
      %791 = vrot.lane.b32.xlu0 %v579, 4
      %v792 = vpop.permute.xlu0 %791
      %793 = vrot.lane.b32.xlu0 %v580, 4
      %v794 = vpop.permute.xlu0 %793
      %795 = vrot.lane.b32.xlu0 %v581, 4
      %v796 = vpop.permute.xlu0 %795
      %797 = vrot.lane.b32.xlu0 %v582, 4
      %v798 = vpop.permute.xlu0 %797
      %799 = vrot.lane.b32.xlu0 %v583, 4
      %v800 = vpop.permute.xlu0 %799
      %801 = vrot.lane.b32.xlu0 %v584, 4
      %v802 = vpop.permute.xlu0 %801
      %803 = vrot.lane.b32.xlu0 %v585, 4
      %v804 = vpop.permute.xlu0 %803
      %805 = vrot.lane.b32.xlu0 %v586, 4
      %v806 = vpop.permute.xlu0 %805
      %807 = vrot.lane.b32.xlu0 %v587, 4
      %v808 = vpop.permute.xlu0 %807
      %809 = vrot.lane.b32.xlu0 %v588, 4
      %v810 = vpop.permute.xlu0 %809
      %875 = vrot.lane.b32.xlu0 %v454, 6
      %v876 = vpop.permute.xlu0 %875
      %877 = vrot.lane.b32.xlu0 %v455, 6
      %v878 = vpop.permute.xlu0 %877
      %879 = vrot.lane.b32.xlu0 %v456, 6
      %v880 = vpop.permute.xlu0 %879
      %881 = vrot.lane.b32.xlu0 %v457, 6
      %v882 = vpop.permute.xlu0 %881
      %883 = vrot.lane.b32.xlu0 %v458, 6
      %v884 = vpop.permute.xlu0 %883
      %885 = vrot.lane.b32.xlu0 %v459, 6
      %v886 = vpop.permute.xlu0 %885
      %887 = vrot.lane.b32.xlu0 %v460, 6
      %v888 = vpop.permute.xlu0 %887
      %889 = vrot.lane.b32.xlu0 %v461, 6
      %v890 = vpop.permute.xlu0 %889
      %891 = vrot.lane.b32.xlu0 %v462, 6
      %v892 = vpop.permute.xlu0 %891
      %893 = vrot.lane.b32.xlu0 %v463, 6
      %v894 = vpop.permute.xlu0 %893
      %895 = vrot.lane.b32.xlu0 %v464, 6
      %v896 = vpop.permute.xlu0 %895
      %897 = vrot.lane.b32.xlu0 %v465, 6
      %v898 = vpop.permute.xlu0 %897
      %899 = vrot.lane.b32.xlu0 %v466, 6
      %v900 = vpop.permute.xlu0 %899
      %901 = vrot.lane.b32.xlu0 %v467, 6
      %v902 = vpop.permute.xlu0 %901
      %903 = vrot.lane.b32.xlu0 %v468, 6
      %v904 = vpop.permute.xlu0 %903
      %905 = vrot.lane.b32.xlu0 %v469, 6
      %v906 = vpop.permute.xlu0 %905
      %907 = vrot.lane.b32.xlu0 %v470, 6
      %v908 = vpop.permute.xlu0 %907
      %909 = vrot.lane.b32.xlu0 %v471, 6
      %v910 = vpop.permute.xlu0 %909
      %911 = vrot.lane.b32.xlu0 %v472, 6
      %v912 = vpop.permute.xlu0 %911
      %913 = vrot.lane.b32.xlu0 %v473, 6
      %v914 = vpop.permute.xlu0 %913
      %915 = vrot.lane.b32.xlu0 %v474, 6
      %v916 = vpop.permute.xlu0 %915
      %917 = vrot.lane.b32.xlu0 %v475, 6
      %v918 = vpop.permute.xlu0 %917
      %919 = vrot.lane.b32.xlu0 %v476, 6
      %v920 = vpop.permute.xlu0 %919
      %921 = vrot.lane.b32.xlu0 %v477, 6
      %v922 = vpop.permute.xlu0 %921
      %923 = vrot.lane.b32.xlu0 %v478, 6
      %v924 = vpop.permute.xlu0 %923
      %925 = vrot.lane.b32.xlu0 %v479, 6
      %v926 = vpop.permute.xlu0 %925
      %927 = vrot.lane.b32.xlu0 %v480, 6
      %v928 = vpop.permute.xlu0 %927
      %929 = vrot.lane.b32.xlu0 %v481, 6
      %v930 = vpop.permute.xlu0 %929
      %931 = vrot.lane.b32.xlu0 %v482, 6
      %v932 = vpop.permute.xlu0 %931
      %933 = vrot.lane.b32.xlu0 %v483, 6
      %v934 = vpop.permute.xlu0 %933
      %935 = vrot.lane.b32.xlu0 %v484, 6
      %v936 = vpop.permute.xlu0 %935
      %937 = vrot.lane.b32.xlu0 %v485, 6
      %v938 = vpop.permute.xlu0 %937
      %973 = vrot.lane.b32.xlu0 %v346, 8
      %v974 = vpop.permute.xlu0 %973
      %975 = vrot.lane.b32.xlu0 %v347, 8
      %v976 = vpop.permute.xlu0 %975
      %977 = vrot.lane.b32.xlu0 %v348, 8
      %v978 = vpop.permute.xlu0 %977
      %979 = vrot.lane.b32.xlu0 %v349, 8
      %v980 = vpop.permute.xlu0 %979
      %981 = vrot.lane.b32.xlu0 %v350, 8
      %v982 = vpop.permute.xlu0 %981
      %983 = vrot.lane.b32.xlu0 %v351, 8
      %v984 = vpop.permute.xlu0 %983
      %985 = vrot.lane.b32.xlu0 %v352, 8
      %v986 = vpop.permute.xlu0 %985
      %987 = vrot.lane.b32.xlu0 %v353, 8
      %v988 = vpop.permute.xlu0 %987
      %989 = vrot.lane.b32.xlu0 %v354, 8
      %v990 = vpop.permute.xlu0 %989
      %991 = vrot.lane.b32.xlu0 %v355, 8
      %v992 = vpop.permute.xlu0 %991
      %993 = vrot.lane.b32.xlu0 %v356, 8
      %v994 = vpop.permute.xlu0 %993
      %995 = vrot.lane.b32.xlu0 %v357, 8
      %v996 = vpop.permute.xlu0 %995
      %997 = vrot.lane.b32.xlu0 %v358, 8
      %v998 = vpop.permute.xlu0 %997
      %999 = vrot.lane.b32.xlu0 %v359, 8
      %v1000 = vpop.permute.xlu0 %999
      %1001 = vrot.lane.b32.xlu0 %v360, 8
      %v1002 = vpop.permute.xlu0 %1001
      %1003 = vrot.lane.b32.xlu0 %v361, 8
      %v1004 = vpop.permute.xlu0 %1003
      %1005 = vrot.lane.b32.xlu0 %v362, 8
      %v1006 = vpop.permute.xlu0 %1005
      %1007 = vrot.lane.b32.xlu0 %v363, 8
      %v1008 = vpop.permute.xlu0 %1007
      %1009 = vrot.lane.b32.xlu0 %v364, 8
      %v1010 = vpop.permute.xlu0 %1009
      %1011 = vrot.lane.b32.xlu0 %v365, 8
      %v1012 = vpop.permute.xlu0 %1011
      %1013 = vrot.lane.b32.xlu0 %v366, 8
      %v1014 = vpop.permute.xlu0 %1013
      %1015 = vrot.lane.b32.xlu0 %v367, 8
      %v1016 = vpop.permute.xlu0 %1015
      %1017 = vrot.lane.b32.xlu0 %v368, 8
      %v1018 = vpop.permute.xlu0 %1017
      %1019 = vrot.lane.b32.xlu0 %v369, 8
      %v1020 = vpop.permute.xlu0 %1019
      %1021 = vrot.lane.b32.xlu0 %v370, 8
      %v1022 = vpop.permute.xlu0 %1021
      %1023 = vrot.lane.b32.xlu0 %v371, 8
      %v1024 = vpop.permute.xlu0 %1023
      %1025 = vrot.lane.b32.xlu0 %v372, 8
      %v1026 = vpop.permute.xlu0 %1025
      %1027 = vrot.lane.b32.xlu0 %v373, 8
      %v1028 = vpop.permute.xlu0 %1027
      %1029 = vrot.lane.b32.xlu0 %v374, 8
      %v1030 = vpop.permute.xlu0 %1029
      %1031 = vrot.lane.b32.xlu0 %v375, 8
      %v1032 = vpop.permute.xlu0 %1031
      %1033 = vrot.lane.b32.xlu0 %v376, 8
      %v1034 = vpop.permute.xlu0 %1033
      %1035 = vrot.lane.b32.xlu0 %v377, 8
      %v1036 = vpop.permute.xlu0 %1035
      %1071 = vrot.lane.b32.xlu0 %v559, 10
      %v1072 = vpop.permute.xlu0 %1071
      %1073 = vrot.lane.b32.xlu0 %v560, 10
      %v1074 = vpop.permute.xlu0 %1073
      %1075 = vrot.lane.b32.xlu0 %v561, 10
      %v1076 = vpop.permute.xlu0 %1075
      %1077 = vrot.lane.b32.xlu0 %v562, 10
      %v1078 = vpop.permute.xlu0 %1077
      %1079 = vrot.lane.b32.xlu0 %v563, 10
      %v1080 = vpop.permute.xlu0 %1079
      %1081 = vrot.lane.b32.xlu0 %v564, 10
      %v1082 = vpop.permute.xlu0 %1081
      %1083 = vrot.lane.b32.xlu0 %v565, 10
      %v1084 = vpop.permute.xlu0 %1083
      %1085 = vrot.lane.b32.xlu0 %v566, 10
      %v1086 = vpop.permute.xlu0 %1085
      %1087 = vrot.lane.b32.xlu0 %v567, 10
      %v1088 = vpop.permute.xlu0 %1087
      %1089 = vrot.lane.b32.xlu0 %v568, 10
      %v1090 = vpop.permute.xlu0 %1089
      %1091 = vrot.lane.b32.xlu0 %v569, 10
      %v1092 = vpop.permute.xlu0 %1091
      %1093 = vrot.lane.b32.xlu0 %v570, 10
      %v1094 = vpop.permute.xlu0 %1093
      %1095 = vrot.lane.b32.xlu0 %v571, 10
      %v1096 = vpop.permute.xlu0 %1095
      %1097 = vrot.lane.b32.xlu0 %v572, 10
      %v1098 = vpop.permute.xlu0 %1097
      %1099 = vrot.lane.b32.xlu0 %v573, 10
      %v1100 = vpop.permute.xlu0 %1099
      %1101 = vrot.lane.b32.xlu0 %v574, 10
      %v1102 = vpop.permute.xlu0 %1101
      %1103 = vrot.lane.b32.xlu0 %v575, 10
      %v1104 = vpop.permute.xlu0 %1103
      %1105 = vrot.lane.b32.xlu0 %v576, 10
      %v1106 = vpop.permute.xlu0 %1105
      %1107 = vrot.lane.b32.xlu0 %v577, 10
      %v1108 = vpop.permute.xlu0 %1107
      %1109 = vrot.lane.b32.xlu0 %v578, 10
      %v1110 = vpop.permute.xlu0 %1109
      %1111 = vrot.lane.b32.xlu0 %v579, 10
      %v1112 = vpop.permute.xlu0 %1111
      %1113 = vrot.lane.b32.xlu0 %v580, 10
      %v1114 = vpop.permute.xlu0 %1113
      %1115 = vrot.lane.b32.xlu0 %v581, 10
      %v1116 = vpop.permute.xlu0 %1115
      %1117 = vrot.lane.b32.xlu0 %v582, 10
      %v1118 = vpop.permute.xlu0 %1117
      %1119 = vrot.lane.b32.xlu0 %v583, 10
      %v1120 = vpop.permute.xlu0 %1119
      %1121 = vrot.lane.b32.xlu0 %v584, 10
      %v1122 = vpop.permute.xlu0 %1121
      %1123 = vrot.lane.b32.xlu0 %v585, 10
      %v1124 = vpop.permute.xlu0 %1123
      %1125 = vrot.lane.b32.xlu0 %v586, 10
      %v1126 = vpop.permute.xlu0 %1125
      %1127 = vrot.lane.b32.xlu0 %v587, 10
      %v1128 = vpop.permute.xlu0 %1127
      %1129 = vrot.lane.b32.xlu0 %v588, 10
      %v1130 = vpop.permute.xlu0 %1129
      %1131 = vrot.lane.b32.xlu0 %v589, 10
      %v1132 = vpop.permute.xlu0 %1131
      %1133 = vrot.lane.b32.xlu0 %v590, 10
      %v1134 = vpop.permute.xlu0 %1133
      %1169 = vrot.lane.b32.xlu0 %v456, 12
      %v1170 = vpop.permute.xlu0 %1169
      %1171 = vrot.lane.b32.xlu0 %v457, 12
      %v1172 = vpop.permute.xlu0 %1171
      %1173 = vrot.lane.b32.xlu0 %v458, 12
      %v1174 = vpop.permute.xlu0 %1173
      %1175 = vrot.lane.b32.xlu0 %v459, 12
      %v1176 = vpop.permute.xlu0 %1175
      %1177 = vrot.lane.b32.xlu0 %v460, 12
      %v1178 = vpop.permute.xlu0 %1177
      %1179 = vrot.lane.b32.xlu0 %v461, 12
      %v1180 = vpop.permute.xlu0 %1179
      %1181 = vrot.lane.b32.xlu0 %v462, 12
      %v1182 = vpop.permute.xlu0 %1181
      %1183 = vrot.lane.b32.xlu0 %v463, 12
      %v1184 = vpop.permute.xlu0 %1183
      %1185 = vrot.lane.b32.xlu0 %v464, 12
      %v1186 = vpop.permute.xlu0 %1185
      %1187 = vrot.lane.b32.xlu0 %v465, 12
      %v1188 = vpop.permute.xlu0 %1187
      %1189 = vrot.lane.b32.xlu0 %v466, 12
      %v1190 = vpop.permute.xlu0 %1189
      %1191 = vrot.lane.b32.xlu0 %v467, 12
      %v1192 = vpop.permute.xlu0 %1191
      %1193 = vrot.lane.b32.xlu0 %v468, 12
      %v1194 = vpop.permute.xlu0 %1193
      %1195 = vrot.lane.b32.xlu0 %v469, 12
      %v1196 = vpop.permute.xlu0 %1195
      %1197 = vrot.lane.b32.xlu0 %v470, 12
      %v1198 = vpop.permute.xlu0 %1197
      %1199 = vrot.lane.b32.xlu0 %v471, 12
      %v1200 = vpop.permute.xlu0 %1199
      %1201 = vrot.lane.b32.xlu0 %v472, 12
      %v1202 = vpop.permute.xlu0 %1201
      %1203 = vrot.lane.b32.xlu0 %v473, 12
      %v1204 = vpop.permute.xlu0 %1203
      %1205 = vrot.lane.b32.xlu0 %v474, 12
      %v1206 = vpop.permute.xlu0 %1205
      %1207 = vrot.lane.b32.xlu0 %v475, 12
      %v1208 = vpop.permute.xlu0 %1207
      %1209 = vrot.lane.b32.xlu0 %v476, 12
      %v1210 = vpop.permute.xlu0 %1209
      %1211 = vrot.lane.b32.xlu0 %v477, 12
      %v1212 = vpop.permute.xlu0 %1211
      %1213 = vrot.lane.b32.xlu0 %v478, 12
      %v1214 = vpop.permute.xlu0 %1213
      %1215 = vrot.lane.b32.xlu0 %v479, 12
      %v1216 = vpop.permute.xlu0 %1215
      %1217 = vrot.lane.b32.xlu0 %v480, 12
      %v1218 = vpop.permute.xlu0 %1217
      %1219 = vrot.lane.b32.xlu0 %v481, 12
      %v1220 = vpop.permute.xlu0 %1219
      %1221 = vrot.lane.b32.xlu0 %v482, 12
      %v1222 = vpop.permute.xlu0 %1221
      %1223 = vrot.lane.b32.xlu0 %v483, 12
      %v1224 = vpop.permute.xlu0 %1223
      %1225 = vrot.lane.b32.xlu0 %v484, 12
      %v1226 = vpop.permute.xlu0 %1225
      %1227 = vrot.lane.b32.xlu0 %v485, 12
      %v1228 = vpop.permute.xlu0 %1227
      %1229 = vrot.lane.b32.xlu0 %v452, 12
      %v1230 = vpop.permute.xlu0 %1229
      %1231 = vrot.lane.b32.xlu0 %v453, 12
      %v1232 = vpop.permute.xlu0 %1231
      %1265 = vrot.lane.b32.xlu0 %v348, 14
      %v1266 = vpop.permute.xlu0 %1265
      %1267 = vrot.lane.b32.xlu0 %v349, 14
      %v1268 = vpop.permute.xlu0 %1267
      %1269 = vrot.lane.b32.xlu0 %v350, 14
      %v1270 = vpop.permute.xlu0 %1269
      %1271 = vrot.lane.b32.xlu0 %v351, 14
      %v1272 = vpop.permute.xlu0 %1271
      %1273 = vrot.lane.b32.xlu0 %v352, 14
      %v1274 = vpop.permute.xlu0 %1273
      %1275 = vrot.lane.b32.xlu0 %v353, 14
      %v1276 = vpop.permute.xlu0 %1275
      %1277 = vrot.lane.b32.xlu0 %v354, 14
      %v1278 = vpop.permute.xlu0 %1277
      %1279 = vrot.lane.b32.xlu0 %v355, 14
      %v1280 = vpop.permute.xlu0 %1279
      %1281 = vrot.lane.b32.xlu0 %v356, 14
      %v1282 = vpop.permute.xlu0 %1281
      %1283 = vrot.lane.b32.xlu0 %v357, 14
      %v1284 = vpop.permute.xlu0 %1283
      %1285 = vrot.lane.b32.xlu0 %v358, 14
      %v1286 = vpop.permute.xlu0 %1285
      %1287 = vrot.lane.b32.xlu0 %v359, 14
      %v1288 = vpop.permute.xlu0 %1287
      %1289 = vrot.lane.b32.xlu0 %v360, 14
      %v1290 = vpop.permute.xlu0 %1289
      %1291 = vrot.lane.b32.xlu0 %v361, 14
      %v1292 = vpop.permute.xlu0 %1291
      %1293 = vrot.lane.b32.xlu0 %v362, 14
      %v1294 = vpop.permute.xlu0 %1293
      %1295 = vrot.lane.b32.xlu0 %v363, 14
      %v1296 = vpop.permute.xlu0 %1295
      %1297 = vrot.lane.b32.xlu0 %v364, 14
      %v1298 = vpop.permute.xlu0 %1297
      %1299 = vrot.lane.b32.xlu0 %v365, 14
      %v1300 = vpop.permute.xlu0 %1299
      %1301 = vrot.lane.b32.xlu0 %v366, 14
      %v1302 = vpop.permute.xlu0 %1301
      %1303 = vrot.lane.b32.xlu0 %v367, 14
      %v1304 = vpop.permute.xlu0 %1303
      %1305 = vrot.lane.b32.xlu0 %v368, 14
      %v1306 = vpop.permute.xlu0 %1305
      %1307 = vrot.lane.b32.xlu0 %v369, 14
      %v1308 = vpop.permute.xlu0 %1307
      %1309 = vrot.lane.b32.xlu0 %v370, 14
      %v1310 = vpop.permute.xlu0 %1309
      %1311 = vrot.lane.b32.xlu0 %v371, 14
      %v1312 = vpop.permute.xlu0 %1311
      %1313 = vrot.lane.b32.xlu0 %v372, 14
      %v1314 = vpop.permute.xlu0 %1313
      %1315 = vrot.lane.b32.xlu0 %v373, 14
      %v1316 = vpop.permute.xlu0 %1315
      %1317 = vrot.lane.b32.xlu0 %v374, 14
      %v1318 = vpop.permute.xlu0 %1317
      %1319 = vrot.lane.b32.xlu0 %v375, 14
      %v1320 = vpop.permute.xlu0 %1319
      %1321 = vrot.lane.b32.xlu0 %v376, 14
      %v1322 = vpop.permute.xlu0 %1321
      %1323 = vrot.lane.b32.xlu0 %v377, 14
      %v1324 = vpop.permute.xlu0 %1323
      %1325 = vrot.lane.b32.xlu0 0.0, 14
      %v1326 = vpop.permute.xlu0 %1325
      %1358 = vrot.lane.b32.xlu0 %v561, 16
      %v1359 = vpop.permute.xlu0 %1358
      %1360 = vrot.lane.b32.xlu0 %v562, 16
      %v1361 = vpop.permute.xlu0 %1360
      %1362 = vrot.lane.b32.xlu0 %v563, 16
      %v1363 = vpop.permute.xlu0 %1362
      %1364 = vrot.lane.b32.xlu0 %v564, 16
      %v1365 = vpop.permute.xlu0 %1364
      %1366 = vrot.lane.b32.xlu0 %v565, 16
      %v1367 = vpop.permute.xlu0 %1366
      %1368 = vrot.lane.b32.xlu0 %v566, 16
      %v1369 = vpop.permute.xlu0 %1368
      %1370 = vrot.lane.b32.xlu0 %v567, 16
      %v1371 = vpop.permute.xlu0 %1370
      %1372 = vrot.lane.b32.xlu0 %v568, 16
      %v1373 = vpop.permute.xlu0 %1372
      %1374 = vrot.lane.b32.xlu0 %v569, 16
      %v1375 = vpop.permute.xlu0 %1374
      %1376 = vrot.lane.b32.xlu0 %v570, 16
      %v1377 = vpop.permute.xlu0 %1376
      %1378 = vrot.lane.b32.xlu0 %v571, 16
      %v1379 = vpop.permute.xlu0 %1378
      %1380 = vrot.lane.b32.xlu0 %v572, 16
      %v1381 = vpop.permute.xlu0 %1380
      %1382 = vrot.lane.b32.xlu0 %v573, 16
      %v1383 = vpop.permute.xlu0 %1382
      %1384 = vrot.lane.b32.xlu0 %v574, 16
      %v1385 = vpop.permute.xlu0 %1384
      %1386 = vrot.lane.b32.xlu0 %v575, 16
      %v1387 = vpop.permute.xlu0 %1386
      %1388 = vrot.lane.b32.xlu0 %v576, 16
      %v1389 = vpop.permute.xlu0 %1388
      %1390 = vrot.lane.b32.xlu0 %v577, 16
      %v1391 = vpop.permute.xlu0 %1390
      %1392 = vrot.lane.b32.xlu0 %v578, 16
      %v1393 = vpop.permute.xlu0 %1392
      %1394 = vrot.lane.b32.xlu0 %v579, 16
      %v1395 = vpop.permute.xlu0 %1394
      %1396 = vrot.lane.b32.xlu0 %v580, 16
      %v1397 = vpop.permute.xlu0 %1396
      %1398 = vrot.lane.b32.xlu0 %v581, 16
      %v1399 = vpop.permute.xlu0 %1398
      %1400 = vrot.lane.b32.xlu0 %v582, 16
      %v1401 = vpop.permute.xlu0 %1400
      %1402 = vrot.lane.b32.xlu0 %v583, 16
      %v1403 = vpop.permute.xlu0 %1402
      %1404 = vrot.lane.b32.xlu0 %v584, 16
      %v1405 = vpop.permute.xlu0 %1404
      %1406 = vrot.lane.b32.xlu0 %v585, 16
      %v1407 = vpop.permute.xlu0 %1406
      %1408 = vrot.lane.b32.xlu0 %v586, 16
      %v1409 = vpop.permute.xlu0 %1408
      %1410 = vrot.lane.b32.xlu0 %v587, 16
      %v1411 = vpop.permute.xlu0 %1410
      %1412 = vrot.lane.b32.xlu0 %v588, 16
      %v1413 = vpop.permute.xlu0 %1412
      %1414 = vrot.lane.b32.xlu0 %v589, 16
      %v1415 = vpop.permute.xlu0 %1414
      %1416 = vrot.lane.b32.xlu0 %v590, 16
      %v1417 = vpop.permute.xlu0 %1416
      %1418 = vrot.lane.b32.xlu0 %v557, 16
      %v1419 = vpop.permute.xlu0 %1418
      %1420 = vrot.lane.b32.xlu0 %v558, 16
      %v1421 = vpop.permute.xlu0 %1420
      %vm1454 = vcmask 15360
      %v1455 = vsel %vm1454, %v452, %v623
      %v1456 = vsel %vm1454, %v453, %v623
      %v1457 = vsel %vm1454, %v454, %v625
      %v1458 = vsel %vm1454, %v455, %v627
      %v1459 = vsel %vm1454, %v456, %v629
      %v1460 = vsel %vm1454, %v457, %v631
      %v1461 = vsel %vm1454, %v458, %v633
      %v1462 = vsel %vm1454, %v459, %v635
      %v1463 = vsel %vm1454, %v460, %v637
      %v1464 = vsel %vm1454, %v461, %v639
      %v1465 = vsel %vm1454, %v462, %v641
      %v1466 = vsel %vm1454, %v463, %v643
      %v1467 = vsel %vm1454, %v464, %v645
      %v1468 = vsel %vm1454, %v465, %v647
      %v1469 = vsel %vm1454, %v466, %v649
      %v1470 = vsel %vm1454, %v467, %v651
      %v1471 = vsel %vm1454, %v468, %v653
      %v1472 = vsel %vm1454, %v469, %v655
      %v1473 = vsel %vm1454, %v470, %v657
      %v1474 = vsel %vm1454, %v471, %v659
      %v1475 = vsel %vm1454, %v472, %v661
      %v1476 = vsel %vm1454, %v473, %v663
      %v1477 = vsel %vm1454, %v474, %v665
      %v1478 = vsel %vm1454, %v475, %v667
      %v1479 = vsel %vm1454, %v476, %v669
      %v1480 = vsel %vm1454, %v477, %v671
      %v1481 = vsel %vm1454, %v478, %v673
      %v1482 = vsel %vm1454, %v479, %v675
      %v1483 = vsel %vm1454, %v480, %v677
      %v1484 = vsel %vm1454, %v481, %v679
      %v1485 = vsel %vm1454, %v482, %v681
      %v1486 = vsel %vm1454, %v483, %v683
      %vm1487 = vcmask 31744
      %v1488 = vsel %vm1487, %v1455, %v748
      %v1489 = vsel %vm1487, %v1456, %v750
      %v1490 = vsel %vm1487, %v1457, %v752
      %v1491 = vsel %vm1487, %v1458, %v754
      %v1492 = vsel %vm1487, %v1459, %v756
      %v1493 = vsel %vm1487, %v1460, %v758
      %v1494 = vsel %vm1487, %v1461, %v760
      %v1495 = vsel %vm1487, %v1462, %v762
      %v1496 = vsel %vm1487, %v1463, %v764
      %v1497 = vsel %vm1487, %v1464, %v766
      %v1498 = vsel %vm1487, %v1465, %v768
      %v1499 = vsel %vm1487, %v1466, %v770
      %v1500 = vsel %vm1487, %v1467, %v772
      %v1501 = vsel %vm1487, %v1468, %v774
      %v1502 = vsel %vm1487, %v1469, %v776
      %v1503 = vsel %vm1487, %v1470, %v778
      %v1504 = vsel %vm1487, %v1471, %v780
      %v1505 = vsel %vm1487, %v1472, %v782
      %v1506 = vsel %vm1487, %v1473, %v784
      %v1507 = vsel %vm1487, %v1474, %v786
      %v1508 = vsel %vm1487, %v1475, %v788
      %v1509 = vsel %vm1487, %v1476, %v790
      %v1510 = vsel %vm1487, %v1477, %v792
      %v1511 = vsel %vm1487, %v1478, %v794
      %v1512 = vsel %vm1487, %v1479, %v796
      %v1513 = vsel %vm1487, %v1480, %v798
      %v1514 = vsel %vm1487, %v1481, %v800
      %v1515 = vsel %vm1487, %v1482, %v802
      %v1516 = vsel %vm1487, %v1483, %v804
      %v1517 = vsel %vm1487, %v1484, %v806
      %v1518 = vsel %vm1487, %v1485, %v808
      %v1519 = vsel %vm1487, %v1486, %v810
      %vm1520 = vcmask 48128
      %v1521 = vsel %vm1520, %v1488, %v876
      %v1522 = vsel %vm1520, %v1489, %v878
      %v1523 = vsel %vm1520, %v1490, %v880
      %v1524 = vsel %vm1520, %v1491, %v882
      %v1525 = vsel %vm1520, %v1492, %v884
      %v1526 = vsel %vm1520, %v1493, %v886
      %v1527 = vsel %vm1520, %v1494, %v888
      %v1528 = vsel %vm1520, %v1495, %v890
      %v1529 = vsel %vm1520, %v1496, %v892
      %v1530 = vsel %vm1520, %v1497, %v894
      %v1531 = vsel %vm1520, %v1498, %v896
      %v1532 = vsel %vm1520, %v1499, %v898
      %v1533 = vsel %vm1520, %v1500, %v900
      %v1534 = vsel %vm1520, %v1501, %v902
      %v1535 = vsel %vm1520, %v1502, %v904
      %v1536 = vsel %vm1520, %v1503, %v906
      %v1537 = vsel %vm1520, %v1504, %v908
      %v1538 = vsel %vm1520, %v1505, %v910
      %v1539 = vsel %vm1520, %v1506, %v912
      %v1540 = vsel %vm1520, %v1507, %v914
      %v1541 = vsel %vm1520, %v1508, %v916
      %v1542 = vsel %vm1520, %v1509, %v918
      %v1543 = vsel %vm1520, %v1510, %v920
      %v1544 = vsel %vm1520, %v1511, %v922
      %v1545 = vsel %vm1520, %v1512, %v924
      %v1546 = vsel %vm1520, %v1513, %v926
      %v1547 = vsel %vm1520, %v1514, %v928
      %v1548 = vsel %vm1520, %v1515, %v930
      %v1549 = vsel %vm1520, %v1516, %v932
      %v1550 = vsel %vm1520, %v1517, %v934
      %v1551 = vsel %vm1520, %v1518, %v936
      %v1552 = vsel %vm1520, %v1519, %v938
      %vm1553 = vcmask 64512
      %v1554 = vsel %vm1553, %v1521, %v974
      %v1555 = vsel %vm1553, %v1522, %v976
      %v1556 = vsel %vm1553, %v1523, %v978
      %v1557 = vsel %vm1553, %v1524, %v980
      %v1558 = vsel %vm1553, %v1525, %v982
      %v1559 = vsel %vm1553, %v1526, %v984
      %v1560 = vsel %vm1553, %v1527, %v986
      %v1561 = vsel %vm1553, %v1528, %v988
      %v1562 = vsel %vm1553, %v1529, %v990
      %v1563 = vsel %vm1553, %v1530, %v992
      %v1564 = vsel %vm1553, %v1531, %v994
      %v1565 = vsel %vm1553, %v1532, %v996
      %v1566 = vsel %vm1553, %v1533, %v998
      %v1567 = vsel %vm1553, %v1534, %v1000
      %v1568 = vsel %vm1553, %v1535, %v1002
      %v1569 = vsel %vm1553, %v1536, %v1004
      %v1570 = vsel %vm1553, %v1537, %v1006
      %v1571 = vsel %vm1553, %v1538, %v1008
      %v1572 = vsel %vm1553, %v1539, %v1010
      %v1573 = vsel %vm1553, %v1540, %v1012
      %v1574 = vsel %vm1553, %v1541, %v1014
      %v1575 = vsel %vm1553, %v1542, %v1016
      %v1576 = vsel %vm1553, %v1543, %v1018
      %v1577 = vsel %vm1553, %v1544, %v1020
      %v1578 = vsel %vm1553, %v1545, %v1022
      %v1579 = vsel %vm1553, %v1546, %v1024
      %v1580 = vsel %vm1553, %v1547, %v1026
      %v1581 = vsel %vm1553, %v1548, %v1028
      %v1582 = vsel %vm1553, %v1549, %v1030
      %v1583 = vsel %vm1553, %v1550, %v1032
      %v1584 = vsel %vm1553, %v1551, %v1034
      %v1585 = vsel %vm1553, %v1552, %v1036
      %vm1586 = vcmask 80896
      %v1587 = vsel %vm1586, %v1554, %v1072
      %v1588 = vsel %vm1586, %v1555, %v1074
      %v1589 = vsel %vm1586, %v1556, %v1076
      %v1590 = vsel %vm1586, %v1557, %v1078
      %v1591 = vsel %vm1586, %v1558, %v1080
      %v1592 = vsel %vm1586, %v1559, %v1082
      %v1593 = vsel %vm1586, %v1560, %v1084
      %v1594 = vsel %vm1586, %v1561, %v1086
      %v1595 = vsel %vm1586, %v1562, %v1088
      %v1596 = vsel %vm1586, %v1563, %v1090
      %v1597 = vsel %vm1586, %v1564, %v1092
      %v1598 = vsel %vm1586, %v1565, %v1094
      %v1599 = vsel %vm1586, %v1566, %v1096
      %v1600 = vsel %vm1586, %v1567, %v1098
      %v1601 = vsel %vm1586, %v1568, %v1100
      %v1602 = vsel %vm1586, %v1569, %v1102
      %v1603 = vsel %vm1586, %v1570, %v1104
      %v1604 = vsel %vm1586, %v1571, %v1106
      %v1605 = vsel %vm1586, %v1572, %v1108
      %v1606 = vsel %vm1586, %v1573, %v1110
      %v1607 = vsel %vm1586, %v1574, %v1112
      %v1608 = vsel %vm1586, %v1575, %v1114
      %v1609 = vsel %vm1586, %v1576, %v1116
      %v1610 = vsel %vm1586, %v1577, %v1118
      %v1611 = vsel %vm1586, %v1578, %v1120
      %v1612 = vsel %vm1586, %v1579, %v1122
      %v1613 = vsel %vm1586, %v1580, %v1124
      %v1614 = vsel %vm1586, %v1581, %v1126
      %v1615 = vsel %vm1586, %v1582, %v1128
      %v1616 = vsel %vm1586, %v1583, %v1130
      %v1617 = vsel %vm1586, %v1584, %v1132
      %v1618 = vsel %vm1586, %v1585, %v1134
      %vm1619 = vcmask 97280
      %v1620 = vsel %vm1619, %v1587, %v1170
      %v1621 = vsel %vm1619, %v1588, %v1172
      %v1622 = vsel %vm1619, %v1589, %v1174
      %v1623 = vsel %vm1619, %v1590, %v1176
      %v1624 = vsel %vm1619, %v1591, %v1178
      %v1625 = vsel %vm1619, %v1592, %v1180
      %v1626 = vsel %vm1619, %v1593, %v1182
      %v1627 = vsel %vm1619, %v1594, %v1184
      %v1628 = vsel %vm1619, %v1595, %v1186
      %v1629 = vsel %vm1619, %v1596, %v1188
      %v1630 = vsel %vm1619, %v1597, %v1190
      %v1631 = vsel %vm1619, %v1598, %v1192
      %v1632 = vsel %vm1619, %v1599, %v1194
      %v1633 = vsel %vm1619, %v1600, %v1196
      %v1634 = vsel %vm1619, %v1601, %v1198
      %v1635 = vsel %vm1619, %v1602, %v1200
      %v1636 = vsel %vm1619, %v1603, %v1202
      %v1637 = vsel %vm1619, %v1604, %v1204
      %v1638 = vsel %vm1619, %v1605, %v1206
      %v1639 = vsel %vm1619, %v1606, %v1208
      %v1640 = vsel %vm1619, %v1607, %v1210
      %v1641 = vsel %vm1619, %v1608, %v1212
      %v1642 = vsel %vm1619, %v1609, %v1214
      %v1643 = vsel %vm1619, %v1610, %v1216
      %v1644 = vsel %vm1619, %v1611, %v1218
      %v1645 = vsel %vm1619, %v1612, %v1220
      %v1646 = vsel %vm1619, %v1613, %v1222
      %v1647 = vsel %vm1619, %v1614, %v1224
      %v1648 = vsel %vm1619, %v1615, %v1226
      %v1649 = vsel %vm1619, %v1616, %v1228
      %v1650 = vsel %vm1619, %v1617, %v1230
      %v1651 = vsel %vm1619, %v1618, %v1232
      %vm1652 = vcmask 113664
      %v1653 = vsel %vm1652, %v1620, %v1266
      %v1654 = vsel %vm1652, %v1621, %v1268
      %v1655 = vsel %vm1652, %v1622, %v1270
      %v1656 = vsel %vm1652, %v1623, %v1272
      %v1657 = vsel %vm1652, %v1624, %v1274
      %v1658 = vsel %vm1652, %v1625, %v1276
      %v1659 = vsel %vm1652, %v1626, %v1278
      %v1660 = vsel %vm1652, %v1627, %v1280
      %v1661 = vsel %vm1652, %v1628, %v1282
      %v1662 = vsel %vm1652, %v1629, %v1284
      %v1663 = vsel %vm1652, %v1630, %v1286
      %v1664 = vsel %vm1652, %v1631, %v1288
      %v1665 = vsel %vm1652, %v1632, %v1290
      %v1666 = vsel %vm1652, %v1633, %v1292
      %v1667 = vsel %vm1652, %v1634, %v1294
      %v1668 = vsel %vm1652, %v1635, %v1296
      %v1669 = vsel %vm1652, %v1636, %v1298
      %v1670 = vsel %vm1652, %v1637, %v1300
      %v1671 = vsel %vm1652, %v1638, %v1302
      %v1672 = vsel %vm1652, %v1639, %v1304
      %v1673 = vsel %vm1652, %v1640, %v1306
      %v1674 = vsel %vm1652, %v1641, %v1308
      %v1675 = vsel %vm1652, %v1642, %v1310
      %v1676 = vsel %vm1652, %v1643, %v1312
      %v1677 = vsel %vm1652, %v1644, %v1314
      %v1678 = vsel %vm1652, %v1645, %v1316
      %v1679 = vsel %vm1652, %v1646, %v1318
      %v1680 = vsel %vm1652, %v1647, %v1320
      %v1681 = vsel %vm1652, %v1648, %v1322
      %v1682 = vsel %vm1652, %v1649, %v1324
      %v1683 = vsel %vm1652, %v1650, %v1326
      %v1684 = vsel %vm1652, %v1651, %v1326
      %vm1685 = vcmask 130048
      %v1686 = vsel %vm1685, %v1653, %v1359
      %v1687 = vsel %vm1685, %v1654, %v1361
      %v1688 = vsel %vm1685, %v1655, %v1363
      %v1689 = vsel %vm1685, %v1656, %v1365
      %v1690 = vsel %vm1685, %v1657, %v1367
      %v1691 = vsel %vm1685, %v1658, %v1369
      %v1692 = vsel %vm1685, %v1659, %v1371
      %v1693 = vsel %vm1685, %v1660, %v1373
      %v1694 = vsel %vm1685, %v1661, %v1375
      %v1695 = vsel %vm1685, %v1662, %v1377
      %v1696 = vsel %vm1685, %v1663, %v1379
      %v1697 = vsel %vm1685, %v1664, %v1381
      %v1698 = vsel %vm1685, %v1665, %v1383
      %v1699 = vsel %vm1685, %v1666, %v1385
      %v1700 = vsel %vm1685, %v1667, %v1387
      %v1701 = vsel %vm1685, %v1668, %v1389
      %v1702 = vsel %vm1685, %v1669, %v1391
      %v1703 = vsel %vm1685, %v1670, %v1393
      %v1704 = vsel %vm1685, %v1671, %v1395
      %v1705 = vsel %vm1685, %v1672, %v1397
      %v1706 = vsel %vm1685, %v1673, %v1399
      %v1707 = vsel %vm1685, %v1674, %v1401
      %v1708 = vsel %vm1685, %v1675, %v1403
      %v1709 = vsel %vm1685, %v1676, %v1405
      %v1710 = vsel %vm1685, %v1677, %v1407
      %v1711 = vsel %vm1685, %v1678, %v1409
      %v1712 = vsel %vm1685, %v1679, %v1411
      %v1713 = vsel %vm1685, %v1680, %v1413
      %v1714 = vsel %vm1685, %v1681, %v1415
      %v1715 = vsel %vm1685, %v1682, %v1417
      %v1716 = vsel %vm1685, %v1683, %v1419
      %v1717 = vsel %vm1685, %v1684, %v1421
      %v1718 = vld [vmem:[%s3] sm:$0xff]
      %v1719 = vld [vmem:[%s3 + $0x8] sm:$0xff]
      %v1720 = vld [vmem:[%s3 + $0x10] sm:$0x3]
      %vm1721 = vcmask 146432
      %v1723 = vsel %vm1721, %v1686, 0
      %v1726 = vsel %vm1721, %v1687, 0
      %v1729 = vsel %vm1721, %v1688, 0
      %v1732 = vsel %vm1721, %v1689, 0
      %v1735 = vsel %vm1721, %v1690, 0
      %v1738 = vsel %vm1721, %v1691, 0
      %v1741 = vsel %vm1721, %v1692, 0
      %v1744 = vsel %vm1721, %v1693, 0
      %v1747 = vsel %vm1721, %v1694, 0
      %v1750 = vsel %vm1721, %v1695, 0
      %v1753 = vsel %vm1721, %v1696, 0
      %v1756 = vsel %vm1721, %v1697, 0
      %v1759 = vsel %vm1721, %v1698, 0
      %v1762 = vsel %vm1721, %v1699, 0
      %v1765 = vsel %vm1721, %v1700, 0
      %v1768 = vsel %vm1721, %v1701, 0
      %v1771 = vsel %vm1721, %v1702, 0
      %v1774 = vsel %vm1721, %v1703, 0
      %v1777 = vsel %vm1721, %v1704, 0
      %v1780 = vsel %vm1721, %v1705, 0
      %v1783 = vsel %vm1721, %v1706, 0
      %v1786 = vsel %vm1721, %v1707, 0
      %v1789 = vsel %vm1721, %v1708, 0
      %v1792 = vsel %vm1721, %v1709, 0
      %v1795 = vsel %vm1721, %v1710, 0
      %v1798 = vsel %vm1721, %v1711, 0
      %v1801 = vsel %vm1721, %v1712, 0
      %v1804 = vsel %vm1721, %v1713, 0
      %v1807 = vsel %vm1721, %v1714, 0
      %v1810 = vsel %vm1721, %v1715, 0
      %v1813 = vsel %vm1721, %v1716, 0
      %v1816 = vsel %vm1721, %v1717, 0
      %vm1818 = vcmask 1041408
      %v1820 = vsel %vm1818, %v1720, 0
      %1822 = vmatprep.subr.mxu0 0.0
      %1823 = vmatpush1.msra.mxu0 0.0
      %1824 = vmatprep.subr.mxu0 0.0
      %1825 = vmatpush1.msra.mxu0 0.0
      %1826 = vmatprep.subr.mxu0 0.0
      %1827 = vmatpush1.msra.mxu0 0.0
      %1828 = vmatprep.subr.mxu0 0.0
      %1829 = vmatpush1.msra.mxu0 0.0
      %1830 = vmatprep.subr.mxu0 0.0
      %1831 = vmatpush1.msra.mxu0 0.0
      %1832 = vmatprep.subr.mxu0 0.0
      %1833 = vmatpush1.msra.mxu0 0.0
      %1834 = vmatprep.subr.mxu0 0.0
      %1835 = vmatpush1.msra.mxu0 0.0
      %1836 = vmatprep.subr.mxu0 0.0
      %1837 = vmatpush1.msra.mxu0 0.0
      %1838 = vmatprep.subr.mxu0 0.0
      %1839 = vmatpush1.msra.mxu0 0.0
      %1840 = vmatprep.subr.mxu0 0.0
      %1841 = vmatpush1.msra.mxu0 0.0
      %1842 = vmatprep.subr.mxu0 0.0
      %1843 = vmatpush1.msra.mxu0 0.0
      %1844 = vmatprep.subr.mxu0 0.0
      %1845 = vmatpush1.msra.mxu0 0.0
      %1846 = vmatprep.subr.mxu0 0.0
      %1847 = vmatpush1.msra.mxu0 0.0
      %1848 = vmatprep.subr.mxu0 0.0
      %1849 = vmatpush1.msra.mxu0 %v1820
      %1850 = vmatprep.subr.mxu0 0.0
      %1851 = vmatpush1.msra.mxu0 %v1719
      %1852 = vmatprep.subr.mxu0 0.0
      %1853 = vmatpush1.msra.mxu0 %v1718
      %1854 = vmatprep.subr.mxu0 0.0
      %1855 = vmatpush2.msra.mxu0 0.0
      %1856 = vmatprep.subr.mxu0 0.0
      %1857 = vmatpush2.msra.mxu0 0.0
      %1858 = vmatprep.subr.mxu0 0.0
      %1859 = vmatpush2.msra.mxu0 0.0
      %1860 = vmatprep.subr.mxu0 0.0
      %1861 = vmatpush2.msra.mxu0 0.0
      %1862 = vmatprep.subr.mxu0 0.0
      %1863 = vmatpush2.msra.mxu0 0.0
      %1864 = vmatprep.subr.mxu0 0.0
      %1865 = vmatpush2.msra.mxu0 0.0
      %1866 = vmatprep.subr.mxu0 0.0
      %1867 = vmatpush2.msra.mxu0 0.0
      %1868 = vmatprep.subr.mxu0 0.0
      %1869 = vmatpush2.msra.mxu0 0.0
      %1870 = vmatprep.subr.mxu0 0.0
      %1871 = vmatpush2.msra.mxu0 0.0
      %1872 = vmatprep.subr.mxu0 0.0
      %1873 = vmatpush2.msra.mxu0 0.0
      %1874 = vmatprep.subr.mxu0 0.0
      %1875 = vmatpush2.msra.mxu0 0.0
      %1876 = vmatprep.subr.mxu0 0.0
      %1877 = vmatpush2.msra.mxu0 0.0
      %1878 = vmatprep.subr.mxu0 0.0
      %1879 = vmatpush2.msra.mxu0 0.0
      %1880 = vmatprep.subr.mxu0 0.0
      %1881 = vmatpush2.msra.mxu0 0.0
      %1882 = vmatprep.subr.mxu0 0.0
      %1883 = vmatpush2.msra.mxu0 0.0
      %1884 = vmatprep.subr.mxu0 0.0
      %1885 = vmatpush2.msra.mxu0 0.0
      %1886 = vmatprep.mubr.f32.mxu0 0.0
      %1887 = vmatmul.mubr.f32.gmra.mxu0 %v1723
      %v1888 = vpop.f32.mrf.mxu0
      %v1889 = vadd.f32 0.0, %v1888
      %v1890 = vpop.f32.mrf.mxu0
      %1891 = vmatprep.mubr.f32.mxu0 0.0
      %1892 = vmatmul.mubr.f32.gmra.mxu0 %v1726
      %v1893 = vpop.f32.mrf.mxu0
      %v1894 = vadd.f32 0.0, %v1893
      %v1895 = vpop.f32.mrf.mxu0
      %1896 = vmatprep.mubr.f32.mxu0 0.0
      %1897 = vmatmul.mubr.f32.gmra.mxu0 %v1729
      %v1898 = vpop.f32.mrf.mxu0
      %v1899 = vadd.f32 0.0, %v1898
      %v1900 = vpop.f32.mrf.mxu0
      %1901 = vmatprep.mubr.f32.mxu0 0.0
      %1902 = vmatmul.mubr.f32.gmra.mxu0 %v1732
      %v1903 = vpop.f32.mrf.mxu0
      %v1904 = vadd.f32 0.0, %v1903
      %v1905 = vpop.f32.mrf.mxu0
      %1906 = vmatprep.mubr.f32.mxu0 0.0
      %1907 = vmatmul.mubr.f32.gmra.mxu0 %v1735
      %v1908 = vpop.f32.mrf.mxu0
      %v1909 = vadd.f32 0.0, %v1908
      %v1910 = vpop.f32.mrf.mxu0
      %1911 = vmatprep.mubr.f32.mxu0 0.0
      %1912 = vmatmul.mubr.f32.gmra.mxu0 %v1738
      %v1913 = vpop.f32.mrf.mxu0
      %v1914 = vadd.f32 0.0, %v1913
      %v1915 = vpop.f32.mrf.mxu0
      %1916 = vmatprep.mubr.f32.mxu0 0.0
      %1917 = vmatmul.mubr.f32.gmra.mxu0 %v1741
      %v1918 = vpop.f32.mrf.mxu0
      %v1919 = vadd.f32 0.0, %v1918
      %v1920 = vpop.f32.mrf.mxu0
      %1921 = vmatprep.mubr.f32.mxu0 0.0
      %1922 = vmatmul.mubr.f32.gmra.mxu0 %v1744
      %v1923 = vpop.f32.mrf.mxu0
      %v1924 = vadd.f32 0.0, %v1923
      %v1925 = vpop.f32.mrf.mxu0
      %1926 = vmatprep.mubr.f32.mxu0 0.0
      %1927 = vmatmul.mubr.f32.gmra.mxu0 %v1747
      %v1928 = vpop.f32.mrf.mxu0
      %v1929 = vadd.f32 0.0, %v1928
      %v1930 = vpop.f32.mrf.mxu0
      %1931 = vmatprep.mubr.f32.mxu0 0.0
      %1932 = vmatmul.mubr.f32.gmra.mxu0 %v1750
      %v1933 = vpop.f32.mrf.mxu0
      %v1934 = vadd.f32 0.0, %v1933
      %v1935 = vpop.f32.mrf.mxu0
      %1936 = vmatprep.mubr.f32.mxu0 0.0
      %1937 = vmatmul.mubr.f32.gmra.mxu0 %v1753
      %v1938 = vpop.f32.mrf.mxu0
      %v1939 = vadd.f32 0.0, %v1938
      %v1940 = vpop.f32.mrf.mxu0
      %1941 = vmatprep.mubr.f32.mxu0 0.0
      %1942 = vmatmul.mubr.f32.gmra.mxu0 %v1756
      %v1943 = vpop.f32.mrf.mxu0
      %v1944 = vadd.f32 0.0, %v1943
      %v1945 = vpop.f32.mrf.mxu0
      %1946 = vmatprep.mubr.f32.mxu0 0.0
      %1947 = vmatmul.mubr.f32.gmra.mxu0 %v1759
      %v1948 = vpop.f32.mrf.mxu0
      %v1949 = vadd.f32 0.0, %v1948
      %v1950 = vpop.f32.mrf.mxu0
      %1951 = vmatprep.mubr.f32.mxu0 0.0
      %1952 = vmatmul.mubr.f32.gmra.mxu0 %v1762
      %v1953 = vpop.f32.mrf.mxu0
      %v1954 = vadd.f32 0.0, %v1953
      %v1955 = vpop.f32.mrf.mxu0
      %1956 = vmatprep.mubr.f32.mxu0 0.0
      %1957 = vmatmul.mubr.f32.gmra.mxu0 %v1765
      %v1958 = vpop.f32.mrf.mxu0
      %v1959 = vadd.f32 0.0, %v1958
      %v1960 = vpop.f32.mrf.mxu0
      %1961 = vmatprep.mubr.f32.mxu0 0.0
      %1962 = vmatmul.mubr.f32.gmra.mxu0 %v1768
      %v1963 = vpop.f32.mrf.mxu0
      %v1964 = vadd.f32 0.0, %v1963
      %v1965 = vpop.f32.mrf.mxu0
      %1966 = vmatprep.mubr.f32.mxu0 0.0
      %1967 = vmatmul.mubr.f32.gmra.mxu0 %v1771
      %v1968 = vpop.f32.mrf.mxu0
      %v1969 = vadd.f32 0.0, %v1968
      %v1970 = vpop.f32.mrf.mxu0
      %1971 = vmatprep.mubr.f32.mxu0 0.0
      %1972 = vmatmul.mubr.f32.gmra.mxu0 %v1774
      %v1973 = vpop.f32.mrf.mxu0
      %v1974 = vadd.f32 0.0, %v1973
      %v1975 = vpop.f32.mrf.mxu0
      %1976 = vmatprep.mubr.f32.mxu0 0.0
      %1977 = vmatmul.mubr.f32.gmra.mxu0 %v1777
      %v1978 = vpop.f32.mrf.mxu0
      %v1979 = vadd.f32 0.0, %v1978
      %v1980 = vpop.f32.mrf.mxu0
      %1981 = vmatprep.mubr.f32.mxu0 0.0
      %1982 = vmatmul.mubr.f32.gmra.mxu0 %v1780
      %v1983 = vpop.f32.mrf.mxu0
      %v1984 = vadd.f32 0.0, %v1983
      %v1985 = vpop.f32.mrf.mxu0
      %1986 = vmatprep.mubr.f32.mxu0 0.0
      %1987 = vmatmul.mubr.f32.gmra.mxu0 %v1783
      %v1988 = vpop.f32.mrf.mxu0
      %v1989 = vadd.f32 0.0, %v1988
      %v1990 = vpop.f32.mrf.mxu0
      %1991 = vmatprep.mubr.f32.mxu0 0.0
      %1992 = vmatmul.mubr.f32.gmra.mxu0 %v1786
      %v1993 = vpop.f32.mrf.mxu0
      %v1994 = vadd.f32 0.0, %v1993
      %v1995 = vpop.f32.mrf.mxu0
      %1996 = vmatprep.mubr.f32.mxu0 0.0
      %1997 = vmatmul.mubr.f32.gmra.mxu0 %v1789
      %v1998 = vpop.f32.mrf.mxu0
      %v1999 = vadd.f32 0.0, %v1998
      %v2000 = vpop.f32.mrf.mxu0
      %2001 = vmatprep.mubr.f32.mxu0 0.0
      %2002 = vmatmul.mubr.f32.gmra.mxu0 %v1792
      %v2003 = vpop.f32.mrf.mxu0
      %v2004 = vadd.f32 0.0, %v2003
      %v2005 = vpop.f32.mrf.mxu0
      %2006 = vmatprep.mubr.f32.mxu0 0.0
      %2007 = vmatmul.mubr.f32.gmra.mxu0 %v1795
      %v2008 = vpop.f32.mrf.mxu0
      %v2009 = vadd.f32 0.0, %v2008
      %v2010 = vpop.f32.mrf.mxu0
      %2011 = vmatprep.mubr.f32.mxu0 0.0
      %2012 = vmatmul.mubr.f32.gmra.mxu0 %v1798
      %v2013 = vpop.f32.mrf.mxu0
      %v2014 = vadd.f32 0.0, %v2013
      %v2015 = vpop.f32.mrf.mxu0
      %2016 = vmatprep.mubr.f32.mxu0 0.0
      %2017 = vmatmul.mubr.f32.gmra.mxu0 %v1801
      %v2018 = vpop.f32.mrf.mxu0
      %v2019 = vadd.f32 0.0, %v2018
      %v2020 = vpop.f32.mrf.mxu0
      %2021 = vmatprep.mubr.f32.mxu0 0.0
      %2022 = vmatmul.mubr.f32.gmra.mxu0 %v1804
      %v2023 = vpop.f32.mrf.mxu0
      %v2024 = vadd.f32 0.0, %v2023
      %v2025 = vpop.f32.mrf.mxu0
      %2026 = vmatprep.mubr.f32.mxu0 0.0
      %2027 = vmatmul.mubr.f32.gmra.mxu0 %v1807
      %v2028 = vpop.f32.mrf.mxu0
      %v2029 = vadd.f32 0.0, %v2028
      %v2030 = vpop.f32.mrf.mxu0
      %2031 = vmatprep.mubr.f32.mxu0 0.0
      %2032 = vmatmul.mubr.f32.gmra.mxu0 %v1810
      %v2033 = vpop.f32.mrf.mxu0
      %v2034 = vadd.f32 0.0, %v2033
      %v2035 = vpop.f32.mrf.mxu0
      %2036 = vmatprep.mubr.f32.mxu0 0.0
      %2037 = vmatmul.mubr.f32.gmra.mxu0 %v1813
      %v2038 = vpop.f32.mrf.mxu0
      %v2039 = vadd.f32 0.0, %v2038
      %v2040 = vpop.f32.mrf.mxu0
      %2041 = vmatprep.mubr.f32.mxu0 0.0
      %2042 = vmatmul.mubr.f32.gmra.mxu0 %v1816
      %v2043 = vpop.f32.mrf.mxu0
      %v2044 = vadd.f32 0.0, %v2043
      %v2045 = vpop.f32.mrf.mxu0
      %2046 = vdwg.mxu0
      %2047 = vrot.lane.b32.xlu0 %v452, 126
      %v2048 = vpop.permute.xlu0 %2047
      %2049 = vrot.lane.b32.xlu0 %v453, 126
      %v2050 = vpop.permute.xlu0 %2049
      %2051 = vrot.lane.b32.xlu0 %v454, 126
      %v2052 = vpop.permute.xlu0 %2051
      %2053 = vrot.lane.b32.xlu0 %v455, 126
      %v2054 = vpop.permute.xlu0 %2053
      %2055 = vrot.lane.b32.xlu0 %v456, 126
      %v2056 = vpop.permute.xlu0 %2055
      %2057 = vrot.lane.b32.xlu0 %v457, 126
      %v2058 = vpop.permute.xlu0 %2057
      %2059 = vrot.lane.b32.xlu0 %v458, 126
      %v2060 = vpop.permute.xlu0 %2059
      %2061 = vrot.lane.b32.xlu0 %v459, 126
      %v2062 = vpop.permute.xlu0 %2061
      %2063 = vrot.lane.b32.xlu0 %v460, 126
      %v2064 = vpop.permute.xlu0 %2063
      %2065 = vrot.lane.b32.xlu0 %v461, 126
      %v2066 = vpop.permute.xlu0 %2065
      %2067 = vrot.lane.b32.xlu0 %v462, 126
      %v2068 = vpop.permute.xlu0 %2067
      %2069 = vrot.lane.b32.xlu0 %v463, 126
      %v2070 = vpop.permute.xlu0 %2069
      %2071 = vrot.lane.b32.xlu0 %v464, 126
      %v2072 = vpop.permute.xlu0 %2071
      %2073 = vrot.lane.b32.xlu0 %v465, 126
      %v2074 = vpop.permute.xlu0 %2073
      %2075 = vrot.lane.b32.xlu0 %v466, 126
      %v2076 = vpop.permute.xlu0 %2075
      %2077 = vrot.lane.b32.xlu0 %v467, 126
      %v2078 = vpop.permute.xlu0 %2077
      %2079 = vrot.lane.b32.xlu0 %v468, 126
      %v2080 = vpop.permute.xlu0 %2079
      %2081 = vrot.lane.b32.xlu0 %v469, 126
      %v2082 = vpop.permute.xlu0 %2081
      %2083 = vrot.lane.b32.xlu0 %v470, 126
      %v2084 = vpop.permute.xlu0 %2083
      %2085 = vrot.lane.b32.xlu0 %v471, 126
      %v2086 = vpop.permute.xlu0 %2085
      %2087 = vrot.lane.b32.xlu0 %v472, 126
      %v2088 = vpop.permute.xlu0 %2087
      %2089 = vrot.lane.b32.xlu0 %v473, 126
      %v2090 = vpop.permute.xlu0 %2089
      %2091 = vrot.lane.b32.xlu0 %v474, 126
      %v2092 = vpop.permute.xlu0 %2091
      %2093 = vrot.lane.b32.xlu0 %v475, 126
      %v2094 = vpop.permute.xlu0 %2093
      %2095 = vrot.lane.b32.xlu0 %v476, 126
      %v2096 = vpop.permute.xlu0 %2095
      %2097 = vrot.lane.b32.xlu0 %v477, 126
      %v2098 = vpop.permute.xlu0 %2097
      %2099 = vrot.lane.b32.xlu0 %v478, 126
      %v2100 = vpop.permute.xlu0 %2099
      %2101 = vrot.lane.b32.xlu0 %v479, 126
      %v2102 = vpop.permute.xlu0 %2101
      %2103 = vrot.lane.b32.xlu0 %v480, 126
      %v2104 = vpop.permute.xlu0 %2103
      %2105 = vrot.lane.b32.xlu0 %v481, 126
      %v2106 = vpop.permute.xlu0 %2105
      %2107 = vrot.lane.b32.xlu0 %v482, 126
      %v2108 = vpop.permute.xlu0 %2107
      %2109 = vrot.lane.b32.xlu0 %v483, 126
      %v2110 = vpop.permute.xlu0 %2109
      %2143 = vrot.lane.b32.xlu0 %v557, 2
      %v2144 = vpop.permute.xlu0 %2143
      %2145 = vrot.lane.b32.xlu0 %v558, 2
      %v2146 = vpop.permute.xlu0 %2145
      %2147 = vrot.lane.b32.xlu0 %v559, 2
      %v2148 = vpop.permute.xlu0 %2147
      %2149 = vrot.lane.b32.xlu0 %v560, 2
      %v2150 = vpop.permute.xlu0 %2149
      %2151 = vrot.lane.b32.xlu0 %v561, 2
      %v2152 = vpop.permute.xlu0 %2151
      %2153 = vrot.lane.b32.xlu0 %v562, 2
      %v2154 = vpop.permute.xlu0 %2153
      %2155 = vrot.lane.b32.xlu0 %v563, 2
      %v2156 = vpop.permute.xlu0 %2155
      %2157 = vrot.lane.b32.xlu0 %v564, 2
      %v2158 = vpop.permute.xlu0 %2157
      %2159 = vrot.lane.b32.xlu0 %v565, 2
      %v2160 = vpop.permute.xlu0 %2159
      %2161 = vrot.lane.b32.xlu0 %v566, 2
      %v2162 = vpop.permute.xlu0 %2161
      %2163 = vrot.lane.b32.xlu0 %v567, 2
      %v2164 = vpop.permute.xlu0 %2163
      %2165 = vrot.lane.b32.xlu0 %v568, 2
      %v2166 = vpop.permute.xlu0 %2165
      %2167 = vrot.lane.b32.xlu0 %v569, 2
      %v2168 = vpop.permute.xlu0 %2167
      %2169 = vrot.lane.b32.xlu0 %v570, 2
      %v2170 = vpop.permute.xlu0 %2169
      %2171 = vrot.lane.b32.xlu0 %v571, 2
      %v2172 = vpop.permute.xlu0 %2171
      %2173 = vrot.lane.b32.xlu0 %v572, 2
      %v2174 = vpop.permute.xlu0 %2173
      %2175 = vrot.lane.b32.xlu0 %v573, 2
      %v2176 = vpop.permute.xlu0 %2175
      %2177 = vrot.lane.b32.xlu0 %v574, 2
      %v2178 = vpop.permute.xlu0 %2177
      %2179 = vrot.lane.b32.xlu0 %v575, 2
      %v2180 = vpop.permute.xlu0 %2179
      %2181 = vrot.lane.b32.xlu0 %v576, 2
      %v2182 = vpop.permute.xlu0 %2181
      %2183 = vrot.lane.b32.xlu0 %v577, 2
      %v2184 = vpop.permute.xlu0 %2183
      %2185 = vrot.lane.b32.xlu0 %v578, 2
      %v2186 = vpop.permute.xlu0 %2185
      %2187 = vrot.lane.b32.xlu0 %v579, 2
      %v2188 = vpop.permute.xlu0 %2187
      %2189 = vrot.lane.b32.xlu0 %v580, 2
      %v2190 = vpop.permute.xlu0 %2189
      %2191 = vrot.lane.b32.xlu0 %v581, 2
      %v2192 = vpop.permute.xlu0 %2191
      %2193 = vrot.lane.b32.xlu0 %v582, 2
      %v2194 = vpop.permute.xlu0 %2193
      %2195 = vrot.lane.b32.xlu0 %v583, 2
      %v2196 = vpop.permute.xlu0 %2195
      %2197 = vrot.lane.b32.xlu0 %v584, 2
      %v2198 = vpop.permute.xlu0 %2197
      %2199 = vrot.lane.b32.xlu0 %v585, 2
      %v2200 = vpop.permute.xlu0 %2199
      %2201 = vrot.lane.b32.xlu0 %v586, 2
      %v2202 = vpop.permute.xlu0 %2201
      %2203 = vrot.lane.b32.xlu0 %v587, 2
      %v2204 = vpop.permute.xlu0 %2203
      %2205 = vrot.lane.b32.xlu0 %v588, 2
      %v2206 = vpop.permute.xlu0 %2205
      %2239 = vrot.lane.b32.xlu0 %v454, 4
      %v2240 = vpop.permute.xlu0 %2239
      %2241 = vrot.lane.b32.xlu0 %v455, 4
      %v2242 = vpop.permute.xlu0 %2241
      %2243 = vrot.lane.b32.xlu0 %v456, 4
      %v2244 = vpop.permute.xlu0 %2243
      %2245 = vrot.lane.b32.xlu0 %v457, 4
      %v2246 = vpop.permute.xlu0 %2245
      %2247 = vrot.lane.b32.xlu0 %v458, 4
      %v2248 = vpop.permute.xlu0 %2247
      %2249 = vrot.lane.b32.xlu0 %v459, 4
      %v2250 = vpop.permute.xlu0 %2249
      %2251 = vrot.lane.b32.xlu0 %v460, 4
      %v2252 = vpop.permute.xlu0 %2251
      %2253 = vrot.lane.b32.xlu0 %v461, 4
      %v2254 = vpop.permute.xlu0 %2253
      %2255 = vrot.lane.b32.xlu0 %v462, 4
      %v2256 = vpop.permute.xlu0 %2255
      %2257 = vrot.lane.b32.xlu0 %v463, 4
      %v2258 = vpop.permute.xlu0 %2257
      %2259 = vrot.lane.b32.xlu0 %v464, 4
      %v2260 = vpop.permute.xlu0 %2259
      %2261 = vrot.lane.b32.xlu0 %v465, 4
      %v2262 = vpop.permute.xlu0 %2261
      %2263 = vrot.lane.b32.xlu0 %v466, 4
      %v2264 = vpop.permute.xlu0 %2263
      %2265 = vrot.lane.b32.xlu0 %v467, 4
      %v2266 = vpop.permute.xlu0 %2265
      %2267 = vrot.lane.b32.xlu0 %v468, 4
      %v2268 = vpop.permute.xlu0 %2267
      %2269 = vrot.lane.b32.xlu0 %v469, 4
      %v2270 = vpop.permute.xlu0 %2269
      %2271 = vrot.lane.b32.xlu0 %v470, 4
      %v2272 = vpop.permute.xlu0 %2271
      %2273 = vrot.lane.b32.xlu0 %v471, 4
      %v2274 = vpop.permute.xlu0 %2273
      %2275 = vrot.lane.b32.xlu0 %v472, 4
      %v2276 = vpop.permute.xlu0 %2275
      %2277 = vrot.lane.b32.xlu0 %v473, 4
      %v2278 = vpop.permute.xlu0 %2277
      %2279 = vrot.lane.b32.xlu0 %v474, 4
      %v2280 = vpop.permute.xlu0 %2279
      %2281 = vrot.lane.b32.xlu0 %v475, 4
      %v2282 = vpop.permute.xlu0 %2281
      %2283 = vrot.lane.b32.xlu0 %v476, 4
      %v2284 = vpop.permute.xlu0 %2283
      %2285 = vrot.lane.b32.xlu0 %v477, 4
      %v2286 = vpop.permute.xlu0 %2285
      %2287 = vrot.lane.b32.xlu0 %v478, 4
      %v2288 = vpop.permute.xlu0 %2287
      %2289 = vrot.lane.b32.xlu0 %v479, 4
      %v2290 = vpop.permute.xlu0 %2289
      %2291 = vrot.lane.b32.xlu0 %v480, 4
      %v2292 = vpop.permute.xlu0 %2291
      %2293 = vrot.lane.b32.xlu0 %v481, 4
      %v2294 = vpop.permute.xlu0 %2293
      %2295 = vrot.lane.b32.xlu0 %v482, 4
      %v2296 = vpop.permute.xlu0 %2295
      %2297 = vrot.lane.b32.xlu0 %v483, 4
      %v2298 = vpop.permute.xlu0 %2297
      %2299 = vrot.lane.b32.xlu0 %v484, 4
      %v2300 = vpop.permute.xlu0 %2299
      %2301 = vrot.lane.b32.xlu0 %v485, 4
      %v2302 = vpop.permute.xlu0 %2301
      %2335 = vrot.lane.b32.xlu0 %v346, 6
      %v2336 = vpop.permute.xlu0 %2335
      %2337 = vrot.lane.b32.xlu0 %v347, 6
      %v2338 = vpop.permute.xlu0 %2337
      %2339 = vrot.lane.b32.xlu0 %v348, 6
      %v2340 = vpop.permute.xlu0 %2339
      %2341 = vrot.lane.b32.xlu0 %v349, 6
      %v2342 = vpop.permute.xlu0 %2341
      %2343 = vrot.lane.b32.xlu0 %v350, 6
      %v2344 = vpop.permute.xlu0 %2343
      %2345 = vrot.lane.b32.xlu0 %v351, 6
      %v2346 = vpop.permute.xlu0 %2345
      %2347 = vrot.lane.b32.xlu0 %v352, 6
      %v2348 = vpop.permute.xlu0 %2347
      %2349 = vrot.lane.b32.xlu0 %v353, 6
      %v2350 = vpop.permute.xlu0 %2349
      %2351 = vrot.lane.b32.xlu0 %v354, 6
      %v2352 = vpop.permute.xlu0 %2351
      %2353 = vrot.lane.b32.xlu0 %v355, 6
      %v2354 = vpop.permute.xlu0 %2353
      %2355 = vrot.lane.b32.xlu0 %v356, 6
      %v2356 = vpop.permute.xlu0 %2355
      %2357 = vrot.lane.b32.xlu0 %v357, 6
      %v2358 = vpop.permute.xlu0 %2357
      %2359 = vrot.lane.b32.xlu0 %v358, 6
      %v2360 = vpop.permute.xlu0 %2359
      %2361 = vrot.lane.b32.xlu0 %v359, 6
      %v2362 = vpop.permute.xlu0 %2361
      %2363 = vrot.lane.b32.xlu0 %v360, 6
      %v2364 = vpop.permute.xlu0 %2363
      %2365 = vrot.lane.b32.xlu0 %v361, 6
      %v2366 = vpop.permute.xlu0 %2365
      %2367 = vrot.lane.b32.xlu0 %v362, 6
      %v2368 = vpop.permute.xlu0 %2367
      %2369 = vrot.lane.b32.xlu0 %v363, 6
      %v2370 = vpop.permute.xlu0 %2369
      %2371 = vrot.lane.b32.xlu0 %v364, 6
      %v2372 = vpop.permute.xlu0 %2371
      %2373 = vrot.lane.b32.xlu0 %v365, 6
      %v2374 = vpop.permute.xlu0 %2373
      %2375 = vrot.lane.b32.xlu0 %v366, 6
      %v2376 = vpop.permute.xlu0 %2375
      %2377 = vrot.lane.b32.xlu0 %v367, 6
      %v2378 = vpop.permute.xlu0 %2377
      %2379 = vrot.lane.b32.xlu0 %v368, 6
      %v2380 = vpop.permute.xlu0 %2379
      %2381 = vrot.lane.b32.xlu0 %v369, 6
      %v2382 = vpop.permute.xlu0 %2381
      %2383 = vrot.lane.b32.xlu0 %v370, 6
      %v2384 = vpop.permute.xlu0 %2383
      %2385 = vrot.lane.b32.xlu0 %v371, 6
      %v2386 = vpop.permute.xlu0 %2385
      %2387 = vrot.lane.b32.xlu0 %v372, 6
      %v2388 = vpop.permute.xlu0 %2387
      %2389 = vrot.lane.b32.xlu0 %v373, 6
      %v2390 = vpop.permute.xlu0 %2389
      %2391 = vrot.lane.b32.xlu0 %v374, 6
      %v2392 = vpop.permute.xlu0 %2391
      %2393 = vrot.lane.b32.xlu0 %v375, 6
      %v2394 = vpop.permute.xlu0 %2393
      %2395 = vrot.lane.b32.xlu0 %v376, 6
      %v2396 = vpop.permute.xlu0 %2395
      %2397 = vrot.lane.b32.xlu0 %v377, 6
      %v2398 = vpop.permute.xlu0 %2397
      %2431 = vrot.lane.b32.xlu0 %v559, 8
      %v2432 = vpop.permute.xlu0 %2431
      %2433 = vrot.lane.b32.xlu0 %v560, 8
      %v2434 = vpop.permute.xlu0 %2433
      %2435 = vrot.lane.b32.xlu0 %v561, 8
      %v2436 = vpop.permute.xlu0 %2435
      %2437 = vrot.lane.b32.xlu0 %v562, 8
      %v2438 = vpop.permute.xlu0 %2437
      %2439 = vrot.lane.b32.xlu0 %v563, 8
      %v2440 = vpop.permute.xlu0 %2439
      %2441 = vrot.lane.b32.xlu0 %v564, 8
      %v2442 = vpop.permute.xlu0 %2441
      %2443 = vrot.lane.b32.xlu0 %v565, 8
      %v2444 = vpop.permute.xlu0 %2443
      %2445 = vrot.lane.b32.xlu0 %v566, 8
      %v2446 = vpop.permute.xlu0 %2445
      %2447 = vrot.lane.b32.xlu0 %v567, 8
      %v2448 = vpop.permute.xlu0 %2447
      %2449 = vrot.lane.b32.xlu0 %v568, 8
      %v2450 = vpop.permute.xlu0 %2449
      %2451 = vrot.lane.b32.xlu0 %v569, 8
      %v2452 = vpop.permute.xlu0 %2451
      %2453 = vrot.lane.b32.xlu0 %v570, 8
      %v2454 = vpop.permute.xlu0 %2453
      %2455 = vrot.lane.b32.xlu0 %v571, 8
      %v2456 = vpop.permute.xlu0 %2455
      %2457 = vrot.lane.b32.xlu0 %v572, 8
      %v2458 = vpop.permute.xlu0 %2457
      %2459 = vrot.lane.b32.xlu0 %v573, 8
      %v2460 = vpop.permute.xlu0 %2459
      %2461 = vrot.lane.b32.xlu0 %v574, 8
      %v2462 = vpop.permute.xlu0 %2461
      %2463 = vrot.lane.b32.xlu0 %v575, 8
      %v2464 = vpop.permute.xlu0 %2463
      %2465 = vrot.lane.b32.xlu0 %v576, 8
      %v2466 = vpop.permute.xlu0 %2465
      %2467 = vrot.lane.b32.xlu0 %v577, 8
      %v2468 = vpop.permute.xlu0 %2467
      %2469 = vrot.lane.b32.xlu0 %v578, 8
      %v2470 = vpop.permute.xlu0 %2469
      %2471 = vrot.lane.b32.xlu0 %v579, 8
      %v2472 = vpop.permute.xlu0 %2471
      %2473 = vrot.lane.b32.xlu0 %v580, 8
      %v2474 = vpop.permute.xlu0 %2473
      %2475 = vrot.lane.b32.xlu0 %v581, 8
      %v2476 = vpop.permute.xlu0 %2475
      %2477 = vrot.lane.b32.xlu0 %v582, 8
      %v2478 = vpop.permute.xlu0 %2477
      %2479 = vrot.lane.b32.xlu0 %v583, 8
      %v2480 = vpop.permute.xlu0 %2479
      %2481 = vrot.lane.b32.xlu0 %v584, 8
      %v2482 = vpop.permute.xlu0 %2481
      %2483 = vrot.lane.b32.xlu0 %v585, 8
      %v2484 = vpop.permute.xlu0 %2483
      %2485 = vrot.lane.b32.xlu0 %v586, 8
      %v2486 = vpop.permute.xlu0 %2485
      %2487 = vrot.lane.b32.xlu0 %v587, 8
      %v2488 = vpop.permute.xlu0 %2487
      %2489 = vrot.lane.b32.xlu0 %v588, 8
      %v2490 = vpop.permute.xlu0 %2489
      %2491 = vrot.lane.b32.xlu0 %v589, 8
      %v2492 = vpop.permute.xlu0 %2491
      %2493 = vrot.lane.b32.xlu0 %v590, 8
      %v2494 = vpop.permute.xlu0 %2493
      %2527 = vrot.lane.b32.xlu0 %v456, 10
      %v2528 = vpop.permute.xlu0 %2527
      %2529 = vrot.lane.b32.xlu0 %v457, 10
      %v2530 = vpop.permute.xlu0 %2529
      %2531 = vrot.lane.b32.xlu0 %v458, 10
      %v2532 = vpop.permute.xlu0 %2531
      %2533 = vrot.lane.b32.xlu0 %v459, 10
      %v2534 = vpop.permute.xlu0 %2533
      %2535 = vrot.lane.b32.xlu0 %v460, 10
      %v2536 = vpop.permute.xlu0 %2535
      %2537 = vrot.lane.b32.xlu0 %v461, 10
      %v2538 = vpop.permute.xlu0 %2537
      %2539 = vrot.lane.b32.xlu0 %v462, 10
      %v2540 = vpop.permute.xlu0 %2539
      %2541 = vrot.lane.b32.xlu0 %v463, 10
      %v2542 = vpop.permute.xlu0 %2541
      %2543 = vrot.lane.b32.xlu0 %v464, 10
      %v2544 = vpop.permute.xlu0 %2543
      %2545 = vrot.lane.b32.xlu0 %v465, 10
      %v2546 = vpop.permute.xlu0 %2545
      %2547 = vrot.lane.b32.xlu0 %v466, 10
      %v2548 = vpop.permute.xlu0 %2547
      %2549 = vrot.lane.b32.xlu0 %v467, 10
      %v2550 = vpop.permute.xlu0 %2549
      %2551 = vrot.lane.b32.xlu0 %v468, 10
      %v2552 = vpop.permute.xlu0 %2551
      %2553 = vrot.lane.b32.xlu0 %v469, 10
      %v2554 = vpop.permute.xlu0 %2553
      %2555 = vrot.lane.b32.xlu0 %v470, 10
      %v2556 = vpop.permute.xlu0 %2555
      %2557 = vrot.lane.b32.xlu0 %v471, 10
      %v2558 = vpop.permute.xlu0 %2557
      %2559 = vrot.lane.b32.xlu0 %v472, 10
      %v2560 = vpop.permute.xlu0 %2559
      %2561 = vrot.lane.b32.xlu0 %v473, 10
      %v2562 = vpop.permute.xlu0 %2561
      %2563 = vrot.lane.b32.xlu0 %v474, 10
      %v2564 = vpop.permute.xlu0 %2563
      %2565 = vrot.lane.b32.xlu0 %v475, 10
      %v2566 = vpop.permute.xlu0 %2565
      %2567 = vrot.lane.b32.xlu0 %v476, 10
      %v2568 = vpop.permute.xlu0 %2567
      %2569 = vrot.lane.b32.xlu0 %v477, 10
      %v2570 = vpop.permute.xlu0 %2569
      %2571 = vrot.lane.b32.xlu0 %v478, 10
      %v2572 = vpop.permute.xlu0 %2571
      %2573 = vrot.lane.b32.xlu0 %v479, 10
      %v2574 = vpop.permute.xlu0 %2573
      %2575 = vrot.lane.b32.xlu0 %v480, 10
      %v2576 = vpop.permute.xlu0 %2575
      %2577 = vrot.lane.b32.xlu0 %v481, 10
      %v2578 = vpop.permute.xlu0 %2577
      %2579 = vrot.lane.b32.xlu0 %v482, 10
      %v2580 = vpop.permute.xlu0 %2579
      %2581 = vrot.lane.b32.xlu0 %v483, 10
      %v2582 = vpop.permute.xlu0 %2581
      %2583 = vrot.lane.b32.xlu0 %v484, 10
      %v2584 = vpop.permute.xlu0 %2583
      %2585 = vrot.lane.b32.xlu0 %v485, 10
      %v2586 = vpop.permute.xlu0 %2585
      %2587 = vrot.lane.b32.xlu0 %v452, 10
      %v2588 = vpop.permute.xlu0 %2587
      %2589 = vrot.lane.b32.xlu0 %v453, 10
      %v2590 = vpop.permute.xlu0 %2589
      %2623 = vrot.lane.b32.xlu0 %v348, 12
      %v2624 = vpop.permute.xlu0 %2623
      %2625 = vrot.lane.b32.xlu0 %v349, 12
      %v2626 = vpop.permute.xlu0 %2625
      %2627 = vrot.lane.b32.xlu0 %v350, 12
      %v2628 = vpop.permute.xlu0 %2627
      %2629 = vrot.lane.b32.xlu0 %v351, 12
      %v2630 = vpop.permute.xlu0 %2629
      %2631 = vrot.lane.b32.xlu0 %v352, 12
      %v2632 = vpop.permute.xlu0 %2631
      %2633 = vrot.lane.b32.xlu0 %v353, 12
      %v2634 = vpop.permute.xlu0 %2633
      %2635 = vrot.lane.b32.xlu0 %v354, 12
      %v2636 = vpop.permute.xlu0 %2635
      %2637 = vrot.lane.b32.xlu0 %v355, 12
      %v2638 = vpop.permute.xlu0 %2637
      %2639 = vrot.lane.b32.xlu0 %v356, 12
      %v2640 = vpop.permute.xlu0 %2639
      %2641 = vrot.lane.b32.xlu0 %v357, 12
      %v2642 = vpop.permute.xlu0 %2641
      %2643 = vrot.lane.b32.xlu0 %v358, 12
      %v2644 = vpop.permute.xlu0 %2643
      %2645 = vrot.lane.b32.xlu0 %v359, 12
      %v2646 = vpop.permute.xlu0 %2645
      %2647 = vrot.lane.b32.xlu0 %v360, 12
      %v2648 = vpop.permute.xlu0 %2647
      %2649 = vrot.lane.b32.xlu0 %v361, 12
      %v2650 = vpop.permute.xlu0 %2649
      %2651 = vrot.lane.b32.xlu0 %v362, 12
      %v2652 = vpop.permute.xlu0 %2651
      %2653 = vrot.lane.b32.xlu0 %v363, 12
      %v2654 = vpop.permute.xlu0 %2653
      %2655 = vrot.lane.b32.xlu0 %v364, 12
      %v2656 = vpop.permute.xlu0 %2655
      %2657 = vrot.lane.b32.xlu0 %v365, 12
      %v2658 = vpop.permute.xlu0 %2657
      %2659 = vrot.lane.b32.xlu0 %v366, 12
      %v2660 = vpop.permute.xlu0 %2659
      %2661 = vrot.lane.b32.xlu0 %v367, 12
      %v2662 = vpop.permute.xlu0 %2661
      %2663 = vrot.lane.b32.xlu0 %v368, 12
      %v2664 = vpop.permute.xlu0 %2663
      %2665 = vrot.lane.b32.xlu0 %v369, 12
      %v2666 = vpop.permute.xlu0 %2665
      %2667 = vrot.lane.b32.xlu0 %v370, 12
      %v2668 = vpop.permute.xlu0 %2667
      %2669 = vrot.lane.b32.xlu0 %v371, 12
      %v2670 = vpop.permute.xlu0 %2669
      %2671 = vrot.lane.b32.xlu0 %v372, 12
      %v2672 = vpop.permute.xlu0 %2671
      %2673 = vrot.lane.b32.xlu0 %v373, 12
      %v2674 = vpop.permute.xlu0 %2673
      %2675 = vrot.lane.b32.xlu0 %v374, 12
      %v2676 = vpop.permute.xlu0 %2675
      %2677 = vrot.lane.b32.xlu0 %v375, 12
      %v2678 = vpop.permute.xlu0 %2677
      %2679 = vrot.lane.b32.xlu0 %v376, 12
      %v2680 = vpop.permute.xlu0 %2679
      %2681 = vrot.lane.b32.xlu0 %v377, 12
      %v2682 = vpop.permute.xlu0 %2681
      %2683 = vrot.lane.b32.xlu0 0.0, 12
      %v2684 = vpop.permute.xlu0 %2683
      %2716 = vrot.lane.b32.xlu0 %v561, 14
      %v2717 = vpop.permute.xlu0 %2716
      %2718 = vrot.lane.b32.xlu0 %v562, 14
      %v2719 = vpop.permute.xlu0 %2718
      %2720 = vrot.lane.b32.xlu0 %v563, 14
      %v2721 = vpop.permute.xlu0 %2720
      %2722 = vrot.lane.b32.xlu0 %v564, 14
      %v2723 = vpop.permute.xlu0 %2722
      %2724 = vrot.lane.b32.xlu0 %v565, 14
      %v2725 = vpop.permute.xlu0 %2724
      %2726 = vrot.lane.b32.xlu0 %v566, 14
      %v2727 = vpop.permute.xlu0 %2726
      %2728 = vrot.lane.b32.xlu0 %v567, 14
      %v2729 = vpop.permute.xlu0 %2728
      %2730 = vrot.lane.b32.xlu0 %v568, 14
      %v2731 = vpop.permute.xlu0 %2730
      %2732 = vrot.lane.b32.xlu0 %v569, 14
      %v2733 = vpop.permute.xlu0 %2732
      %2734 = vrot.lane.b32.xlu0 %v570, 14
      %v2735 = vpop.permute.xlu0 %2734
      %2736 = vrot.lane.b32.xlu0 %v571, 14
      %v2737 = vpop.permute.xlu0 %2736
      %2738 = vrot.lane.b32.xlu0 %v572, 14
      %v2739 = vpop.permute.xlu0 %2738
      %2740 = vrot.lane.b32.xlu0 %v573, 14
      %v2741 = vpop.permute.xlu0 %2740
      %2742 = vrot.lane.b32.xlu0 %v574, 14
      %v2743 = vpop.permute.xlu0 %2742
      %2744 = vrot.lane.b32.xlu0 %v575, 14
      %v2745 = vpop.permute.xlu0 %2744
      %2746 = vrot.lane.b32.xlu0 %v576, 14
      %v2747 = vpop.permute.xlu0 %2746
      %2748 = vrot.lane.b32.xlu0 %v577, 14
      %v2749 = vpop.permute.xlu0 %2748
      %2750 = vrot.lane.b32.xlu0 %v578, 14
      %v2751 = vpop.permute.xlu0 %2750
      %2752 = vrot.lane.b32.xlu0 %v579, 14
      %v2753 = vpop.permute.xlu0 %2752
      %2754 = vrot.lane.b32.xlu0 %v580, 14
      %v2755 = vpop.permute.xlu0 %2754
      %2756 = vrot.lane.b32.xlu0 %v581, 14
      %v2757 = vpop.permute.xlu0 %2756
      %2758 = vrot.lane.b32.xlu0 %v582, 14
      %v2759 = vpop.permute.xlu0 %2758
      %2760 = vrot.lane.b32.xlu0 %v583, 14
      %v2761 = vpop.permute.xlu0 %2760
      %2762 = vrot.lane.b32.xlu0 %v584, 14
      %v2763 = vpop.permute.xlu0 %2762
      %2764 = vrot.lane.b32.xlu0 %v585, 14
      %v2765 = vpop.permute.xlu0 %2764
      %2766 = vrot.lane.b32.xlu0 %v586, 14
      %v2767 = vpop.permute.xlu0 %2766
      %2768 = vrot.lane.b32.xlu0 %v587, 14
      %v2769 = vpop.permute.xlu0 %2768
      %2770 = vrot.lane.b32.xlu0 %v588, 14
      %v2771 = vpop.permute.xlu0 %2770
      %2772 = vrot.lane.b32.xlu0 %v589, 14
      %v2773 = vpop.permute.xlu0 %2772
      %2774 = vrot.lane.b32.xlu0 %v590, 14
      %v2775 = vpop.permute.xlu0 %2774
      %2776 = vrot.lane.b32.xlu0 %v557, 14
      %v2777 = vpop.permute.xlu0 %2776
      %2778 = vrot.lane.b32.xlu0 %v558, 14
      %v2779 = vpop.permute.xlu0 %2778
      %v2812 = vsel %vm1454, %v2048, 0.0
      %v2813 = vsel %vm1454, %v2050, 0.0
      %v2814 = vsel %vm1454, %v2052, %v346
      %v2815 = vsel %vm1454, %v2054, %v347
      %v2816 = vsel %vm1454, %v2056, %v348
      %v2817 = vsel %vm1454, %v2058, %v349
      %v2818 = vsel %vm1454, %v2060, %v350
      %v2819 = vsel %vm1454, %v2062, %v351
      %v2820 = vsel %vm1454, %v2064, %v352
      %v2821 = vsel %vm1454, %v2066, %v353
      %v2822 = vsel %vm1454, %v2068, %v354
      %v2823 = vsel %vm1454, %v2070, %v355
      %v2824 = vsel %vm1454, %v2072, %v356
      %v2825 = vsel %vm1454, %v2074, %v357
      %v2826 = vsel %vm1454, %v2076, %v358
      %v2827 = vsel %vm1454, %v2078, %v359
      %v2828 = vsel %vm1454, %v2080, %v360
      %v2829 = vsel %vm1454, %v2082, %v361
      %v2830 = vsel %vm1454, %v2084, %v362
      %v2831 = vsel %vm1454, %v2086, %v363
      %v2832 = vsel %vm1454, %v2088, %v364
      %v2833 = vsel %vm1454, %v2090, %v365
      %v2834 = vsel %vm1454, %v2092, %v366
      %v2835 = vsel %vm1454, %v2094, %v367
      %v2836 = vsel %vm1454, %v2096, %v368
      %v2837 = vsel %vm1454, %v2098, %v369
      %v2838 = vsel %vm1454, %v2100, %v370
      %v2839 = vsel %vm1454, %v2102, %v371
      %v2840 = vsel %vm1454, %v2104, %v372
      %v2841 = vsel %vm1454, %v2106, %v373
      %v2842 = vsel %vm1454, %v2108, %v374
      %v2843 = vsel %vm1454, %v2110, %v375
      %v2844 = vsel %vm1487, %v2812, %v2144
      %v2845 = vsel %vm1487, %v2813, %v2146
      %v2846 = vsel %vm1487, %v2814, %v2148
      %v2847 = vsel %vm1487, %v2815, %v2150
      %v2848 = vsel %vm1487, %v2816, %v2152
      %v2849 = vsel %vm1487, %v2817, %v2154
      %v2850 = vsel %vm1487, %v2818, %v2156
      %v2851 = vsel %vm1487, %v2819, %v2158
      %v2852 = vsel %vm1487, %v2820, %v2160
      %v2853 = vsel %vm1487, %v2821, %v2162
      %v2854 = vsel %vm1487, %v2822, %v2164
      %v2855 = vsel %vm1487, %v2823, %v2166
      %v2856 = vsel %vm1487, %v2824, %v2168
      %v2857 = vsel %vm1487, %v2825, %v2170
      %v2858 = vsel %vm1487, %v2826, %v2172
      %v2859 = vsel %vm1487, %v2827, %v2174
      %v2860 = vsel %vm1487, %v2828, %v2176
      %v2861 = vsel %vm1487, %v2829, %v2178
      %v2862 = vsel %vm1487, %v2830, %v2180
      %v2863 = vsel %vm1487, %v2831, %v2182
      %v2864 = vsel %vm1487, %v2832, %v2184
      %v2865 = vsel %vm1487, %v2833, %v2186
      %v2866 = vsel %vm1487, %v2834, %v2188
      %v2867 = vsel %vm1487, %v2835, %v2190
      %v2868 = vsel %vm1487, %v2836, %v2192
      %v2869 = vsel %vm1487, %v2837, %v2194
      %v2870 = vsel %vm1487, %v2838, %v2196
      %v2871 = vsel %vm1487, %v2839, %v2198
      %v2872 = vsel %vm1487, %v2840, %v2200
      %v2873 = vsel %vm1487, %v2841, %v2202
      %v2874 = vsel %vm1487, %v2842, %v2204
      %v2875 = vsel %vm1487, %v2843, %v2206
      %v2876 = vsel %vm1520, %v2844, %v2240
      %v2877 = vsel %vm1520, %v2845, %v2242
      %v2878 = vsel %vm1520, %v2846, %v2244
      %v2879 = vsel %vm1520, %v2847, %v2246
      %v2880 = vsel %vm1520, %v2848, %v2248
      %v2881 = vsel %vm1520, %v2849, %v2250
      %v2882 = vsel %vm1520, %v2850, %v2252
      %v2883 = vsel %vm1520, %v2851, %v2254
      %v2884 = vsel %vm1520, %v2852, %v2256
      %v2885 = vsel %vm1520, %v2853, %v2258
      %v2886 = vsel %vm1520, %v2854, %v2260
      %v2887 = vsel %vm1520, %v2855, %v2262
      %v2888 = vsel %vm1520, %v2856, %v2264
      %v2889 = vsel %vm1520, %v2857, %v2266
      %v2890 = vsel %vm1520, %v2858, %v2268
      %v2891 = vsel %vm1520, %v2859, %v2270
      %v2892 = vsel %vm1520, %v2860, %v2272
      %v2893 = vsel %vm1520, %v2861, %v2274
      %v2894 = vsel %vm1520, %v2862, %v2276
      %v2895 = vsel %vm1520, %v2863, %v2278
      %v2896 = vsel %vm1520, %v2864, %v2280
      %v2897 = vsel %vm1520, %v2865, %v2282
      %v2898 = vsel %vm1520, %v2866, %v2284
      %v2899 = vsel %vm1520, %v2867, %v2286
      %v2900 = vsel %vm1520, %v2868, %v2288
      %v2901 = vsel %vm1520, %v2869, %v2290
      %v2902 = vsel %vm1520, %v2870, %v2292
      %v2903 = vsel %vm1520, %v2871, %v2294
      %v2904 = vsel %vm1520, %v2872, %v2296
      %v2905 = vsel %vm1520, %v2873, %v2298
      %v2906 = vsel %vm1520, %v2874, %v2300
      %v2907 = vsel %vm1520, %v2875, %v2302
      %v2908 = vsel %vm1553, %v2876, %v2336
      %v2909 = vsel %vm1553, %v2877, %v2338
      %v2910 = vsel %vm1553, %v2878, %v2340
      %v2911 = vsel %vm1553, %v2879, %v2342
      %v2912 = vsel %vm1553, %v2880, %v2344
      %v2913 = vsel %vm1553, %v2881, %v2346
      %v2914 = vsel %vm1553, %v2882, %v2348
      %v2915 = vsel %vm1553, %v2883, %v2350
      %v2916 = vsel %vm1553, %v2884, %v2352
      %v2917 = vsel %vm1553, %v2885, %v2354
      %v2918 = vsel %vm1553, %v2886, %v2356
      %v2919 = vsel %vm1553, %v2887, %v2358
      %v2920 = vsel %vm1553, %v2888, %v2360
      %v2921 = vsel %vm1553, %v2889, %v2362
      %v2922 = vsel %vm1553, %v2890, %v2364
      %v2923 = vsel %vm1553, %v2891, %v2366
      %v2924 = vsel %vm1553, %v2892, %v2368
      %v2925 = vsel %vm1553, %v2893, %v2370
      %v2926 = vsel %vm1553, %v2894, %v2372
      %v2927 = vsel %vm1553, %v2895, %v2374
      %v2928 = vsel %vm1553, %v2896, %v2376
      %v2929 = vsel %vm1553, %v2897, %v2378
      %v2930 = vsel %vm1553, %v2898, %v2380
      %v2931 = vsel %vm1553, %v2899, %v2382
      %v2932 = vsel %vm1553, %v2900, %v2384
      %v2933 = vsel %vm1553, %v2901, %v2386
      %v2934 = vsel %vm1553, %v2902, %v2388
      %v2935 = vsel %vm1553, %v2903, %v2390
      %v2936 = vsel %vm1553, %v2904, %v2392
      %v2937 = vsel %vm1553, %v2905, %v2394
      %v2938 = vsel %vm1553, %v2906, %v2396
      %v2939 = vsel %vm1553, %v2907, %v2398
      %v2940 = vsel %vm1586, %v2908, %v2432
      %v2941 = vsel %vm1586, %v2909, %v2434
      %v2942 = vsel %vm1586, %v2910, %v2436
      %v2943 = vsel %vm1586, %v2911, %v2438
      %v2944 = vsel %vm1586, %v2912, %v2440
      %v2945 = vsel %vm1586, %v2913, %v2442
      %v2946 = vsel %vm1586, %v2914, %v2444
      %v2947 = vsel %vm1586, %v2915, %v2446
      %v2948 = vsel %vm1586, %v2916, %v2448
      %v2949 = vsel %vm1586, %v2917, %v2450
      %v2950 = vsel %vm1586, %v2918, %v2452
      %v2951 = vsel %vm1586, %v2919, %v2454
      %v2952 = vsel %vm1586, %v2920, %v2456
      %v2953 = vsel %vm1586, %v2921, %v2458
      %v2954 = vsel %vm1586, %v2922, %v2460
      %v2955 = vsel %vm1586, %v2923, %v2462
      %v2956 = vsel %vm1586, %v2924, %v2464
      %v2957 = vsel %vm1586, %v2925, %v2466
      %v2958 = vsel %vm1586, %v2926, %v2468
      %v2959 = vsel %vm1586, %v2927, %v2470
      %v2960 = vsel %vm1586, %v2928, %v2472
      %v2961 = vsel %vm1586, %v2929, %v2474
      %v2962 = vsel %vm1586, %v2930, %v2476
      %v2963 = vsel %vm1586, %v2931, %v2478
      %v2964 = vsel %vm1586, %v2932, %v2480
      %v2965 = vsel %vm1586, %v2933, %v2482
      %v2966 = vsel %vm1586, %v2934, %v2484
      %v2967 = vsel %vm1586, %v2935, %v2486
      %v2968 = vsel %vm1586, %v2936, %v2488
      %v2969 = vsel %vm1586, %v2937, %v2490
      %v2970 = vsel %vm1586, %v2938, %v2492
      %v2971 = vsel %vm1586, %v2939, %v2494
      %v2972 = vsel %vm1619, %v2940, %v2528
      %v2973 = vsel %vm1619, %v2941, %v2530
      %v2974 = vsel %vm1619, %v2942, %v2532
      %v2975 = vsel %vm1619, %v2943, %v2534
      %v2976 = vsel %vm1619, %v2944, %v2536
      %v2977 = vsel %vm1619, %v2945, %v2538
      %v2978 = vsel %vm1619, %v2946, %v2540
      %v2979 = vsel %vm1619, %v2947, %v2542
      %v2980 = vsel %vm1619, %v2948, %v2544
      %v2981 = vsel %vm1619, %v2949, %v2546
      %v2982 = vsel %vm1619, %v2950, %v2548
      %v2983 = vsel %vm1619, %v2951, %v2550
      %v2984 = vsel %vm1619, %v2952, %v2552
      %v2985 = vsel %vm1619, %v2953, %v2554
      %v2986 = vsel %vm1619, %v2954, %v2556
      %v2987 = vsel %vm1619, %v2955, %v2558
      %v2988 = vsel %vm1619, %v2956, %v2560
      %v2989 = vsel %vm1619, %v2957, %v2562
      %v2990 = vsel %vm1619, %v2958, %v2564
      %v2991 = vsel %vm1619, %v2959, %v2566
      %v2992 = vsel %vm1619, %v2960, %v2568
      %v2993 = vsel %vm1619, %v2961, %v2570
      %v2994 = vsel %vm1619, %v2962, %v2572
      %v2995 = vsel %vm1619, %v2963, %v2574
      %v2996 = vsel %vm1619, %v2964, %v2576
      %v2997 = vsel %vm1619, %v2965, %v2578
      %v2998 = vsel %vm1619, %v2966, %v2580
      %v2999 = vsel %vm1619, %v2967, %v2582
      %v3000 = vsel %vm1619, %v2968, %v2584
      %v3001 = vsel %vm1619, %v2969, %v2586
      %v3002 = vsel %vm1619, %v2970, %v2588
      %v3003 = vsel %vm1619, %v2971, %v2590
      %v3004 = vsel %vm1652, %v2972, %v2624
      %v3005 = vsel %vm1652, %v2973, %v2626
      %v3006 = vsel %vm1652, %v2974, %v2628
      %v3007 = vsel %vm1652, %v2975, %v2630
      %v3008 = vsel %vm1652, %v2976, %v2632
      %v3009 = vsel %vm1652, %v2977, %v2634
      %v3010 = vsel %vm1652, %v2978, %v2636
      %v3011 = vsel %vm1652, %v2979, %v2638
      %v3012 = vsel %vm1652, %v2980, %v2640
      %v3013 = vsel %vm1652, %v2981, %v2642
      %v3014 = vsel %vm1652, %v2982, %v2644
      %v3015 = vsel %vm1652, %v2983, %v2646
      %v3016 = vsel %vm1652, %v2984, %v2648
      %v3017 = vsel %vm1652, %v2985, %v2650
      %v3018 = vsel %vm1652, %v2986, %v2652
      %v3019 = vsel %vm1652, %v2987, %v2654
      %v3020 = vsel %vm1652, %v2988, %v2656
      %v3021 = vsel %vm1652, %v2989, %v2658
      %v3022 = vsel %vm1652, %v2990, %v2660
      %v3023 = vsel %vm1652, %v2991, %v2662
      %v3024 = vsel %vm1652, %v2992, %v2664
      %v3025 = vsel %vm1652, %v2993, %v2666
      %v3026 = vsel %vm1652, %v2994, %v2668
      %v3027 = vsel %vm1652, %v2995, %v2670
      %v3028 = vsel %vm1652, %v2996, %v2672
      %v3029 = vsel %vm1652, %v2997, %v2674
      %v3030 = vsel %vm1652, %v2998, %v2676
      %v3031 = vsel %vm1652, %v2999, %v2678
      %v3032 = vsel %vm1652, %v3000, %v2680
      %v3033 = vsel %vm1652, %v3001, %v2682
      %v3034 = vsel %vm1652, %v3002, %v2684
      %v3035 = vsel %vm1652, %v3003, %v2684
      %v3036 = vsel %vm1685, %v3004, %v2717
      %v3037 = vsel %vm1685, %v3005, %v2719
      %v3038 = vsel %vm1685, %v3006, %v2721
      %v3039 = vsel %vm1685, %v3007, %v2723
      %v3040 = vsel %vm1685, %v3008, %v2725
      %v3041 = vsel %vm1685, %v3009, %v2727
      %v3042 = vsel %vm1685, %v3010, %v2729
      %v3043 = vsel %vm1685, %v3011, %v2731
      %v3044 = vsel %vm1685, %v3012, %v2733
      %v3045 = vsel %vm1685, %v3013, %v2735
      %v3046 = vsel %vm1685, %v3014, %v2737
      %v3047 = vsel %vm1685, %v3015, %v2739
      %v3048 = vsel %vm1685, %v3016, %v2741
      %v3049 = vsel %vm1685, %v3017, %v2743
      %v3050 = vsel %vm1685, %v3018, %v2745
      %v3051 = vsel %vm1685, %v3019, %v2747
      %v3052 = vsel %vm1685, %v3020, %v2749
      %v3053 = vsel %vm1685, %v3021, %v2751
      %v3054 = vsel %vm1685, %v3022, %v2753
      %v3055 = vsel %vm1685, %v3023, %v2755
      %v3056 = vsel %vm1685, %v3024, %v2757
      %v3057 = vsel %vm1685, %v3025, %v2759
      %v3058 = vsel %vm1685, %v3026, %v2761
      %v3059 = vsel %vm1685, %v3027, %v2763
      %v3060 = vsel %vm1685, %v3028, %v2765
      %v3061 = vsel %vm1685, %v3029, %v2767
      %v3062 = vsel %vm1685, %v3030, %v2769
      %v3063 = vsel %vm1685, %v3031, %v2771
      %v3064 = vsel %vm1685, %v3032, %v2773
      %v3065 = vsel %vm1685, %v3033, %v2775
      %v3066 = vsel %vm1685, %v3034, %v2777
      %v3067 = vsel %vm1685, %v3035, %v2779
      %s3068 = scalar_lea.vmem %s3, 24
      %v3069 = vld [vmem:[%s3068] sm:$0xff]
      %v3070 = vld [vmem:[%s3068 + $0x8] sm:$0xff]
      %v3071 = vld [vmem:[%s3068 + $0x10] sm:$0x3]
      %v3073 = vsel %vm1721, %v3036, 0
      %v3076 = vsel %vm1721, %v3037, 0
      %v3079 = vsel %vm1721, %v3038, 0
      %v3082 = vsel %vm1721, %v3039, 0
      %v3085 = vsel %vm1721, %v3040, 0
      %v3088 = vsel %vm1721, %v3041, 0
      %v3091 = vsel %vm1721, %v3042, 0
      %v3094 = vsel %vm1721, %v3043, 0
      %v3097 = vsel %vm1721, %v3044, 0
      %v3100 = vsel %vm1721, %v3045, 0
      %v3103 = vsel %vm1721, %v3046, 0
      %v3106 = vsel %vm1721, %v3047, 0
      %v3109 = vsel %vm1721, %v3048, 0
      %v3112 = vsel %vm1721, %v3049, 0
      %v3115 = vsel %vm1721, %v3050, 0
      %v3118 = vsel %vm1721, %v3051, 0
      %v3121 = vsel %vm1721, %v3052, 0
      %v3124 = vsel %vm1721, %v3053, 0
      %v3127 = vsel %vm1721, %v3054, 0
      %v3130 = vsel %vm1721, %v3055, 0
      %v3133 = vsel %vm1721, %v3056, 0
      %v3136 = vsel %vm1721, %v3057, 0
      %v3139 = vsel %vm1721, %v3058, 0
      %v3142 = vsel %vm1721, %v3059, 0
      %v3145 = vsel %vm1721, %v3060, 0
      %v3148 = vsel %vm1721, %v3061, 0
      %v3151 = vsel %vm1721, %v3062, 0
      %v3154 = vsel %vm1721, %v3063, 0
      %v3157 = vsel %vm1721, %v3064, 0
      %v3160 = vsel %vm1721, %v3065, 0
      %v3163 = vsel %vm1721, %v3066, 0
      %v3166 = vsel %vm1721, %v3067, 0
      %v3169 = vsel %vm1818, %v3071, 0
      %3171 = vmatprep.subr.mxu0 0.0
      %3172 = vmatpush1.msra.mxu0 0.0
      %3173 = vmatprep.subr.mxu0 0.0
      %3174 = vmatpush1.msra.mxu0 0.0
      %3175 = vmatprep.subr.mxu0 0.0
      %3176 = vmatpush1.msra.mxu0 0.0
      %3177 = vmatprep.subr.mxu0 0.0
      %3178 = vmatpush1.msra.mxu0 0.0
      %3179 = vmatprep.subr.mxu0 0.0
      %3180 = vmatpush1.msra.mxu0 0.0
      %3181 = vmatprep.subr.mxu0 0.0
      %3182 = vmatpush1.msra.mxu0 0.0
      %3183 = vmatprep.subr.mxu0 0.0
      %3184 = vmatpush1.msra.mxu0 0.0
      %3185 = vmatprep.subr.mxu0 0.0
      %3186 = vmatpush1.msra.mxu0 0.0
      %3187 = vmatprep.subr.mxu0 0.0
      %3188 = vmatpush1.msra.mxu0 0.0
      %3189 = vmatprep.subr.mxu0 0.0
      %3190 = vmatpush1.msra.mxu0 0.0
      %3191 = vmatprep.subr.mxu0 0.0
      %3192 = vmatpush1.msra.mxu0 0.0
      %3193 = vmatprep.subr.mxu0 0.0
      %3194 = vmatpush1.msra.mxu0 0.0
      %3195 = vmatprep.subr.mxu0 0.0
      %3196 = vmatpush1.msra.mxu0 0.0
      %3197 = vmatprep.subr.mxu0 0.0
      %3198 = vmatpush1.msra.mxu0 %v3169
      %3199 = vmatprep.subr.mxu0 0.0
      %3200 = vmatpush1.msra.mxu0 %v3070
      %3201 = vmatprep.subr.mxu0 0.0
      %3202 = vmatpush1.msra.mxu0 %v3069
      %3203 = vmatprep.subr.mxu0 0.0
      %3204 = vmatpush2.msra.mxu0 0.0
      %3205 = vmatprep.subr.mxu0 0.0
      %3206 = vmatpush2.msra.mxu0 0.0
      %3207 = vmatprep.subr.mxu0 0.0
      %3208 = vmatpush2.msra.mxu0 0.0
      %3209 = vmatprep.subr.mxu0 0.0
      %3210 = vmatpush2.msra.mxu0 0.0
      %3211 = vmatprep.subr.mxu0 0.0
      %3212 = vmatpush2.msra.mxu0 0.0
      %3213 = vmatprep.subr.mxu0 0.0
      %3214 = vmatpush2.msra.mxu0 0.0
      %3215 = vmatprep.subr.mxu0 0.0
      %3216 = vmatpush2.msra.mxu0 0.0
      %3217 = vmatprep.subr.mxu0 0.0
      %3218 = vmatpush2.msra.mxu0 0.0
      %3219 = vmatprep.subr.mxu0 0.0
      %3220 = vmatpush2.msra.mxu0 0.0
      %3221 = vmatprep.subr.mxu0 0.0
      %3222 = vmatpush2.msra.mxu0 0.0
      %3223 = vmatprep.subr.mxu0 0.0
      %3224 = vmatpush2.msra.mxu0 0.0
      %3225 = vmatprep.subr.mxu0 0.0
      %3226 = vmatpush2.msra.mxu0 0.0
      %3227 = vmatprep.subr.mxu0 0.0
      %3228 = vmatpush2.msra.mxu0 0.0
      %3229 = vmatprep.subr.mxu0 0.0
      %3230 = vmatpush2.msra.mxu0 0.0
      %3231 = vmatprep.subr.mxu0 0.0
      %3232 = vmatpush2.msra.mxu0 0.0
      %3233 = vmatprep.subr.mxu0 0.0
      %3234 = vmatpush2.msra.mxu0 0.0
      %3235 = vmatprep.mubr.f32.mxu0 0.0
      %3236 = vmatmul.mubr.f32.gmra.mxu0 %v3073
      %v3237 = vpop.f32.mrf.mxu0
      %v3238 = vadd.f32 0.0, %v3237
      %v3239 = vpop.f32.mrf.mxu0
      %3240 = vmatprep.mubr.f32.mxu0 0.0
      %3241 = vmatmul.mubr.f32.gmra.mxu0 %v3076
      %v3242 = vpop.f32.mrf.mxu0
      %v3243 = vadd.f32 0.0, %v3242
      %v3244 = vpop.f32.mrf.mxu0
      %3245 = vmatprep.mubr.f32.mxu0 0.0
      %3246 = vmatmul.mubr.f32.gmra.mxu0 %v3079
      %v3247 = vpop.f32.mrf.mxu0
      %v3248 = vadd.f32 0.0, %v3247
      %v3249 = vpop.f32.mrf.mxu0
      %3250 = vmatprep.mubr.f32.mxu0 0.0
      %3251 = vmatmul.mubr.f32.gmra.mxu0 %v3082
      %v3252 = vpop.f32.mrf.mxu0
      %v3253 = vadd.f32 0.0, %v3252
      %v3254 = vpop.f32.mrf.mxu0
      %3255 = vmatprep.mubr.f32.mxu0 0.0
      %3256 = vmatmul.mubr.f32.gmra.mxu0 %v3085
      %v3257 = vpop.f32.mrf.mxu0
      %v3258 = vadd.f32 0.0, %v3257
      %v3259 = vpop.f32.mrf.mxu0
      %3260 = vmatprep.mubr.f32.mxu0 0.0
      %3261 = vmatmul.mubr.f32.gmra.mxu0 %v3088
      %v3262 = vpop.f32.mrf.mxu0
      %v3263 = vadd.f32 0.0, %v3262
      %v3264 = vpop.f32.mrf.mxu0
      %3265 = vmatprep.mubr.f32.mxu0 0.0
      %3266 = vmatmul.mubr.f32.gmra.mxu0 %v3091
      %v3267 = vpop.f32.mrf.mxu0
      %v3268 = vadd.f32 0.0, %v3267
      %v3269 = vpop.f32.mrf.mxu0
      %3270 = vmatprep.mubr.f32.mxu0 0.0
      %3271 = vmatmul.mubr.f32.gmra.mxu0 %v3094
      %v3272 = vpop.f32.mrf.mxu0
      %v3273 = vadd.f32 0.0, %v3272
      %v3274 = vpop.f32.mrf.mxu0
      %3275 = vmatprep.mubr.f32.mxu0 0.0
      %3276 = vmatmul.mubr.f32.gmra.mxu0 %v3097
      %v3277 = vpop.f32.mrf.mxu0
      %v3278 = vadd.f32 0.0, %v3277
      %v3279 = vpop.f32.mrf.mxu0
      %3280 = vmatprep.mubr.f32.mxu0 0.0
      %3281 = vmatmul.mubr.f32.gmra.mxu0 %v3100
      %v3282 = vpop.f32.mrf.mxu0
      %v3283 = vadd.f32 0.0, %v3282
      %v3284 = vpop.f32.mrf.mxu0
      %3285 = vmatprep.mubr.f32.mxu0 0.0
      %3286 = vmatmul.mubr.f32.gmra.mxu0 %v3103
      %v3287 = vpop.f32.mrf.mxu0
      %v3288 = vadd.f32 0.0, %v3287
      %v3289 = vpop.f32.mrf.mxu0
      %3290 = vmatprep.mubr.f32.mxu0 0.0
      %3291 = vmatmul.mubr.f32.gmra.mxu0 %v3106
      %v3292 = vpop.f32.mrf.mxu0
      %v3293 = vadd.f32 0.0, %v3292
      %v3294 = vpop.f32.mrf.mxu0
      %3295 = vmatprep.mubr.f32.mxu0 0.0
      %3296 = vmatmul.mubr.f32.gmra.mxu0 %v3109
      %v3297 = vpop.f32.mrf.mxu0
      %v3298 = vadd.f32 0.0, %v3297
      %v3299 = vpop.f32.mrf.mxu0
      %3300 = vmatprep.mubr.f32.mxu0 0.0
      %3301 = vmatmul.mubr.f32.gmra.mxu0 %v3112
      %v3302 = vpop.f32.mrf.mxu0
      %v3303 = vadd.f32 0.0, %v3302
      %v3304 = vpop.f32.mrf.mxu0
      %3305 = vmatprep.mubr.f32.mxu0 0.0
      %3306 = vmatmul.mubr.f32.gmra.mxu0 %v3115
      %v3307 = vpop.f32.mrf.mxu0
      %v3308 = vadd.f32 0.0, %v3307
      %v3309 = vpop.f32.mrf.mxu0
      %3310 = vmatprep.mubr.f32.mxu0 0.0
      %3311 = vmatmul.mubr.f32.gmra.mxu0 %v3118
      %v3312 = vpop.f32.mrf.mxu0
      %v3313 = vadd.f32 0.0, %v3312
      %v3314 = vpop.f32.mrf.mxu0
      %3315 = vmatprep.mubr.f32.mxu0 0.0
      %3316 = vmatmul.mubr.f32.gmra.mxu0 %v3121
      %v3317 = vpop.f32.mrf.mxu0
      %v3318 = vadd.f32 0.0, %v3317
      %v3319 = vpop.f32.mrf.mxu0
      %3320 = vmatprep.mubr.f32.mxu0 0.0
      %3321 = vmatmul.mubr.f32.gmra.mxu0 %v3124
      %v3322 = vpop.f32.mrf.mxu0
      %v3323 = vadd.f32 0.0, %v3322
      %v3324 = vpop.f32.mrf.mxu0
      %3325 = vmatprep.mubr.f32.mxu0 0.0
      %3326 = vmatmul.mubr.f32.gmra.mxu0 %v3127
      %v3327 = vpop.f32.mrf.mxu0
      %v3328 = vadd.f32 0.0, %v3327
      %v3329 = vpop.f32.mrf.mxu0
      %3330 = vmatprep.mubr.f32.mxu0 0.0
      %3331 = vmatmul.mubr.f32.gmra.mxu0 %v3130
      %v3332 = vpop.f32.mrf.mxu0
      %v3333 = vadd.f32 0.0, %v3332
      %v3334 = vpop.f32.mrf.mxu0
      %3335 = vmatprep.mubr.f32.mxu0 0.0
      %3336 = vmatmul.mubr.f32.gmra.mxu0 %v3133
      %v3337 = vpop.f32.mrf.mxu0
      %v3338 = vadd.f32 0.0, %v3337
      %v3339 = vpop.f32.mrf.mxu0
      %3340 = vmatprep.mubr.f32.mxu0 0.0
      %3341 = vmatmul.mubr.f32.gmra.mxu0 %v3136
      %v3342 = vpop.f32.mrf.mxu0
      %v3343 = vadd.f32 0.0, %v3342
      %v3344 = vpop.f32.mrf.mxu0
      %3345 = vmatprep.mubr.f32.mxu0 0.0
      %3346 = vmatmul.mubr.f32.gmra.mxu0 %v3139
      %v3347 = vpop.f32.mrf.mxu0
      %v3348 = vadd.f32 0.0, %v3347
      %v3349 = vpop.f32.mrf.mxu0
      %3350 = vmatprep.mubr.f32.mxu0 0.0
      %3351 = vmatmul.mubr.f32.gmra.mxu0 %v3142
      %v3352 = vpop.f32.mrf.mxu0
      %v3353 = vadd.f32 0.0, %v3352
      %v3354 = vpop.f32.mrf.mxu0
      %3355 = vmatprep.mubr.f32.mxu0 0.0
      %3356 = vmatmul.mubr.f32.gmra.mxu0 %v3145
      %v3357 = vpop.f32.mrf.mxu0
      %v3358 = vadd.f32 0.0, %v3357
      %v3359 = vpop.f32.mrf.mxu0
      %3360 = vmatprep.mubr.f32.mxu0 0.0
      %3361 = vmatmul.mubr.f32.gmra.mxu0 %v3148
      %v3362 = vpop.f32.mrf.mxu0
      %v3363 = vadd.f32 0.0, %v3362
      %v3364 = vpop.f32.mrf.mxu0
      %3365 = vmatprep.mubr.f32.mxu0 0.0
      %3366 = vmatmul.mubr.f32.gmra.mxu0 %v3151
      %v3367 = vpop.f32.mrf.mxu0
      %v3368 = vadd.f32 0.0, %v3367
      %v3369 = vpop.f32.mrf.mxu0
      %3370 = vmatprep.mubr.f32.mxu0 0.0
      %3371 = vmatmul.mubr.f32.gmra.mxu0 %v3154
      %v3372 = vpop.f32.mrf.mxu0
      %v3373 = vadd.f32 0.0, %v3372
      %v3374 = vpop.f32.mrf.mxu0
      %3375 = vmatprep.mubr.f32.mxu0 0.0
      %3376 = vmatmul.mubr.f32.gmra.mxu0 %v3157
      %v3377 = vpop.f32.mrf.mxu0
      %v3378 = vadd.f32 0.0, %v3377
      %v3379 = vpop.f32.mrf.mxu0
      %3380 = vmatprep.mubr.f32.mxu0 0.0
      %3381 = vmatmul.mubr.f32.gmra.mxu0 %v3160
      %v3382 = vpop.f32.mrf.mxu0
      %v3383 = vadd.f32 0.0, %v3382
      %v3384 = vpop.f32.mrf.mxu0
      %3385 = vmatprep.mubr.f32.mxu0 0.0
      %3386 = vmatmul.mubr.f32.gmra.mxu0 %v3163
      %v3387 = vpop.f32.mrf.mxu0
      %v3388 = vadd.f32 0.0, %v3387
      %v3389 = vpop.f32.mrf.mxu0
      %3390 = vmatprep.mubr.f32.mxu0 0.0
      %3391 = vmatmul.mubr.f32.gmra.mxu0 %v3166
      %v3392 = vpop.f32.mrf.mxu0
      %v3393 = vadd.f32 0.0, %v3392
      %v3394 = vpop.f32.mrf.mxu0
      %3395 = vdwg.mxu0
      %3396 = vrot.lane.b32.xlu0 %v452, 124
      %v3397 = vpop.permute.xlu0 %3396
      %3398 = vrot.lane.b32.xlu0 %v453, 124
      %v3399 = vpop.permute.xlu0 %3398
      %3400 = vrot.lane.b32.xlu0 %v454, 124
      %v3401 = vpop.permute.xlu0 %3400
      %3402 = vrot.lane.b32.xlu0 %v455, 124
      %v3403 = vpop.permute.xlu0 %3402
      %3404 = vrot.lane.b32.xlu0 %v456, 124
      %v3405 = vpop.permute.xlu0 %3404
      %3406 = vrot.lane.b32.xlu0 %v457, 124
      %v3407 = vpop.permute.xlu0 %3406
      %3408 = vrot.lane.b32.xlu0 %v458, 124
      %v3409 = vpop.permute.xlu0 %3408
      %3410 = vrot.lane.b32.xlu0 %v459, 124
      %v3411 = vpop.permute.xlu0 %3410
      %3412 = vrot.lane.b32.xlu0 %v460, 124
      %v3413 = vpop.permute.xlu0 %3412
      %3414 = vrot.lane.b32.xlu0 %v461, 124
      %v3415 = vpop.permute.xlu0 %3414
      %3416 = vrot.lane.b32.xlu0 %v462, 124
      %v3417 = vpop.permute.xlu0 %3416
      %3418 = vrot.lane.b32.xlu0 %v463, 124
      %v3419 = vpop.permute.xlu0 %3418
      %3420 = vrot.lane.b32.xlu0 %v464, 124
      %v3421 = vpop.permute.xlu0 %3420
      %3422 = vrot.lane.b32.xlu0 %v465, 124
      %v3423 = vpop.permute.xlu0 %3422
      %3424 = vrot.lane.b32.xlu0 %v466, 124
      %v3425 = vpop.permute.xlu0 %3424
      %3426 = vrot.lane.b32.xlu0 %v467, 124
      %v3427 = vpop.permute.xlu0 %3426
      %3428 = vrot.lane.b32.xlu0 %v468, 124
      %v3429 = vpop.permute.xlu0 %3428
      %3430 = vrot.lane.b32.xlu0 %v469, 124
      %v3431 = vpop.permute.xlu0 %3430
      %3432 = vrot.lane.b32.xlu0 %v470, 124
      %v3433 = vpop.permute.xlu0 %3432
      %3434 = vrot.lane.b32.xlu0 %v471, 124
      %v3435 = vpop.permute.xlu0 %3434
      %3436 = vrot.lane.b32.xlu0 %v472, 124
      %v3437 = vpop.permute.xlu0 %3436
      %3438 = vrot.lane.b32.xlu0 %v473, 124
      %v3439 = vpop.permute.xlu0 %3438
      %3440 = vrot.lane.b32.xlu0 %v474, 124
      %v3441 = vpop.permute.xlu0 %3440
      %3442 = vrot.lane.b32.xlu0 %v475, 124
      %v3443 = vpop.permute.xlu0 %3442
      %3444 = vrot.lane.b32.xlu0 %v476, 124
      %v3445 = vpop.permute.xlu0 %3444
      %3446 = vrot.lane.b32.xlu0 %v477, 124
      %v3447 = vpop.permute.xlu0 %3446
      %3448 = vrot.lane.b32.xlu0 %v478, 124
      %v3449 = vpop.permute.xlu0 %3448
      %3450 = vrot.lane.b32.xlu0 %v479, 124
      %v3451 = vpop.permute.xlu0 %3450
      %3452 = vrot.lane.b32.xlu0 %v480, 124
      %v3453 = vpop.permute.xlu0 %3452
      %3454 = vrot.lane.b32.xlu0 %v481, 124
      %v3455 = vpop.permute.xlu0 %3454
      %3456 = vrot.lane.b32.xlu0 %v482, 124
      %v3457 = vpop.permute.xlu0 %3456
      %3458 = vrot.lane.b32.xlu0 %v483, 124
      %v3459 = vpop.permute.xlu0 %3458
      %3492 = vrot.lane.b32.xlu0 0.0, 126
      %v3493 = vpop.permute.xlu0 %3492
      %3494 = vrot.lane.b32.xlu0 %v346, 126
      %v3495 = vpop.permute.xlu0 %3494
      %3496 = vrot.lane.b32.xlu0 %v347, 126
      %v3497 = vpop.permute.xlu0 %3496
      %3498 = vrot.lane.b32.xlu0 %v348, 126
      %v3499 = vpop.permute.xlu0 %3498
      %3500 = vrot.lane.b32.xlu0 %v349, 126
      %v3501 = vpop.permute.xlu0 %3500
      %3502 = vrot.lane.b32.xlu0 %v350, 126
      %v3503 = vpop.permute.xlu0 %3502
      %3504 = vrot.lane.b32.xlu0 %v351, 126
      %v3505 = vpop.permute.xlu0 %3504
      %3506 = vrot.lane.b32.xlu0 %v352, 126
      %v3507 = vpop.permute.xlu0 %3506
      %3508 = vrot.lane.b32.xlu0 %v353, 126
      %v3509 = vpop.permute.xlu0 %3508
      %3510 = vrot.lane.b32.xlu0 %v354, 126
      %v3511 = vpop.permute.xlu0 %3510
      %3512 = vrot.lane.b32.xlu0 %v355, 126
      %v3513 = vpop.permute.xlu0 %3512
      %3514 = vrot.lane.b32.xlu0 %v356, 126
      %v3515 = vpop.permute.xlu0 %3514
      %3516 = vrot.lane.b32.xlu0 %v357, 126
      %v3517 = vpop.permute.xlu0 %3516
      %3518 = vrot.lane.b32.xlu0 %v358, 126
      %v3519 = vpop.permute.xlu0 %3518
      %3520 = vrot.lane.b32.xlu0 %v359, 126
      %v3521 = vpop.permute.xlu0 %3520
      %3522 = vrot.lane.b32.xlu0 %v360, 126
      %v3523 = vpop.permute.xlu0 %3522
      %3524 = vrot.lane.b32.xlu0 %v361, 126
      %v3525 = vpop.permute.xlu0 %3524
      %3526 = vrot.lane.b32.xlu0 %v362, 126
      %v3527 = vpop.permute.xlu0 %3526
      %3528 = vrot.lane.b32.xlu0 %v363, 126
      %v3529 = vpop.permute.xlu0 %3528
      %3530 = vrot.lane.b32.xlu0 %v364, 126
      %v3531 = vpop.permute.xlu0 %3530
      %3532 = vrot.lane.b32.xlu0 %v365, 126
      %v3533 = vpop.permute.xlu0 %3532
      %3534 = vrot.lane.b32.xlu0 %v366, 126
      %v3535 = vpop.permute.xlu0 %3534
      %3536 = vrot.lane.b32.xlu0 %v367, 126
      %v3537 = vpop.permute.xlu0 %3536
      %3538 = vrot.lane.b32.xlu0 %v368, 126
      %v3539 = vpop.permute.xlu0 %3538
      %3540 = vrot.lane.b32.xlu0 %v369, 126
      %v3541 = vpop.permute.xlu0 %3540
      %3542 = vrot.lane.b32.xlu0 %v370, 126
      %v3543 = vpop.permute.xlu0 %3542
      %3544 = vrot.lane.b32.xlu0 %v371, 126
      %v3545 = vpop.permute.xlu0 %3544
      %3546 = vrot.lane.b32.xlu0 %v372, 126
      %v3547 = vpop.permute.xlu0 %3546
      %3548 = vrot.lane.b32.xlu0 %v373, 126
      %v3549 = vpop.permute.xlu0 %3548
      %3550 = vrot.lane.b32.xlu0 %v374, 126
      %v3551 = vpop.permute.xlu0 %3550
      %3552 = vrot.lane.b32.xlu0 %v375, 126
      %v3553 = vpop.permute.xlu0 %3552
      %3585 = vrot.lane.b32.xlu0 %v454, 2
      %v3586 = vpop.permute.xlu0 %3585
      %3587 = vrot.lane.b32.xlu0 %v455, 2
      %v3588 = vpop.permute.xlu0 %3587
      %3589 = vrot.lane.b32.xlu0 %v456, 2
      %v3590 = vpop.permute.xlu0 %3589
      %3591 = vrot.lane.b32.xlu0 %v457, 2
      %v3592 = vpop.permute.xlu0 %3591
      %3593 = vrot.lane.b32.xlu0 %v458, 2
      %v3594 = vpop.permute.xlu0 %3593
      %3595 = vrot.lane.b32.xlu0 %v459, 2
      %v3596 = vpop.permute.xlu0 %3595
      %3597 = vrot.lane.b32.xlu0 %v460, 2
      %v3598 = vpop.permute.xlu0 %3597
      %3599 = vrot.lane.b32.xlu0 %v461, 2
      %v3600 = vpop.permute.xlu0 %3599
      %3601 = vrot.lane.b32.xlu0 %v462, 2
      %v3602 = vpop.permute.xlu0 %3601
      %3603 = vrot.lane.b32.xlu0 %v463, 2
      %v3604 = vpop.permute.xlu0 %3603
      %3605 = vrot.lane.b32.xlu0 %v464, 2
      %v3606 = vpop.permute.xlu0 %3605
      %3607 = vrot.lane.b32.xlu0 %v465, 2
      %v3608 = vpop.permute.xlu0 %3607
      %3609 = vrot.lane.b32.xlu0 %v466, 2
      %v3610 = vpop.permute.xlu0 %3609
      %3611 = vrot.lane.b32.xlu0 %v467, 2
      %v3612 = vpop.permute.xlu0 %3611
      %3613 = vrot.lane.b32.xlu0 %v468, 2
      %v3614 = vpop.permute.xlu0 %3613
      %3615 = vrot.lane.b32.xlu0 %v469, 2
      %v3616 = vpop.permute.xlu0 %3615
      %3617 = vrot.lane.b32.xlu0 %v470, 2
      %v3618 = vpop.permute.xlu0 %3617
      %3619 = vrot.lane.b32.xlu0 %v471, 2
      %v3620 = vpop.permute.xlu0 %3619
      %3621 = vrot.lane.b32.xlu0 %v472, 2
      %v3622 = vpop.permute.xlu0 %3621
      %3623 = vrot.lane.b32.xlu0 %v473, 2
      %v3624 = vpop.permute.xlu0 %3623
      %3625 = vrot.lane.b32.xlu0 %v474, 2
      %v3626 = vpop.permute.xlu0 %3625
      %3627 = vrot.lane.b32.xlu0 %v475, 2
      %v3628 = vpop.permute.xlu0 %3627
      %3629 = vrot.lane.b32.xlu0 %v476, 2
      %v3630 = vpop.permute.xlu0 %3629
      %3631 = vrot.lane.b32.xlu0 %v477, 2
      %v3632 = vpop.permute.xlu0 %3631
      %3633 = vrot.lane.b32.xlu0 %v478, 2
      %v3634 = vpop.permute.xlu0 %3633
      %3635 = vrot.lane.b32.xlu0 %v479, 2
      %v3636 = vpop.permute.xlu0 %3635
      %3637 = vrot.lane.b32.xlu0 %v480, 2
      %v3638 = vpop.permute.xlu0 %3637
      %3639 = vrot.lane.b32.xlu0 %v481, 2
      %v3640 = vpop.permute.xlu0 %3639
      %3641 = vrot.lane.b32.xlu0 %v482, 2
      %v3642 = vpop.permute.xlu0 %3641
      %3643 = vrot.lane.b32.xlu0 %v483, 2
      %v3644 = vpop.permute.xlu0 %3643
      %3645 = vrot.lane.b32.xlu0 %v484, 2
      %v3646 = vpop.permute.xlu0 %3645
      %3647 = vrot.lane.b32.xlu0 %v485, 2
      %v3648 = vpop.permute.xlu0 %3647
      %3681 = vrot.lane.b32.xlu0 %v346, 4
      %v3682 = vpop.permute.xlu0 %3681
      %3683 = vrot.lane.b32.xlu0 %v347, 4
      %v3684 = vpop.permute.xlu0 %3683
      %3685 = vrot.lane.b32.xlu0 %v348, 4
      %v3686 = vpop.permute.xlu0 %3685
      %3687 = vrot.lane.b32.xlu0 %v349, 4
      %v3688 = vpop.permute.xlu0 %3687
      %3689 = vrot.lane.b32.xlu0 %v350, 4
      %v3690 = vpop.permute.xlu0 %3689
      %3691 = vrot.lane.b32.xlu0 %v351, 4
      %v3692 = vpop.permute.xlu0 %3691
      %3693 = vrot.lane.b32.xlu0 %v352, 4
      %v3694 = vpop.permute.xlu0 %3693
      %3695 = vrot.lane.b32.xlu0 %v353, 4
      %v3696 = vpop.permute.xlu0 %3695
      %3697 = vrot.lane.b32.xlu0 %v354, 4
      %v3698 = vpop.permute.xlu0 %3697
      %3699 = vrot.lane.b32.xlu0 %v355, 4
      %v3700 = vpop.permute.xlu0 %3699
      %3701 = vrot.lane.b32.xlu0 %v356, 4
      %v3702 = vpop.permute.xlu0 %3701
      %3703 = vrot.lane.b32.xlu0 %v357, 4
      %v3704 = vpop.permute.xlu0 %3703
      %3705 = vrot.lane.b32.xlu0 %v358, 4
      %v3706 = vpop.permute.xlu0 %3705
      %3707 = vrot.lane.b32.xlu0 %v359, 4
      %v3708 = vpop.permute.xlu0 %3707
      %3709 = vrot.lane.b32.xlu0 %v360, 4
      %v3710 = vpop.permute.xlu0 %3709
      %3711 = vrot.lane.b32.xlu0 %v361, 4
      %v3712 = vpop.permute.xlu0 %3711
      %3713 = vrot.lane.b32.xlu0 %v362, 4
      %v3714 = vpop.permute.xlu0 %3713
      %3715 = vrot.lane.b32.xlu0 %v363, 4
      %v3716 = vpop.permute.xlu0 %3715
      %3717 = vrot.lane.b32.xlu0 %v364, 4
      %v3718 = vpop.permute.xlu0 %3717
      %3719 = vrot.lane.b32.xlu0 %v365, 4
      %v3720 = vpop.permute.xlu0 %3719
      %3721 = vrot.lane.b32.xlu0 %v366, 4
      %v3722 = vpop.permute.xlu0 %3721
      %3723 = vrot.lane.b32.xlu0 %v367, 4
      %v3724 = vpop.permute.xlu0 %3723
      %3725 = vrot.lane.b32.xlu0 %v368, 4
      %v3726 = vpop.permute.xlu0 %3725
      %3727 = vrot.lane.b32.xlu0 %v369, 4
      %v3728 = vpop.permute.xlu0 %3727
      %3729 = vrot.lane.b32.xlu0 %v370, 4
      %v3730 = vpop.permute.xlu0 %3729
      %3731 = vrot.lane.b32.xlu0 %v371, 4
      %v3732 = vpop.permute.xlu0 %3731
      %3733 = vrot.lane.b32.xlu0 %v372, 4
      %v3734 = vpop.permute.xlu0 %3733
      %3735 = vrot.lane.b32.xlu0 %v373, 4
      %v3736 = vpop.permute.xlu0 %3735
      %3737 = vrot.lane.b32.xlu0 %v374, 4
      %v3738 = vpop.permute.xlu0 %3737
      %3739 = vrot.lane.b32.xlu0 %v375, 4
      %v3740 = vpop.permute.xlu0 %3739
      %3741 = vrot.lane.b32.xlu0 %v376, 4
      %v3742 = vpop.permute.xlu0 %3741
      %3743 = vrot.lane.b32.xlu0 %v377, 4
      %v3744 = vpop.permute.xlu0 %3743
      %3777 = vrot.lane.b32.xlu0 %v559, 6
      %v3778 = vpop.permute.xlu0 %3777
      %3779 = vrot.lane.b32.xlu0 %v560, 6
      %v3780 = vpop.permute.xlu0 %3779
      %3781 = vrot.lane.b32.xlu0 %v561, 6
      %v3782 = vpop.permute.xlu0 %3781
      %3783 = vrot.lane.b32.xlu0 %v562, 6
      %v3784 = vpop.permute.xlu0 %3783
      %3785 = vrot.lane.b32.xlu0 %v563, 6
      %v3786 = vpop.permute.xlu0 %3785
      %3787 = vrot.lane.b32.xlu0 %v564, 6
      %v3788 = vpop.permute.xlu0 %3787
      %3789 = vrot.lane.b32.xlu0 %v565, 6
      %v3790 = vpop.permute.xlu0 %3789
      %3791 = vrot.lane.b32.xlu0 %v566, 6
      %v3792 = vpop.permute.xlu0 %3791
      %3793 = vrot.lane.b32.xlu0 %v567, 6
      %v3794 = vpop.permute.xlu0 %3793
      %3795 = vrot.lane.b32.xlu0 %v568, 6
      %v3796 = vpop.permute.xlu0 %3795
      %3797 = vrot.lane.b32.xlu0 %v569, 6
      %v3798 = vpop.permute.xlu0 %3797
      %3799 = vrot.lane.b32.xlu0 %v570, 6
      %v3800 = vpop.permute.xlu0 %3799
      %3801 = vrot.lane.b32.xlu0 %v571, 6
      %v3802 = vpop.permute.xlu0 %3801
      %3803 = vrot.lane.b32.xlu0 %v572, 6
      %v3804 = vpop.permute.xlu0 %3803
      %3805 = vrot.lane.b32.xlu0 %v573, 6
      %v3806 = vpop.permute.xlu0 %3805
      %3807 = vrot.lane.b32.xlu0 %v574, 6
      %v3808 = vpop.permute.xlu0 %3807
      %3809 = vrot.lane.b32.xlu0 %v575, 6
      %v3810 = vpop.permute.xlu0 %3809
      %3811 = vrot.lane.b32.xlu0 %v576, 6
      %v3812 = vpop.permute.xlu0 %3811
      %3813 = vrot.lane.b32.xlu0 %v577, 6
      %v3814 = vpop.permute.xlu0 %3813
      %3815 = vrot.lane.b32.xlu0 %v578, 6
      %v3816 = vpop.permute.xlu0 %3815
      %3817 = vrot.lane.b32.xlu0 %v579, 6
      %v3818 = vpop.permute.xlu0 %3817
      %3819 = vrot.lane.b32.xlu0 %v580, 6
      %v3820 = vpop.permute.xlu0 %3819
      %3821 = vrot.lane.b32.xlu0 %v581, 6
      %v3822 = vpop.permute.xlu0 %3821
      %3823 = vrot.lane.b32.xlu0 %v582, 6
      %v3824 = vpop.permute.xlu0 %3823
      %3825 = vrot.lane.b32.xlu0 %v583, 6
      %v3826 = vpop.permute.xlu0 %3825
      %3827 = vrot.lane.b32.xlu0 %v584, 6
      %v3828 = vpop.permute.xlu0 %3827
      %3829 = vrot.lane.b32.xlu0 %v585, 6
      %v3830 = vpop.permute.xlu0 %3829
      %3831 = vrot.lane.b32.xlu0 %v586, 6
      %v3832 = vpop.permute.xlu0 %3831
      %3833 = vrot.lane.b32.xlu0 %v587, 6
      %v3834 = vpop.permute.xlu0 %3833
      %3835 = vrot.lane.b32.xlu0 %v588, 6
      %v3836 = vpop.permute.xlu0 %3835
      %3837 = vrot.lane.b32.xlu0 %v589, 6
      %v3838 = vpop.permute.xlu0 %3837
      %3839 = vrot.lane.b32.xlu0 %v590, 6
      %v3840 = vpop.permute.xlu0 %3839
      %3873 = vrot.lane.b32.xlu0 %v456, 8
      %v3874 = vpop.permute.xlu0 %3873
      %3875 = vrot.lane.b32.xlu0 %v457, 8
      %v3876 = vpop.permute.xlu0 %3875
      %3877 = vrot.lane.b32.xlu0 %v458, 8
      %v3878 = vpop.permute.xlu0 %3877
      %3879 = vrot.lane.b32.xlu0 %v459, 8
      %v3880 = vpop.permute.xlu0 %3879
      %3881 = vrot.lane.b32.xlu0 %v460, 8
      %v3882 = vpop.permute.xlu0 %3881
      %3883 = vrot.lane.b32.xlu0 %v461, 8
      %v3884 = vpop.permute.xlu0 %3883
      %3885 = vrot.lane.b32.xlu0 %v462, 8
      %v3886 = vpop.permute.xlu0 %3885
      %3887 = vrot.lane.b32.xlu0 %v463, 8
      %v3888 = vpop.permute.xlu0 %3887
      %3889 = vrot.lane.b32.xlu0 %v464, 8
      %v3890 = vpop.permute.xlu0 %3889
      %3891 = vrot.lane.b32.xlu0 %v465, 8
      %v3892 = vpop.permute.xlu0 %3891
      %3893 = vrot.lane.b32.xlu0 %v466, 8
      %v3894 = vpop.permute.xlu0 %3893
      %3895 = vrot.lane.b32.xlu0 %v467, 8
      %v3896 = vpop.permute.xlu0 %3895
      %3897 = vrot.lane.b32.xlu0 %v468, 8
      %v3898 = vpop.permute.xlu0 %3897
      %3899 = vrot.lane.b32.xlu0 %v469, 8
      %v3900 = vpop.permute.xlu0 %3899
      %3901 = vrot.lane.b32.xlu0 %v470, 8
      %v3902 = vpop.permute.xlu0 %3901
      %3903 = vrot.lane.b32.xlu0 %v471, 8
      %v3904 = vpop.permute.xlu0 %3903
      %3905 = vrot.lane.b32.xlu0 %v472, 8
      %v3906 = vpop.permute.xlu0 %3905
      %3907 = vrot.lane.b32.xlu0 %v473, 8
      %v3908 = vpop.permute.xlu0 %3907
      %3909 = vrot.lane.b32.xlu0 %v474, 8
      %v3910 = vpop.permute.xlu0 %3909
      %3911 = vrot.lane.b32.xlu0 %v475, 8
      %v3912 = vpop.permute.xlu0 %3911
      %3913 = vrot.lane.b32.xlu0 %v476, 8
      %v3914 = vpop.permute.xlu0 %3913
      %3915 = vrot.lane.b32.xlu0 %v477, 8
      %v3916 = vpop.permute.xlu0 %3915
      %3917 = vrot.lane.b32.xlu0 %v478, 8
      %v3918 = vpop.permute.xlu0 %3917
      %3919 = vrot.lane.b32.xlu0 %v479, 8
      %v3920 = vpop.permute.xlu0 %3919
      %3921 = vrot.lane.b32.xlu0 %v480, 8
      %v3922 = vpop.permute.xlu0 %3921
      %3923 = vrot.lane.b32.xlu0 %v481, 8
      %v3924 = vpop.permute.xlu0 %3923
      %3925 = vrot.lane.b32.xlu0 %v482, 8
      %v3926 = vpop.permute.xlu0 %3925
      %3927 = vrot.lane.b32.xlu0 %v483, 8
      %v3928 = vpop.permute.xlu0 %3927
      %3929 = vrot.lane.b32.xlu0 %v484, 8
      %v3930 = vpop.permute.xlu0 %3929
      %3931 = vrot.lane.b32.xlu0 %v485, 8
      %v3932 = vpop.permute.xlu0 %3931
      %3933 = vrot.lane.b32.xlu0 %v452, 8
      %v3934 = vpop.permute.xlu0 %3933
      %3935 = vrot.lane.b32.xlu0 %v453, 8
      %v3936 = vpop.permute.xlu0 %3935
      %3969 = vrot.lane.b32.xlu0 %v348, 10
      %v3970 = vpop.permute.xlu0 %3969
      %3971 = vrot.lane.b32.xlu0 %v349, 10
      %v3972 = vpop.permute.xlu0 %3971
      %3973 = vrot.lane.b32.xlu0 %v350, 10
      %v3974 = vpop.permute.xlu0 %3973
      %3975 = vrot.lane.b32.xlu0 %v351, 10
      %v3976 = vpop.permute.xlu0 %3975
      %3977 = vrot.lane.b32.xlu0 %v352, 10
      %v3978 = vpop.permute.xlu0 %3977
      %3979 = vrot.lane.b32.xlu0 %v353, 10
      %v3980 = vpop.permute.xlu0 %3979
      %3981 = vrot.lane.b32.xlu0 %v354, 10
      %v3982 = vpop.permute.xlu0 %3981
      %3983 = vrot.lane.b32.xlu0 %v355, 10
      %v3984 = vpop.permute.xlu0 %3983
      %3985 = vrot.lane.b32.xlu0 %v356, 10
      %v3986 = vpop.permute.xlu0 %3985
      %3987 = vrot.lane.b32.xlu0 %v357, 10
      %v3988 = vpop.permute.xlu0 %3987
      %3989 = vrot.lane.b32.xlu0 %v358, 10
      %v3990 = vpop.permute.xlu0 %3989
      %3991 = vrot.lane.b32.xlu0 %v359, 10
      %v3992 = vpop.permute.xlu0 %3991
      %3993 = vrot.lane.b32.xlu0 %v360, 10
      %v3994 = vpop.permute.xlu0 %3993
      %3995 = vrot.lane.b32.xlu0 %v361, 10
      %v3996 = vpop.permute.xlu0 %3995
      %3997 = vrot.lane.b32.xlu0 %v362, 10
      %v3998 = vpop.permute.xlu0 %3997
      %3999 = vrot.lane.b32.xlu0 %v363, 10
      %v4000 = vpop.permute.xlu0 %3999
      %4001 = vrot.lane.b32.xlu0 %v364, 10
      %v4002 = vpop.permute.xlu0 %4001
      %4003 = vrot.lane.b32.xlu0 %v365, 10
      %v4004 = vpop.permute.xlu0 %4003
      %4005 = vrot.lane.b32.xlu0 %v366, 10
      %v4006 = vpop.permute.xlu0 %4005
      %4007 = vrot.lane.b32.xlu0 %v367, 10
      %v4008 = vpop.permute.xlu0 %4007
      %4009 = vrot.lane.b32.xlu0 %v368, 10
      %v4010 = vpop.permute.xlu0 %4009
      %4011 = vrot.lane.b32.xlu0 %v369, 10
      %v4012 = vpop.permute.xlu0 %4011
      %4013 = vrot.lane.b32.xlu0 %v370, 10
      %v4014 = vpop.permute.xlu0 %4013
      %4015 = vrot.lane.b32.xlu0 %v371, 10
      %v4016 = vpop.permute.xlu0 %4015
      %4017 = vrot.lane.b32.xlu0 %v372, 10
      %v4018 = vpop.permute.xlu0 %4017
      %4019 = vrot.lane.b32.xlu0 %v373, 10
      %v4020 = vpop.permute.xlu0 %4019
      %4021 = vrot.lane.b32.xlu0 %v374, 10
      %v4022 = vpop.permute.xlu0 %4021
      %4023 = vrot.lane.b32.xlu0 %v375, 10
      %v4024 = vpop.permute.xlu0 %4023
      %4025 = vrot.lane.b32.xlu0 %v376, 10
      %v4026 = vpop.permute.xlu0 %4025
      %4027 = vrot.lane.b32.xlu0 %v377, 10
      %v4028 = vpop.permute.xlu0 %4027
      %4029 = vrot.lane.b32.xlu0 0.0, 10
      %v4030 = vpop.permute.xlu0 %4029
      %4062 = vrot.lane.b32.xlu0 %v561, 12
      %v4063 = vpop.permute.xlu0 %4062
      %4064 = vrot.lane.b32.xlu0 %v562, 12
      %v4065 = vpop.permute.xlu0 %4064
      %4066 = vrot.lane.b32.xlu0 %v563, 12
      %v4067 = vpop.permute.xlu0 %4066
      %4068 = vrot.lane.b32.xlu0 %v564, 12
      %v4069 = vpop.permute.xlu0 %4068
      %4070 = vrot.lane.b32.xlu0 %v565, 12
      %v4071 = vpop.permute.xlu0 %4070
      %4072 = vrot.lane.b32.xlu0 %v566, 12
      %v4073 = vpop.permute.xlu0 %4072
      %4074 = vrot.lane.b32.xlu0 %v567, 12
      %v4075 = vpop.permute.xlu0 %4074
      %4076 = vrot.lane.b32.xlu0 %v568, 12
      %v4077 = vpop.permute.xlu0 %4076
      %4078 = vrot.lane.b32.xlu0 %v569, 12
      %v4079 = vpop.permute.xlu0 %4078
      %4080 = vrot.lane.b32.xlu0 %v570, 12
      %v4081 = vpop.permute.xlu0 %4080
      %4082 = vrot.lane.b32.xlu0 %v571, 12
      %v4083 = vpop.permute.xlu0 %4082
      %4084 = vrot.lane.b32.xlu0 %v572, 12
      %v4085 = vpop.permute.xlu0 %4084
      %4086 = vrot.lane.b32.xlu0 %v573, 12
      %v4087 = vpop.permute.xlu0 %4086
      %4088 = vrot.lane.b32.xlu0 %v574, 12
      %v4089 = vpop.permute.xlu0 %4088
      %4090 = vrot.lane.b32.xlu0 %v575, 12
      %v4091 = vpop.permute.xlu0 %4090
      %4092 = vrot.lane.b32.xlu0 %v576, 12
      %v4093 = vpop.permute.xlu0 %4092
      %4094 = vrot.lane.b32.xlu0 %v577, 12
      %v4095 = vpop.permute.xlu0 %4094
      %4096 = vrot.lane.b32.xlu0 %v578, 12
      %v4097 = vpop.permute.xlu0 %4096
      %4098 = vrot.lane.b32.xlu0 %v579, 12
      %v4099 = vpop.permute.xlu0 %4098
      %4100 = vrot.lane.b32.xlu0 %v580, 12
      %v4101 = vpop.permute.xlu0 %4100
      %4102 = vrot.lane.b32.xlu0 %v581, 12
      %v4103 = vpop.permute.xlu0 %4102
      %4104 = vrot.lane.b32.xlu0 %v582, 12
      %v4105 = vpop.permute.xlu0 %4104
      %4106 = vrot.lane.b32.xlu0 %v583, 12
      %v4107 = vpop.permute.xlu0 %4106
      %4108 = vrot.lane.b32.xlu0 %v584, 12
      %v4109 = vpop.permute.xlu0 %4108
      %4110 = vrot.lane.b32.xlu0 %v585, 12
      %v4111 = vpop.permute.xlu0 %4110
      %4112 = vrot.lane.b32.xlu0 %v586, 12
      %v4113 = vpop.permute.xlu0 %4112
      %4114 = vrot.lane.b32.xlu0 %v587, 12
      %v4115 = vpop.permute.xlu0 %4114
      %4116 = vrot.lane.b32.xlu0 %v588, 12
      %v4117 = vpop.permute.xlu0 %4116
      %4118 = vrot.lane.b32.xlu0 %v589, 12
      %v4119 = vpop.permute.xlu0 %4118
      %4120 = vrot.lane.b32.xlu0 %v590, 12
      %v4121 = vpop.permute.xlu0 %4120
      %4122 = vrot.lane.b32.xlu0 %v557, 12
      %v4123 = vpop.permute.xlu0 %4122
      %4124 = vrot.lane.b32.xlu0 %v558, 12
      %v4125 = vpop.permute.xlu0 %4124
      %v4158 = vsel %vm1454, %v3397, %v3493
      %v4159 = vsel %vm1454, %v3399, %v3493
      %v4160 = vsel %vm1454, %v3401, %v3495
      %v4161 = vsel %vm1454, %v3403, %v3497
      %v4162 = vsel %vm1454, %v3405, %v3499
      %v4163 = vsel %vm1454, %v3407, %v3501
      %v4164 = vsel %vm1454, %v3409, %v3503
      %v4165 = vsel %vm1454, %v3411, %v3505
      %v4166 = vsel %vm1454, %v3413, %v3507
      %v4167 = vsel %vm1454, %v3415, %v3509
      %v4168 = vsel %vm1454, %v3417, %v3511
      %v4169 = vsel %vm1454, %v3419, %v3513
      %v4170 = vsel %vm1454, %v3421, %v3515
      %v4171 = vsel %vm1454, %v3423, %v3517
      %v4172 = vsel %vm1454, %v3425, %v3519
      %v4173 = vsel %vm1454, %v3427, %v3521
      %v4174 = vsel %vm1454, %v3429, %v3523
      %v4175 = vsel %vm1454, %v3431, %v3525
      %v4176 = vsel %vm1454, %v3433, %v3527
      %v4177 = vsel %vm1454, %v3435, %v3529
      %v4178 = vsel %vm1454, %v3437, %v3531
      %v4179 = vsel %vm1454, %v3439, %v3533
      %v4180 = vsel %vm1454, %v3441, %v3535
      %v4181 = vsel %vm1454, %v3443, %v3537
      %v4182 = vsel %vm1454, %v3445, %v3539
      %v4183 = vsel %vm1454, %v3447, %v3541
      %v4184 = vsel %vm1454, %v3449, %v3543
      %v4185 = vsel %vm1454, %v3451, %v3545
      %v4186 = vsel %vm1454, %v3453, %v3547
      %v4187 = vsel %vm1454, %v3455, %v3549
      %v4188 = vsel %vm1454, %v3457, %v3551
      %v4189 = vsel %vm1454, %v3459, %v3553
      %v4190 = vsel %vm1487, %v4158, %v557
      %v4191 = vsel %vm1487, %v4159, %v558
      %v4192 = vsel %vm1487, %v4160, %v559
      %v4193 = vsel %vm1487, %v4161, %v560
      %v4194 = vsel %vm1487, %v4162, %v561
      %v4195 = vsel %vm1487, %v4163, %v562
      %v4196 = vsel %vm1487, %v4164, %v563
      %v4197 = vsel %vm1487, %v4165, %v564
      %v4198 = vsel %vm1487, %v4166, %v565
      %v4199 = vsel %vm1487, %v4167, %v566
      %v4200 = vsel %vm1487, %v4168, %v567
      %v4201 = vsel %vm1487, %v4169, %v568
      %v4202 = vsel %vm1487, %v4170, %v569
      %v4203 = vsel %vm1487, %v4171, %v570
      %v4204 = vsel %vm1487, %v4172, %v571
      %v4205 = vsel %vm1487, %v4173, %v572
      %v4206 = vsel %vm1487, %v4174, %v573
      %v4207 = vsel %vm1487, %v4175, %v574
      %v4208 = vsel %vm1487, %v4176, %v575
      %v4209 = vsel %vm1487, %v4177, %v576
      %v4210 = vsel %vm1487, %v4178, %v577
      %v4211 = vsel %vm1487, %v4179, %v578
      %v4212 = vsel %vm1487, %v4180, %v579
      %v4213 = vsel %vm1487, %v4181, %v580
      %v4214 = vsel %vm1487, %v4182, %v581
      %v4215 = vsel %vm1487, %v4183, %v582
      %v4216 = vsel %vm1487, %v4184, %v583
      %v4217 = vsel %vm1487, %v4185, %v584
      %v4218 = vsel %vm1487, %v4186, %v585
      %v4219 = vsel %vm1487, %v4187, %v586
      %v4220 = vsel %vm1487, %v4188, %v587
      %v4221 = vsel %vm1487, %v4189, %v588
      %v4222 = vsel %vm1520, %v4190, %v3586
      %v4223 = vsel %vm1520, %v4191, %v3588
      %v4224 = vsel %vm1520, %v4192, %v3590
      %v4225 = vsel %vm1520, %v4193, %v3592
      %v4226 = vsel %vm1520, %v4194, %v3594
      %v4227 = vsel %vm1520, %v4195, %v3596
      %v4228 = vsel %vm1520, %v4196, %v3598
      %v4229 = vsel %vm1520, %v4197, %v3600
      %v4230 = vsel %vm1520, %v4198, %v3602
      %v4231 = vsel %vm1520, %v4199, %v3604
      %v4232 = vsel %vm1520, %v4200, %v3606
      %v4233 = vsel %vm1520, %v4201, %v3608
      %v4234 = vsel %vm1520, %v4202, %v3610
      %v4235 = vsel %vm1520, %v4203, %v3612
      %v4236 = vsel %vm1520, %v4204, %v3614
      %v4237 = vsel %vm1520, %v4205, %v3616
      %v4238 = vsel %vm1520, %v4206, %v3618
      %v4239 = vsel %vm1520, %v4207, %v3620
      %v4240 = vsel %vm1520, %v4208, %v3622
      %v4241 = vsel %vm1520, %v4209, %v3624
      %v4242 = vsel %vm1520, %v4210, %v3626
      %v4243 = vsel %vm1520, %v4211, %v3628
      %v4244 = vsel %vm1520, %v4212, %v3630
      %v4245 = vsel %vm1520, %v4213, %v3632
      %v4246 = vsel %vm1520, %v4214, %v3634
      %v4247 = vsel %vm1520, %v4215, %v3636
      %v4248 = vsel %vm1520, %v4216, %v3638
      %v4249 = vsel %vm1520, %v4217, %v3640
      %v4250 = vsel %vm1520, %v4218, %v3642
      %v4251 = vsel %vm1520, %v4219, %v3644
      %v4252 = vsel %vm1520, %v4220, %v3646
      %v4253 = vsel %vm1520, %v4221, %v3648
      %v4254 = vsel %vm1553, %v4222, %v3682
      %v4255 = vsel %vm1553, %v4223, %v3684
      %v4256 = vsel %vm1553, %v4224, %v3686
      %v4257 = vsel %vm1553, %v4225, %v3688
      %v4258 = vsel %vm1553, %v4226, %v3690
      %v4259 = vsel %vm1553, %v4227, %v3692
      %v4260 = vsel %vm1553, %v4228, %v3694
      %v4261 = vsel %vm1553, %v4229, %v3696
      %v4262 = vsel %vm1553, %v4230, %v3698
      %v4263 = vsel %vm1553, %v4231, %v3700
      %v4264 = vsel %vm1553, %v4232, %v3702
      %v4265 = vsel %vm1553, %v4233, %v3704
      %v4266 = vsel %vm1553, %v4234, %v3706
      %v4267 = vsel %vm1553, %v4235, %v3708
      %v4268 = vsel %vm1553, %v4236, %v3710
      %v4269 = vsel %vm1553, %v4237, %v3712
      %v4270 = vsel %vm1553, %v4238, %v3714
      %v4271 = vsel %vm1553, %v4239, %v3716
      %v4272 = vsel %vm1553, %v4240, %v3718
      %v4273 = vsel %vm1553, %v4241, %v3720
      %v4274 = vsel %vm1553, %v4242, %v3722
      %v4275 = vsel %vm1553, %v4243, %v3724
      %v4276 = vsel %vm1553, %v4244, %v3726
      %v4277 = vsel %vm1553, %v4245, %v3728
      %v4278 = vsel %vm1553, %v4246, %v3730
      %v4279 = vsel %vm1553, %v4247, %v3732
      %v4280 = vsel %vm1553, %v4248, %v3734
      %v4281 = vsel %vm1553, %v4249, %v3736
      %v4282 = vsel %vm1553, %v4250, %v3738
      %v4283 = vsel %vm1553, %v4251, %v3740
      %v4284 = vsel %vm1553, %v4252, %v3742
      %v4285 = vsel %vm1553, %v4253, %v3744
      %v4286 = vsel %vm1586, %v4254, %v3778
      %v4287 = vsel %vm1586, %v4255, %v3780
      %v4288 = vsel %vm1586, %v4256, %v3782
      %v4289 = vsel %vm1586, %v4257, %v3784
      %v4290 = vsel %vm1586, %v4258, %v3786
      %v4291 = vsel %vm1586, %v4259, %v3788
      %v4292 = vsel %vm1586, %v4260, %v3790
      %v4293 = vsel %vm1586, %v4261, %v3792
      %v4294 = vsel %vm1586, %v4262, %v3794
      %v4295 = vsel %vm1586, %v4263, %v3796
      %v4296 = vsel %vm1586, %v4264, %v3798
      %v4297 = vsel %vm1586, %v4265, %v3800
      %v4298 = vsel %vm1586, %v4266, %v3802
      %v4299 = vsel %vm1586, %v4267, %v3804
      %v4300 = vsel %vm1586, %v4268, %v3806
      %v4301 = vsel %vm1586, %v4269, %v3808
      %v4302 = vsel %vm1586, %v4270, %v3810
      %v4303 = vsel %vm1586, %v4271, %v3812
      %v4304 = vsel %vm1586, %v4272, %v3814
      %v4305 = vsel %vm1586, %v4273, %v3816
      %v4306 = vsel %vm1586, %v4274, %v3818
      %v4307 = vsel %vm1586, %v4275, %v3820
      %v4308 = vsel %vm1586, %v4276, %v3822
      %v4309 = vsel %vm1586, %v4277, %v3824
      %v4310 = vsel %vm1586, %v4278, %v3826
      %v4311 = vsel %vm1586, %v4279, %v3828
      %v4312 = vsel %vm1586, %v4280, %v3830
      %v4313 = vsel %vm1586, %v4281, %v3832
      %v4314 = vsel %vm1586, %v4282, %v3834
      %v4315 = vsel %vm1586, %v4283, %v3836
      %v4316 = vsel %vm1586, %v4284, %v3838
      %v4317 = vsel %vm1586, %v4285, %v3840
      %v4318 = vsel %vm1619, %v4286, %v3874
      %v4319 = vsel %vm1619, %v4287, %v3876
      %v4320 = vsel %vm1619, %v4288, %v3878
      %v4321 = vsel %vm1619, %v4289, %v3880
      %v4322 = vsel %vm1619, %v4290, %v3882
      %v4323 = vsel %vm1619, %v4291, %v3884
      %v4324 = vsel %vm1619, %v4292, %v3886
      %v4325 = vsel %vm1619, %v4293, %v3888
      %v4326 = vsel %vm1619, %v4294, %v3890
      %v4327 = vsel %vm1619, %v4295, %v3892
      %v4328 = vsel %vm1619, %v4296, %v3894
      %v4329 = vsel %vm1619, %v4297, %v3896
      %v4330 = vsel %vm1619, %v4298, %v3898
      %v4331 = vsel %vm1619, %v4299, %v3900
      %v4332 = vsel %vm1619, %v4300, %v3902
      %v4333 = vsel %vm1619, %v4301, %v3904
      %v4334 = vsel %vm1619, %v4302, %v3906
      %v4335 = vsel %vm1619, %v4303, %v3908
      %v4336 = vsel %vm1619, %v4304, %v3910
      %v4337 = vsel %vm1619, %v4305, %v3912
      %v4338 = vsel %vm1619, %v4306, %v3914
      %v4339 = vsel %vm1619, %v4307, %v3916
      %v4340 = vsel %vm1619, %v4308, %v3918
      %v4341 = vsel %vm1619, %v4309, %v3920
      %v4342 = vsel %vm1619, %v4310, %v3922
      %v4343 = vsel %vm1619, %v4311, %v3924
      %v4344 = vsel %vm1619, %v4312, %v3926
      %v4345 = vsel %vm1619, %v4313, %v3928
      %v4346 = vsel %vm1619, %v4314, %v3930
      %v4347 = vsel %vm1619, %v4315, %v3932
      %v4348 = vsel %vm1619, %v4316, %v3934
      %v4349 = vsel %vm1619, %v4317, %v3936
      %v4350 = vsel %vm1652, %v4318, %v3970
      %v4351 = vsel %vm1652, %v4319, %v3972
      %v4352 = vsel %vm1652, %v4320, %v3974
      %v4353 = vsel %vm1652, %v4321, %v3976
      %v4354 = vsel %vm1652, %v4322, %v3978
      %v4355 = vsel %vm1652, %v4323, %v3980
      %v4356 = vsel %vm1652, %v4324, %v3982
      %v4357 = vsel %vm1652, %v4325, %v3984
      %v4358 = vsel %vm1652, %v4326, %v3986
      %v4359 = vsel %vm1652, %v4327, %v3988
      %v4360 = vsel %vm1652, %v4328, %v3990
      %v4361 = vsel %vm1652, %v4329, %v3992
      %v4362 = vsel %vm1652, %v4330, %v3994
      %v4363 = vsel %vm1652, %v4331, %v3996
      %v4364 = vsel %vm1652, %v4332, %v3998
      %v4365 = vsel %vm1652, %v4333, %v4000
      %v4366 = vsel %vm1652, %v4334, %v4002
      %v4367 = vsel %vm1652, %v4335, %v4004
      %v4368 = vsel %vm1652, %v4336, %v4006
      %v4369 = vsel %vm1652, %v4337, %v4008
      %v4370 = vsel %vm1652, %v4338, %v4010
      %v4371 = vsel %vm1652, %v4339, %v4012
      %v4372 = vsel %vm1652, %v4340, %v4014
      %v4373 = vsel %vm1652, %v4341, %v4016
      %v4374 = vsel %vm1652, %v4342, %v4018
      %v4375 = vsel %vm1652, %v4343, %v4020
      %v4376 = vsel %vm1652, %v4344, %v4022
      %v4377 = vsel %vm1652, %v4345, %v4024
      %v4378 = vsel %vm1652, %v4346, %v4026
      %v4379 = vsel %vm1652, %v4347, %v4028
      %v4380 = vsel %vm1652, %v4348, %v4030
      %v4381 = vsel %vm1652, %v4349, %v4030
      %v4382 = vsel %vm1685, %v4350, %v4063
      %v4383 = vsel %vm1685, %v4351, %v4065
      %v4384 = vsel %vm1685, %v4352, %v4067
      %v4385 = vsel %vm1685, %v4353, %v4069
      %v4386 = vsel %vm1685, %v4354, %v4071
      %v4387 = vsel %vm1685, %v4355, %v4073
      %v4388 = vsel %vm1685, %v4356, %v4075
      %v4389 = vsel %vm1685, %v4357, %v4077
      %v4390 = vsel %vm1685, %v4358, %v4079
      %v4391 = vsel %vm1685, %v4359, %v4081
      %v4392 = vsel %vm1685, %v4360, %v4083
      %v4393 = vsel %vm1685, %v4361, %v4085
      %v4394 = vsel %vm1685, %v4362, %v4087
      %v4395 = vsel %vm1685, %v4363, %v4089
      %v4396 = vsel %vm1685, %v4364, %v4091
      %v4397 = vsel %vm1685, %v4365, %v4093
      %v4398 = vsel %vm1685, %v4366, %v4095
      %v4399 = vsel %vm1685, %v4367, %v4097
      %v4400 = vsel %vm1685, %v4368, %v4099
      %v4401 = vsel %vm1685, %v4369, %v4101
      %v4402 = vsel %vm1685, %v4370, %v4103
      %v4403 = vsel %vm1685, %v4371, %v4105
      %v4404 = vsel %vm1685, %v4372, %v4107
      %v4405 = vsel %vm1685, %v4373, %v4109
      %v4406 = vsel %vm1685, %v4374, %v4111
      %v4407 = vsel %vm1685, %v4375, %v4113
      %v4408 = vsel %vm1685, %v4376, %v4115
      %v4409 = vsel %vm1685, %v4377, %v4117
      %v4410 = vsel %vm1685, %v4378, %v4119
      %v4411 = vsel %vm1685, %v4379, %v4121
      %v4412 = vsel %vm1685, %v4380, %v4123
      %v4413 = vsel %vm1685, %v4381, %v4125
      %s4414 = scalar_lea.vmem %s3, 48
      %v4415 = vld [vmem:[%s4414] sm:$0xff]
      %v4416 = vld [vmem:[%s4414 + $0x8] sm:$0xff]
      %v4417 = vld [vmem:[%s4414 + $0x10] sm:$0x3]
      %v4419 = vsel %vm1721, %v4382, 0
      %v4422 = vsel %vm1721, %v4383, 0
      %v4425 = vsel %vm1721, %v4384, 0
      %v4428 = vsel %vm1721, %v4385, 0
      %v4431 = vsel %vm1721, %v4386, 0
      %v4434 = vsel %vm1721, %v4387, 0
      %v4437 = vsel %vm1721, %v4388, 0
      %v4440 = vsel %vm1721, %v4389, 0
      %v4443 = vsel %vm1721, %v4390, 0
      %v4446 = vsel %vm1721, %v4391, 0
      %v4449 = vsel %vm1721, %v4392, 0
      %v4452 = vsel %vm1721, %v4393, 0
      %v4455 = vsel %vm1721, %v4394, 0
      %v4458 = vsel %vm1721, %v4395, 0
      %v4461 = vsel %vm1721, %v4396, 0
      %v4464 = vsel %vm1721, %v4397, 0
      %v4467 = vsel %vm1721, %v4398, 0
      %v4470 = vsel %vm1721, %v4399, 0
      %v4473 = vsel %vm1721, %v4400, 0
      %v4476 = vsel %vm1721, %v4401, 0
      %v4479 = vsel %vm1721, %v4402, 0
      %v4482 = vsel %vm1721, %v4403, 0
      %v4485 = vsel %vm1721, %v4404, 0
      %v4488 = vsel %vm1721, %v4405, 0
      %v4491 = vsel %vm1721, %v4406, 0
      %v4494 = vsel %vm1721, %v4407, 0
      %v4497 = vsel %vm1721, %v4408, 0
      %v4500 = vsel %vm1721, %v4409, 0
      %v4503 = vsel %vm1721, %v4410, 0
      %v4506 = vsel %vm1721, %v4411, 0
      %v4509 = vsel %vm1721, %v4412, 0
      %v4512 = vsel %vm1721, %v4413, 0
      %v4515 = vsel %vm1818, %v4417, 0
      %4517 = vmatprep.subr.mxu0 0.0
      %4518 = vmatpush1.msra.mxu0 0.0
      %4519 = vmatprep.subr.mxu0 0.0
      %4520 = vmatpush1.msra.mxu0 0.0
      %4521 = vmatprep.subr.mxu0 0.0
      %4522 = vmatpush1.msra.mxu0 0.0
      %4523 = vmatprep.subr.mxu0 0.0
      %4524 = vmatpush1.msra.mxu0 0.0
      %4525 = vmatprep.subr.mxu0 0.0
      %4526 = vmatpush1.msra.mxu0 0.0
      %4527 = vmatprep.subr.mxu0 0.0
      %4528 = vmatpush1.msra.mxu0 0.0
      %4529 = vmatprep.subr.mxu0 0.0
      %4530 = vmatpush1.msra.mxu0 0.0
      %4531 = vmatprep.subr.mxu0 0.0
      %4532 = vmatpush1.msra.mxu0 0.0
      %4533 = vmatprep.subr.mxu0 0.0
      %4534 = vmatpush1.msra.mxu0 0.0
      %4535 = vmatprep.subr.mxu0 0.0
      %4536 = vmatpush1.msra.mxu0 0.0
      %4537 = vmatprep.subr.mxu0 0.0
      %4538 = vmatpush1.msra.mxu0 0.0
      %4539 = vmatprep.subr.mxu0 0.0
      %4540 = vmatpush1.msra.mxu0 0.0
      %4541 = vmatprep.subr.mxu0 0.0
      %4542 = vmatpush1.msra.mxu0 0.0
      %4543 = vmatprep.subr.mxu0 0.0
      %4544 = vmatpush1.msra.mxu0 %v4515
      %4545 = vmatprep.subr.mxu0 0.0
      %4546 = vmatpush1.msra.mxu0 %v4416
      %4547 = vmatprep.subr.mxu0 0.0
      %4548 = vmatpush1.msra.mxu0 %v4415
      %4549 = vmatprep.subr.mxu0 0.0
      %4550 = vmatpush2.msra.mxu0 0.0
      %4551 = vmatprep.subr.mxu0 0.0
      %4552 = vmatpush2.msra.mxu0 0.0
      %4553 = vmatprep.subr.mxu0 0.0
      %4554 = vmatpush2.msra.mxu0 0.0
      %4555 = vmatprep.subr.mxu0 0.0
      %4556 = vmatpush2.msra.mxu0 0.0
      %4557 = vmatprep.subr.mxu0 0.0
      %4558 = vmatpush2.msra.mxu0 0.0
      %4559 = vmatprep.subr.mxu0 0.0
      %4560 = vmatpush2.msra.mxu0 0.0
      %4561 = vmatprep.subr.mxu0 0.0
      %4562 = vmatpush2.msra.mxu0 0.0
      %4563 = vmatprep.subr.mxu0 0.0
      %4564 = vmatpush2.msra.mxu0 0.0
      %4565 = vmatprep.subr.mxu0 0.0
      %4566 = vmatpush2.msra.mxu0 0.0
      %4567 = vmatprep.subr.mxu0 0.0
      %4568 = vmatpush2.msra.mxu0 0.0
      %4569 = vmatprep.subr.mxu0 0.0
      %4570 = vmatpush2.msra.mxu0 0.0
      %4571 = vmatprep.subr.mxu0 0.0
      %4572 = vmatpush2.msra.mxu0 0.0
      %4573 = vmatprep.subr.mxu0 0.0
      %4574 = vmatpush2.msra.mxu0 0.0
      %4575 = vmatprep.subr.mxu0 0.0
      %4576 = vmatpush2.msra.mxu0 0.0
      %4577 = vmatprep.subr.mxu0 0.0
      %4578 = vmatpush2.msra.mxu0 0.0
      %4579 = vmatprep.subr.mxu0 0.0
      %4580 = vmatpush2.msra.mxu0 0.0
      %4581 = vmatprep.mubr.f32.mxu0 0.0
      %4582 = vmatmul.mubr.f32.gmra.mxu0 %v4419
      %v4583 = vpop.f32.mrf.mxu0
      %v4584 = vadd.f32 0.0, %v4583
      %v4585 = vpop.f32.mrf.mxu0
      %4586 = vmatprep.mubr.f32.mxu0 0.0
      %4587 = vmatmul.mubr.f32.gmra.mxu0 %v4422
      %v4588 = vpop.f32.mrf.mxu0
      %v4589 = vadd.f32 0.0, %v4588
      %v4590 = vpop.f32.mrf.mxu0
      %4591 = vmatprep.mubr.f32.mxu0 0.0
      %4592 = vmatmul.mubr.f32.gmra.mxu0 %v4425
      %v4593 = vpop.f32.mrf.mxu0
      %v4594 = vadd.f32 0.0, %v4593
      %v4595 = vpop.f32.mrf.mxu0
      %4596 = vmatprep.mubr.f32.mxu0 0.0
      %4597 = vmatmul.mubr.f32.gmra.mxu0 %v4428
      %v4598 = vpop.f32.mrf.mxu0
      %v4599 = vadd.f32 0.0, %v4598
      %v4600 = vpop.f32.mrf.mxu0
      %4601 = vmatprep.mubr.f32.mxu0 0.0
      %4602 = vmatmul.mubr.f32.gmra.mxu0 %v4431
      %v4603 = vpop.f32.mrf.mxu0
      %v4604 = vadd.f32 0.0, %v4603
      %v4605 = vpop.f32.mrf.mxu0
      %4606 = vmatprep.mubr.f32.mxu0 0.0
      %4607 = vmatmul.mubr.f32.gmra.mxu0 %v4434
      %v4608 = vpop.f32.mrf.mxu0
      %v4609 = vadd.f32 0.0, %v4608
      %v4610 = vpop.f32.mrf.mxu0
      %4611 = vmatprep.mubr.f32.mxu0 0.0
      %4612 = vmatmul.mubr.f32.gmra.mxu0 %v4437
      %v4613 = vpop.f32.mrf.mxu0
      %v4614 = vadd.f32 0.0, %v4613
      %v4615 = vpop.f32.mrf.mxu0
      %4616 = vmatprep.mubr.f32.mxu0 0.0
      %4617 = vmatmul.mubr.f32.gmra.mxu0 %v4440
      %v4618 = vpop.f32.mrf.mxu0
      %v4619 = vadd.f32 0.0, %v4618
      %v4620 = vpop.f32.mrf.mxu0
      %4621 = vmatprep.mubr.f32.mxu0 0.0
      %4622 = vmatmul.mubr.f32.gmra.mxu0 %v4443
      %v4623 = vpop.f32.mrf.mxu0
      %v4624 = vadd.f32 0.0, %v4623
      %v4625 = vpop.f32.mrf.mxu0
      %4626 = vmatprep.mubr.f32.mxu0 0.0
      %4627 = vmatmul.mubr.f32.gmra.mxu0 %v4446
      %v4628 = vpop.f32.mrf.mxu0
      %v4629 = vadd.f32 0.0, %v4628
      %v4630 = vpop.f32.mrf.mxu0
      %4631 = vmatprep.mubr.f32.mxu0 0.0
      %4632 = vmatmul.mubr.f32.gmra.mxu0 %v4449
      %v4633 = vpop.f32.mrf.mxu0
      %v4634 = vadd.f32 0.0, %v4633
      %v4635 = vpop.f32.mrf.mxu0
      %4636 = vmatprep.mubr.f32.mxu0 0.0
      %4637 = vmatmul.mubr.f32.gmra.mxu0 %v4452
      %v4638 = vpop.f32.mrf.mxu0
      %v4639 = vadd.f32 0.0, %v4638
      %v4640 = vpop.f32.mrf.mxu0
      %4641 = vmatprep.mubr.f32.mxu0 0.0
      %4642 = vmatmul.mubr.f32.gmra.mxu0 %v4455
      %v4643 = vpop.f32.mrf.mxu0
      %v4644 = vadd.f32 0.0, %v4643
      %v4645 = vpop.f32.mrf.mxu0
      %4646 = vmatprep.mubr.f32.mxu0 0.0
      %4647 = vmatmul.mubr.f32.gmra.mxu0 %v4458
      %v4648 = vpop.f32.mrf.mxu0
      %v4649 = vadd.f32 0.0, %v4648
      %v4650 = vpop.f32.mrf.mxu0
      %4651 = vmatprep.mubr.f32.mxu0 0.0
      %4652 = vmatmul.mubr.f32.gmra.mxu0 %v4461
      %v4653 = vpop.f32.mrf.mxu0
      %v4654 = vadd.f32 0.0, %v4653
      %v4655 = vpop.f32.mrf.mxu0
      %4656 = vmatprep.mubr.f32.mxu0 0.0
      %4657 = vmatmul.mubr.f32.gmra.mxu0 %v4464
      %v4658 = vpop.f32.mrf.mxu0
      %v4659 = vadd.f32 0.0, %v4658
      %v4660 = vpop.f32.mrf.mxu0
      %4661 = vmatprep.mubr.f32.mxu0 0.0
      %4662 = vmatmul.mubr.f32.gmra.mxu0 %v4467
      %v4663 = vpop.f32.mrf.mxu0
      %v4664 = vadd.f32 0.0, %v4663
      %v4665 = vpop.f32.mrf.mxu0
      %4666 = vmatprep.mubr.f32.mxu0 0.0
      %4667 = vmatmul.mubr.f32.gmra.mxu0 %v4470
      %v4668 = vpop.f32.mrf.mxu0
      %v4669 = vadd.f32 0.0, %v4668
      %v4670 = vpop.f32.mrf.mxu0
      %4671 = vmatprep.mubr.f32.mxu0 0.0
      %4672 = vmatmul.mubr.f32.gmra.mxu0 %v4473
      %v4673 = vpop.f32.mrf.mxu0
      %v4674 = vadd.f32 0.0, %v4673
      %v4675 = vpop.f32.mrf.mxu0
      %4676 = vmatprep.mubr.f32.mxu0 0.0
      %4677 = vmatmul.mubr.f32.gmra.mxu0 %v4476
      %v4678 = vpop.f32.mrf.mxu0
      %v4679 = vadd.f32 0.0, %v4678
      %v4680 = vpop.f32.mrf.mxu0
      %4681 = vmatprep.mubr.f32.mxu0 0.0
      %4682 = vmatmul.mubr.f32.gmra.mxu0 %v4479
      %v4683 = vpop.f32.mrf.mxu0
      %v4684 = vadd.f32 0.0, %v4683
      %v4685 = vpop.f32.mrf.mxu0
      %4686 = vmatprep.mubr.f32.mxu0 0.0
      %4687 = vmatmul.mubr.f32.gmra.mxu0 %v4482
      %v4688 = vpop.f32.mrf.mxu0
      %v4689 = vadd.f32 0.0, %v4688
      %v4690 = vpop.f32.mrf.mxu0
      %4691 = vmatprep.mubr.f32.mxu0 0.0
      %4692 = vmatmul.mubr.f32.gmra.mxu0 %v4485
      %v4693 = vpop.f32.mrf.mxu0
      %v4694 = vadd.f32 0.0, %v4693
      %v4695 = vpop.f32.mrf.mxu0
      %4696 = vmatprep.mubr.f32.mxu0 0.0
      %4697 = vmatmul.mubr.f32.gmra.mxu0 %v4488
      %v4698 = vpop.f32.mrf.mxu0
      %v4699 = vadd.f32 0.0, %v4698
      %v4700 = vpop.f32.mrf.mxu0
      %4701 = vmatprep.mubr.f32.mxu0 0.0
      %4702 = vmatmul.mubr.f32.gmra.mxu0 %v4491
      %v4703 = vpop.f32.mrf.mxu0
      %v4704 = vadd.f32 0.0, %v4703
      %v4705 = vpop.f32.mrf.mxu0
      %4706 = vmatprep.mubr.f32.mxu0 0.0
      %4707 = vmatmul.mubr.f32.gmra.mxu0 %v4494
      %v4708 = vpop.f32.mrf.mxu0
      %v4709 = vadd.f32 0.0, %v4708
      %v4710 = vpop.f32.mrf.mxu0
      %4711 = vmatprep.mubr.f32.mxu0 0.0
      %4712 = vmatmul.mubr.f32.gmra.mxu0 %v4497
      %v4713 = vpop.f32.mrf.mxu0
      %v4714 = vadd.f32 0.0, %v4713
      %v4715 = vpop.f32.mrf.mxu0
      %4716 = vmatprep.mubr.f32.mxu0 0.0
      %4717 = vmatmul.mubr.f32.gmra.mxu0 %v4500
      %v4718 = vpop.f32.mrf.mxu0
      %v4719 = vadd.f32 0.0, %v4718
      %v4720 = vpop.f32.mrf.mxu0
      %4721 = vmatprep.mubr.f32.mxu0 0.0
      %4722 = vmatmul.mubr.f32.gmra.mxu0 %v4503
      %v4723 = vpop.f32.mrf.mxu0
      %v4724 = vadd.f32 0.0, %v4723
      %v4725 = vpop.f32.mrf.mxu0
      %4726 = vmatprep.mubr.f32.mxu0 0.0
      %4727 = vmatmul.mubr.f32.gmra.mxu0 %v4506
      %v4728 = vpop.f32.mrf.mxu0
      %v4729 = vadd.f32 0.0, %v4728
      %v4730 = vpop.f32.mrf.mxu0
      %4731 = vmatprep.mubr.f32.mxu0 0.0
      %4732 = vmatmul.mubr.f32.gmra.mxu0 %v4509
      %v4733 = vpop.f32.mrf.mxu0
      %v4734 = vadd.f32 0.0, %v4733
      %v4735 = vpop.f32.mrf.mxu0
      %4736 = vmatprep.mubr.f32.mxu0 0.0
      %4737 = vmatmul.mubr.f32.gmra.mxu0 %v4512
      %v4738 = vpop.f32.mrf.mxu0
      %v4739 = vadd.f32 0.0, %v4738
      %v4740 = vpop.f32.mrf.mxu0
      %4741 = vdwg.mxu0
      %4742 = vrot.lane.b32.xlu0 %v452, 122
      %v4743 = vpop.permute.xlu0 %4742
      %4744 = vrot.lane.b32.xlu0 %v453, 122
      %v4745 = vpop.permute.xlu0 %4744
      %4746 = vrot.lane.b32.xlu0 %v454, 122
      %v4747 = vpop.permute.xlu0 %4746
      %4748 = vrot.lane.b32.xlu0 %v455, 122
      %v4749 = vpop.permute.xlu0 %4748
      %4750 = vrot.lane.b32.xlu0 %v456, 122
      %v4751 = vpop.permute.xlu0 %4750
      %4752 = vrot.lane.b32.xlu0 %v457, 122
      %v4753 = vpop.permute.xlu0 %4752
      %4754 = vrot.lane.b32.xlu0 %v458, 122
      %v4755 = vpop.permute.xlu0 %4754
      %4756 = vrot.lane.b32.xlu0 %v459, 122
      %v4757 = vpop.permute.xlu0 %4756
      %4758 = vrot.lane.b32.xlu0 %v460, 122
      %v4759 = vpop.permute.xlu0 %4758
      %4760 = vrot.lane.b32.xlu0 %v461, 122
      %v4761 = vpop.permute.xlu0 %4760
      %4762 = vrot.lane.b32.xlu0 %v462, 122
      %v4763 = vpop.permute.xlu0 %4762
      %4764 = vrot.lane.b32.xlu0 %v463, 122
      %v4765 = vpop.permute.xlu0 %4764
      %4766 = vrot.lane.b32.xlu0 %v464, 122
      %v4767 = vpop.permute.xlu0 %4766
      %4768 = vrot.lane.b32.xlu0 %v465, 122
      %v4769 = vpop.permute.xlu0 %4768
      %4770 = vrot.lane.b32.xlu0 %v466, 122
      %v4771 = vpop.permute.xlu0 %4770
      %4772 = vrot.lane.b32.xlu0 %v467, 122
      %v4773 = vpop.permute.xlu0 %4772
      %4774 = vrot.lane.b32.xlu0 %v468, 122
      %v4775 = vpop.permute.xlu0 %4774
      %4776 = vrot.lane.b32.xlu0 %v469, 122
      %v4777 = vpop.permute.xlu0 %4776
      %4778 = vrot.lane.b32.xlu0 %v470, 122
      %v4779 = vpop.permute.xlu0 %4778
      %4780 = vrot.lane.b32.xlu0 %v471, 122
      %v4781 = vpop.permute.xlu0 %4780
      %4782 = vrot.lane.b32.xlu0 %v472, 122
      %v4783 = vpop.permute.xlu0 %4782
      %4784 = vrot.lane.b32.xlu0 %v473, 122
      %v4785 = vpop.permute.xlu0 %4784
      %4786 = vrot.lane.b32.xlu0 %v474, 122
      %v4787 = vpop.permute.xlu0 %4786
      %4788 = vrot.lane.b32.xlu0 %v475, 122
      %v4789 = vpop.permute.xlu0 %4788
      %4790 = vrot.lane.b32.xlu0 %v476, 122
      %v4791 = vpop.permute.xlu0 %4790
      %4792 = vrot.lane.b32.xlu0 %v477, 122
      %v4793 = vpop.permute.xlu0 %4792
      %4794 = vrot.lane.b32.xlu0 %v478, 122
      %v4795 = vpop.permute.xlu0 %4794
      %4796 = vrot.lane.b32.xlu0 %v479, 122
      %v4797 = vpop.permute.xlu0 %4796
      %4798 = vrot.lane.b32.xlu0 %v480, 122
      %v4799 = vpop.permute.xlu0 %4798
      %4800 = vrot.lane.b32.xlu0 %v481, 122
      %v4801 = vpop.permute.xlu0 %4800
      %4802 = vrot.lane.b32.xlu0 %v482, 122
      %v4803 = vpop.permute.xlu0 %4802
      %4804 = vrot.lane.b32.xlu0 %v483, 122
      %v4805 = vpop.permute.xlu0 %4804
      %4838 = vrot.lane.b32.xlu0 0.0, 124
      %v4839 = vpop.permute.xlu0 %4838
      %4840 = vrot.lane.b32.xlu0 %v346, 124
      %v4841 = vpop.permute.xlu0 %4840
      %4842 = vrot.lane.b32.xlu0 %v347, 124
      %v4843 = vpop.permute.xlu0 %4842
      %4844 = vrot.lane.b32.xlu0 %v348, 124
      %v4845 = vpop.permute.xlu0 %4844
      %4846 = vrot.lane.b32.xlu0 %v349, 124
      %v4847 = vpop.permute.xlu0 %4846
      %4848 = vrot.lane.b32.xlu0 %v350, 124
      %v4849 = vpop.permute.xlu0 %4848
      %4850 = vrot.lane.b32.xlu0 %v351, 124
      %v4851 = vpop.permute.xlu0 %4850
      %4852 = vrot.lane.b32.xlu0 %v352, 124
      %v4853 = vpop.permute.xlu0 %4852
      %4854 = vrot.lane.b32.xlu0 %v353, 124
      %v4855 = vpop.permute.xlu0 %4854
      %4856 = vrot.lane.b32.xlu0 %v354, 124
      %v4857 = vpop.permute.xlu0 %4856
      %4858 = vrot.lane.b32.xlu0 %v355, 124
      %v4859 = vpop.permute.xlu0 %4858
      %4860 = vrot.lane.b32.xlu0 %v356, 124
      %v4861 = vpop.permute.xlu0 %4860
      %4862 = vrot.lane.b32.xlu0 %v357, 124
      %v4863 = vpop.permute.xlu0 %4862
      %4864 = vrot.lane.b32.xlu0 %v358, 124
      %v4865 = vpop.permute.xlu0 %4864
      %4866 = vrot.lane.b32.xlu0 %v359, 124
      %v4867 = vpop.permute.xlu0 %4866
      %4868 = vrot.lane.b32.xlu0 %v360, 124
      %v4869 = vpop.permute.xlu0 %4868
      %4870 = vrot.lane.b32.xlu0 %v361, 124
      %v4871 = vpop.permute.xlu0 %4870
      %4872 = vrot.lane.b32.xlu0 %v362, 124
      %v4873 = vpop.permute.xlu0 %4872
      %4874 = vrot.lane.b32.xlu0 %v363, 124
      %v4875 = vpop.permute.xlu0 %4874
      %4876 = vrot.lane.b32.xlu0 %v364, 124
      %v4877 = vpop.permute.xlu0 %4876
      %4878 = vrot.lane.b32.xlu0 %v365, 124
      %v4879 = vpop.permute.xlu0 %4878
      %4880 = vrot.lane.b32.xlu0 %v366, 124
      %v4881 = vpop.permute.xlu0 %4880
      %4882 = vrot.lane.b32.xlu0 %v367, 124
      %v4883 = vpop.permute.xlu0 %4882
      %4884 = vrot.lane.b32.xlu0 %v368, 124
      %v4885 = vpop.permute.xlu0 %4884
      %4886 = vrot.lane.b32.xlu0 %v369, 124
      %v4887 = vpop.permute.xlu0 %4886
      %4888 = vrot.lane.b32.xlu0 %v370, 124
      %v4889 = vpop.permute.xlu0 %4888
      %4890 = vrot.lane.b32.xlu0 %v371, 124
      %v4891 = vpop.permute.xlu0 %4890
      %4892 = vrot.lane.b32.xlu0 %v372, 124
      %v4893 = vpop.permute.xlu0 %4892
      %4894 = vrot.lane.b32.xlu0 %v373, 124
      %v4895 = vpop.permute.xlu0 %4894
      %4896 = vrot.lane.b32.xlu0 %v374, 124
      %v4897 = vpop.permute.xlu0 %4896
      %4898 = vrot.lane.b32.xlu0 %v375, 124
      %v4899 = vpop.permute.xlu0 %4898
      %4931 = vrot.lane.b32.xlu0 %v557, 126
      %v4932 = vpop.permute.xlu0 %4931
      %4933 = vrot.lane.b32.xlu0 %v558, 126
      %v4934 = vpop.permute.xlu0 %4933
      %4935 = vrot.lane.b32.xlu0 %v559, 126
      %v4936 = vpop.permute.xlu0 %4935
      %4937 = vrot.lane.b32.xlu0 %v560, 126
      %v4938 = vpop.permute.xlu0 %4937
      %4939 = vrot.lane.b32.xlu0 %v561, 126
      %v4940 = vpop.permute.xlu0 %4939
      %4941 = vrot.lane.b32.xlu0 %v562, 126
      %v4942 = vpop.permute.xlu0 %4941
      %4943 = vrot.lane.b32.xlu0 %v563, 126
      %v4944 = vpop.permute.xlu0 %4943
      %4945 = vrot.lane.b32.xlu0 %v564, 126
      %v4946 = vpop.permute.xlu0 %4945
      %4947 = vrot.lane.b32.xlu0 %v565, 126
      %v4948 = vpop.permute.xlu0 %4947
      %4949 = vrot.lane.b32.xlu0 %v566, 126
      %v4950 = vpop.permute.xlu0 %4949
      %4951 = vrot.lane.b32.xlu0 %v567, 126
      %v4952 = vpop.permute.xlu0 %4951
      %4953 = vrot.lane.b32.xlu0 %v568, 126
      %v4954 = vpop.permute.xlu0 %4953
      %4955 = vrot.lane.b32.xlu0 %v569, 126
      %v4956 = vpop.permute.xlu0 %4955
      %4957 = vrot.lane.b32.xlu0 %v570, 126
      %v4958 = vpop.permute.xlu0 %4957
      %4959 = vrot.lane.b32.xlu0 %v571, 126
      %v4960 = vpop.permute.xlu0 %4959
      %4961 = vrot.lane.b32.xlu0 %v572, 126
      %v4962 = vpop.permute.xlu0 %4961
      %4963 = vrot.lane.b32.xlu0 %v573, 126
      %v4964 = vpop.permute.xlu0 %4963
      %4965 = vrot.lane.b32.xlu0 %v574, 126
      %v4966 = vpop.permute.xlu0 %4965
      %4967 = vrot.lane.b32.xlu0 %v575, 126
      %v4968 = vpop.permute.xlu0 %4967
      %4969 = vrot.lane.b32.xlu0 %v576, 126
      %v4970 = vpop.permute.xlu0 %4969
      %4971 = vrot.lane.b32.xlu0 %v577, 126
      %v4972 = vpop.permute.xlu0 %4971
      %4973 = vrot.lane.b32.xlu0 %v578, 126
      %v4974 = vpop.permute.xlu0 %4973
      %4975 = vrot.lane.b32.xlu0 %v579, 126
      %v4976 = vpop.permute.xlu0 %4975
      %4977 = vrot.lane.b32.xlu0 %v580, 126
      %v4978 = vpop.permute.xlu0 %4977
      %4979 = vrot.lane.b32.xlu0 %v581, 126
      %v4980 = vpop.permute.xlu0 %4979
      %4981 = vrot.lane.b32.xlu0 %v582, 126
      %v4982 = vpop.permute.xlu0 %4981
      %4983 = vrot.lane.b32.xlu0 %v583, 126
      %v4984 = vpop.permute.xlu0 %4983
      %4985 = vrot.lane.b32.xlu0 %v584, 126
      %v4986 = vpop.permute.xlu0 %4985
      %4987 = vrot.lane.b32.xlu0 %v585, 126
      %v4988 = vpop.permute.xlu0 %4987
      %4989 = vrot.lane.b32.xlu0 %v586, 126
      %v4990 = vpop.permute.xlu0 %4989
      %4991 = vrot.lane.b32.xlu0 %v587, 126
      %v4992 = vpop.permute.xlu0 %4991
      %4993 = vrot.lane.b32.xlu0 %v588, 126
      %v4994 = vpop.permute.xlu0 %4993
      %5027 = vrot.lane.b32.xlu0 %v376, 2
      %v5028 = vpop.permute.xlu0 %5027
      %5029 = vrot.lane.b32.xlu0 %v377, 2
      %v5030 = vpop.permute.xlu0 %5029
      %5033 = vrot.lane.b32.xlu0 %v589, 4
      %v5034 = vpop.permute.xlu0 %5033
      %5035 = vrot.lane.b32.xlu0 %v590, 4
      %v5036 = vpop.permute.xlu0 %5035
      %5039 = vrot.lane.b32.xlu0 %v452, 6
      %v5040 = vpop.permute.xlu0 %5039
      %5041 = vrot.lane.b32.xlu0 %v453, 6
      %v5042 = vpop.permute.xlu0 %5041
      %5045 = vrot.lane.b32.xlu0 0.0, 8
      %v5046 = vpop.permute.xlu0 %5045
      %5048 = vrot.lane.b32.xlu0 %v557, 10
      %v5049 = vpop.permute.xlu0 %5048
      %5050 = vrot.lane.b32.xlu0 %v558, 10
      %v5051 = vpop.permute.xlu0 %5050
      %v5054 = vsel %vm1454, %v4743, %v4839
      %v5055 = vsel %vm1454, %v4745, %v4839
      %v5056 = vsel %vm1454, %v4747, %v4841
      %v5057 = vsel %vm1454, %v4749, %v4843
      %v5058 = vsel %vm1454, %v4751, %v4845
      %v5059 = vsel %vm1454, %v4753, %v4847
      %v5060 = vsel %vm1454, %v4755, %v4849
      %v5061 = vsel %vm1454, %v4757, %v4851
      %v5062 = vsel %vm1454, %v4759, %v4853
      %v5063 = vsel %vm1454, %v4761, %v4855
      %v5064 = vsel %vm1454, %v4763, %v4857
      %v5065 = vsel %vm1454, %v4765, %v4859
      %v5066 = vsel %vm1454, %v4767, %v4861
      %v5067 = vsel %vm1454, %v4769, %v4863
      %v5068 = vsel %vm1454, %v4771, %v4865
      %v5069 = vsel %vm1454, %v4773, %v4867
      %v5070 = vsel %vm1454, %v4775, %v4869
      %v5071 = vsel %vm1454, %v4777, %v4871
      %v5072 = vsel %vm1454, %v4779, %v4873
      %v5073 = vsel %vm1454, %v4781, %v4875
      %v5074 = vsel %vm1454, %v4783, %v4877
      %v5075 = vsel %vm1454, %v4785, %v4879
      %v5076 = vsel %vm1454, %v4787, %v4881
      %v5077 = vsel %vm1454, %v4789, %v4883
      %v5078 = vsel %vm1454, %v4791, %v4885
      %v5079 = vsel %vm1454, %v4793, %v4887
      %v5080 = vsel %vm1454, %v4795, %v4889
      %v5081 = vsel %vm1454, %v4797, %v4891
      %v5082 = vsel %vm1454, %v4799, %v4893
      %v5083 = vsel %vm1454, %v4801, %v4895
      %v5084 = vsel %vm1454, %v4803, %v4897
      %v5085 = vsel %vm1454, %v4805, %v4899
      %v5086 = vsel %vm1487, %v5054, %v4932
      %v5087 = vsel %vm1487, %v5055, %v4934
      %v5088 = vsel %vm1487, %v5056, %v4936
      %v5089 = vsel %vm1487, %v5057, %v4938
      %v5090 = vsel %vm1487, %v5058, %v4940
      %v5091 = vsel %vm1487, %v5059, %v4942
      %v5092 = vsel %vm1487, %v5060, %v4944
      %v5093 = vsel %vm1487, %v5061, %v4946
      %v5094 = vsel %vm1487, %v5062, %v4948
      %v5095 = vsel %vm1487, %v5063, %v4950
      %v5096 = vsel %vm1487, %v5064, %v4952
      %v5097 = vsel %vm1487, %v5065, %v4954
      %v5098 = vsel %vm1487, %v5066, %v4956
      %v5099 = vsel %vm1487, %v5067, %v4958
      %v5100 = vsel %vm1487, %v5068, %v4960
      %v5101 = vsel %vm1487, %v5069, %v4962
      %v5102 = vsel %vm1487, %v5070, %v4964
      %v5103 = vsel %vm1487, %v5071, %v4966
      %v5104 = vsel %vm1487, %v5072, %v4968
      %v5105 = vsel %vm1487, %v5073, %v4970
      %v5106 = vsel %vm1487, %v5074, %v4972
      %v5107 = vsel %vm1487, %v5075, %v4974
      %v5108 = vsel %vm1487, %v5076, %v4976
      %v5109 = vsel %vm1487, %v5077, %v4978
      %v5110 = vsel %vm1487, %v5078, %v4980
      %v5111 = vsel %vm1487, %v5079, %v4982
      %v5112 = vsel %vm1487, %v5080, %v4984
      %v5113 = vsel %vm1487, %v5081, %v4986
      %v5114 = vsel %vm1487, %v5082, %v4988
      %v5115 = vsel %vm1487, %v5083, %v4990
      %v5116 = vsel %vm1487, %v5084, %v4992
      %v5117 = vsel %vm1487, %v5085, %v4994
      %v5118 = vsel %vm1520, %v5086, %v454
      %v5119 = vsel %vm1520, %v5087, %v455
      %v5120 = vsel %vm1520, %v5088, %v456
      %v5121 = vsel %vm1520, %v5089, %v457
      %v5122 = vsel %vm1520, %v5090, %v458
      %v5123 = vsel %vm1520, %v5091, %v459
      %v5124 = vsel %vm1520, %v5092, %v460
      %v5125 = vsel %vm1520, %v5093, %v461
      %v5126 = vsel %vm1520, %v5094, %v462
      %v5127 = vsel %vm1520, %v5095, %v463
      %v5128 = vsel %vm1520, %v5096, %v464
      %v5129 = vsel %vm1520, %v5097, %v465
      %v5130 = vsel %vm1520, %v5098, %v466
      %v5131 = vsel %vm1520, %v5099, %v467
      %v5132 = vsel %vm1520, %v5100, %v468
      %v5133 = vsel %vm1520, %v5101, %v469
      %v5134 = vsel %vm1520, %v5102, %v470
      %v5135 = vsel %vm1520, %v5103, %v471
      %v5136 = vsel %vm1520, %v5104, %v472
      %v5137 = vsel %vm1520, %v5105, %v473
      %v5138 = vsel %vm1520, %v5106, %v474
      %v5139 = vsel %vm1520, %v5107, %v475
      %v5140 = vsel %vm1520, %v5108, %v476
      %v5141 = vsel %vm1520, %v5109, %v477
      %v5142 = vsel %vm1520, %v5110, %v478
      %v5143 = vsel %vm1520, %v5111, %v479
      %v5144 = vsel %vm1520, %v5112, %v480
      %v5145 = vsel %vm1520, %v5113, %v481
      %v5146 = vsel %vm1520, %v5114, %v482
      %v5147 = vsel %vm1520, %v5115, %v483
      %v5148 = vsel %vm1520, %v5116, %v484
      %v5149 = vsel %vm1520, %v5117, %v485
      %v5150 = vsel %vm1553, %v5118, %v625
      %v5151 = vsel %vm1553, %v5119, %v627
      %v5152 = vsel %vm1553, %v5120, %v629
      %v5153 = vsel %vm1553, %v5121, %v631
      %v5154 = vsel %vm1553, %v5122, %v633
      %v5155 = vsel %vm1553, %v5123, %v635
      %v5156 = vsel %vm1553, %v5124, %v637
      %v5157 = vsel %vm1553, %v5125, %v639
      %v5158 = vsel %vm1553, %v5126, %v641
      %v5159 = vsel %vm1553, %v5127, %v643
      %v5160 = vsel %vm1553, %v5128, %v645
      %v5161 = vsel %vm1553, %v5129, %v647
      %v5162 = vsel %vm1553, %v5130, %v649
      %v5163 = vsel %vm1553, %v5131, %v651
      %v5164 = vsel %vm1553, %v5132, %v653
      %v5165 = vsel %vm1553, %v5133, %v655
      %v5166 = vsel %vm1553, %v5134, %v657
      %v5167 = vsel %vm1553, %v5135, %v659
      %v5168 = vsel %vm1553, %v5136, %v661
      %v5169 = vsel %vm1553, %v5137, %v663
      %v5170 = vsel %vm1553, %v5138, %v665
      %v5171 = vsel %vm1553, %v5139, %v667
      %v5172 = vsel %vm1553, %v5140, %v669
      %v5173 = vsel %vm1553, %v5141, %v671
      %v5174 = vsel %vm1553, %v5142, %v673
      %v5175 = vsel %vm1553, %v5143, %v675
      %v5176 = vsel %vm1553, %v5144, %v677
      %v5177 = vsel %vm1553, %v5145, %v679
      %v5178 = vsel %vm1553, %v5146, %v681
      %v5179 = vsel %vm1553, %v5147, %v683
      %v5180 = vsel %vm1553, %v5148, %v5028
      %v5181 = vsel %vm1553, %v5149, %v5030
      %v5182 = vsel %vm1586, %v5150, %v752
      %v5183 = vsel %vm1586, %v5151, %v754
      %v5184 = vsel %vm1586, %v5152, %v756
      %v5185 = vsel %vm1586, %v5153, %v758
      %v5186 = vsel %vm1586, %v5154, %v760
      %v5187 = vsel %vm1586, %v5155, %v762
      %v5188 = vsel %vm1586, %v5156, %v764
      %v5189 = vsel %vm1586, %v5157, %v766
      %v5190 = vsel %vm1586, %v5158, %v768
      %v5191 = vsel %vm1586, %v5159, %v770
      %v5192 = vsel %vm1586, %v5160, %v772
      %v5193 = vsel %vm1586, %v5161, %v774
      %v5194 = vsel %vm1586, %v5162, %v776
      %v5195 = vsel %vm1586, %v5163, %v778
      %v5196 = vsel %vm1586, %v5164, %v780
      %v5197 = vsel %vm1586, %v5165, %v782
      %v5198 = vsel %vm1586, %v5166, %v784
      %v5199 = vsel %vm1586, %v5167, %v786
      %v5200 = vsel %vm1586, %v5168, %v788
      %v5201 = vsel %vm1586, %v5169, %v790
      %v5202 = vsel %vm1586, %v5170, %v792
      %v5203 = vsel %vm1586, %v5171, %v794
      %v5204 = vsel %vm1586, %v5172, %v796
      %v5205 = vsel %vm1586, %v5173, %v798
      %v5206 = vsel %vm1586, %v5174, %v800
      %v5207 = vsel %vm1586, %v5175, %v802
      %v5208 = vsel %vm1586, %v5176, %v804
      %v5209 = vsel %vm1586, %v5177, %v806
      %v5210 = vsel %vm1586, %v5178, %v808
      %v5211 = vsel %vm1586, %v5179, %v810
      %v5212 = vsel %vm1586, %v5180, %v5034
      %v5213 = vsel %vm1586, %v5181, %v5036
      %v5214 = vsel %vm1619, %v5182, %v880
      %v5215 = vsel %vm1619, %v5183, %v882
      %v5216 = vsel %vm1619, %v5184, %v884
      %v5217 = vsel %vm1619, %v5185, %v886
      %v5218 = vsel %vm1619, %v5186, %v888
      %v5219 = vsel %vm1619, %v5187, %v890
      %v5220 = vsel %vm1619, %v5188, %v892
      %v5221 = vsel %vm1619, %v5189, %v894
      %v5222 = vsel %vm1619, %v5190, %v896
      %v5223 = vsel %vm1619, %v5191, %v898
      %v5224 = vsel %vm1619, %v5192, %v900
      %v5225 = vsel %vm1619, %v5193, %v902
      %v5226 = vsel %vm1619, %v5194, %v904
      %v5227 = vsel %vm1619, %v5195, %v906
      %v5228 = vsel %vm1619, %v5196, %v908
      %v5229 = vsel %vm1619, %v5197, %v910
      %v5230 = vsel %vm1619, %v5198, %v912
      %v5231 = vsel %vm1619, %v5199, %v914
      %v5232 = vsel %vm1619, %v5200, %v916
      %v5233 = vsel %vm1619, %v5201, %v918
      %v5234 = vsel %vm1619, %v5202, %v920
      %v5235 = vsel %vm1619, %v5203, %v922
      %v5236 = vsel %vm1619, %v5204, %v924
      %v5237 = vsel %vm1619, %v5205, %v926
      %v5238 = vsel %vm1619, %v5206, %v928
      %v5239 = vsel %vm1619, %v5207, %v930
      %v5240 = vsel %vm1619, %v5208, %v932
      %v5241 = vsel %vm1619, %v5209, %v934
      %v5242 = vsel %vm1619, %v5210, %v936
      %v5243 = vsel %vm1619, %v5211, %v938
      %v5244 = vsel %vm1619, %v5212, %v5040
      %v5245 = vsel %vm1619, %v5213, %v5042
      %v5246 = vsel %vm1652, %v5214, %v978
      %v5247 = vsel %vm1652, %v5215, %v980
      %v5248 = vsel %vm1652, %v5216, %v982
      %v5249 = vsel %vm1652, %v5217, %v984
      %v5250 = vsel %vm1652, %v5218, %v986
      %v5251 = vsel %vm1652, %v5219, %v988
      %v5252 = vsel %vm1652, %v5220, %v990
      %v5253 = vsel %vm1652, %v5221, %v992
      %v5254 = vsel %vm1652, %v5222, %v994
      %v5255 = vsel %vm1652, %v5223, %v996
      %v5256 = vsel %vm1652, %v5224, %v998
      %v5257 = vsel %vm1652, %v5225, %v1000
      %v5258 = vsel %vm1652, %v5226, %v1002
      %v5259 = vsel %vm1652, %v5227, %v1004
      %v5260 = vsel %vm1652, %v5228, %v1006
      %v5261 = vsel %vm1652, %v5229, %v1008
      %v5262 = vsel %vm1652, %v5230, %v1010
      %v5263 = vsel %vm1652, %v5231, %v1012
      %v5264 = vsel %vm1652, %v5232, %v1014
      %v5265 = vsel %vm1652, %v5233, %v1016
      %v5266 = vsel %vm1652, %v5234, %v1018
      %v5267 = vsel %vm1652, %v5235, %v1020
      %v5268 = vsel %vm1652, %v5236, %v1022
      %v5269 = vsel %vm1652, %v5237, %v1024
      %v5270 = vsel %vm1652, %v5238, %v1026
      %v5271 = vsel %vm1652, %v5239, %v1028
      %v5272 = vsel %vm1652, %v5240, %v1030
      %v5273 = vsel %vm1652, %v5241, %v1032
      %v5274 = vsel %vm1652, %v5242, %v1034
      %v5275 = vsel %vm1652, %v5243, %v1036
      %v5276 = vsel %vm1652, %v5244, %v5046
      %v5277 = vsel %vm1652, %v5245, %v5046
      %v5278 = vsel %vm1685, %v5246, %v1076
      %v5279 = vsel %vm1685, %v5247, %v1078
      %v5280 = vsel %vm1685, %v5248, %v1080
      %v5281 = vsel %vm1685, %v5249, %v1082
      %v5282 = vsel %vm1685, %v5250, %v1084
      %v5283 = vsel %vm1685, %v5251, %v1086
      %v5284 = vsel %vm1685, %v5252, %v1088
      %v5285 = vsel %vm1685, %v5253, %v1090
      %v5286 = vsel %vm1685, %v5254, %v1092
      %v5287 = vsel %vm1685, %v5255, %v1094
      %v5288 = vsel %vm1685, %v5256, %v1096
      %v5289 = vsel %vm1685, %v5257, %v1098
      %v5290 = vsel %vm1685, %v5258, %v1100
      %v5291 = vsel %vm1685, %v5259, %v1102
      %v5292 = vsel %vm1685, %v5260, %v1104
      %v5293 = vsel %vm1685, %v5261, %v1106
      %v5294 = vsel %vm1685, %v5262, %v1108
      %v5295 = vsel %vm1685, %v5263, %v1110
      %v5296 = vsel %vm1685, %v5264, %v1112
      %v5297 = vsel %vm1685, %v5265, %v1114
      %v5298 = vsel %vm1685, %v5266, %v1116
      %v5299 = vsel %vm1685, %v5267, %v1118
      %v5300 = vsel %vm1685, %v5268, %v1120
      %v5301 = vsel %vm1685, %v5269, %v1122
      %v5302 = vsel %vm1685, %v5270, %v1124
      %v5303 = vsel %vm1685, %v5271, %v1126
      %v5304 = vsel %vm1685, %v5272, %v1128
      %v5305 = vsel %vm1685, %v5273, %v1130
      %v5306 = vsel %vm1685, %v5274, %v1132
      %v5307 = vsel %vm1685, %v5275, %v1134
      %v5308 = vsel %vm1685, %v5276, %v5049
      %v5309 = vsel %vm1685, %v5277, %v5051
      %s5310 = scalar_lea.vmem %s3, 72
      %v5311 = vld [vmem:[%s5310] sm:$0xff]
      %v5312 = vld [vmem:[%s5310 + $0x8] sm:$0xff]
      %v5313 = vld [vmem:[%s5310 + $0x10] sm:$0x3]
      %v5315 = vsel %vm1721, %v5278, 0
      %v5318 = vsel %vm1721, %v5279, 0
      %v5321 = vsel %vm1721, %v5280, 0
      %v5324 = vsel %vm1721, %v5281, 0
      %v5327 = vsel %vm1721, %v5282, 0
      %v5330 = vsel %vm1721, %v5283, 0
      %v5333 = vsel %vm1721, %v5284, 0
      %v5336 = vsel %vm1721, %v5285, 0
      %v5339 = vsel %vm1721, %v5286, 0
      %v5342 = vsel %vm1721, %v5287, 0
      %v5345 = vsel %vm1721, %v5288, 0
      %v5348 = vsel %vm1721, %v5289, 0
      %v5351 = vsel %vm1721, %v5290, 0
      %v5354 = vsel %vm1721, %v5291, 0
      %v5357 = vsel %vm1721, %v5292, 0
      %v5360 = vsel %vm1721, %v5293, 0
      %v5363 = vsel %vm1721, %v5294, 0
      %v5366 = vsel %vm1721, %v5295, 0
      %v5369 = vsel %vm1721, %v5296, 0
      %v5372 = vsel %vm1721, %v5297, 0
      %v5375 = vsel %vm1721, %v5298, 0
      %v5378 = vsel %vm1721, %v5299, 0
      %v5381 = vsel %vm1721, %v5300, 0
      %v5384 = vsel %vm1721, %v5301, 0
      %v5387 = vsel %vm1721, %v5302, 0
      %v5390 = vsel %vm1721, %v5303, 0
      %v5393 = vsel %vm1721, %v5304, 0
      %v5396 = vsel %vm1721, %v5305, 0
      %v5399 = vsel %vm1721, %v5306, 0
      %v5402 = vsel %vm1721, %v5307, 0
      %v5405 = vsel %vm1721, %v5308, 0
      %v5408 = vsel %vm1721, %v5309, 0
      %v5411 = vsel %vm1818, %v5313, 0
      %5413 = vmatprep.subr.mxu0 0.0
      %5414 = vmatpush1.msra.mxu0 0.0
      %5415 = vmatprep.subr.mxu0 0.0
      %5416 = vmatpush1.msra.mxu0 0.0
      %5417 = vmatprep.subr.mxu0 0.0
      %5418 = vmatpush1.msra.mxu0 0.0
      %5419 = vmatprep.subr.mxu0 0.0
      %5420 = vmatpush1.msra.mxu0 0.0
      %5421 = vmatprep.subr.mxu0 0.0
      %5422 = vmatpush1.msra.mxu0 0.0
      %5423 = vmatprep.subr.mxu0 0.0
      %5424 = vmatpush1.msra.mxu0 0.0
      %5425 = vmatprep.subr.mxu0 0.0
      %5426 = vmatpush1.msra.mxu0 0.0
      %5427 = vmatprep.subr.mxu0 0.0
      %5428 = vmatpush1.msra.mxu0 0.0
      %5429 = vmatprep.subr.mxu0 0.0
      %5430 = vmatpush1.msra.mxu0 0.0
      %5431 = vmatprep.subr.mxu0 0.0
      %5432 = vmatpush1.msra.mxu0 0.0
      %5433 = vmatprep.subr.mxu0 0.0
      %5434 = vmatpush1.msra.mxu0 0.0
      %5435 = vmatprep.subr.mxu0 0.0
      %5436 = vmatpush1.msra.mxu0 0.0
      %5437 = vmatprep.subr.mxu0 0.0
      %5438 = vmatpush1.msra.mxu0 0.0
      %5439 = vmatprep.subr.mxu0 0.0
      %5440 = vmatpush1.msra.mxu0 %v5411
      %5441 = vmatprep.subr.mxu0 0.0
      %5442 = vmatpush1.msra.mxu0 %v5312
      %5443 = vmatprep.subr.mxu0 0.0
      %5444 = vmatpush1.msra.mxu0 %v5311
      %5445 = vmatprep.subr.mxu0 0.0
      %5446 = vmatpush2.msra.mxu0 0.0
      %5447 = vmatprep.subr.mxu0 0.0
      %5448 = vmatpush2.msra.mxu0 0.0
      %5449 = vmatprep.subr.mxu0 0.0
      %5450 = vmatpush2.msra.mxu0 0.0
      %5451 = vmatprep.subr.mxu0 0.0
      %5452 = vmatpush2.msra.mxu0 0.0
      %5453 = vmatprep.subr.mxu0 0.0
      %5454 = vmatpush2.msra.mxu0 0.0
      %5455 = vmatprep.subr.mxu0 0.0
      %5456 = vmatpush2.msra.mxu0 0.0
      %5457 = vmatprep.subr.mxu0 0.0
      %5458 = vmatpush2.msra.mxu0 0.0
      %5459 = vmatprep.subr.mxu0 0.0
      %5460 = vmatpush2.msra.mxu0 0.0
      %5461 = vmatprep.subr.mxu0 0.0
      %5462 = vmatpush2.msra.mxu0 0.0
      %5463 = vmatprep.subr.mxu0 0.0
      %5464 = vmatpush2.msra.mxu0 0.0
      %5465 = vmatprep.subr.mxu0 0.0
      %5466 = vmatpush2.msra.mxu0 0.0
      %5467 = vmatprep.subr.mxu0 0.0
      %5468 = vmatpush2.msra.mxu0 0.0
      %5469 = vmatprep.subr.mxu0 0.0
      %5470 = vmatpush2.msra.mxu0 0.0
      %5471 = vmatprep.subr.mxu0 0.0
      %5472 = vmatpush2.msra.mxu0 0.0
      %5473 = vmatprep.subr.mxu0 0.0
      %5474 = vmatpush2.msra.mxu0 0.0
      %5475 = vmatprep.subr.mxu0 0.0
      %5476 = vmatpush2.msra.mxu0 0.0
      %5477 = vmatprep.mubr.f32.mxu0 0.0
      %5478 = vmatmul.mubr.f32.gmra.mxu0 %v5315
      %v5479 = vpop.f32.mrf.mxu0
      %v5480 = vadd.f32 0.0, %v5479
      %v5481 = vpop.f32.mrf.mxu0
      %5482 = vmatprep.mubr.f32.mxu0 0.0
      %5483 = vmatmul.mubr.f32.gmra.mxu0 %v5318
      %v5484 = vpop.f32.mrf.mxu0
      %v5485 = vadd.f32 0.0, %v5484
      %v5486 = vpop.f32.mrf.mxu0
      %5487 = vmatprep.mubr.f32.mxu0 0.0
      %5488 = vmatmul.mubr.f32.gmra.mxu0 %v5321
      %v5489 = vpop.f32.mrf.mxu0
      %v5490 = vadd.f32 0.0, %v5489
      %v5491 = vpop.f32.mrf.mxu0
      %5492 = vmatprep.mubr.f32.mxu0 0.0
      %5493 = vmatmul.mubr.f32.gmra.mxu0 %v5324
      %v5494 = vpop.f32.mrf.mxu0
      %v5495 = vadd.f32 0.0, %v5494
      %v5496 = vpop.f32.mrf.mxu0
      %5497 = vmatprep.mubr.f32.mxu0 0.0
      %5498 = vmatmul.mubr.f32.gmra.mxu0 %v5327
      %v5499 = vpop.f32.mrf.mxu0
      %v5500 = vadd.f32 0.0, %v5499
      %v5501 = vpop.f32.mrf.mxu0
      %5502 = vmatprep.mubr.f32.mxu0 0.0
      %5503 = vmatmul.mubr.f32.gmra.mxu0 %v5330
      %v5504 = vpop.f32.mrf.mxu0
      %v5505 = vadd.f32 0.0, %v5504
      %v5506 = vpop.f32.mrf.mxu0
      %5507 = vmatprep.mubr.f32.mxu0 0.0
      %5508 = vmatmul.mubr.f32.gmra.mxu0 %v5333
      %v5509 = vpop.f32.mrf.mxu0
      %v5510 = vadd.f32 0.0, %v5509
      %v5511 = vpop.f32.mrf.mxu0
      %5512 = vmatprep.mubr.f32.mxu0 0.0
      %5513 = vmatmul.mubr.f32.gmra.mxu0 %v5336
      %v5514 = vpop.f32.mrf.mxu0
      %v5515 = vadd.f32 0.0, %v5514
      %v5516 = vpop.f32.mrf.mxu0
      %5517 = vmatprep.mubr.f32.mxu0 0.0
      %5518 = vmatmul.mubr.f32.gmra.mxu0 %v5339
      %v5519 = vpop.f32.mrf.mxu0
      %v5520 = vadd.f32 0.0, %v5519
      %v5521 = vpop.f32.mrf.mxu0
      %5522 = vmatprep.mubr.f32.mxu0 0.0
      %5523 = vmatmul.mubr.f32.gmra.mxu0 %v5342
      %v5524 = vpop.f32.mrf.mxu0
      %v5525 = vadd.f32 0.0, %v5524
      %v5526 = vpop.f32.mrf.mxu0
      %5527 = vmatprep.mubr.f32.mxu0 0.0
      %5528 = vmatmul.mubr.f32.gmra.mxu0 %v5345
      %v5529 = vpop.f32.mrf.mxu0
      %v5530 = vadd.f32 0.0, %v5529
      %v5531 = vpop.f32.mrf.mxu0
      %5532 = vmatprep.mubr.f32.mxu0 0.0
      %5533 = vmatmul.mubr.f32.gmra.mxu0 %v5348
      %v5534 = vpop.f32.mrf.mxu0
      %v5535 = vadd.f32 0.0, %v5534
      %v5536 = vpop.f32.mrf.mxu0
      %5537 = vmatprep.mubr.f32.mxu0 0.0
      %5538 = vmatmul.mubr.f32.gmra.mxu0 %v5351
      %v5539 = vpop.f32.mrf.mxu0
      %v5540 = vadd.f32 0.0, %v5539
      %v5541 = vpop.f32.mrf.mxu0
      %5542 = vmatprep.mubr.f32.mxu0 0.0
      %5543 = vmatmul.mubr.f32.gmra.mxu0 %v5354
      %v5544 = vpop.f32.mrf.mxu0
      %v5545 = vadd.f32 0.0, %v5544
      %v5546 = vpop.f32.mrf.mxu0
      %5547 = vmatprep.mubr.f32.mxu0 0.0
      %5548 = vmatmul.mubr.f32.gmra.mxu0 %v5357
      %v5549 = vpop.f32.mrf.mxu0
      %v5550 = vadd.f32 0.0, %v5549
      %v5551 = vpop.f32.mrf.mxu0
      %5552 = vmatprep.mubr.f32.mxu0 0.0
      %5553 = vmatmul.mubr.f32.gmra.mxu0 %v5360
      %v5554 = vpop.f32.mrf.mxu0
      %v5555 = vadd.f32 0.0, %v5554
      %v5556 = vpop.f32.mrf.mxu0
      %5557 = vmatprep.mubr.f32.mxu0 0.0
      %5558 = vmatmul.mubr.f32.gmra.mxu0 %v5363
      %v5559 = vpop.f32.mrf.mxu0
      %v5560 = vadd.f32 0.0, %v5559
      %v5561 = vpop.f32.mrf.mxu0
      %5562 = vmatprep.mubr.f32.mxu0 0.0
      %5563 = vmatmul.mubr.f32.gmra.mxu0 %v5366
      %v5564 = vpop.f32.mrf.mxu0
      %v5565 = vadd.f32 0.0, %v5564
      %v5566 = vpop.f32.mrf.mxu0
      %5567 = vmatprep.mubr.f32.mxu0 0.0
      %5568 = vmatmul.mubr.f32.gmra.mxu0 %v5369
      %v5569 = vpop.f32.mrf.mxu0
      %v5570 = vadd.f32 0.0, %v5569
      %v5571 = vpop.f32.mrf.mxu0
      %5572 = vmatprep.mubr.f32.mxu0 0.0
      %5573 = vmatmul.mubr.f32.gmra.mxu0 %v5372
      %v5574 = vpop.f32.mrf.mxu0
      %v5575 = vadd.f32 0.0, %v5574
      %v5576 = vpop.f32.mrf.mxu0
      %5577 = vmatprep.mubr.f32.mxu0 0.0
      %5578 = vmatmul.mubr.f32.gmra.mxu0 %v5375
      %v5579 = vpop.f32.mrf.mxu0
      %v5580 = vadd.f32 0.0, %v5579
      %v5581 = vpop.f32.mrf.mxu0
      %5582 = vmatprep.mubr.f32.mxu0 0.0
      %5583 = vmatmul.mubr.f32.gmra.mxu0 %v5378
      %v5584 = vpop.f32.mrf.mxu0
      %v5585 = vadd.f32 0.0, %v5584
      %v5586 = vpop.f32.mrf.mxu0
      %5587 = vmatprep.mubr.f32.mxu0 0.0
      %5588 = vmatmul.mubr.f32.gmra.mxu0 %v5381
      %v5589 = vpop.f32.mrf.mxu0
      %v5590 = vadd.f32 0.0, %v5589
      %v5591 = vpop.f32.mrf.mxu0
      %5592 = vmatprep.mubr.f32.mxu0 0.0
      %5593 = vmatmul.mubr.f32.gmra.mxu0 %v5384
      %v5594 = vpop.f32.mrf.mxu0
      %v5595 = vadd.f32 0.0, %v5594
      %v5596 = vpop.f32.mrf.mxu0
      %5597 = vmatprep.mubr.f32.mxu0 0.0
      %5598 = vmatmul.mubr.f32.gmra.mxu0 %v5387
      %v5599 = vpop.f32.mrf.mxu0
      %v5600 = vadd.f32 0.0, %v5599
      %v5601 = vpop.f32.mrf.mxu0
      %5602 = vmatprep.mubr.f32.mxu0 0.0
      %5603 = vmatmul.mubr.f32.gmra.mxu0 %v5390
      %v5604 = vpop.f32.mrf.mxu0
      %v5605 = vadd.f32 0.0, %v5604
      %v5606 = vpop.f32.mrf.mxu0
      %5607 = vmatprep.mubr.f32.mxu0 0.0
      %5608 = vmatmul.mubr.f32.gmra.mxu0 %v5393
      %v5609 = vpop.f32.mrf.mxu0
      %v5610 = vadd.f32 0.0, %v5609
      %v5611 = vpop.f32.mrf.mxu0
      %5612 = vmatprep.mubr.f32.mxu0 0.0
      %5613 = vmatmul.mubr.f32.gmra.mxu0 %v5396
      %v5614 = vpop.f32.mrf.mxu0
      %v5615 = vadd.f32 0.0, %v5614
      %v5616 = vpop.f32.mrf.mxu0
      %5617 = vmatprep.mubr.f32.mxu0 0.0
      %5618 = vmatmul.mubr.f32.gmra.mxu0 %v5399
      %v5619 = vpop.f32.mrf.mxu0
      %v5620 = vadd.f32 0.0, %v5619
      %v5621 = vpop.f32.mrf.mxu0
      %5622 = vmatprep.mubr.f32.mxu0 0.0
      %5623 = vmatmul.mubr.f32.gmra.mxu0 %v5402
      %v5624 = vpop.f32.mrf.mxu0
      %v5625 = vadd.f32 0.0, %v5624
      %v5626 = vpop.f32.mrf.mxu0
      %5627 = vmatprep.mubr.f32.mxu0 0.0
      %5628 = vmatmul.mubr.f32.gmra.mxu0 %v5405
      %v5629 = vpop.f32.mrf.mxu0
      %v5630 = vadd.f32 0.0, %v5629
      %v5631 = vpop.f32.mrf.mxu0
      %5632 = vmatprep.mubr.f32.mxu0 0.0
      %5633 = vmatmul.mubr.f32.gmra.mxu0 %v5408
      %v5634 = vpop.f32.mrf.mxu0
      %v5635 = vadd.f32 0.0, %v5634
      %v5636 = vpop.f32.mrf.mxu0
      %5637 = vdwg.mxu0
      %5670 = vrot.lane.b32.xlu0 %v3238, 2
      %v5671 = vpop.permute.xlu0 %5670
      %5672 = vrot.lane.b32.xlu0 %v3243, 2
      %v5673 = vpop.permute.xlu0 %5672
      %5674 = vrot.lane.b32.xlu0 %v3248, 2
      %v5675 = vpop.permute.xlu0 %5674
      %5676 = vrot.lane.b32.xlu0 %v3253, 2
      %v5677 = vpop.permute.xlu0 %5676
      %5678 = vrot.lane.b32.xlu0 %v3258, 2
      %v5679 = vpop.permute.xlu0 %5678
      %5680 = vrot.lane.b32.xlu0 %v3263, 2
      %v5681 = vpop.permute.xlu0 %5680
      %5682 = vrot.lane.b32.xlu0 %v3268, 2
      %v5683 = vpop.permute.xlu0 %5682
      %5684 = vrot.lane.b32.xlu0 %v3273, 2
      %v5685 = vpop.permute.xlu0 %5684
      %5686 = vrot.lane.b32.xlu0 %v3278, 2
      %v5687 = vpop.permute.xlu0 %5686
      %5688 = vrot.lane.b32.xlu0 %v3283, 2
      %v5689 = vpop.permute.xlu0 %5688
      %5690 = vrot.lane.b32.xlu0 %v3288, 2
      %v5691 = vpop.permute.xlu0 %5690
      %5692 = vrot.lane.b32.xlu0 %v3293, 2
      %v5693 = vpop.permute.xlu0 %5692
      %5694 = vrot.lane.b32.xlu0 %v3298, 2
      %v5695 = vpop.permute.xlu0 %5694
      %5696 = vrot.lane.b32.xlu0 %v3303, 2
      %v5697 = vpop.permute.xlu0 %5696
      %5698 = vrot.lane.b32.xlu0 %v3308, 2
      %v5699 = vpop.permute.xlu0 %5698
      %5700 = vrot.lane.b32.xlu0 %v3313, 2
      %v5701 = vpop.permute.xlu0 %5700
      %5702 = vrot.lane.b32.xlu0 %v3318, 2
      %v5703 = vpop.permute.xlu0 %5702
      %5704 = vrot.lane.b32.xlu0 %v3323, 2
      %v5705 = vpop.permute.xlu0 %5704
      %5706 = vrot.lane.b32.xlu0 %v3328, 2
      %v5707 = vpop.permute.xlu0 %5706
      %5708 = vrot.lane.b32.xlu0 %v3333, 2
      %v5709 = vpop.permute.xlu0 %5708
      %5710 = vrot.lane.b32.xlu0 %v3338, 2
      %v5711 = vpop.permute.xlu0 %5710
      %5712 = vrot.lane.b32.xlu0 %v3343, 2
      %v5713 = vpop.permute.xlu0 %5712
      %5714 = vrot.lane.b32.xlu0 %v3348, 2
      %v5715 = vpop.permute.xlu0 %5714
      %5716 = vrot.lane.b32.xlu0 %v3353, 2
      %v5717 = vpop.permute.xlu0 %5716
      %5718 = vrot.lane.b32.xlu0 %v3358, 2
      %v5719 = vpop.permute.xlu0 %5718
      %5720 = vrot.lane.b32.xlu0 %v3363, 2
      %v5721 = vpop.permute.xlu0 %5720
      %5722 = vrot.lane.b32.xlu0 %v3368, 2
      %v5723 = vpop.permute.xlu0 %5722
      %5724 = vrot.lane.b32.xlu0 %v3373, 2
      %v5725 = vpop.permute.xlu0 %5724
      %5726 = vrot.lane.b32.xlu0 %v3378, 2
      %v5727 = vpop.permute.xlu0 %5726
      %5728 = vrot.lane.b32.xlu0 %v3383, 2
      %v5729 = vpop.permute.xlu0 %5728
      %5730 = vrot.lane.b32.xlu0 %v3388, 2
      %v5731 = vpop.permute.xlu0 %5730
      %5732 = vrot.lane.b32.xlu0 %v3393, 2
      %v5733 = vpop.permute.xlu0 %5732
      %5798 = vrot.lane.b32.xlu0 %v4584, 4
      %v5799 = vpop.permute.xlu0 %5798
      %5800 = vrot.lane.b32.xlu0 %v4589, 4
      %v5801 = vpop.permute.xlu0 %5800
      %5802 = vrot.lane.b32.xlu0 %v4594, 4
      %v5803 = vpop.permute.xlu0 %5802
      %5804 = vrot.lane.b32.xlu0 %v4599, 4
      %v5805 = vpop.permute.xlu0 %5804
      %5806 = vrot.lane.b32.xlu0 %v4604, 4
      %v5807 = vpop.permute.xlu0 %5806
      %5808 = vrot.lane.b32.xlu0 %v4609, 4
      %v5809 = vpop.permute.xlu0 %5808
      %5810 = vrot.lane.b32.xlu0 %v4614, 4
      %v5811 = vpop.permute.xlu0 %5810
      %5812 = vrot.lane.b32.xlu0 %v4619, 4
      %v5813 = vpop.permute.xlu0 %5812
      %5814 = vrot.lane.b32.xlu0 %v4624, 4
      %v5815 = vpop.permute.xlu0 %5814
      %5816 = vrot.lane.b32.xlu0 %v4629, 4
      %v5817 = vpop.permute.xlu0 %5816
      %5818 = vrot.lane.b32.xlu0 %v4634, 4
      %v5819 = vpop.permute.xlu0 %5818
      %5820 = vrot.lane.b32.xlu0 %v4639, 4
      %v5821 = vpop.permute.xlu0 %5820
      %5822 = vrot.lane.b32.xlu0 %v4644, 4
      %v5823 = vpop.permute.xlu0 %5822
      %5824 = vrot.lane.b32.xlu0 %v4649, 4
      %v5825 = vpop.permute.xlu0 %5824
      %5826 = vrot.lane.b32.xlu0 %v4654, 4
      %v5827 = vpop.permute.xlu0 %5826
      %5828 = vrot.lane.b32.xlu0 %v4659, 4
      %v5829 = vpop.permute.xlu0 %5828
      %5830 = vrot.lane.b32.xlu0 %v4664, 4
      %v5831 = vpop.permute.xlu0 %5830
      %5832 = vrot.lane.b32.xlu0 %v4669, 4
      %v5833 = vpop.permute.xlu0 %5832
      %5834 = vrot.lane.b32.xlu0 %v4674, 4
      %v5835 = vpop.permute.xlu0 %5834
      %5836 = vrot.lane.b32.xlu0 %v4679, 4
      %v5837 = vpop.permute.xlu0 %5836
      %5838 = vrot.lane.b32.xlu0 %v4684, 4
      %v5839 = vpop.permute.xlu0 %5838
      %5840 = vrot.lane.b32.xlu0 %v4689, 4
      %v5841 = vpop.permute.xlu0 %5840
      %5842 = vrot.lane.b32.xlu0 %v4694, 4
      %v5843 = vpop.permute.xlu0 %5842
      %5844 = vrot.lane.b32.xlu0 %v4699, 4
      %v5845 = vpop.permute.xlu0 %5844
      %5846 = vrot.lane.b32.xlu0 %v4704, 4
      %v5847 = vpop.permute.xlu0 %5846
      %5848 = vrot.lane.b32.xlu0 %v4709, 4
      %v5849 = vpop.permute.xlu0 %5848
      %5850 = vrot.lane.b32.xlu0 %v4714, 4
      %v5851 = vpop.permute.xlu0 %5850
      %5852 = vrot.lane.b32.xlu0 %v4719, 4
      %v5853 = vpop.permute.xlu0 %5852
      %5854 = vrot.lane.b32.xlu0 %v4724, 4
      %v5855 = vpop.permute.xlu0 %5854
      %5856 = vrot.lane.b32.xlu0 %v4729, 4
      %v5857 = vpop.permute.xlu0 %5856
      %5858 = vrot.lane.b32.xlu0 %v4734, 4
      %v5859 = vpop.permute.xlu0 %5858
      %5860 = vrot.lane.b32.xlu0 %v4739, 4
      %v5861 = vpop.permute.xlu0 %5860
      %5926 = vrot.lane.b32.xlu0 %v5480, 6
      %v5927 = vpop.permute.xlu0 %5926
      %5928 = vrot.lane.b32.xlu0 %v5485, 6
      %v5929 = vpop.permute.xlu0 %5928
      %5930 = vrot.lane.b32.xlu0 %v5490, 6
      %v5931 = vpop.permute.xlu0 %5930
      %5932 = vrot.lane.b32.xlu0 %v5495, 6
      %v5933 = vpop.permute.xlu0 %5932
      %5934 = vrot.lane.b32.xlu0 %v5500, 6
      %v5935 = vpop.permute.xlu0 %5934
      %5936 = vrot.lane.b32.xlu0 %v5505, 6
      %v5937 = vpop.permute.xlu0 %5936
      %5938 = vrot.lane.b32.xlu0 %v5510, 6
      %v5939 = vpop.permute.xlu0 %5938
      %5940 = vrot.lane.b32.xlu0 %v5515, 6
      %v5941 = vpop.permute.xlu0 %5940
      %5942 = vrot.lane.b32.xlu0 %v5520, 6
      %v5943 = vpop.permute.xlu0 %5942
      %5944 = vrot.lane.b32.xlu0 %v5525, 6
      %v5945 = vpop.permute.xlu0 %5944
      %5946 = vrot.lane.b32.xlu0 %v5530, 6
      %v5947 = vpop.permute.xlu0 %5946
      %5948 = vrot.lane.b32.xlu0 %v5535, 6
      %v5949 = vpop.permute.xlu0 %5948
      %5950 = vrot.lane.b32.xlu0 %v5540, 6
      %v5951 = vpop.permute.xlu0 %5950
      %5952 = vrot.lane.b32.xlu0 %v5545, 6
      %v5953 = vpop.permute.xlu0 %5952
      %5954 = vrot.lane.b32.xlu0 %v5550, 6
      %v5955 = vpop.permute.xlu0 %5954
      %5956 = vrot.lane.b32.xlu0 %v5555, 6
      %v5957 = vpop.permute.xlu0 %5956
      %5958 = vrot.lane.b32.xlu0 %v5560, 6
      %v5959 = vpop.permute.xlu0 %5958
      %5960 = vrot.lane.b32.xlu0 %v5565, 6
      %v5961 = vpop.permute.xlu0 %5960
      %5962 = vrot.lane.b32.xlu0 %v5570, 6
      %v5963 = vpop.permute.xlu0 %5962
      %5964 = vrot.lane.b32.xlu0 %v5575, 6
      %v5965 = vpop.permute.xlu0 %5964
      %5966 = vrot.lane.b32.xlu0 %v5580, 6
      %v5967 = vpop.permute.xlu0 %5966
      %5968 = vrot.lane.b32.xlu0 %v5585, 6
      %v5969 = vpop.permute.xlu0 %5968
      %5970 = vrot.lane.b32.xlu0 %v5590, 6
      %v5971 = vpop.permute.xlu0 %5970
      %5972 = vrot.lane.b32.xlu0 %v5595, 6
      %v5973 = vpop.permute.xlu0 %5972
      %5974 = vrot.lane.b32.xlu0 %v5600, 6
      %v5975 = vpop.permute.xlu0 %5974
      %5976 = vrot.lane.b32.xlu0 %v5605, 6
      %v5977 = vpop.permute.xlu0 %5976
      %5978 = vrot.lane.b32.xlu0 %v5610, 6
      %v5979 = vpop.permute.xlu0 %5978
      %5980 = vrot.lane.b32.xlu0 %v5615, 6
      %v5981 = vpop.permute.xlu0 %5980
      %5982 = vrot.lane.b32.xlu0 %v5620, 6
      %v5983 = vpop.permute.xlu0 %5982
      %5984 = vrot.lane.b32.xlu0 %v5625, 6
      %v5985 = vpop.permute.xlu0 %5984
      %5986 = vrot.lane.b32.xlu0 %v5630, 6
      %v5987 = vpop.permute.xlu0 %5986
      %5988 = vrot.lane.b32.xlu0 %v5635, 6
      %v5989 = vpop.permute.xlu0 %5988
      %v6022 = vsel %vm1454, %v1889, %v5671
      %v6023 = vsel %vm1454, %v1894, %v5673
      %v6024 = vsel %vm1454, %v1899, %v5675
      %v6025 = vsel %vm1454, %v1904, %v5677
      %v6026 = vsel %vm1454, %v1909, %v5679
      %v6027 = vsel %vm1454, %v1914, %v5681
      %v6028 = vsel %vm1454, %v1919, %v5683
      %v6029 = vsel %vm1454, %v1924, %v5685
      %v6030 = vsel %vm1454, %v1929, %v5687
      %v6031 = vsel %vm1454, %v1934, %v5689
      %v6032 = vsel %vm1454, %v1939, %v5691
      %v6033 = vsel %vm1454, %v1944, %v5693
      %v6034 = vsel %vm1454, %v1949, %v5695
      %v6035 = vsel %vm1454, %v1954, %v5697
      %v6036 = vsel %vm1454, %v1959, %v5699
      %v6037 = vsel %vm1454, %v1964, %v5701
      %v6038 = vsel %vm1454, %v1969, %v5703
      %v6039 = vsel %vm1454, %v1974, %v5705
      %v6040 = vsel %vm1454, %v1979, %v5707
      %v6041 = vsel %vm1454, %v1984, %v5709
      %v6042 = vsel %vm1454, %v1989, %v5711
      %v6043 = vsel %vm1454, %v1994, %v5713
      %v6044 = vsel %vm1454, %v1999, %v5715
      %v6045 = vsel %vm1454, %v2004, %v5717
      %v6046 = vsel %vm1454, %v2009, %v5719
      %v6047 = vsel %vm1454, %v2014, %v5721
      %v6048 = vsel %vm1454, %v2019, %v5723
      %v6049 = vsel %vm1454, %v2024, %v5725
      %v6050 = vsel %vm1454, %v2029, %v5727
      %v6051 = vsel %vm1454, %v2034, %v5729
      %v6052 = vsel %vm1454, %v2039, %v5731
      %v6053 = vsel %vm1454, %v2044, %v5733
      %v6054 = vsel %vm1487, %v6022, %v5799
      %v6055 = vsel %vm1487, %v6023, %v5801
      %v6056 = vsel %vm1487, %v6024, %v5803
      %v6057 = vsel %vm1487, %v6025, %v5805
      %v6058 = vsel %vm1487, %v6026, %v5807
      %v6059 = vsel %vm1487, %v6027, %v5809
      %v6060 = vsel %vm1487, %v6028, %v5811
      %v6061 = vsel %vm1487, %v6029, %v5813
      %v6062 = vsel %vm1487, %v6030, %v5815
      %v6063 = vsel %vm1487, %v6031, %v5817
      %v6064 = vsel %vm1487, %v6032, %v5819
      %v6065 = vsel %vm1487, %v6033, %v5821
      %v6066 = vsel %vm1487, %v6034, %v5823
      %v6067 = vsel %vm1487, %v6035, %v5825
      %v6068 = vsel %vm1487, %v6036, %v5827
      %v6069 = vsel %vm1487, %v6037, %v5829
      %v6070 = vsel %vm1487, %v6038, %v5831
      %v6071 = vsel %vm1487, %v6039, %v5833
      %v6072 = vsel %vm1487, %v6040, %v5835
      %v6073 = vsel %vm1487, %v6041, %v5837
      %v6074 = vsel %vm1487, %v6042, %v5839
      %v6075 = vsel %vm1487, %v6043, %v5841
      %v6076 = vsel %vm1487, %v6044, %v5843
      %v6077 = vsel %vm1487, %v6045, %v5845
      %v6078 = vsel %vm1487, %v6046, %v5847
      %v6079 = vsel %vm1487, %v6047, %v5849
      %v6080 = vsel %vm1487, %v6048, %v5851
      %v6081 = vsel %vm1487, %v6049, %v5853
      %v6082 = vsel %vm1487, %v6050, %v5855
      %v6083 = vsel %vm1487, %v6051, %v5857
      %v6084 = vsel %vm1487, %v6052, %v5859
      %v6085 = vsel %vm1487, %v6053, %v5861
      %v6086 = vsel %vm1520, %v6054, %v5927
      %v6087 = vsel %vm1520, %v6055, %v5929
      %v6088 = vsel %vm1520, %v6056, %v5931
      %v6089 = vsel %vm1520, %v6057, %v5933
      %v6090 = vsel %vm1520, %v6058, %v5935
      %v6091 = vsel %vm1520, %v6059, %v5937
      %v6092 = vsel %vm1520, %v6060, %v5939
      %v6093 = vsel %vm1520, %v6061, %v5941
      %v6094 = vsel %vm1520, %v6062, %v5943
      %v6095 = vsel %vm1520, %v6063, %v5945
      %v6096 = vsel %vm1520, %v6064, %v5947
      %v6097 = vsel %vm1520, %v6065, %v5949
      %v6098 = vsel %vm1520, %v6066, %v5951
      %v6099 = vsel %vm1520, %v6067, %v5953
      %v6100 = vsel %vm1520, %v6068, %v5955
      %v6101 = vsel %vm1520, %v6069, %v5957
      %v6102 = vsel %vm1520, %v6070, %v5959
      %v6103 = vsel %vm1520, %v6071, %v5961
      %v6104 = vsel %vm1520, %v6072, %v5963
      %v6105 = vsel %vm1520, %v6073, %v5965
      %v6106 = vsel %vm1520, %v6074, %v5967
      %v6107 = vsel %vm1520, %v6075, %v5969
      %v6108 = vsel %vm1520, %v6076, %v5971
      %v6109 = vsel %vm1520, %v6077, %v5973
      %v6110 = vsel %vm1520, %v6078, %v5975
      %v6111 = vsel %vm1520, %v6079, %v5977
      %v6112 = vsel %vm1520, %v6080, %v5979
      %v6113 = vsel %vm1520, %v6081, %v5981
      %v6114 = vsel %vm1520, %v6082, %v5983
      %v6115 = vsel %vm1520, %v6083, %v5985
      %v6116 = vsel %vm1520, %v6084, %v5987
      %v6117 = vsel %vm1520, %v6085, %v5989
      %6118 = vst.msk [vmem:[%s231] sm:$0xff] %vm1553, %v6086
      %6119 = vst.msk [vmem:[%s231 + $0x8] sm:$0xff] %vm1553, %v6087
      %6120 = vst.msk [vmem:[%s231 + $0x10] sm:$0xff] %vm1553, %v6088
      %6121 = vst.msk [vmem:[%s231 + $0x18] sm:$0xff] %vm1553, %v6089
      %6122 = vst.msk [vmem:[%s231 + $0x20] sm:$0xff] %vm1553, %v6090
      %6123 = vst.msk [vmem:[%s231 + $0x28] sm:$0xff] %vm1553, %v6091
      %6124 = vst.msk [vmem:[%s231 + $0x30] sm:$0xff] %vm1553, %v6092
      %6125 = vst.msk [vmem:[%s231 + $0x38] sm:$0xff] %vm1553, %v6093
      %6126 = vst.msk [vmem:[%s231 + $0x40] sm:$0xff] %vm1553, %v6094
      %6127 = vst.msk [vmem:[%s231 + $0x48] sm:$0xff] %vm1553, %v6095
      %6128 = vst.msk [vmem:[%s231 + $0x50] sm:$0xff] %vm1553, %v6096
      %6129 = vst.msk [vmem:[%s231 + $0x58] sm:$0xff] %vm1553, %v6097
      %6130 = vst.msk [vmem:[%s231 + $0x60] sm:$0xff] %vm1553, %v6098
      %6131 = vst.msk [vmem:[%s231 + $0x68] sm:$0xff] %vm1553, %v6099
      %6132 = vst.msk [vmem:[%s231 + $0x70] sm:$0xff] %vm1553, %v6100
      %6133 = vst.msk [vmem:[%s231 + $0x78] sm:$0xff] %vm1553, %v6101
      %6134 = vst.msk [vmem:[%s231 + $0x80] sm:$0xff] %vm1553, %v6102
      %6135 = vst.msk [vmem:[%s231 + $0x88] sm:$0xff] %vm1553, %v6103
      %6136 = vst.msk [vmem:[%s231 + $0x90] sm:$0xff] %vm1553, %v6104
      %6137 = vst.msk [vmem:[%s231 + $0x98] sm:$0xff] %vm1553, %v6105
      %6138 = vst.msk [vmem:[%s231 + $0xa0] sm:$0xff] %vm1553, %v6106
      %6139 = vst.msk [vmem:[%s231 + $0xa8] sm:$0xff] %vm1553, %v6107
      %6140 = vst.msk [vmem:[%s231 + $0xb0] sm:$0xff] %vm1553, %v6108
      %6141 = vst.msk [vmem:[%s231 + $0xb8] sm:$0xff] %vm1553, %v6109
      %6142 = vst.msk [vmem:[%s231 + $0xc0] sm:$0xff] %vm1553, %v6110
      %6143 = vst.msk [vmem:[%s231 + $0xc8] sm:$0xff] %vm1553, %v6111
      %6144 = vst.msk [vmem:[%s231 + $0xd0] sm:$0xff] %vm1553, %v6112
      %6145 = vst.msk [vmem:[%s231 + $0xd8] sm:$0xff] %vm1553, %v6113
      %6146 = vst.msk [vmem:[%s231 + $0xe0] sm:$0xff] %vm1553, %v6114
      %6147 = vst.msk [vmem:[%s231 + $0xe8] sm:$0xff] %vm1553, %v6115
      %6148 = vst.msk [vmem:[%s231 + $0xf0] sm:$0xff] %vm1553, %v6116
      %6149 = vst.msk [vmem:[%s231 + $0xf8] sm:$0xff] %vm1553, %v6117
      %v6150 = vsel %vm1553, %v6086, 0.0
      %v6151 = vsel %vm1553, %v6087, 0.0
      %v6152 = vadd.f32 %v6150, %v6151
      %v6153 = vsel %vm1553, %v6088, 0.0
      %v6154 = vadd.f32 %v6152, %v6153
      %v6155 = vsel %vm1553, %v6089, 0.0
      %v6156 = vadd.f32 %v6154, %v6155
      %v6157 = vsel %vm1553, %v6090, 0.0
      %v6158 = vadd.f32 %v6156, %v6157
      %v6159 = vsel %vm1553, %v6091, 0.0
      %v6160 = vadd.f32 %v6158, %v6159
      %v6161 = vsel %vm1553, %v6092, 0.0
      %v6162 = vadd.f32 %v6160, %v6161
      %v6163 = vsel %vm1553, %v6093, 0.0
      %v6164 = vadd.f32 %v6162, %v6163
      %v6165 = vsel %vm1553, %v6094, 0.0
      %v6166 = vadd.f32 %v6164, %v6165
      %v6167 = vsel %vm1553, %v6095, 0.0
      %v6168 = vadd.f32 %v6166, %v6167
      %v6169 = vsel %vm1553, %v6096, 0.0
      %v6170 = vadd.f32 %v6168, %v6169
      %v6171 = vsel %vm1553, %v6097, 0.0
      %v6172 = vadd.f32 %v6170, %v6171
      %v6173 = vsel %vm1553, %v6098, 0.0
      %v6174 = vadd.f32 %v6172, %v6173
      %v6175 = vsel %vm1553, %v6099, 0.0
      %v6176 = vadd.f32 %v6174, %v6175
      %v6177 = vsel %vm1553, %v6100, 0.0
      %v6178 = vadd.f32 %v6176, %v6177
      %v6179 = vsel %vm1553, %v6101, 0.0
      %v6180 = vadd.f32 %v6178, %v6179
      %v6181 = vsel %vm1553, %v6102, 0.0
      %v6182 = vadd.f32 %v6180, %v6181
      %v6183 = vsel %vm1553, %v6103, 0.0
      %v6184 = vadd.f32 %v6182, %v6183
      %v6185 = vsel %vm1553, %v6104, 0.0
      %v6186 = vadd.f32 %v6184, %v6185
      %v6187 = vsel %vm1553, %v6105, 0.0
      %v6188 = vadd.f32 %v6186, %v6187
      %v6189 = vsel %vm1553, %v6106, 0.0
      %v6190 = vadd.f32 %v6188, %v6189
      %v6191 = vsel %vm1553, %v6107, 0.0
      %v6192 = vadd.f32 %v6190, %v6191
      %v6193 = vsel %vm1553, %v6108, 0.0
      %v6194 = vadd.f32 %v6192, %v6193
      %v6195 = vsel %vm1553, %v6109, 0.0
      %v6196 = vadd.f32 %v6194, %v6195
      %v6197 = vsel %vm1553, %v6110, 0.0
      %v6198 = vadd.f32 %v6196, %v6197
      %v6199 = vsel %vm1553, %v6111, 0.0
      %v6200 = vadd.f32 %v6198, %v6199
      %v6201 = vsel %vm1553, %v6112, 0.0
      %v6202 = vadd.f32 %v6200, %v6201
      %v6203 = vsel %vm1553, %v6113, 0.0
      %v6204 = vadd.f32 %v6202, %v6203
      %v6205 = vsel %vm1553, %v6114, 0.0
      %v6206 = vadd.f32 %v6204, %v6205
      %v6207 = vsel %vm1553, %v6115, 0.0
      %v6208 = vadd.f32 %v6206, %v6207
      %v6209 = vsel %vm1553, %v6116, 0.0
      %v6210 = vadd.f32 %v6208, %v6209
      %v6211 = vsel %vm1553, %v6117, 0.0
      %v6212 = vadd.f32 %v6210, %v6211
      %v6213 = vrot.slane %v6212, 4
      %v6214 = vadd.f32 %v6212, %v6213
      %v6215 = vrot.slane %v6214, 2
      %v6216 = vadd.f32 %v6214, %v6215
      %v6217 = vrot.slane %v6216, 1
      %v6218 = vadd.f32 %v6216, %v6217
      %vm6219 = vcmask 57344
      %6220 = vst.msk [vmem:[%s235] sm:$0x1] %vm6219, %v6218
      %v6221 = vmul.f32 %v6086, %v6086
      %v6222 = vmul.f32 %v6087, %v6087
      %v6223 = vmul.f32 %v6088, %v6088
      %v6224 = vmul.f32 %v6089, %v6089
      %v6225 = vmul.f32 %v6090, %v6090
      %v6226 = vmul.f32 %v6091, %v6091
      %v6227 = vmul.f32 %v6092, %v6092
      %v6228 = vmul.f32 %v6093, %v6093
      %v6229 = vmul.f32 %v6094, %v6094
      %v6230 = vmul.f32 %v6095, %v6095
      %v6231 = vmul.f32 %v6096, %v6096
      %v6232 = vmul.f32 %v6097, %v6097
      %v6233 = vmul.f32 %v6098, %v6098
      %v6234 = vmul.f32 %v6099, %v6099
      %v6235 = vmul.f32 %v6100, %v6100
      %v6236 = vmul.f32 %v6101, %v6101
      %v6237 = vmul.f32 %v6102, %v6102
      %v6238 = vmul.f32 %v6103, %v6103
      %v6239 = vmul.f32 %v6104, %v6104
      %v6240 = vmul.f32 %v6105, %v6105
      %v6241 = vmul.f32 %v6106, %v6106
      %v6242 = vmul.f32 %v6107, %v6107
      %v6243 = vmul.f32 %v6108, %v6108
      %v6244 = vmul.f32 %v6109, %v6109
      %v6245 = vmul.f32 %v6110, %v6110
      %v6246 = vmul.f32 %v6111, %v6111
      %v6247 = vmul.f32 %v6112, %v6112
      %v6248 = vmul.f32 %v6113, %v6113
      %v6249 = vmul.f32 %v6114, %v6114
      %v6250 = vmul.f32 %v6115, %v6115
      %v6251 = vmul.f32 %v6116, %v6116
      %v6252 = vmul.f32 %v6117, %v6117
      %v6253 = vsel %vm1553, %v6221, 0.0
      %v6254 = vsel %vm1553, %v6222, 0.0
      %v6255 = vadd.f32 %v6253, %v6254
      %v6256 = vsel %vm1553, %v6223, 0.0
      %v6257 = vadd.f32 %v6255, %v6256
      %v6258 = vsel %vm1553, %v6224, 0.0
      %v6259 = vadd.f32 %v6257, %v6258
      %v6260 = vsel %vm1553, %v6225, 0.0
      %v6261 = vadd.f32 %v6259, %v6260
      %v6262 = vsel %vm1553, %v6226, 0.0
      %v6263 = vadd.f32 %v6261, %v6262
      %v6264 = vsel %vm1553, %v6227, 0.0
      %v6265 = vadd.f32 %v6263, %v6264
      %v6266 = vsel %vm1553, %v6228, 0.0
      %v6267 = vadd.f32 %v6265, %v6266
      %v6268 = vsel %vm1553, %v6229, 0.0
      %v6269 = vadd.f32 %v6267, %v6268
      %v6270 = vsel %vm1553, %v6230, 0.0
      %v6271 = vadd.f32 %v6269, %v6270
      %v6272 = vsel %vm1553, %v6231, 0.0
      %v6273 = vadd.f32 %v6271, %v6272
      %v6274 = vsel %vm1553, %v6232, 0.0
      %v6275 = vadd.f32 %v6273, %v6274
      %v6276 = vsel %vm1553, %v6233, 0.0
      %v6277 = vadd.f32 %v6275, %v6276
      %v6278 = vsel %vm1553, %v6234, 0.0
      %v6279 = vadd.f32 %v6277, %v6278
      %v6280 = vsel %vm1553, %v6235, 0.0
      %v6281 = vadd.f32 %v6279, %v6280
      %v6282 = vsel %vm1553, %v6236, 0.0
      %v6283 = vadd.f32 %v6281, %v6282
      %v6284 = vsel %vm1553, %v6237, 0.0
      %v6285 = vadd.f32 %v6283, %v6284
      %v6286 = vsel %vm1553, %v6238, 0.0
      %v6287 = vadd.f32 %v6285, %v6286
      %v6288 = vsel %vm1553, %v6239, 0.0
      %v6289 = vadd.f32 %v6287, %v6288
      %v6290 = vsel %vm1553, %v6240, 0.0
      %v6291 = vadd.f32 %v6289, %v6290
      %v6292 = vsel %vm1553, %v6241, 0.0
      %v6293 = vadd.f32 %v6291, %v6292
      %v6294 = vsel %vm1553, %v6242, 0.0
      %v6295 = vadd.f32 %v6293, %v6294
      %v6296 = vsel %vm1553, %v6243, 0.0
      %v6297 = vadd.f32 %v6295, %v6296
      %v6298 = vsel %vm1553, %v6244, 0.0
      %v6299 = vadd.f32 %v6297, %v6298
      %v6300 = vsel %vm1553, %v6245, 0.0
      %v6301 = vadd.f32 %v6299, %v6300
      %v6302 = vsel %vm1553, %v6246, 0.0
      %v6303 = vadd.f32 %v6301, %v6302
      %v6304 = vsel %vm1553, %v6247, 0.0
      %v6305 = vadd.f32 %v6303, %v6304
      %v6306 = vsel %vm1553, %v6248, 0.0
      %v6307 = vadd.f32 %v6305, %v6306
      %v6308 = vsel %vm1553, %v6249, 0.0
      %v6309 = vadd.f32 %v6307, %v6308
      %v6310 = vsel %vm1553, %v6250, 0.0
      %v6311 = vadd.f32 %v6309, %v6310
      %v6312 = vsel %vm1553, %v6251, 0.0
      %v6313 = vadd.f32 %v6311, %v6312
      %v6314 = vsel %vm1553, %v6252, 0.0
      %v6315 = vadd.f32 %v6313, %v6314
      %v6316 = vrot.slane %v6315, 4
      %v6317 = vadd.f32 %v6315, %v6316
      %v6318 = vrot.slane %v6317, 2
      %v6319 = vadd.f32 %v6317, %v6318
      %v6320 = vrot.slane %v6319, 1
      %v6321 = vadd.f32 %v6319, %v6320
      %6322 = vst.msk [vmem:[%s235 + $0x1] sm:$0x1] %vm6219, %v6321
      %p6323 = scmp.lt.s32.totalorder %s17, 3
      %s6324 = scalar_select %p6323, %s17, 3
      %s6325 = smul.addr %s6324, 32
      %s6326 = smul.addr %s6325, 8
      %s6327 = scalar_lea.vmem %s4, %s6326
      %p6328 = scmp.lt.s32.totalorder %s17, 3
      %s6329 = scalar_select %p6328, %s17, 3
      %s6330 = smul.addr %s6329, 2
      %s6331 = scalar_lea.vmem %s5, %s6330
      // Predicated region
      $region37: #{_forward_impl.5} parent=35 // pred_check
        %p6332 = pneg %p124
      $region38: #{_forward_impl.5} parent=35 // pred_check_branch
        %6334 = sbr.rel (%p6332) target = $region40
      $region39: #{_forward_impl.5} parent=35 // pred_region
        _
      $region40: #{_forward_impl.5} parent=35 // pred_fallthru
        _
      // Predicated region
      $region41: #{_forward_impl.5} parent=35 // pred_check
        %p6335 = pneg %p150
      $region42: #{_forward_impl.5} parent=35 // pred_check_branch
        %6337 = sbr.rel (%p6335) target = $region44
      $region43: #{_forward_impl.5} parent=35 // pred_region
        _
      $region44: #{_forward_impl.5} parent=35 // pred_fallthru
        _
    $region36: #{_forward_impl.5} parent=5 // pred_fallthru
      _
    %p6338 = scmp.le.s32.totalorder 2, %s12
    // Predicated region
    $region45: #{_forward_impl.5} parent=5 // pred_check
      %p6339 = pneg %p6338
    $region46: #{_forward_impl.5} parent=5 // pred_check_branch
      %6341 = sbr.rel (%p6339) target = $region48
    $region47: #{_forward_impl.5} parent=5 // pred_region
      %s6342 = ssub.s32 %s12, 2
      // Predicated region
      $region49: #{_forward_impl.5} parent=47 // pred_check
        %p6343 = pneg %p130
      $region50: #{_forward_impl.5} parent=47 // pred_check_branch
        %6345 = sbr.rel (%p6343) target = $region52
      $region51: #{_forward_impl.5} parent=47 // pred_region
        %p6346 = scmp.lt.s32.totalorder %s18, 3
        %s6347 = scalar_select %p6346, %s18, 3
        %s6348 = smul.addr %s6347, 32
        %s6349 = smul.addr %s6348, 8
        %s6350 = scalar_lea.vmem %s4, %s6349
      $region52: #{_forward_impl.5} parent=47 // pred_fallthru
        _
      // Predicated region
      $region53: #{_forward_impl.5} parent=47 // pred_check
        %p6351 = pneg %p156
      $region54: #{_forward_impl.5} parent=47 // pred_check_branch
        %6353 = sbr.rel (%p6351) target = $region56
      $region55: #{_forward_impl.5} parent=47 // pred_region
        %p6354 = scmp.lt.s32.totalorder %s18, 3
        %s6355 = scalar_select %p6354, %s18, 3
        %s6356 = smul.addr %s6355, 2
        %s6357 = scalar_lea.vmem %s5, %s6356
      $region56: #{_forward_impl.5} parent=47 // pred_fallthru
        _
    $region48: #{_forward_impl.5} parent=5 // pred_fallthru
      _
  $region6: #{_forward_impl.5} parent=0 // loop_footer
    %s16 = sadd.s32 1, %s12
  $region7: #{_forward_impl.5} parent=0 // loop_footer_branch
    %11 = sbr.rel target = $region3
  $region8: #{_forward_impl.5} parent=0 // loop_exit
    _

</llo_original>
